<compile_context>
chip_gen: v6e
topology: v6e:2x2x1
jax: 0.10.0
libtpu: 0.0.40
codegen_flags: <defaults>
</compile_context>

<pallas_src>
import functools

import numpy as np
import jax
import jax.numpy as jnp
from jax import lax
from jax.experimental import pallas as pl
from jax.experimental.pallas import tpu as pltpu

# ----------------------------- configuration --------------------------------
DIM = 3
N_POINTS = 64          # opt.num_point
N_KEYPOINTS = 8        # opt.n_keypoints
BOTTLENECK = 32        # opt.bottleneck_size
CAGE_SIZE = 1.4        # opt.cage_size
N_INFLUENCE_RATIO = 1.0
CAGE_DIST = 0.4
CAGE_ITERS = 100
CAGE_STEP = 0.01
CAGE_UNROLL = 4
LRELU_SLOPE = 0.2

_PARALLEL_1D = pltpu.CompilerParams(dimension_semantics=("parallel",))


# ------------------------------ small helpers -------------------------------
def _lrelu(v):
    return jnp.where(v >= 0.0, v, LRELU_SLOPE * v)


def _asin01(x):
    # float32 arcsin for x in [0, 1] (Cephes-style minimax polynomial); used
    # because inverse-trig has no direct Mosaic lowering.  Accuracy ~1e-7.
    big = x > 0.5
    z = jnp.where(big, 0.5 * (1.0 - x), x * x)
    t = jnp.where(big, jnp.sqrt(jnp.maximum(0.5 * (1.0 - x), 0.0)), x)
    p = ((((4.2163199048e-2 * z + 2.4181311049e-2) * z + 4.5470025998e-2) * z
          + 7.4953002686e-2) * z + 1.6666752422e-1) * z * t + t
    return jnp.where(big, jnp.pi / 2.0 - 2.0 * p, p)


# ----------- kernel 1: fused keypoint head + influence head + FPS ------------
def _encoder_heads_kernel(xk_ref, xi_ref,
                          kw1, kb1, kw2, kb2, kw3, kb3, kw4, kb4, kw5, kb5,
                          kw6, kb6,
                          iw1, ib1, iw2, ib2, iw3, ib3, iw4, ib4, iw5, ib5,
                          iw6, ib6,
                          kp_ref, inf_ref, fps_ref,
                          *, n_kp_b, n_inf_b, n_pts, n_fps):
    f32 = jnp.float32

    def _mlp_head(x, w1, b1, w2, b2, w3, b3, w4, b4, w5, b5, w6, b6, nb):
        # shared per-point MLP -> per-batch max pool -> decoder MLP
        h = _lrelu(jnp.dot(x, w1[...], preferred_element_type=f32) + b1[...])
        h = _lrelu(jnp.dot(h, w2[...], preferred_element_type=f32) + b2[...])
        h = _lrelu(jnp.dot(h, w3[...], preferred_element_type=f32) + b3[...])
        rows = [jnp.max(h[b * n_pts:(b + 1) * n_pts, :], axis=0, keepdims=True)
                for b in range(nb)]
        g = rows[0] if nb == 1 else jnp.concatenate(rows, axis=0)   # (nb, feat)
        g = _lrelu(jnp.dot(g, w4[...], preferred_element_type=f32) + b4[...])
        g = _lrelu(jnp.dot(g, w5[...], preferred_element_type=f32) + b5[...])
        return jnp.dot(g, w6[...], preferred_element_type=f32) + b6[...]

    xk = xk_ref[...]                                       # (n_kp_b*N, 3)
    kp_ref[0] = _mlp_head(xk, kw1, kb1, kw2, kb2, kw3, kb3, kw4, kb4,
                          kw5, kb5, kw6, kb6, n_kp_b)
    inf_ref[0] = _mlp_head(xi_ref[...], iw1, ib1, iw2, ib2, iw3, ib3, iw4, ib4,
                           iw5, ib5, iw6, ib6, n_inf_b)

    # ---- farthest-point sampling (deterministic, start at index 0) ----------
    # Runs fully in VMEM/registers; the data-dependent "gather" of the newly
    # selected point is a masked reduce, so no dynamic loads/stores are needed.
    row_iota = lax.broadcasted_iota(jnp.int32, (n_pts, 1), 0)
    sel_rows = lax.broadcasted_iota(jnp.int32, (n_fps, 1), 0)
    for b in range(n_kp_b):
        p = xk[b * n_pts:(b + 1) * n_pts, :]               # (N, 3)

        def _fps_body(j, carry, p=p):
            min_d, lastp, sel = carry
            diff = p - lastp                               # (N, 3)
            dist = jnp.sum(diff * diff, axis=1, keepdims=True)      # (N, 1)
            min_d = jnp.minimum(min_d, dist)
            m = jnp.max(min_d, axis=0, keepdims=True)                # (1, 1)
            first = jnp.min(jnp.where(min_d >= m, row_iota, n_pts),
                            axis=0, keepdims=True)                   # (1, 1)
            pick = (row_iota == first).astype(jnp.float32)           # (N, 1)
            newp = jnp.sum(p * pick, axis=0, keepdims=True)          # (1, 3)
            sel = sel + (sel_rows == j).astype(jnp.float32) * newp   # (n_fps, 3)
            return (min_d, newp, sel)

        min_d0 = jnp.full((n_pts, 1), jnp.inf, f32)
        last0 = p[0:1, :]
        sel0 = (sel_rows == 0).astype(f32) * last0
        _, _, sel = lax.fori_loop(1, n_fps, _fps_body, (min_d0, last0, sel0))
        fps_ref[0, b] = sel                                 # (n_fps, 3)


def encoder_heads(x_flat, p_kpt, p_inf, *, n_total_b, n_src_b, n_pts, n_fps):
    """x_flat: (n_total_b*n_pts, 3).  Returns (keypoints, influence, fps_pts).

    One pallas_call for both PointNet heads + FPS.  grid=(2,) 'parallel' so a
    v7x chip uses both TensorCores; a no-op split on single-TC chips."""
    n_prog = 2 if (n_src_b % 2 == 0) else 1
    kp_b = n_total_b // n_prog
    inf_b = n_src_b // n_prog
    names = ["w1", "b1", "w2", "b2", "w3", "b3", "w4", "b4", "w5", "b5",
             "w6", "b6"]
    kw = [p_kpt[n] for n in names]
    iw = [p_inf[n] for n in names]
    kp_dim = p_kpt["w6"].shape[1]
    inf_dim = p_inf["w6"].shape[1]

    def _full(a):
        return pl.BlockSpec(a.shape, lambda i, _nd=a.ndim: (0,) * _nd)

    kernel = functools.partial(_encoder_heads_kernel, n_kp_b=kp_b,
                               n_inf_b=inf_b, n_pts=n_pts, n_fps=n_fps)
    in_specs = ([pl.BlockSpec((kp_b * n_pts, 3), lambda i: (i, 0)),
                 pl.BlockSpec((inf_b * n_pts, 3), lambda i: (i, 0))]
                + [_full(a) for a in kw] + [_full(a) for a in iw])
    out_shapes = (jax.ShapeDtypeStruct((n_prog, kp_b, kp_dim), jnp.float32),
                  jax.ShapeDtypeStruct((n_prog, inf_b, inf_dim), jnp.float32),
                  jax.ShapeDtypeStruct((n_prog, kp_b, n_fps, 3), jnp.float32))
    out_specs = (pl.BlockSpec((1, kp_b, kp_dim), lambda i: (i, 0, 0)),
                 pl.BlockSpec((1, inf_b, inf_dim), lambda i: (i, 0, 0)),
                 pl.BlockSpec((1, kp_b, n_fps, 3), lambda i: (i, 0, 0, 0)))
    kp, infl, fps = pl.pallas_call(
        kernel, out_shape=out_shapes, grid=(n_prog,),
        in_specs=in_specs, out_specs=out_specs,
        compiler_params=_PARALLEL_1D,
    )(x_flat, x_flat, *kw, *iw)
    return (kp.reshape(n_total_b, kp_dim),
            infl.reshape(n_src_b, inf_dim),
            fps.reshape(n_total_b, n_fps, 3))


# ------------- kernel 2: fused optimize_cage + influence + MVC deform --------
def _cage_fused_kernel(tmpl_ref, pts_ref, skp_ref, tkp_ref, iparam_ref, ioff_ref,
                       gat_ref, sct_ref,
                       cage_ref, newcage_ref, infl_ref, w_ref, def_ref,
                       *, n_influence, n_cage, n_faces, iters, step, dist2,
                       unroll):
    f32 = jnp.float32
    eps = 1e-8
    F = n_faces

    pts = pts_ref[0]                                        # (N, 3)
    tmpl = tmpl_ref[...]                                    # (3, C)
    px, py, pz = pts[:, 0:1], pts[:, 1:2], pts[:, 2:3]

    # ---- 1) optimize_cage, hoisted to an exact per-column scale recurrence --
    # Every update is cage *= (1 - step*upd), so cage = template * s with s a
    # per-column scalar.  ||p||^2 and 2*p.c0 are computed once; each of the 100
    # iterations is one broadcast FMA over (N, C) + a sublane min reduce.
    pnorm = jnp.sum(pts * pts, axis=1, keepdims=True)       # (N, 1)
    cross2 = 2.0 * (px * tmpl[0:1, :] + py * tmpl[1:2, :] + pz * tmpl[2:3, :])
    cnorm = jnp.sum(tmpl * tmpl, axis=0, keepdims=True)     # (1, C)

    def _scale_step(s):
        md = jnp.min(pnorm - s * cross2, axis=0, keepdims=True)     # (1, C)
        upd = ((md + s * s * cnorm) > dist2).astype(f32)
        return s * (1.0 - step * upd)

    n_outer, rem = divmod(iters, unroll)

    def _body(_, s):
        for _ in range(unroll):                             # partial unroll
            s = _scale_step(s)
        return s

    scale = lax.fori_loop(0, n_outer, _body, jnp.ones((1, n_cage), f32))
    for _ in range(rem):
        scale = _scale_step(scale)
    cage = tmpl * scale                                     # (3, C)

    # ---- 2) influence mask + new cage ---------------------------------------
    kp = skp_ref[0]                                         # (3, K)
    diff = kp[:, :, None] - cage[:, None, :]                # (3, K, C)
    dist = jnp.sum(diff * diff, axis=0)                     # (K, C)

    # n_influence-th smallest per row (== torch.topk(largest=False)[0][..., -1])
    iota = lax.broadcasted_iota(jnp.int32, dist.shape, 1)
    work = dist
    for _ in range(n_influence - 1):
        curmin = jnp.min(work, axis=1, keepdims=True)
        ismin = work == curmin
        first = jnp.min(jnp.where(ismin, iota, n_cage), axis=1, keepdims=True)
        work = jnp.where(iota == first, jnp.inf, work)
    threshold = jnp.min(work, axis=1, keepdims=True)        # (K, 1)

    keep = (dist <= threshold).astype(dist.dtype)           # (K, C)
    infl = (iparam_ref[...] + ioff_ref[0]) * keep           # (K, C)
    kp_off = tkp_ref[0] - kp                                # (3, K)
    new_cage = cage + jnp.dot(kp_off, infl, preferred_element_type=f32)

    # ---- 3) mean-value-coordinate deformation (lane-stacked over corners) ---
    # stacked gather matmul: triT[:, j*F+f] = cage[:, faces[f, j]]
    triT = jnp.dot(cage, gat_ref[...], preferred_element_type=f32)   # (3, 3F)
    dx = triT[0:1, :] - px                                  # (N, 3F)
    dy = triT[1:2, :] - py
    dz = triT[2:3, :] - pz
    # TODO(synk): "query coincides with a cage vertex" special case skipped.
    d2 = jnp.maximum(dx * dx + dy * dy + dz * dz, eps * eps)
    inv_d = lax.rsqrt(d2)                                   # 1 EUP op vs sqrt + 3 div
    ux, uy, uz = dx * inv_d, dy * inv_d, dz * inv_d
    dall = d2 * inv_d                                       # == sqrt(d2)

    def _plus(a):   # value of corner i+1 at stacked position i: [A1|A2|A0]
        return jnp.concatenate([a[:, F:], a[:, :F]], axis=1)

    def _minus(a):  # value of corner i-1 at stacked position i: [A2|A0|A1]
        return jnp.concatenate([a[:, 2 * F:], a[:, :2 * F]], axis=1)
    # TODO(synk): pltpu.roll(axis=-1) would put these rotations on the XLU, but
    # the stacked lane width (3F=60) is not a 128 multiple, so the reliably
    # lowered slice+concat rotation is used instead.

    uxp, uxm = _plus(ux), _minus(ux)
    uyp, uym = _plus(uy), _minus(uy)
    uzp, uzm = _plus(uz), _minus(uz)

    # edge chords l_i = |u_{i+1} - u_{i-1}|  (stacked)
    ex, ey, ez = uxp - uxm, uyp - uym, uzp - uzm
    l2 = ex * ex + ey * ey + ez * ez
    l = jnp.sqrt(l2)
    th = 2.0 * _asin01(jnp.clip(0.5 * l, 0.0, 1.0))
    cos_th = 1.0 - 0.5 * l2
    sin_th = l * jnp.sqrt(jnp.clip(1.0 - 0.25 * l2, 0.0, 1.0))

    # det = u_i . (u_{i+1} x u_{i-1}) is identical for all three corners of a
    # face, so it is computed directly in stacked form.
    det = (ux * (uyp * uzm - uzp * uym)
           + uy * (uzp * uxm - uxp * uzm)
           + uz * (uxp * uym - uyp * uxm))
    sgn = jnp.where(det > 0.0, 1.0, jnp.where(det < 0.0, -1.0, 0.0))

    cosp, cosm = _plus(cos_th), _minus(cos_th)
    sinp, sinm = _plus(sin_th), _minus(sin_th)
    c = jnp.clip((cos_th - cosp * cosm) / jnp.maximum(sinp * sinm, eps),
                 -1.0, 1.0)
    s_mvc = sgn * jnp.sqrt(jnp.clip(1.0 - c * c, 0.0, 1.0))
    vs = (jnp.abs(s_mvc) > eps).astype(f32)
    valid = (vs * _plus(vs) * _minus(vs)) > 0.5
    # TODO(synk): "query lies exactly on a cage triangle" barycentric branch skipped.

    num = th - _plus(c) * _minus(th) - _minus(c) * _plus(th)
    den = dall * sinp * _minus(s_mvc)
    den = jnp.where(jnp.abs(den) < eps, eps, den)
    w = jnp.where(valid, num / den, 0.0)                    # (N, 3F), stays stacked

    # stacked scatter matmul: Wv[n,c] = sum_{j,f} w[n, j*F+f] * [faces[f,j]==c]
    Wv = jnp.dot(w, sct_ref[...], preferred_element_type=f32)        # (N, C)
    sumW = jnp.sum(Wv, axis=1, keepdims=True)
    sumW = jnp.where(jnp.abs(sumW) < eps, eps, sumW)
    weights = Wv * pl.reciprocal(sumW, approx=True)          # (N, C)

    # deformed[n, d] = sum_c weights[n, c] * new_cage[d, c] (no in-kernel transpose)
    dcols = [jnp.sum(weights * new_cage[dd:dd + 1, :], axis=1, keepdims=True)
             for dd in range(3)]
    deformed = jnp.concatenate(dcols, axis=1)                # (N, 3)

    cage_ref[0] = cage
    newcage_ref[0] = new_cage
    infl_ref[0] = infl
    w_ref[0] = weights
    def_ref[0] = deformed


def cage_pipeline_pallas(template, pts, src_kp, tgt_kp, influence_param,
                         influence_offset, gather_mat, scatter_mat, n_influence):
    """Fused optimize_cage + influence + MVC deform, one grid step per batch."""
    B, N, _ = pts.shape
    C = template.shape[1]
    K = influence_param.shape[0]
    F = gather_mat.shape[1] // 3
    kernel = functools.partial(
        _cage_fused_kernel, n_influence=n_influence, n_cage=C, n_faces=F,
        iters=CAGE_ITERS, step=CAGE_STEP, dist2=CAGE_DIST * CAGE_DIST,
        unroll=CAGE_UNROLL)
    out_shapes = (jax.ShapeDtypeStruct((B, 3, C), jnp.float32),      # cage
                  jax.ShapeDtypeStruct((B, 3, C), jnp.float32),      # new_cage
                  jax.ShapeDtypeStruct((B, K, C), jnp.float32),      # influence
                  jax.ShapeDtypeStruct((B, N, C), jnp.float32),      # weights
                  jax.ShapeDtypeStruct((B, N, 3), jnp.float32))      # deformed
    in_specs = [
        pl.BlockSpec((3, C), lambda b: (0, 0)),             # template (shared)
        pl.BlockSpec((1, N, 3), lambda b: (b, 0, 0)),       # source points
        pl.BlockSpec((1, 3, K), lambda b: (b, 0, 0)),       # source keypoints
        pl.BlockSpec((1, 3, K), lambda b: (b, 0, 0)),       # target keypoints
        pl.BlockSpec((K, C), lambda b: (0, 0)),             # influence_param
        pl.BlockSpec((1, K, C), lambda b: (b, 0, 0)),       # influence_offset
        pl.BlockSpec(gather_mat.shape, lambda b: (0, 0)),   # (C, 3F) gather one-hot
        pl.BlockSpec(scatter_mat.shape, lambda b: (0, 0)),  # (3F, C) scatter one-hot
    ]
    out_specs = (
        pl.BlockSpec((1, 3, C), lambda b: (b, 0, 0)),
        pl.BlockSpec((1, 3, C), lambda b: (b, 0, 0)),
        pl.BlockSpec((1, K, C), lambda b: (b, 0, 0)),
        pl.BlockSpec((1, N, C), lambda b: (b, 0, 0)),
        pl.BlockSpec((1, N, 3), lambda b: (b, 0, 0)),
    )
    return pl.pallas_call(
        kernel, out_shape=out_shapes, grid=(B,),
        in_specs=in_specs, out_specs=out_specs,
        compiler_params=_PARALLEL_1D,
    )(template, pts, src_kp, tgt_kp, influence_param, influence_offset,
      gather_mat, scatter_mat)


# --------------------------- parameter construction --------------------------
def _icosahedron():
    t = (1.0 + 5.0 ** 0.5) / 2.0
    verts = np.array(
        [[-1, t, 0], [1, t, 0], [-1, -t, 0], [1, -t, 0],
         [0, -1, t], [0, 1, t], [0, -1, -t], [0, 1, -t],
         [t, 0, -1], [t, 0, 1], [-t, 0, -1], [-t, 0, 1]], np.float32)
    faces = np.array(
        [[0, 11, 5], [0, 5, 1], [0, 1, 7], [0, 7, 10], [0, 10, 11],
         [1, 5, 9], [5, 11, 4], [11, 10, 2], [10, 7, 6], [7, 1, 8],
         [3, 9, 4], [3, 4, 2], [3, 2, 6], [3, 6, 8], [3, 8, 9],
         [4, 9, 5], [2, 4, 11], [6, 2, 10], [8, 6, 7], [9, 8, 1]], np.int32)
    return verts, faces


def _normalize_to_box(v):
    center = (v.max(0) + v.min(0)) / 2.0
    v = v - center
    return v / np.abs(v).max()


def _dense(key, fan_in, fan_out):
    w = jax.random.normal(key, (fan_in, fan_out), jnp.float32) / np.sqrt(fan_in)
    b = jnp.zeros((1, fan_out), jnp.float32)
    return w.astype(jnp.float32), b


def init_params(key):
    # TODO(synk): pytorch3d.utils.ico_sphere(div=1) replaced by a built-in
    # icosahedron cage (12 verts / 20 faces) to stay file/network free.
    verts, faces = _icosahedron()
    verts = CAGE_SIZE * _normalize_to_box(verts)             # (C, 3)
    C, F = verts.shape[0], faces.shape[0]
    K, BN = N_KEYPOINTS, BOTTLENECK
    inf_size = K * C

    keys = jax.random.split(key, 12)
    kpt_sizes = [(DIM, 64), (64, 128), (128, BN), (BN, BN), (BN, 64), (64, DIM * K)]
    inf_sizes = [(DIM, 64), (64, 128), (128, inf_size), (inf_size, inf_size),
                 (inf_size, inf_size), (inf_size, inf_size)]
    kpt, infl = {}, {}
    for i, (fi, fo) in enumerate(kpt_sizes):
        kpt[f"w{i+1}"], kpt[f"b{i+1}"] = _dense(keys[i], fi, fo)
    for i, (fi, fo) in enumerate(inf_sizes):
        infl[f"w{i+1}"], infl[f"b{i+1}"] = _dense(keys[6 + i], fi, fo)

    # Stacked one-hot gather / scatter matrices for the MVC kernel:
    #   gather[c, j*F + f] = 1  iff faces[f, j] == c      -> (C, 3F)
    #   scatter = gather.T                                -> (3F, C)
    gather = np.zeros((C, 3 * F), np.float32)
    for j in range(3):
        gather[faces[:, j], j * F + np.arange(F)] = 1.0

    return {
        "keypoint": kpt,
        "influence": infl,
        "influence_param": jnp.zeros((K, C), jnp.float32),    # nn.Parameter zeros
        "template_vertices": jnp.asarray(verts.T),            # (3, C)
        "template_faces": jnp.asarray(faces, jnp.int32),      # (F, 3)
        "gather_onehot": jnp.asarray(gather),                  # (C, 3F)
        "scatter_onehot": jnp.asarray(gather.T),               # (3F, C)
    }


# ------------------------------- forward pass --------------------------------
def cage_skinning_forward(params, source_shape, target_shape):
    """source_shape (B,3,N), target_shape (B,3,N)."""
    B, dim, N = source_shape.shape
    K = params["influence_param"].shape[0]
    C = params["template_vertices"].shape[1]

    shape = jnp.concatenate([source_shape, target_shape], axis=0)   # (2B,3,N)
    shape_pts = jnp.transpose(shape, (0, 2, 1))                     # (2B,N,3)
    x_flat = shape_pts.reshape(2 * B * N, dim)

    n_fps = 2 * K
    kp_flat, infl_flat, fps_pts = encoder_heads(
        x_flat, params["keypoint"], params["influence"],
        n_total_b=2 * B, n_src_b=B, n_pts=N, n_fps=n_fps)

    keypoints = jnp.clip(kp_flat.reshape(2 * B, dim, K), -1.0, 1.0)
    source_keypoints, target_keypoints = keypoints[:B], keypoints[B:]

    init_keypoints = jnp.transpose(fps_pts, (0, 2, 1))               # (2B,3,n_fps)
    source_init_keypoints = init_keypoints[:B]
    target_init_keypoints = init_keypoints[B:]

    influence_offset = infl_flat.reshape(B, K, C)
    n_influence = max(5, int(C / K * N_INFLUENCE_RATIO))

    cage, new_cage, influence, weights, deformed = cage_pipeline_pallas(
        params["template_vertices"], shape_pts[:B],
        source_keypoints, target_keypoints,
        params["influence_param"], influence_offset,
        params["gather_onehot"], params["scatter_onehot"], n_influence)

    cage_t = jnp.transpose(cage, (0, 2, 1))                          # (B,C,3)
    new_cage_t = jnp.transpose(new_cage, (0, 2, 1))                  # (B,C,3)
    faces = jnp.broadcast_to(params["template_faces"][None],
                             (B,) + params["template_faces"].shape)
    return {
        "cage": cage_t,
        "cage_face": faces,
        "new_cage": new_cage_t,
        "deformed": deformed,
        "weight": weights,
        "influence": influence,
        "source_keypoints": source_keypoints,
        "target_keypoints": target_keypoints,
        "source_init_keypoints": source_init_keypoints,
        "target_init_keypoints": target_init_keypoints,
    }


# ----------------------------------- main ------------------------------------
if __name__ == "__main__":
    key = jax.random.PRNGKey(0)
    k_src, k_tgt, k_par = jax.random.split(key, 3)
    B = 2
    source_shape = 0.6 * jax.random.normal(k_src, (B, DIM, N_POINTS), jnp.float32)
    target_shape = 0.6 * jax.random.normal(k_tgt, (B, DIM, N_POINTS), jnp.float32)
    params = init_params(k_par)

    fwd = jax.jit(cage_skinning_forward)
    outputs = fwd(params, source_shape, target_shape)
    jax.block_until_ready(outputs)

    C = params["template_vertices"].shape[1]
    assert outputs["deformed"].shape == (B, N_POINTS, DIM)
    assert outputs["weight"].shape == (B, N_POINTS, C)
    assert outputs["new_cage"].shape == (B, C, DIM)
    assert outputs["influence"].shape == (B, N_KEYPOINTS, C)
    assert outputs["source_init_keypoints"].shape == (B, DIM, 2 * N_KEYPOINTS)
    print("KERNEL_OK")
</pallas_src>

<mosaic_0001>
module attributes {stable_mosaic.version = 11 : i64} {
  func.func @_cage_fused_kernel(%arg0: i32, %arg1: memref<3x12xf32, #tpu.memory_space<vmem>>, %arg2: memref<1x64x3xf32, #tpu.memory_space<vmem>>, %arg3: memref<1x3x8xf32, #tpu.memory_space<vmem>>, %arg4: memref<1x3x8xf32, #tpu.memory_space<vmem>>, %arg5: memref<8x12xf32, #tpu.memory_space<vmem>>, %arg6: memref<1x8x12xf32, #tpu.memory_space<vmem>>, %arg7: memref<12x60xf32, #tpu.memory_space<vmem>>, %arg8: memref<60x12xf32, #tpu.memory_space<vmem>>, %arg9: memref<1x3x12xf32, #tpu.memory_space<vmem>>, %arg10: memref<1x3x12xf32, #tpu.memory_space<vmem>>, %arg11: memref<1x8x12xf32, #tpu.memory_space<vmem>>, %arg12: memref<1x64x12xf32, #tpu.memory_space<vmem>>, %arg13: memref<1x64x3xf32, #tpu.memory_space<vmem>>) attributes {dimension_semantics = [#tpu.dimension_semantics<parallel>], iteration_bounds = array<i64: 2>, scalar_prefetch = 0 : i64, scratch_operands = 0 : i64, tpu.core_type = #tpu.core_type<tc>, window_params = [{pipeline_mode = #tpu.pipeline_mode<synchronous>, transform_indices = @transform_0, window_bounds = array<i64: 3, 12>}, {transform_indices = @transform_1, window_bounds = array<i64: 1, 64, 3>}, {transform_indices = @transform_2, window_bounds = array<i64: 1, 3, 8>}, {transform_indices = @transform_3, window_bounds = array<i64: 1, 3, 8>}, {pipeline_mode = #tpu.pipeline_mode<synchronous>, transform_indices = @transform_4, window_bounds = array<i64: 8, 12>}, {transform_indices = @transform_5, window_bounds = array<i64: 1, 8, 12>}, {pipeline_mode = #tpu.pipeline_mode<synchronous>, transform_indices = @transform_6, window_bounds = array<i64: 12, 60>}, {pipeline_mode = #tpu.pipeline_mode<synchronous>, transform_indices = @transform_7, window_bounds = array<i64: 60, 12>}, {transform_indices = @transform_8, window_bounds = array<i64: 1, 3, 12>}, {transform_indices = @transform_9, window_bounds = array<i64: 1, 3, 12>}, {transform_indices = @transform_10, window_bounds = array<i64: 1, 8, 12>}, {transform_indices = @transform_11, window_bounds = array<i64: 1, 64, 12>}, {transform_indices = @transform_12, window_bounds = array<i64: 1, 64, 3>}]} {
    %c0 = arith.constant 0 : index
    %c0_0 = arith.constant 0 : index
    %c0_1 = arith.constant 0 : index
    %0 = vector.load %arg2[%c0, %c0_0, %c0_1] : memref<1x64x3xf32, #tpu.memory_space<vmem>>, vector<1x64x3xf32>
    %1 = vector.shape_cast %0 : vector<1x64x3xf32> to vector<64x3xf32>
    %c0_2 = arith.constant 0 : index
    %c0_3 = arith.constant 0 : index
    %2 = vector.load %arg1[%c0_2, %c0_3] : memref<3x12xf32, #tpu.memory_space<vmem>>, vector<3x12xf32>
    %3 = vector.extract_strided_slice %1 {offsets = [0, 0], sizes = [64, 1], strides = [1, 1]} : vector<64x3xf32> to vector<64x1xf32>
    %4 = vector.extract_strided_slice %1 {offsets = [0, 1], sizes = [64, 1], strides = [1, 1]} : vector<64x3xf32> to vector<64x1xf32>
    %5 = vector.extract_strided_slice %1 {offsets = [0, 2], sizes = [64, 1], strides = [1, 1]} : vector<64x3xf32> to vector<64x1xf32>
    %6 = arith.mulf %1, %1 : vector<64x3xf32>
    %cst = arith.constant dense<0.000000e+00> : vector<64xf32>
    %7 = vector.multi_reduction <add>, %6, %cst [1] : vector<64x3xf32> to vector<64xf32>
    %8 = vector.shape_cast %7 : vector<64xf32> to vector<64x1xf32>
    %9 = vector.extract_strided_slice %2 {offsets = [0, 0], sizes = [1, 12], strides = [1, 1]} : vector<3x12xf32> to vector<1x12xf32>
    %10 = vector.broadcast %3 : vector<64x1xf32> to vector<64x12xf32>
    %11 = vector.broadcast %9 : vector<1x12xf32> to vector<64x12xf32>
    %12 = arith.mulf %10, %11 : vector<64x12xf32>
    %13 = vector.extract_strided_slice %2 {offsets = [1, 0], sizes = [1, 12], strides = [1, 1]} : vector<3x12xf32> to vector<1x12xf32>
    %14 = vector.broadcast %4 : vector<64x1xf32> to vector<64x12xf32>
    %15 = vector.broadcast %13 : vector<1x12xf32> to vector<64x12xf32>
    %16 = arith.mulf %14, %15 : vector<64x12xf32>
    %17 = arith.addf %12, %16 : vector<64x12xf32>
    %18 = vector.extract_strided_slice %2 {offsets = [2, 0], sizes = [1, 12], strides = [1, 1]} : vector<3x12xf32> to vector<1x12xf32>
    %19 = vector.broadcast %5 : vector<64x1xf32> to vector<64x12xf32>
    %20 = vector.broadcast %18 : vector<1x12xf32> to vector<64x12xf32>
    %21 = arith.mulf %19, %20 : vector<64x12xf32>
    %22 = arith.addf %17, %21 : vector<64x12xf32>
    %cst_4 = arith.constant 2.000000e+00 : f32
    %23 = vector.broadcast %cst_4 : f32 to vector<64x12xf32>
    %24 = arith.mulf %23, %22 : vector<64x12xf32>
    %25 = arith.mulf %2, %2 : vector<3x12xf32>
    %cst_5 = arith.constant dense<0.000000e+00> : vector<12xf32>
    %26 = vector.multi_reduction <add>, %25, %cst_5 [0] : vector<3x12xf32> to vector<12xf32>
    %27 = vector.shape_cast %26 : vector<12xf32> to vector<1x12xf32>
    %cst_6 = arith.constant 1.000000e+00 : f32
    %28 = vector.broadcast %cst_6 : f32 to vector<1x12xf32>
    %c0_i32 = arith.constant 0 : i32
    %c25_i32 = arith.constant 25 : i32
    %29 = arith.addi %c0_i32, %c25_i32 : i32
    %c1_i32 = arith.constant 1 : i32
    %30 = scf.for %arg14 = %c0_i32 to %29 step %c1_i32 iter_args(%arg15 = %28) -> (vector<1x12xf32>)  : i32 {
      %360 = vector.broadcast %arg15 : vector<1x12xf32> to vector<64x12xf32>
      %361 = arith.mulf %360, %24 : vector<64x12xf32>
      %362 = vector.broadcast %8 : vector<64x1xf32> to vector<64x12xf32>
      %363 = arith.subf %362, %361 : vector<64x12xf32>
      %cst_103 = arith.constant dense<0x7F800000> : vector<12xf32>
      %364 = vector.multi_reduction <minimumf>, %363, %cst_103 [0] : vector<64x12xf32> to vector<12xf32>
      %365 = vector.shape_cast %364 : vector<12xf32> to vector<1x12xf32>
      %366 = arith.mulf %arg15, %arg15 : vector<1x12xf32>
      %367 = arith.mulf %366, %27 : vector<1x12xf32>
      %368 = arith.addf %365, %367 : vector<1x12xf32>
      %cst_104 = arith.constant 1.600000e-01 : f32
      %369 = vector.broadcast %cst_104 : f32 to vector<1x12xf32>
      %370 = arith.cmpf ogt, %368, %369 : vector<1x12xf32>
      %371 = arith.extui %370 : vector<1x12xi1> to vector<1x12xi32>
      %372 = arith.sitofp %371 : vector<1x12xi32> to vector<1x12xf32>
      %cst_105 = arith.constant 0.00999999977 : f32
      %373 = vector.broadcast %cst_105 : f32 to vector<1x12xf32>
      %374 = arith.mulf %373, %372 : vector<1x12xf32>
      %cst_106 = arith.constant 1.000000e+00 : f32
      %375 = vector.broadcast %cst_106 : f32 to vector<1x12xf32>
      %376 = arith.subf %375, %374 : vector<1x12xf32>
      %377 = arith.mulf %arg15, %376 : vector<1x12xf32>
      %378 = vector.broadcast %377 : vector<1x12xf32> to vector<64x12xf32>
      %379 = arith.mulf %378, %24 : vector<64x12xf32>
      %380 = vector.broadcast %8 : vector<64x1xf32> to vector<64x12xf32>
      %381 = arith.subf %380, %379 : vector<64x12xf32>
      %cst_107 = arith.constant dense<0x7F800000> : vector<12xf32>
      %382 = vector.multi_reduction <minimumf>, %381, %cst_107 [0] : vector<64x12xf32> to vector<12xf32>
      %383 = vector.shape_cast %382 : vector<12xf32> to vector<1x12xf32>
      %384 = arith.mulf %377, %377 : vector<1x12xf32>
      %385 = arith.mulf %384, %27 : vector<1x12xf32>
      %386 = arith.addf %383, %385 : vector<1x12xf32>
      %cst_108 = arith.constant 1.600000e-01 : f32
      %387 = vector.broadcast %cst_108 : f32 to vector<1x12xf32>
      %388 = arith.cmpf ogt, %386, %387 : vector<1x12xf32>
      %389 = arith.extui %388 : vector<1x12xi1> to vector<1x12xi32>
      %390 = arith.sitofp %389 : vector<1x12xi32> to vector<1x12xf32>
      %cst_109 = arith.constant 0.00999999977 : f32
      %391 = vector.broadcast %cst_109 : f32 to vector<1x12xf32>
      %392 = arith.mulf %391, %390 : vector<1x12xf32>
      %cst_110 = arith.constant 1.000000e+00 : f32
      %393 = vector.broadcast %cst_110 : f32 to vector<1x12xf32>
      %394 = arith.subf %393, %392 : vector<1x12xf32>
      %395 = arith.mulf %377, %394 : vector<1x12xf32>
      %396 = vector.broadcast %395 : vector<1x12xf32> to vector<64x12xf32>
      %397 = arith.mulf %396, %24 : vector<64x12xf32>
      %398 = vector.broadcast %8 : vector<64x1xf32> to vector<64x12xf32>
      %399 = arith.subf %398, %397 : vector<64x12xf32>
      %cst_111 = arith.constant dense<0x7F800000> : vector<12xf32>
      %400 = vector.multi_reduction <minimumf>, %399, %cst_111 [0] : vector<64x12xf32> to vector<12xf32>
      %401 = vector.shape_cast %400 : vector<12xf32> to vector<1x12xf32>
      %402 = arith.mulf %395, %395 : vector<1x12xf32>
      %403 = arith.mulf %402, %27 : vector<1x12xf32>
      %404 = arith.addf %401, %403 : vector<1x12xf32>
      %cst_112 = arith.constant 1.600000e-01 : f32
      %405 = vector.broadcast %cst_112 : f32 to vector<1x12xf32>
      %406 = arith.cmpf ogt, %404, %405 : vector<1x12xf32>
      %407 = arith.extui %406 : vector<1x12xi1> to vector<1x12xi32>
      %408 = arith.sitofp %407 : vector<1x12xi32> to vector<1x12xf32>
      %cst_113 = arith.constant 0.00999999977 : f32
      %409 = vector.broadcast %cst_113 : f32 to vector<1x12xf32>
      %410 = arith.mulf %409, %408 : vector<1x12xf32>
      %cst_114 = arith.constant 1.000000e+00 : f32
      %411 = vector.broadcast %cst_114 : f32 to vector<1x12xf32>
      %412 = arith.subf %411, %410 : vector<1x12xf32>
      %413 = arith.mulf %395, %412 : vector<1x12xf32>
      %414 = vector.broadcast %413 : vector<1x12xf32> to vector<64x12xf32>
      %415 = arith.mulf %414, %24 : vector<64x12xf32>
      %416 = vector.broadcast %8 : vector<64x1xf32> to vector<64x12xf32>
      %417 = arith.subf %416, %415 : vector<64x12xf32>
      %cst_115 = arith.constant dense<0x7F800000> : vector<12xf32>
      %418 = vector.multi_reduction <minimumf>, %417, %cst_115 [0] : vector<64x12xf32> to vector<12xf32>
      %419 = vector.shape_cast %418 : vector<12xf32> to vector<1x12xf32>
      %420 = arith.mulf %413, %413 : vector<1x12xf32>
      %421 = arith.mulf %420, %27 : vector<1x12xf32>
      %422 = arith.addf %419, %421 : vector<1x12xf32>
      %cst_116 = arith.constant 1.600000e-01 : f32
      %423 = vector.broadcast %cst_116 : f32 to vector<1x12xf32>
      %424 = arith.cmpf ogt, %422, %423 : vector<1x12xf32>
      %425 = arith.extui %424 : vector<1x12xi1> to vector<1x12xi32>
      %426 = arith.sitofp %425 : vector<1x12xi32> to vector<1x12xf32>
      %cst_117 = arith.constant 0.00999999977 : f32
      %427 = vector.broadcast %cst_117 : f32 to vector<1x12xf32>
      %428 = arith.mulf %427, %426 : vector<1x12xf32>
      %cst_118 = arith.constant 1.000000e+00 : f32
      %429 = vector.broadcast %cst_118 : f32 to vector<1x12xf32>
      %430 = arith.subf %429, %428 : vector<1x12xf32>
      %431 = arith.mulf %413, %430 : vector<1x12xf32>
      scf.yield %431 : vector<1x12xf32>
    }
    %31 = vector.broadcast %30 : vector<1x12xf32> to vector<3x12xf32>
    %32 = arith.mulf %2, %31 : vector<3x12xf32>
    %c0_7 = arith.constant 0 : index
    %c0_8 = arith.constant 0 : index
    %c0_9 = arith.constant 0 : index
    %33 = vector.load %arg3[%c0_7, %c0_8, %c0_9] : memref<1x3x8xf32, #tpu.memory_space<vmem>>, vector<1x3x8xf32>
    %34 = vector.shape_cast %33 : vector<1x3x8xf32> to vector<3x8xf32>
    %35 = vector.shape_cast %34 : vector<3x8xf32> to vector<3x8x1xf32>
    %36 = vector.shape_cast %32 : vector<3x12xf32> to vector<3x1x12xf32>
    %37 = vector.broadcast %35 : vector<3x8x1xf32> to vector<3x8x12xf32>
    %38 = vector.broadcast %36 : vector<3x1x12xf32> to vector<3x8x12xf32>
    %39 = arith.subf %37, %38 : vector<3x8x12xf32>
    %40 = arith.mulf %39, %39 : vector<3x8x12xf32>
    %cst_10 = arith.constant dense<0.000000e+00> : vector<8x12xf32>
    %41 = vector.multi_reduction <add>, %40, %cst_10 [0] : vector<3x8x12xf32> to vector<8x12xf32>
    %42 = tpu.iota {dimensions = array<i32: 1>} : vector<8x12xi32>
    %cst_11 = arith.constant dense<0x7F800000> : vector<8xf32>
    %43 = vector.multi_reduction <minimumf>, %41, %cst_11 [1] : vector<8x12xf32> to vector<8xf32>
    %44 = vector.shape_cast %43 : vector<8xf32> to vector<8x1xf32>
    %45 = vector.broadcast %44 : vector<8x1xf32> to vector<8x12xf32>
    %46 = arith.cmpf oeq, %41, %45 : vector<8x12xf32>
    %c12_i32 = arith.constant 12 : i32
    %47 = vector.broadcast %c12_i32 : i32 to vector<8x12xi32>
    %48 = arith.select %46, %42, %47 : vector<8x12xi1>, vector<8x12xi32>
    %cst_12 = arith.constant dense<2147483647> : vector<8xi32>
    %49 = vector.multi_reduction <minsi>, %48, %cst_12 [1] : vector<8x12xi32> to vector<8xi32>
    %50 = vector.shape_cast %49 : vector<8xi32> to vector<8x1xi32>
    %51 = vector.broadcast %50 : vector<8x1xi32> to vector<8x12xi32>
    %52 = arith.cmpi eq, %42, %51 : vector<8x12xi32>
    %cst_13 = arith.constant 0x7F800000 : f32
    %53 = vector.broadcast %cst_13 : f32 to vector<8x12xf32>
    %54 = arith.select %52, %53, %41 : vector<8x12xi1>, vector<8x12xf32>
    %cst_14 = arith.constant dense<0x7F800000> : vector<8xf32>
    %55 = vector.multi_reduction <minimumf>, %54, %cst_14 [1] : vector<8x12xf32> to vector<8xf32>
    %56 = vector.shape_cast %55 : vector<8xf32> to vector<8x1xf32>
    %57 = vector.broadcast %56 : vector<8x1xf32> to vector<8x12xf32>
    %58 = arith.cmpf oeq, %54, %57 : vector<8x12xf32>
    %c12_i32_15 = arith.constant 12 : i32
    %59 = vector.broadcast %c12_i32_15 : i32 to vector<8x12xi32>
    %60 = arith.select %58, %42, %59 : vector<8x12xi1>, vector<8x12xi32>
    %cst_16 = arith.constant dense<2147483647> : vector<8xi32>
    %61 = vector.multi_reduction <minsi>, %60, %cst_16 [1] : vector<8x12xi32> to vector<8xi32>
    %62 = vector.shape_cast %61 : vector<8xi32> to vector<8x1xi32>
    %63 = vector.broadcast %62 : vector<8x1xi32> to vector<8x12xi32>
    %64 = arith.cmpi eq, %42, %63 : vector<8x12xi32>
    %cst_17 = arith.constant 0x7F800000 : f32
    %65 = vector.broadcast %cst_17 : f32 to vector<8x12xf32>
    %66 = arith.select %64, %65, %54 : vector<8x12xi1>, vector<8x12xf32>
    %cst_18 = arith.constant dense<0x7F800000> : vector<8xf32>
    %67 = vector.multi_reduction <minimumf>, %66, %cst_18 [1] : vector<8x12xf32> to vector<8xf32>
    %68 = vector.shape_cast %67 : vector<8xf32> to vector<8x1xf32>
    %69 = vector.broadcast %68 : vector<8x1xf32> to vector<8x12xf32>
    %70 = arith.cmpf oeq, %66, %69 : vector<8x12xf32>
    %c12_i32_19 = arith.constant 12 : i32
    %71 = vector.broadcast %c12_i32_19 : i32 to vector<8x12xi32>
    %72 = arith.select %70, %42, %71 : vector<8x12xi1>, vector<8x12xi32>
    %cst_20 = arith.constant dense<2147483647> : vector<8xi32>
    %73 = vector.multi_reduction <minsi>, %72, %cst_20 [1] : vector<8x12xi32> to vector<8xi32>
    %74 = vector.shape_cast %73 : vector<8xi32> to vector<8x1xi32>
    %75 = vector.broadcast %74 : vector<8x1xi32> to vector<8x12xi32>
    %76 = arith.cmpi eq, %42, %75 : vector<8x12xi32>
    %cst_21 = arith.constant 0x7F800000 : f32
    %77 = vector.broadcast %cst_21 : f32 to vector<8x12xf32>
    %78 = arith.select %76, %77, %66 : vector<8x12xi1>, vector<8x12xf32>
    %cst_22 = arith.constant dense<0x7F800000> : vector<8xf32>
    %79 = vector.multi_reduction <minimumf>, %78, %cst_22 [1] : vector<8x12xf32> to vector<8xf32>
    %80 = vector.shape_cast %79 : vector<8xf32> to vector<8x1xf32>
    %81 = vector.broadcast %80 : vector<8x1xf32> to vector<8x12xf32>
    %82 = arith.cmpf oeq, %78, %81 : vector<8x12xf32>
    %c12_i32_23 = arith.constant 12 : i32
    %83 = vector.broadcast %c12_i32_23 : i32 to vector<8x12xi32>
    %84 = arith.select %82, %42, %83 : vector<8x12xi1>, vector<8x12xi32>
    %cst_24 = arith.constant dense<2147483647> : vector<8xi32>
    %85 = vector.multi_reduction <minsi>, %84, %cst_24 [1] : vector<8x12xi32> to vector<8xi32>
    %86 = vector.shape_cast %85 : vector<8xi32> to vector<8x1xi32>
    %87 = vector.broadcast %86 : vector<8x1xi32> to vector<8x12xi32>
    %88 = arith.cmpi eq, %42, %87 : vector<8x12xi32>
    %cst_25 = arith.constant 0x7F800000 : f32
    %89 = vector.broadcast %cst_25 : f32 to vector<8x12xf32>
    %90 = arith.select %88, %89, %78 : vector<8x12xi1>, vector<8x12xf32>
    %cst_26 = arith.constant dense<0x7F800000> : vector<8xf32>
    %91 = vector.multi_reduction <minimumf>, %90, %cst_26 [1] : vector<8x12xf32> to vector<8xf32>
    %92 = vector.shape_cast %91 : vector<8xf32> to vector<8x1xf32>
    %93 = vector.broadcast %92 : vector<8x1xf32> to vector<8x12xf32>
    %94 = arith.cmpf ole, %41, %93 : vector<8x12xf32>
    %95 = arith.extui %94 : vector<8x12xi1> to vector<8x12xi32>
    %96 = arith.sitofp %95 : vector<8x12xi32> to vector<8x12xf32>
    %c0_27 = arith.constant 0 : index
    %c0_28 = arith.constant 0 : index
    %97 = vector.load %arg5[%c0_27, %c0_28] : memref<8x12xf32, #tpu.memory_space<vmem>>, vector<8x12xf32>
    %c0_29 = arith.constant 0 : index
    %c0_30 = arith.constant 0 : index
    %c0_31 = arith.constant 0 : index
    %98 = vector.load %arg6[%c0_29, %c0_30, %c0_31] : memref<1x8x12xf32, #tpu.memory_space<vmem>>, vector<1x8x12xf32>
    %99 = vector.shape_cast %98 : vector<1x8x12xf32> to vector<8x12xf32>
    %100 = arith.addf %97, %99 : vector<8x12xf32>
    %101 = arith.mulf %100, %96 : vector<8x12xf32>
    %c0_32 = arith.constant 0 : index
    %c0_33 = arith.constant 0 : index
    %c0_34 = arith.constant 0 : index
    %102 = vector.load %arg4[%c0_32, %c0_33, %c0_34] : memref<1x3x8xf32, #tpu.memory_space<vmem>>, vector<1x3x8xf32>
    %103 = vector.shape_cast %102 : vector<1x3x8xf32> to vector<3x8xf32>
    %104 = arith.subf %103, %34 : vector<3x8xf32>
    %cst_35 = arith.constant dense<0.000000e+00> : vector<3x12xf32>
    %105 = tpu.matmul %104, %101, %cst_35 {dimension_numbers = #tpu.dot_dimension_numbers<[1], [0], [0], [1], [0, 0, 1, 1], [], []>} : vector<3x8xf32>, vector<8x12xf32>, vector<3x12xf32> -> vector<3x12xf32>
    %106 = arith.addf %32, %105 : vector<3x12xf32>
    %c0_36 = arith.constant 0 : index
    %c0_37 = arith.constant 0 : index
    %107 = vector.load %arg7[%c0_36, %c0_37] : memref<12x60xf32, #tpu.memory_space<vmem>>, vector<12x60xf32>
    %cst_38 = arith.constant dense<0.000000e+00> : vector<3x60xf32>
    %108 = tpu.matmul %32, %107, %cst_38 {dimension_numbers = #tpu.dot_dimension_numbers<[1], [0], [0], [1], [0, 0, 1, 1], [], []>} : vector<3x12xf32>, vector<12x60xf32>, vector<3x60xf32> -> vector<3x60xf32>
    %109 = vector.extract_strided_slice %108 {offsets = [0, 0], sizes = [1, 60], strides = [1, 1]} : vector<3x60xf32> to vector<1x60xf32>
    %110 = vector.broadcast %109 : vector<1x60xf32> to vector<64x60xf32>
    %111 = vector.broadcast %3 : vector<64x1xf32> to vector<64x60xf32>
    %112 = arith.subf %110, %111 : vector<64x60xf32>
    %113 = vector.extract_strided_slice %108 {offsets = [1, 0], sizes = [1, 60], strides = [1, 1]} : vector<3x60xf32> to vector<1x60xf32>
    %114 = vector.broadcast %113 : vector<1x60xf32> to vector<64x60xf32>
    %115 = vector.broadcast %4 : vector<64x1xf32> to vector<64x60xf32>
    %116 = arith.subf %114, %115 : vector<64x60xf32>
    %117 = vector.extract_strided_slice %108 {offsets = [2, 0], sizes = [1, 60], strides = [1, 1]} : vector<3x60xf32> to vector<1x60xf32>
    %118 = vector.broadcast %117 : vector<1x60xf32> to vector<64x60xf32>
    %119 = vector.broadcast %5 : vector<64x1xf32> to vector<64x60xf32>
    %120 = arith.subf %118, %119 : vector<64x60xf32>
    %121 = arith.mulf %112, %112 : vector<64x60xf32>
    %122 = arith.mulf %116, %116 : vector<64x60xf32>
    %123 = arith.addf %121, %122 : vector<64x60xf32>
    %124 = arith.mulf %120, %120 : vector<64x60xf32>
    %125 = arith.addf %123, %124 : vector<64x60xf32>
    %cst_39 = arith.constant 1.000000e-16 : f32
    %126 = vector.broadcast %cst_39 : f32 to vector<64x60xf32>
    %127 = arith.maximumf %125, %126 : vector<64x60xf32>
    %128 = math.rsqrt %127 : vector<64x60xf32>
    %129 = arith.mulf %112, %128 : vector<64x60xf32>
    %130 = arith.mulf %116, %128 : vector<64x60xf32>
    %131 = arith.mulf %120, %128 : vector<64x60xf32>
    %132 = arith.mulf %127, %128 : vector<64x60xf32>
    %133 = vector.extract_strided_slice %129 {offsets = [0, 20], sizes = [64, 40], strides = [1, 1]} : vector<64x60xf32> to vector<64x40xf32>
    %134 = vector.extract_strided_slice %129 {offsets = [0, 0], sizes = [64, 20], strides = [1, 1]} : vector<64x60xf32> to vector<64x20xf32>
    %135 = tpu.concatenate %133, %134 in 1 : vector<64x40xf32>, vector<64x20xf32> -> vector<64x60xf32>
    %136 = vector.extract_strided_slice %129 {offsets = [0, 40], sizes = [64, 20], strides = [1, 1]} : vector<64x60xf32> to vector<64x20xf32>
    %137 = vector.extract_strided_slice %129 {offsets = [0, 0], sizes = [64, 40], strides = [1, 1]} : vector<64x60xf32> to vector<64x40xf32>
    %138 = tpu.concatenate %136, %137 in 1 : vector<64x20xf32>, vector<64x40xf32> -> vector<64x60xf32>
    %139 = vector.extract_strided_slice %130 {offsets = [0, 20], sizes = [64, 40], strides = [1, 1]} : vector<64x60xf32> to vector<64x40xf32>
    %140 = vector.extract_strided_slice %130 {offsets = [0, 0], sizes = [64, 20], strides = [1, 1]} : vector<64x60xf32> to vector<64x20xf32>
    %141 = tpu.concatenate %139, %140 in 1 : vector<64x40xf32>, vector<64x20xf32> -> vector<64x60xf32>
    %142 = vector.extract_strided_slice %130 {offsets = [0, 40], sizes = [64, 20], strides = [1, 1]} : vector<64x60xf32> to vector<64x20xf32>
    %143 = vector.extract_strided_slice %130 {offsets = [0, 0], sizes = [64, 40], strides = [1, 1]} : vector<64x60xf32> to vector<64x40xf32>
    %144 = tpu.concatenate %142, %143 in 1 : vector<64x20xf32>, vector<64x40xf32> -> vector<64x60xf32>
    %145 = vector.extract_strided_slice %131 {offsets = [0, 20], sizes = [64, 40], strides = [1, 1]} : vector<64x60xf32> to vector<64x40xf32>
    %146 = vector.extract_strided_slice %131 {offsets = [0, 0], sizes = [64, 20], strides = [1, 1]} : vector<64x60xf32> to vector<64x20xf32>
    %147 = tpu.concatenate %145, %146 in 1 : vector<64x40xf32>, vector<64x20xf32> -> vector<64x60xf32>
    %148 = vector.extract_strided_slice %131 {offsets = [0, 40], sizes = [64, 20], strides = [1, 1]} : vector<64x60xf32> to vector<64x20xf32>
    %149 = vector.extract_strided_slice %131 {offsets = [0, 0], sizes = [64, 40], strides = [1, 1]} : vector<64x60xf32> to vector<64x40xf32>
    %150 = tpu.concatenate %148, %149 in 1 : vector<64x20xf32>, vector<64x40xf32> -> vector<64x60xf32>
    %151 = arith.subf %135, %138 : vector<64x60xf32>
    %152 = arith.subf %141, %144 : vector<64x60xf32>
    %153 = arith.subf %147, %150 : vector<64x60xf32>
    %154 = arith.mulf %151, %151 : vector<64x60xf32>
    %155 = arith.mulf %152, %152 : vector<64x60xf32>
    %156 = arith.addf %154, %155 : vector<64x60xf32>
    %157 = arith.mulf %153, %153 : vector<64x60xf32>
    %158 = arith.addf %156, %157 : vector<64x60xf32>
    %159 = math.sqrt %158 : vector<64x60xf32>
    %cst_40 = arith.constant 5.000000e-01 : f32
    %160 = vector.broadcast %cst_40 : f32 to vector<64x60xf32>
    %161 = arith.mulf %160, %159 : vector<64x60xf32>
    %cst_41 = arith.constant 0.000000e+00 : f32
    %cst_42 = arith.constant 1.000000e+00 : f32
    %162 = vector.broadcast %cst_41 : f32 to vector<64x60xf32>
    %163 = arith.maximumf %162, %161 : vector<64x60xf32>
    %164 = vector.broadcast %cst_42 : f32 to vector<64x60xf32>
    %165 = arith.minimumf %164, %163 : vector<64x60xf32>
    %cst_43 = arith.constant 5.000000e-01 : f32
    %166 = vector.broadcast %cst_43 : f32 to vector<64x60xf32>
    %167 = arith.cmpf ogt, %165, %166 : vector<64x60xf32>
    %cst_44 = arith.constant 1.000000e+00 : f32
    %168 = vector.broadcast %cst_44 : f32 to vector<64x60xf32>
    %169 = arith.subf %168, %165 : vector<64x60xf32>
    %cst_45 = arith.constant 5.000000e-01 : f32
    %170 = vector.broadcast %cst_45 : f32 to vector<64x60xf32>
    %171 = arith.mulf %170, %169 : vector<64x60xf32>
    %172 = arith.mulf %165, %165 : vector<64x60xf32>
    %173 = arith.select %167, %171, %172 : vector<64x60xi1>, vector<64x60xf32>
    %cst_46 = arith.constant 1.000000e+00 : f32
    %174 = vector.broadcast %cst_46 : f32 to vector<64x60xf32>
    %175 = arith.subf %174, %165 : vector<64x60xf32>
    %cst_47 = arith.constant 5.000000e-01 : f32
    %176 = vector.broadcast %cst_47 : f32 to vector<64x60xf32>
    %177 = arith.mulf %176, %175 : vector<64x60xf32>
    %cst_48 = arith.constant 0.000000e+00 : f32
    %178 = vector.broadcast %cst_48 : f32 to vector<64x60xf32>
    %179 = arith.maximumf %177, %178 : vector<64x60xf32>
    %180 = math.sqrt %179 : vector<64x60xf32>
    %181 = arith.select %167, %180, %165 : vector<64x60xi1>, vector<64x60xf32>
    %cst_49 = arith.constant 4.216320e-02 : f32
    %182 = vector.broadcast %cst_49 : f32 to vector<64x60xf32>
    %183 = arith.mulf %182, %173 : vector<64x60xf32>
    %cst_50 = arith.constant 0.024181312 : f32
    %184 = vector.broadcast %cst_50 : f32 to vector<64x60xf32>
    %185 = arith.addf %183, %184 : vector<64x60xf32>
    %186 = arith.mulf %185, %173 : vector<64x60xf32>
    %cst_51 = arith.constant 0.0454700254 : f32
    %187 = vector.broadcast %cst_51 : f32 to vector<64x60xf32>
    %188 = arith.addf %186, %187 : vector<64x60xf32>
    %189 = arith.mulf %188, %173 : vector<64x60xf32>
    %cst_52 = arith.constant 0.0749530047 : f32
    %190 = vector.broadcast %cst_52 : f32 to vector<64x60xf32>
    %191 = arith.addf %189, %190 : vector<64x60xf32>
    %192 = arith.mulf %191, %173 : vector<64x60xf32>
    %cst_53 = arith.constant 0.166667521 : f32
    %193 = vector.broadcast %cst_53 : f32 to vector<64x60xf32>
    %194 = arith.addf %192, %193 : vector<64x60xf32>
    %195 = arith.mulf %194, %173 : vector<64x60xf32>
    %196 = arith.mulf %195, %181 : vector<64x60xf32>
    %197 = arith.addf %196, %181 : vector<64x60xf32>
    %cst_54 = arith.constant 2.000000e+00 : f32
    %198 = vector.broadcast %cst_54 : f32 to vector<64x60xf32>
    %199 = arith.mulf %198, %197 : vector<64x60xf32>
    %cst_55 = arith.constant 1.57079637 : f32
    %200 = vector.broadcast %cst_55 : f32 to vector<64x60xf32>
    %201 = arith.subf %200, %199 : vector<64x60xf32>
    %202 = arith.select %167, %201, %197 : vector<64x60xi1>, vector<64x60xf32>
    %cst_56 = arith.constant 2.000000e+00 : f32
    %203 = vector.broadcast %cst_56 : f32 to vector<64x60xf32>
    %204 = arith.mulf %203, %202 : vector<64x60xf32>
    %cst_57 = arith.constant 5.000000e-01 : f32
    %205 = vector.broadcast %cst_57 : f32 to vector<64x60xf32>
    %206 = arith.mulf %205, %158 : vector<64x60xf32>
    %cst_58 = arith.constant 1.000000e+00 : f32
    %207 = vector.broadcast %cst_58 : f32 to vector<64x60xf32>
    %208 = arith.subf %207, %206 : vector<64x60xf32>
    %cst_59 = arith.constant 2.500000e-01 : f32
    %209 = vector.broadcast %cst_59 : f32 to vector<64x60xf32>
    %210 = arith.mulf %209, %158 : vector<64x60xf32>
    %cst_60 = arith.constant 1.000000e+00 : f32
    %211 = vector.broadcast %cst_60 : f32 to vector<64x60xf32>
    %212 = arith.subf %211, %210 : vector<64x60xf32>
    %cst_61 = arith.constant 0.000000e+00 : f32
    %cst_62 = arith.constant 1.000000e+00 : f32
    %213 = vector.broadcast %cst_61 : f32 to vector<64x60xf32>
    %214 = arith.maximumf %213, %212 : vector<64x60xf32>
    %215 = vector.broadcast %cst_62 : f32 to vector<64x60xf32>
    %216 = arith.minimumf %215, %214 : vector<64x60xf32>
    %217 = math.sqrt %216 : vector<64x60xf32>
    %218 = arith.mulf %159, %217 : vector<64x60xf32>
    %219 = arith.mulf %141, %150 : vector<64x60xf32>
    %220 = arith.mulf %147, %144 : vector<64x60xf32>
    %221 = arith.subf %219, %220 : vector<64x60xf32>
    %222 = arith.mulf %129, %221 : vector<64x60xf32>
    %223 = arith.mulf %147, %138 : vector<64x60xf32>
    %224 = arith.mulf %135, %150 : vector<64x60xf32>
    %225 = arith.subf %223, %224 : vector<64x60xf32>
    %226 = arith.mulf %130, %225 : vector<64x60xf32>
    %227 = arith.addf %222, %226 : vector<64x60xf32>
    %228 = arith.mulf %135, %144 : vector<64x60xf32>
    %229 = arith.mulf %141, %138 : vector<64x60xf32>
    %230 = arith.subf %228, %229 : vector<64x60xf32>
    %231 = arith.mulf %131, %230 : vector<64x60xf32>
    %232 = arith.addf %227, %231 : vector<64x60xf32>
    %cst_63 = arith.constant 0.000000e+00 : f32
    %233 = vector.broadcast %cst_63 : f32 to vector<64x60xf32>
    %234 = arith.cmpf ogt, %232, %233 : vector<64x60xf32>
    %cst_64 = arith.constant 0.000000e+00 : f32
    %235 = vector.broadcast %cst_64 : f32 to vector<64x60xf32>
    %236 = arith.cmpf olt, %232, %235 : vector<64x60xf32>
    %cst_65 = arith.constant -1.000000e+00 : f32
    %cst_66 = arith.constant 0.000000e+00 : f32
    %237 = vector.broadcast %cst_65 : f32 to vector<64x60xf32>
    %238 = vector.broadcast %cst_66 : f32 to vector<64x60xf32>
    %239 = arith.select %236, %237, %238 : vector<64x60xi1>, vector<64x60xf32>
    %cst_67 = arith.constant 1.000000e+00 : f32
    %240 = vector.broadcast %cst_67 : f32 to vector<64x60xf32>
    %241 = arith.select %234, %240, %239 : vector<64x60xi1>, vector<64x60xf32>
    %242 = vector.extract_strided_slice %208 {offsets = [0, 20], sizes = [64, 40], strides = [1, 1]} : vector<64x60xf32> to vector<64x40xf32>
    %243 = vector.extract_strided_slice %208 {offsets = [0, 0], sizes = [64, 20], strides = [1, 1]} : vector<64x60xf32> to vector<64x20xf32>
    %244 = tpu.concatenate %242, %243 in 1 : vector<64x40xf32>, vector<64x20xf32> -> vector<64x60xf32>
    %245 = vector.extract_strided_slice %208 {offsets = [0, 40], sizes = [64, 20], strides = [1, 1]} : vector<64x60xf32> to vector<64x20xf32>
    %246 = vector.extract_strided_slice %208 {offsets = [0, 0], sizes = [64, 40], strides = [1, 1]} : vector<64x60xf32> to vector<64x40xf32>
    %247 = tpu.concatenate %245, %246 in 1 : vector<64x20xf32>, vector<64x40xf32> -> vector<64x60xf32>
    %248 = vector.extract_strided_slice %218 {offsets = [0, 20], sizes = [64, 40], strides = [1, 1]} : vector<64x60xf32> to vector<64x40xf32>
    %249 = vector.extract_strided_slice %218 {offsets = [0, 0], sizes = [64, 20], strides = [1, 1]} : vector<64x60xf32> to vector<64x20xf32>
    %250 = tpu.concatenate %248, %249 in 1 : vector<64x40xf32>, vector<64x20xf32> -> vector<64x60xf32>
    %251 = vector.extract_strided_slice %218 {offsets = [0, 40], sizes = [64, 20], strides = [1, 1]} : vector<64x60xf32> to vector<64x20xf32>
    %252 = vector.extract_strided_slice %218 {offsets = [0, 0], sizes = [64, 40], strides = [1, 1]} : vector<64x60xf32> to vector<64x40xf32>
    %253 = tpu.concatenate %251, %252 in 1 : vector<64x20xf32>, vector<64x40xf32> -> vector<64x60xf32>
    %254 = arith.mulf %244, %247 : vector<64x60xf32>
    %255 = arith.subf %208, %254 : vector<64x60xf32>
    %256 = arith.mulf %250, %253 : vector<64x60xf32>
    %cst_68 = arith.constant 9.99999993E-9 : f32
    %257 = vector.broadcast %cst_68 : f32 to vector<64x60xf32>
    %258 = arith.maximumf %256, %257 : vector<64x60xf32>
    %259 = arith.divf %255, %258 : vector<64x60xf32>
    %cst_69 = arith.constant -1.000000e+00 : f32
    %cst_70 = arith.constant 1.000000e+00 : f32
    %260 = vector.broadcast %cst_69 : f32 to vector<64x60xf32>
    %261 = arith.maximumf %260, %259 : vector<64x60xf32>
    %262 = vector.broadcast %cst_70 : f32 to vector<64x60xf32>
    %263 = arith.minimumf %262, %261 : vector<64x60xf32>
    %264 = arith.mulf %263, %263 : vector<64x60xf32>
    %cst_71 = arith.constant 1.000000e+00 : f32
    %265 = vector.broadcast %cst_71 : f32 to vector<64x60xf32>
    %266 = arith.subf %265, %264 : vector<64x60xf32>
    %cst_72 = arith.constant 0.000000e+00 : f32
    %cst_73 = arith.constant 1.000000e+00 : f32
    %267 = vector.broadcast %cst_72 : f32 to vector<64x60xf32>
    %268 = arith.maximumf %267, %266 : vector<64x60xf32>
    %269 = vector.broadcast %cst_73 : f32 to vector<64x60xf32>
    %270 = arith.minimumf %269, %268 : vector<64x60xf32>
    %271 = math.sqrt %270 : vector<64x60xf32>
    %272 = arith.mulf %241, %271 : vector<64x60xf32>
    %273 = math.absf %272 : vector<64x60xf32>
    %cst_74 = arith.constant 9.99999993E-9 : f32
    %274 = vector.broadcast %cst_74 : f32 to vector<64x60xf32>
    %275 = arith.cmpf ogt, %273, %274 : vector<64x60xf32>
    %276 = arith.extui %275 : vector<64x60xi1> to vector<64x60xi32>
    %277 = arith.sitofp %276 : vector<64x60xi32> to vector<64x60xf32>
    %278 = vector.extract_strided_slice %277 {offsets = [0, 20], sizes = [64, 40], strides = [1, 1]} : vector<64x60xf32> to vector<64x40xf32>
    %279 = vector.extract_strided_slice %277 {offsets = [0, 0], sizes = [64, 20], strides = [1, 1]} : vector<64x60xf32> to vector<64x20xf32>
    %280 = tpu.concatenate %278, %279 in 1 : vector<64x40xf32>, vector<64x20xf32> -> vector<64x60xf32>
    %281 = arith.mulf %277, %280 : vector<64x60xf32>
    %282 = vector.extract_strided_slice %277 {offsets = [0, 40], sizes = [64, 20], strides = [1, 1]} : vector<64x60xf32> to vector<64x20xf32>
    %283 = vector.extract_strided_slice %277 {offsets = [0, 0], sizes = [64, 40], strides = [1, 1]} : vector<64x60xf32> to vector<64x40xf32>
    %284 = tpu.concatenate %282, %283 in 1 : vector<64x20xf32>, vector<64x40xf32> -> vector<64x60xf32>
    %285 = arith.mulf %281, %284 : vector<64x60xf32>
    %cst_75 = arith.constant 5.000000e-01 : f32
    %286 = vector.broadcast %cst_75 : f32 to vector<64x60xf32>
    %287 = arith.cmpf ogt, %285, %286 : vector<64x60xf32>
    %288 = vector.extract_strided_slice %263 {offsets = [0, 20], sizes = [64, 40], strides = [1, 1]} : vector<64x60xf32> to vector<64x40xf32>
    %289 = vector.extract_strided_slice %263 {offsets = [0, 0], sizes = [64, 20], strides = [1, 1]} : vector<64x60xf32> to vector<64x20xf32>
    %290 = tpu.concatenate %288, %289 in 1 : vector<64x40xf32>, vector<64x20xf32> -> vector<64x60xf32>
    %291 = vector.extract_strided_slice %204 {offsets = [0, 40], sizes = [64, 20], strides = [1, 1]} : vector<64x60xf32> to vector<64x20xf32>
    %292 = vector.extract_strided_slice %204 {offsets = [0, 0], sizes = [64, 40], strides = [1, 1]} : vector<64x60xf32> to vector<64x40xf32>
    %293 = tpu.concatenate %291, %292 in 1 : vector<64x20xf32>, vector<64x40xf32> -> vector<64x60xf32>
    %294 = arith.mulf %290, %293 : vector<64x60xf32>
    %295 = arith.subf %204, %294 : vector<64x60xf32>
    %296 = vector.extract_strided_slice %263 {offsets = [0, 40], sizes = [64, 20], strides = [1, 1]} : vector<64x60xf32> to vector<64x20xf32>
    %297 = vector.extract_strided_slice %263 {offsets = [0, 0], sizes = [64, 40], strides = [1, 1]} : vector<64x60xf32> to vector<64x40xf32>
    %298 = tpu.concatenate %296, %297 in 1 : vector<64x20xf32>, vector<64x40xf32> -> vector<64x60xf32>
    %299 = vector.extract_strided_slice %204 {offsets = [0, 20], sizes = [64, 40], strides = [1, 1]} : vector<64x60xf32> to vector<64x40xf32>
    %300 = vector.extract_strided_slice %204 {offsets = [0, 0], sizes = [64, 20], strides = [1, 1]} : vector<64x60xf32> to vector<64x20xf32>
    %301 = tpu.concatenate %299, %300 in 1 : vector<64x40xf32>, vector<64x20xf32> -> vector<64x60xf32>
    %302 = arith.mulf %298, %301 : vector<64x60xf32>
    %303 = arith.subf %295, %302 : vector<64x60xf32>
    %304 = arith.mulf %132, %250 : vector<64x60xf32>
    %305 = vector.extract_strided_slice %272 {offsets = [0, 40], sizes = [64, 20], strides = [1, 1]} : vector<64x60xf32> to vector<64x20xf32>
    %306 = vector.extract_strided_slice %272 {offsets = [0, 0], sizes = [64, 40], strides = [1, 1]} : vector<64x60xf32> to vector<64x40xf32>
    %307 = tpu.concatenate %305, %306 in 1 : vector<64x20xf32>, vector<64x40xf32> -> vector<64x60xf32>
    %308 = arith.mulf %304, %307 : vector<64x60xf32>
    %309 = math.absf %308 : vector<64x60xf32>
    %cst_76 = arith.constant 9.99999993E-9 : f32
    %310 = vector.broadcast %cst_76 : f32 to vector<64x60xf32>
    %311 = arith.cmpf olt, %309, %310 : vector<64x60xf32>
    %cst_77 = arith.constant 9.99999993E-9 : f32
    %312 = vector.broadcast %cst_77 : f32 to vector<64x60xf32>
    %313 = arith.select %311, %312, %308 : vector<64x60xi1>, vector<64x60xf32>
    %314 = arith.divf %303, %313 : vector<64x60xf32>
    %cst_78 = arith.constant 0.000000e+00 : f32
    %315 = vector.broadcast %cst_78 : f32 to vector<64x60xf32>
    %316 = arith.select %287, %314, %315 : vector<64x60xi1>, vector<64x60xf32>
    %c0_79 = arith.constant 0 : index
    %c0_80 = arith.constant 0 : index
    %317 = vector.load %arg8[%c0_79, %c0_80] : memref<60x12xf32, #tpu.memory_space<vmem>>, vector<60x12xf32>
    %cst_81 = arith.constant dense<0.000000e+00> : vector<64x12xf32>
    %318 = tpu.matmul %316, %317, %cst_81 {dimension_numbers = #tpu.dot_dimension_numbers<[1], [0], [0], [1], [0, 0, 1, 1], [], []>} : vector<64x60xf32>, vector<60x12xf32>, vector<64x12xf32> -> vector<64x12xf32>
    %cst_82 = arith.constant dense<0.000000e+00> : vector<64xf32>
    %319 = vector.multi_reduction <add>, %318, %cst_82 [1] : vector<64x12xf32> to vector<64xf32>
    %320 = vector.shape_cast %319 : vector<64xf32> to vector<64x1xf32>
    %321 = math.absf %320 : vector<64x1xf32>
    %cst_83 = arith.constant 9.99999993E-9 : f32
    %322 = vector.broadcast %cst_83 : f32 to vector<64x1xf32>
    %323 = arith.cmpf olt, %321, %322 : vector<64x1xf32>
    %cst_84 = arith.constant 9.99999993E-9 : f32
    %324 = vector.broadcast %cst_84 : f32 to vector<64x1xf32>
    %325 = arith.select %323, %324, %320 : vector<64x1xi1>, vector<64x1xf32>
    %326 = tpu.reciprocal %325 {approx = true} : vector<64x1xf32> -> vector<64x1xf32>
    %327 = vector.broadcast %326 : vector<64x1xf32> to vector<64x12xf32>
    %328 = arith.mulf %318, %327 : vector<64x12xf32>
    %329 = vector.extract_strided_slice %106 {offsets = [0, 0], sizes = [1, 12], strides = [1, 1]} : vector<3x12xf32> to vector<1x12xf32>
    %330 = vector.broadcast %329 : vector<1x12xf32> to vector<64x12xf32>
    %331 = arith.mulf %328, %330 : vector<64x12xf32>
    %cst_85 = arith.constant dense<0.000000e+00> : vector<64xf32>
    %332 = vector.multi_reduction <add>, %331, %cst_85 [1] : vector<64x12xf32> to vector<64xf32>
    %333 = vector.shape_cast %332 : vector<64xf32> to vector<64x1xf32>
    %334 = vector.extract_strided_slice %106 {offsets = [1, 0], sizes = [1, 12], strides = [1, 1]} : vector<3x12xf32> to vector<1x12xf32>
    %335 = vector.broadcast %334 : vector<1x12xf32> to vector<64x12xf32>
    %336 = arith.mulf %328, %335 : vector<64x12xf32>
    %cst_86 = arith.constant dense<0.000000e+00> : vector<64xf32>
    %337 = vector.multi_reduction <add>, %336, %cst_86 [1] : vector<64x12xf32> to vector<64xf32>
    %338 = vector.shape_cast %337 : vector<64xf32> to vector<64x1xf32>
    %339 = vector.extract_strided_slice %106 {offsets = [2, 0], sizes = [1, 12], strides = [1, 1]} : vector<3x12xf32> to vector<1x12xf32>
    %340 = vector.broadcast %339 : vector<1x12xf32> to vector<64x12xf32>
    %341 = arith.mulf %328, %340 : vector<64x12xf32>
    %cst_87 = arith.constant dense<0.000000e+00> : vector<64xf32>
    %342 = vector.multi_reduction <add>, %341, %cst_87 [1] : vector<64x12xf32> to vector<64xf32>
    %343 = vector.shape_cast %342 : vector<64xf32> to vector<64x1xf32>
    %344 = tpu.concatenate %333, %338, %343 in 1 : vector<64x1xf32>, vector<64x1xf32>, vector<64x1xf32> -> vector<64x3xf32>
    %c0_88 = arith.constant 0 : index
    %c0_89 = arith.constant 0 : index
    %c0_90 = arith.constant 0 : index
    %345 = vector.load %arg9[%c0_88, %c0_89, %c0_90] : memref<1x3x12xf32, #tpu.memory_space<vmem>>, vector<1x3x12xf32>
    %346 = vector.shape_cast %345 : vector<1x3x12xf32> to vector<3x12xf32>
    %347 = vector.shape_cast %32 : vector<3x12xf32> to vector<1x3x12xf32>
    tpu.vector_store %arg9[%c0_88, %c0_89, %c0_90], %347 {strides = array<i32>} : memref<1x3x12xf32, #tpu.memory_space<vmem>>, vector<1x3x12xf32>,
    %c0_91 = arith.constant 0 : index
    %c0_92 = arith.constant 0 : index
    %c0_93 = arith.constant 0 : index
    %348 = vector.load %arg10[%c0_91, %c0_92, %c0_93] : memref<1x3x12xf32, #tpu.memory_space<vmem>>, vector<1x3x12xf32>
    %349 = vector.shape_cast %348 : vector<1x3x12xf32> to vector<3x12xf32>
    %350 = vector.shape_cast %106 : vector<3x12xf32> to vector<1x3x12xf32>
    tpu.vector_store %arg10[%c0_91, %c0_92, %c0_93], %350 {strides = array<i32>} : memref<1x3x12xf32, #tpu.memory_space<vmem>>, vector<1x3x12xf32>,
    %c0_94 = arith.constant 0 : index
    %c0_95 = arith.constant 0 : index
    %c0_96 = arith.constant 0 : index
    %351 = vector.load %arg11[%c0_94, %c0_95, %c0_96] : memref<1x8x12xf32, #tpu.memory_space<vmem>>, vector<1x8x12xf32>
    %352 = vector.shape_cast %351 : vector<1x8x12xf32> to vector<8x12xf32>
    %353 = vector.shape_cast %101 : vector<8x12xf32> to vector<1x8x12xf32>
    tpu.vector_store %arg11[%c0_94, %c0_95, %c0_96], %353 {strides = array<i32>} : memref<1x8x12xf32, #tpu.memory_space<vmem>>, vector<1x8x12xf32>,
    %c0_97 = arith.constant 0 : index
    %c0_98 = arith.constant 0 : index
    %c0_99 = arith.constant 0 : index
    %354 = vector.load %arg12[%c0_97, %c0_98, %c0_99] : memref<1x64x12xf32, #tpu.memory_space<vmem>>, vector<1x64x12xf32>
    %355 = vector.shape_cast %354 : vector<1x64x12xf32> to vector<64x12xf32>
    %356 = vector.shape_cast %328 : vector<64x12xf32> to vector<1x64x12xf32>
    tpu.vector_store %arg12[%c0_97, %c0_98, %c0_99], %356 {strides = array<i32>} : memref<1x64x12xf32, #tpu.memory_space<vmem>>, vector<1x64x12xf32>,
    %c0_100 = arith.constant 0 : index
    %c0_101 = arith.constant 0 : index
    %c0_102 = arith.constant 0 : index
    %357 = vector.load %arg13[%c0_100, %c0_101, %c0_102] : memref<1x64x3xf32, #tpu.memory_space<vmem>>, vector<1x64x3xf32>
    %358 = vector.shape_cast %357 : vector<1x64x3xf32> to vector<64x3xf32>
    %359 = vector.shape_cast %344 : vector<64x3xf32> to vector<1x64x3xf32>
    tpu.vector_store %arg13[%c0_100, %c0_101, %c0_102], %359 {strides = array<i32>} : memref<1x64x3xf32, #tpu.memory_space<vmem>>, vector<1x64x3xf32>,
    return
  }
  func.func @transform_0(%arg0: i32) -> (i32, i32) {
    %c0_i32 = arith.constant 0 : i32
    %c0_i32_0 = arith.constant 0 : i32
    %c0_i32_1 = arith.constant 0 : i32
    return %c0_i32, %c0_i32_0 : i32, i32
  }
  func.func @transform_1(%arg0: i32) -> (i32, i32, i32) {
    %c0_i32 = arith.constant 0 : i32
    %c0_i32_0 = arith.constant 0 : i32
    %c0_i32_1 = arith.constant 0 : i32
    return %arg0, %c0_i32, %c0_i32_0 : i32, i32, i32
  }
  func.func @transform_2(%arg0: i32) -> (i32, i32, i32) {
    %c0_i32 = arith.constant 0 : i32
    %c0_i32_0 = arith.constant 0 : i32
    %c0_i32_1 = arith.constant 0 : i32
    return %arg0, %c0_i32, %c0_i32_0 : i32, i32, i32
  }
  func.func @transform_3(%arg0: i32) -> (i32, i32, i32) {
    %c0_i32 = arith.constant 0 : i32
    %c0_i32_0 = arith.constant 0 : i32
    %c0_i32_1 = arith.constant 0 : i32
    return %arg0, %c0_i32, %c0_i32_0 : i32, i32, i32
  }
  func.func @transform_4(%arg0: i32) -> (i32, i32) {
    %c0_i32 = arith.constant 0 : i32
    %c0_i32_0 = arith.constant 0 : i32
    %c0_i32_1 = arith.constant 0 : i32
    return %c0_i32, %c0_i32_0 : i32, i32
  }
  func.func @transform_5(%arg0: i32) -> (i32, i32, i32) {
    %c0_i32 = arith.constant 0 : i32
    %c0_i32_0 = arith.constant 0 : i32
    %c0_i32_1 = arith.constant 0 : i32
    return %arg0, %c0_i32, %c0_i32_0 : i32, i32, i32
  }
  func.func @transform_6(%arg0: i32) -> (i32, i32) {
    %c0_i32 = arith.constant 0 : i32
    %c0_i32_0 = arith.constant 0 : i32
    %c0_i32_1 = arith.constant 0 : i32
    return %c0_i32, %c0_i32_0 : i32, i32
  }
  func.func @transform_7(%arg0: i32) -> (i32, i32) {
    %c0_i32 = arith.constant 0 : i32
    %c0_i32_0 = arith.constant 0 : i32
    %c0_i32_1 = arith.constant 0 : i32
    return %c0_i32, %c0_i32_0 : i32, i32
  }
  func.func @transform_8(%arg0: i32) -> (i32, i32, i32) {
    %c0_i32 = arith.constant 0 : i32
    %c0_i32_0 = arith.constant 0 : i32
    %c0_i32_1 = arith.constant 0 : i32
    return %arg0, %c0_i32, %c0_i32_0 : i32, i32, i32
  }
  func.func @transform_9(%arg0: i32) -> (i32, i32, i32) {
    %c0_i32 = arith.constant 0 : i32
    %c0_i32_0 = arith.constant 0 : i32
    %c0_i32_1 = arith.constant 0 : i32
    return %arg0, %c0_i32, %c0_i32_0 : i32, i32, i32
  }
  func.func @transform_10(%arg0: i32) -> (i32, i32, i32) {
    %c0_i32 = arith.constant 0 : i32
    %c0_i32_0 = arith.constant 0 : i32
    %c0_i32_1 = arith.constant 0 : i32
    return %arg0, %c0_i32, %c0_i32_0 : i32, i32, i32
  }
  func.func @transform_11(%arg0: i32) -> (i32, i32, i32) {
    %c0_i32 = arith.constant 0 : i32
    %c0_i32_0 = arith.constant 0 : i32
    %c0_i32_1 = arith.constant 0 : i32
    return %arg0, %c0_i32, %c0_i32_0 : i32, i32, i32
  }
  func.func @transform_12(%arg0: i32) -> (i32, i32, i32) {
    %c0_i32 = arith.constant 0 : i32
    %c0_i32_0 = arith.constant 0 : i32
    %c0_i32_1 = arith.constant 0 : i32
    return %arg0, %c0_i32, %c0_i32_0 : i32, i32, i32
  }
}

module attributes {stable_mosaic.version = 11 : i64} {
  func.func @_encoder_heads_kernel(%arg0: i32, %arg1: memref<128x3xf32, #tpu.memory_space<vmem>>, %arg2: memref<64x3xf32, #tpu.memory_space<vmem>>, %arg3: memref<3x64xf32, #tpu.memory_space<vmem>>, %arg4: memref<1x64xf32, #tpu.memory_space<vmem>>, %arg5: memref<64x128xf32, #tpu.memory_space<vmem>>, %arg6: memref<1x128xf32, #tpu.memory_space<vmem>>, %arg7: memref<128x32xf32, #tpu.memory_space<vmem>>, %arg8: memref<1x32xf32, #tpu.memory_space<vmem>>, %arg9: memref<32x32xf32, #tpu.memory_space<vmem>>, %arg10: memref<1x32xf32, #tpu.memory_space<vmem>>, %arg11: memref<32x64xf32, #tpu.memory_space<vmem>>, %arg12: memref<1x64xf32, #tpu.memory_space<vmem>>, %arg13: memref<64x24xf32, #tpu.memory_space<vmem>>, %arg14: memref<1x24xf32, #tpu.memory_space<vmem>>, %arg15: memref<3x64xf32, #tpu.memory_space<vmem>>, %arg16: memref<1x64xf32, #tpu.memory_space<vmem>>, %arg17: memref<64x128xf32, #tpu.memory_space<vmem>>, %arg18: memref<1x128xf32, #tpu.memory_space<vmem>>, %arg19: memref<128x96xf32, #tpu.memory_space<vmem>>, %arg20: memref<1x96xf32, #tpu.memory_space<vmem>>, %arg21: memref<96x96xf32, #tpu.memory_space<vmem>>, %arg22: memref<1x96xf32, #tpu.memory_space<vmem>>, %arg23: memref<96x96xf32, #tpu.memory_space<vmem>>, %arg24: memref<1x96xf32, #tpu.memory_space<vmem>>, %arg25: memref<96x96xf32, #tpu.memory_space<vmem>>, %arg26: memref<1x96xf32, #tpu.memory_space<vmem>>, %arg27: memref<1x2x24xf32, #tpu.memory_space<vmem>>, %arg28: memref<1x1x96xf32, #tpu.memory_space<vmem>>, %arg29: memref<1x2x16x3xf32, #tpu.memory_space<vmem>>) attributes {dimension_semantics = [#tpu.dimension_semantics<parallel>], iteration_bounds = array<i64: 2>, scalar_prefetch = 0 : i64, scratch_operands = 0 : i64, tpu.core_type = #tpu.core_type<tc>, window_params = [{transform_indices = @transform_0, window_bounds = array<i64: 128, 3>}, {transform_indices = @transform_1, window_bounds = array<i64: 64, 3>}, {pipeline_mode = #tpu.pipeline_mode<synchronous>, transform_indices = @transform_2, window_bounds = array<i64: 3, 64>}, {pipeline_mode = #tpu.pipeline_mode<synchronous>, transform_indices = @transform_3, window_bounds = array<i64: 1, 64>}, {pipeline_mode = #tpu.pipeline_mode<synchronous>, transform_indices = @transform_4, window_bounds = array<i64: 64, 128>}, {pipeline_mode = #tpu.pipeline_mode<synchronous>, transform_indices = @transform_5, window_bounds = array<i64: 1, 128>}, {pipeline_mode = #tpu.pipeline_mode<synchronous>, transform_indices = @transform_6, window_bounds = array<i64: 128, 32>}, {pipeline_mode = #tpu.pipeline_mode<synchronous>, transform_indices = @transform_7, window_bounds = array<i64: 1, 32>}, {pipeline_mode = #tpu.pipeline_mode<synchronous>, transform_indices = @transform_8, window_bounds = array<i64: 32, 32>}, {pipeline_mode = #tpu.pipeline_mode<synchronous>, transform_indices = @transform_9, window_bounds = array<i64: 1, 32>}, {pipeline_mode = #tpu.pipeline_mode<synchronous>, transform_indices = @transform_10, window_bounds = array<i64: 32, 64>}, {pipeline_mode = #tpu.pipeline_mode<synchronous>, transform_indices = @transform_11, window_bounds = array<i64: 1, 64>}, {pipeline_mode = #tpu.pipeline_mode<synchronous>, transform_indices = @transform_12, window_bounds = array<i64: 64, 24>}, {pipeline_mode = #tpu.pipeline_mode<synchronous>, transform_indices = @transform_13, window_bounds = array<i64: 1, 24>}, {pipeline_mode = #tpu.pipeline_mode<synchronous>, transform_indices = @transform_14, window_bounds = array<i64: 3, 64>}, {pipeline_mode = #tpu.pipeline_mode<synchronous>, transform_indices = @transform_15, window_bounds = array<i64: 1, 64>}, {pipeline_mode = #tpu.pipeline_mode<synchronous>, transform_indices = @transform_16, window_bounds = array<i64: 64, 128>}, {pipeline_mode = #tpu.pipeline_mode<synchronous>, transform_indices = @transform_17, window_bounds = array<i64: 1, 128>}, {pipeline_mode = #tpu.pipeline_mode<synchronous>, transform_indices = @transform_18, window_bounds = array<i64: 128, 96>}, {pipeline_mode = #tpu.pipeline_mode<synchronous>, transform_indices = @transform_19, window_bounds = array<i64: 1, 96>}, {pipeline_mode = #tpu.pipeline_mode<synchronous>, transform_indices = @transform_20, window_bounds = array<i64: 96, 96>}, {pipeline_mode = #tpu.pipeline_mode<synchronous>, transform_indices = @transform_21, window_bounds = array<i64: 1, 96>}, {pipeline_mode = #tpu.pipeline_mode<synchronous>, transform_indices = @transform_22, window_bounds = array<i64: 96, 96>}, {pipeline_mode = #tpu.pipeline_mode<synchronous>, transform_indices = @transform_23, window_bounds = array<i64: 1, 96>}, {pipeline_mode = #tpu.pipeline_mode<synchronous>, transform_indices = @transform_24, window_bounds = array<i64: 96, 96>}, {pipeline_mode = #tpu.pipeline_mode<synchronous>, transform_indices = @transform_25, window_bounds = array<i64: 1, 96>}, {transform_indices = @transform_26, window_bounds = array<i64: 1, 2, 24>}, {transform_indices = @transform_27, window_bounds = array<i64: 1, 1, 96>}, {transform_indices = @transform_28, window_bounds = array<i64: 1, 2, 16, 3>}]} {
    %c0 = arith.constant 0 : index
    %c0_0 = arith.constant 0 : index
    %0 = vector.load %arg1[%c0, %c0_0] : memref<128x3xf32, #tpu.memory_space<vmem>>, vector<128x3xf32>
    %c0_1 = arith.constant 0 : index
    %c0_2 = arith.constant 0 : index
    %1 = vector.load %arg3[%c0_1, %c0_2] : memref<3x64xf32, #tpu.memory_space<vmem>>, vector<3x64xf32>
    %cst = arith.constant dense<0.000000e+00> : vector<128x64xf32>
    %2 = tpu.matmul %0, %1, %cst {dimension_numbers = #tpu.dot_dimension_numbers<[1], [0], [0], [1], [0, 0, 1, 1], [], []>} : vector<128x3xf32>, vector<3x64xf32>, vector<128x64xf32> -> vector<128x64xf32>
    %c0_3 = arith.constant 0 : index
    %c0_4 = arith.constant 0 : index
    %3 = vector.load %arg4[%c0_3, %c0_4] : memref<1x64xf32, #tpu.memory_space<vmem>>, vector<1x64xf32>
    %4 = vector.broadcast %3 : vector<1x64xf32> to vector<128x64xf32>
    %5 = arith.addf %2, %4 : vector<128x64xf32>
    %cst_5 = arith.constant 0.000000e+00 : f32
    %6 = vector.broadcast %cst_5 : f32 to vector<128x64xf32>
    %7 = arith.cmpf oge, %5, %6 : vector<128x64xf32>
    %cst_6 = arith.constant 2.000000e-01 : f32
    %8 = vector.broadcast %cst_6 : f32 to vector<128x64xf32>
    %9 = arith.mulf %8, %5 : vector<128x64xf32>
    %10 = arith.select %7, %5, %9 : vector<128x64xi1>, vector<128x64xf32>
    %c0_7 = arith.constant 0 : index
    %c0_8 = arith.constant 0 : index
    %11 = vector.load %arg5[%c0_7, %c0_8] : memref<64x128xf32, #tpu.memory_space<vmem>>, vector<64x128xf32>
    %cst_9 = arith.constant dense<0.000000e+00> : vector<128x128xf32>
    %12 = tpu.matmul %10, %11, %cst_9 {dimension_numbers = #tpu.dot_dimension_numbers<[1], [0], [0], [1], [0, 0, 1, 1], [], []>} : vector<128x64xf32>, vector<64x128xf32>, vector<128x128xf32> -> vector<128x128xf32>
    %c0_10 = arith.constant 0 : index
    %c0_11 = arith.constant 0 : index
    %13 = vector.load %arg6[%c0_10, %c0_11] : memref<1x128xf32, #tpu.memory_space<vmem>>, vector<1x128xf32>
    %14 = vector.broadcast %13 : vector<1x128xf32> to vector<128x128xf32>
    %15 = arith.addf %12, %14 : vector<128x128xf32>
    %cst_12 = arith.constant 0.000000e+00 : f32
    %16 = vector.broadcast %cst_12 : f32 to vector<128x128xf32>
    %17 = arith.cmpf oge, %15, %16 : vector<128x128xf32>
    %cst_13 = arith.constant 2.000000e-01 : f32
    %18 = vector.broadcast %cst_13 : f32 to vector<128x128xf32>
    %19 = arith.mulf %18, %15 : vector<128x128xf32>
    %20 = arith.select %17, %15, %19 : vector<128x128xi1>, vector<128x128xf32>
    %c0_14 = arith.constant 0 : index
    %c0_15 = arith.constant 0 : index
    %21 = vector.load %arg7[%c0_14, %c0_15] : memref<128x32xf32, #tpu.memory_space<vmem>>, vector<128x32xf32>
    %cst_16 = arith.constant dense<0.000000e+00> : vector<128x32xf32>
    %22 = tpu.matmul %20, %21, %cst_16 {dimension_numbers = #tpu.dot_dimension_numbers<[1], [0], [0], [1], [0, 0, 1, 1], [], []>} : vector<128x128xf32>, vector<128x32xf32>, vector<128x32xf32> -> vector<128x32xf32>
    %c0_17 = arith.constant 0 : index
    %c0_18 = arith.constant 0 : index
    %23 = vector.load %arg8[%c0_17, %c0_18] : memref<1x32xf32, #tpu.memory_space<vmem>>, vector<1x32xf32>
    %24 = vector.broadcast %23 : vector<1x32xf32> to vector<128x32xf32>
    %25 = arith.addf %22, %24 : vector<128x32xf32>
    %cst_19 = arith.constant 0.000000e+00 : f32
    %26 = vector.broadcast %cst_19 : f32 to vector<128x32xf32>
    %27 = arith.cmpf oge, %25, %26 : vector<128x32xf32>
    %cst_20 = arith.constant 2.000000e-01 : f32
    %28 = vector.broadcast %cst_20 : f32 to vector<128x32xf32>
    %29 = arith.mulf %28, %25 : vector<128x32xf32>
    %30 = arith.select %27, %25, %29 : vector<128x32xi1>, vector<128x32xf32>
    %31 = vector.extract_strided_slice %30 {offsets = [0, 0], sizes = [64, 32], strides = [1, 1]} : vector<128x32xf32> to vector<64x32xf32>
    %cst_21 = arith.constant dense<0xFF800000> : vector<32xf32>
    %32 = vector.multi_reduction <maximumf>, %31, %cst_21 [0] : vector<64x32xf32> to vector<32xf32>
    %33 = vector.shape_cast %32 : vector<32xf32> to vector<1x32xf32>
    %34 = vector.extract_strided_slice %30 {offsets = [64, 0], sizes = [64, 32], strides = [1, 1]} : vector<128x32xf32> to vector<64x32xf32>
    %cst_22 = arith.constant dense<0xFF800000> : vector<32xf32>
    %35 = vector.multi_reduction <maximumf>, %34, %cst_22 [0] : vector<64x32xf32> to vector<32xf32>
    %36 = vector.shape_cast %35 : vector<32xf32> to vector<1x32xf32>
    %37 = tpu.concatenate %33, %36 in 0 : vector<1x32xf32>, vector<1x32xf32> -> vector<2x32xf32>
    %c0_23 = arith.constant 0 : index
    %c0_24 = arith.constant 0 : index
    %38 = vector.load %arg9[%c0_23, %c0_24] : memref<32x32xf32, #tpu.memory_space<vmem>>, vector<32x32xf32>
    %cst_25 = arith.constant dense<0.000000e+00> : vector<2x32xf32>
    %39 = tpu.matmul %37, %38, %cst_25 {dimension_numbers = #tpu.dot_dimension_numbers<[1], [0], [0], [1], [0, 0, 1, 1], [], []>} : vector<2x32xf32>, vector<32x32xf32>, vector<2x32xf32> -> vector<2x32xf32>
    %c0_26 = arith.constant 0 : index
    %c0_27 = arith.constant 0 : index
    %40 = vector.load %arg10[%c0_26, %c0_27] : memref<1x32xf32, #tpu.memory_space<vmem>>, vector<1x32xf32>
    %41 = vector.broadcast %40 : vector<1x32xf32> to vector<2x32xf32>
    %42 = arith.addf %39, %41 : vector<2x32xf32>
    %cst_28 = arith.constant 0.000000e+00 : f32
    %43 = vector.broadcast %cst_28 : f32 to vector<2x32xf32>
    %44 = arith.cmpf oge, %42, %43 : vector<2x32xf32>
    %cst_29 = arith.constant 2.000000e-01 : f32
    %45 = vector.broadcast %cst_29 : f32 to vector<2x32xf32>
    %46 = arith.mulf %45, %42 : vector<2x32xf32>
    %47 = arith.select %44, %42, %46 : vector<2x32xi1>, vector<2x32xf32>
    %c0_30 = arith.constant 0 : index
    %c0_31 = arith.constant 0 : index
    %48 = vector.load %arg11[%c0_30, %c0_31] : memref<32x64xf32, #tpu.memory_space<vmem>>, vector<32x64xf32>
    %cst_32 = arith.constant dense<0.000000e+00> : vector<2x64xf32>
    %49 = tpu.matmul %47, %48, %cst_32 {dimension_numbers = #tpu.dot_dimension_numbers<[1], [0], [0], [1], [0, 0, 1, 1], [], []>} : vector<2x32xf32>, vector<32x64xf32>, vector<2x64xf32> -> vector<2x64xf32>
    %c0_33 = arith.constant 0 : index
    %c0_34 = arith.constant 0 : index
    %50 = vector.load %arg12[%c0_33, %c0_34] : memref<1x64xf32, #tpu.memory_space<vmem>>, vector<1x64xf32>
    %51 = vector.broadcast %50 : vector<1x64xf32> to vector<2x64xf32>
    %52 = arith.addf %49, %51 : vector<2x64xf32>
    %cst_35 = arith.constant 0.000000e+00 : f32
    %53 = vector.broadcast %cst_35 : f32 to vector<2x64xf32>
    %54 = arith.cmpf oge, %52, %53 : vector<2x64xf32>
    %cst_36 = arith.constant 2.000000e-01 : f32
    %55 = vector.broadcast %cst_36 : f32 to vector<2x64xf32>
    %56 = arith.mulf %55, %52 : vector<2x64xf32>
    %57 = arith.select %54, %52, %56 : vector<2x64xi1>, vector<2x64xf32>
    %c0_37 = arith.constant 0 : index
    %c0_38 = arith.constant 0 : index
    %58 = vector.load %arg13[%c0_37, %c0_38] : memref<64x24xf32, #tpu.memory_space<vmem>>, vector<64x24xf32>
    %cst_39 = arith.constant dense<0.000000e+00> : vector<2x24xf32>
    %59 = tpu.matmul %57, %58, %cst_39 {dimension_numbers = #tpu.dot_dimension_numbers<[1], [0], [0], [1], [0, 0, 1, 1], [], []>} : vector<2x64xf32>, vector<64x24xf32>, vector<2x24xf32> -> vector<2x24xf32>
    %c0_40 = arith.constant 0 : index
    %c0_41 = arith.constant 0 : index
    %60 = vector.load %arg14[%c0_40, %c0_41] : memref<1x24xf32, #tpu.memory_space<vmem>>, vector<1x24xf32>
    %61 = vector.broadcast %60 : vector<1x24xf32> to vector<2x24xf32>
    %62 = arith.addf %59, %61 : vector<2x24xf32>
    %c0_42 = arith.constant 0 : index
    %c0_43 = arith.constant 0 : index
    %c0_44 = arith.constant 0 : index
    %63 = vector.load %arg27[%c0_42, %c0_43, %c0_44] : memref<1x2x24xf32, #tpu.memory_space<vmem>>, vector<1x2x24xf32>
    %64 = vector.shape_cast %63 : vector<1x2x24xf32> to vector<2x24xf32>
    %65 = vector.shape_cast %62 : vector<2x24xf32> to vector<1x2x24xf32>
    tpu.vector_store %arg27[%c0_42, %c0_43, %c0_44], %65 {strides = array<i32>} : memref<1x2x24xf32, #tpu.memory_space<vmem>>, vector<1x2x24xf32>,
    %c0_45 = arith.constant 0 : index
    %c0_46 = arith.constant 0 : index
    %66 = vector.load %arg2[%c0_45, %c0_46] : memref<64x3xf32, #tpu.memory_space<vmem>>, vector<64x3xf32>
    %c0_47 = arith.constant 0 : index
    %c0_48 = arith.constant 0 : index
    %67 = vector.load %arg15[%c0_47, %c0_48] : memref<3x64xf32, #tpu.memory_space<vmem>>, vector<3x64xf32>
    %cst_49 = arith.constant dense<0.000000e+00> : vector<64x64xf32>
    %68 = tpu.matmul %66, %67, %cst_49 {dimension_numbers = #tpu.dot_dimension_numbers<[1], [0], [0], [1], [0, 0, 1, 1], [], []>} : vector<64x3xf32>, vector<3x64xf32>, vector<64x64xf32> -> vector<64x64xf32>
    %c0_50 = arith.constant 0 : index
    %c0_51 = arith.constant 0 : index
    %69 = vector.load %arg16[%c0_50, %c0_51] : memref<1x64xf32, #tpu.memory_space<vmem>>, vector<1x64xf32>
    %70 = vector.broadcast %69 : vector<1x64xf32> to vector<64x64xf32>
    %71 = arith.addf %68, %70 : vector<64x64xf32>
    %cst_52 = arith.constant 0.000000e+00 : f32
    %72 = vector.broadcast %cst_52 : f32 to vector<64x64xf32>
    %73 = arith.cmpf oge, %71, %72 : vector<64x64xf32>
    %cst_53 = arith.constant 2.000000e-01 : f32
    %74 = vector.broadcast %cst_53 : f32 to vector<64x64xf32>
    %75 = arith.mulf %74, %71 : vector<64x64xf32>
    %76 = arith.select %73, %71, %75 : vector<64x64xi1>, vector<64x64xf32>
    %c0_54 = arith.constant 0 : index
    %c0_55 = arith.constant 0 : index
    %77 = vector.load %arg17[%c0_54, %c0_55] : memref<64x128xf32, #tpu.memory_space<vmem>>, vector<64x128xf32>
    %cst_56 = arith.constant dense<0.000000e+00> : vector<64x128xf32>
    %78 = tpu.matmul %76, %77, %cst_56 {dimension_numbers = #tpu.dot_dimension_numbers<[1], [0], [0], [1], [0, 0, 1, 1], [], []>} : vector<64x64xf32>, vector<64x128xf32>, vector<64x128xf32> -> vector<64x128xf32>
    %c0_57 = arith.constant 0 : index
    %c0_58 = arith.constant 0 : index
    %79 = vector.load %arg18[%c0_57, %c0_58] : memref<1x128xf32, #tpu.memory_space<vmem>>, vector<1x128xf32>
    %80 = vector.broadcast %79 : vector<1x128xf32> to vector<64x128xf32>
    %81 = arith.addf %78, %80 : vector<64x128xf32>
    %cst_59 = arith.constant 0.000000e+00 : f32
    %82 = vector.broadcast %cst_59 : f32 to vector<64x128xf32>
    %83 = arith.cmpf oge, %81, %82 : vector<64x128xf32>
    %cst_60 = arith.constant 2.000000e-01 : f32
    %84 = vector.broadcast %cst_60 : f32 to vector<64x128xf32>
    %85 = arith.mulf %84, %81 : vector<64x128xf32>
    %86 = arith.select %83, %81, %85 : vector<64x128xi1>, vector<64x128xf32>
    %c0_61 = arith.constant 0 : index
    %c0_62 = arith.constant 0 : index
    %87 = vector.load %arg19[%c0_61, %c0_62] : memref<128x96xf32, #tpu.memory_space<vmem>>, vector<128x96xf32>
    %cst_63 = arith.constant dense<0.000000e+00> : vector<64x96xf32>
    %88 = tpu.matmul %86, %87, %cst_63 {dimension_numbers = #tpu.dot_dimension_numbers<[1], [0], [0], [1], [0, 0, 1, 1], [], []>} : vector<64x128xf32>, vector<128x96xf32>, vector<64x96xf32> -> vector<64x96xf32>
    %c0_64 = arith.constant 0 : index
    %c0_65 = arith.constant 0 : index
    %89 = vector.load %arg20[%c0_64, %c0_65] : memref<1x96xf32, #tpu.memory_space<vmem>>, vector<1x96xf32>
    %90 = vector.broadcast %89 : vector<1x96xf32> to vector<64x96xf32>
    %91 = arith.addf %88, %90 : vector<64x96xf32>
    %cst_66 = arith.constant 0.000000e+00 : f32
    %92 = vector.broadcast %cst_66 : f32 to vector<64x96xf32>
    %93 = arith.cmpf oge, %91, %92 : vector<64x96xf32>
    %cst_67 = arith.constant 2.000000e-01 : f32
    %94 = vector.broadcast %cst_67 : f32 to vector<64x96xf32>
    %95 = arith.mulf %94, %91 : vector<64x96xf32>
    %96 = arith.select %93, %91, %95 : vector<64x96xi1>, vector<64x96xf32>
    %cst_68 = arith.constant dense<0xFF800000> : vector<96xf32>
    %97 = vector.multi_reduction <maximumf>, %96, %cst_68 [0] : vector<64x96xf32> to vector<96xf32>
    %98 = vector.shape_cast %97 : vector<96xf32> to vector<1x96xf32>
    %c0_69 = arith.constant 0 : index
    %c0_70 = arith.constant 0 : index
    %99 = vector.load %arg21[%c0_69, %c0_70] : memref<96x96xf32, #tpu.memory_space<vmem>>, vector<96x96xf32>
    %cst_71 = arith.constant dense<0.000000e+00> : vector<1x96xf32>
    %100 = tpu.matmul %98, %99, %cst_71 {dimension_numbers = #tpu.dot_dimension_numbers<[1], [0], [0], [1], [0, 0, 1, 1], [], []>} : vector<1x96xf32>, vector<96x96xf32>, vector<1x96xf32> -> vector<1x96xf32>
    %c0_72 = arith.constant 0 : index
    %c0_73 = arith.constant 0 : index
    %101 = vector.load %arg22[%c0_72, %c0_73] : memref<1x96xf32, #tpu.memory_space<vmem>>, vector<1x96xf32>
    %102 = arith.addf %100, %101 : vector<1x96xf32>
    %cst_74 = arith.constant 0.000000e+00 : f32
    %103 = vector.broadcast %cst_74 : f32 to vector<1x96xf32>
    %104 = arith.cmpf oge, %102, %103 : vector<1x96xf32>
    %cst_75 = arith.constant 2.000000e-01 : f32
    %105 = vector.broadcast %cst_75 : f32 to vector<1x96xf32>
    %106 = arith.mulf %105, %102 : vector<1x96xf32>
    %107 = arith.select %104, %102, %106 : vector<1x96xi1>, vector<1x96xf32>
    %c0_76 = arith.constant 0 : index
    %c0_77 = arith.constant 0 : index
    %108 = vector.load %arg23[%c0_76, %c0_77] : memref<96x96xf32, #tpu.memory_space<vmem>>, vector<96x96xf32>
    %cst_78 = arith.constant dense<0.000000e+00> : vector<1x96xf32>
    %109 = tpu.matmul %107, %108, %cst_78 {dimension_numbers = #tpu.dot_dimension_numbers<[1], [0], [0], [1], [0, 0, 1, 1], [], []>} : vector<1x96xf32>, vector<96x96xf32>, vector<1x96xf32> -> vector<1x96xf32>
    %c0_79 = arith.constant 0 : index
    %c0_80 = arith.constant 0 : index
    %110 = vector.load %arg24[%c0_79, %c0_80] : memref<1x96xf32, #tpu.memory_space<vmem>>, vector<1x96xf32>
    %111 = arith.addf %109, %110 : vector<1x96xf32>
    %cst_81 = arith.constant 0.000000e+00 : f32
    %112 = vector.broadcast %cst_81 : f32 to vector<1x96xf32>
    %113 = arith.cmpf oge, %111, %112 : vector<1x96xf32>
    %cst_82 = arith.constant 2.000000e-01 : f32
    %114 = vector.broadcast %cst_82 : f32 to vector<1x96xf32>
    %115 = arith.mulf %114, %111 : vector<1x96xf32>
    %116 = arith.select %113, %111, %115 : vector<1x96xi1>, vector<1x96xf32>
    %c0_83 = arith.constant 0 : index
    %c0_84 = arith.constant 0 : index
    %117 = vector.load %arg25[%c0_83, %c0_84] : memref<96x96xf32, #tpu.memory_space<vmem>>, vector<96x96xf32>
    %cst_85 = arith.constant dense<0.000000e+00> : vector<1x96xf32>
    %118 = tpu.matmul %116, %117, %cst_85 {dimension_numbers = #tpu.dot_dimension_numbers<[1], [0], [0], [1], [0, 0, 1, 1], [], []>} : vector<1x96xf32>, vector<96x96xf32>, vector<1x96xf32> -> vector<1x96xf32>
    %c0_86 = arith.constant 0 : index
    %c0_87 = arith.constant 0 : index
    %119 = vector.load %arg26[%c0_86, %c0_87] : memref<1x96xf32, #tpu.memory_space<vmem>>, vector<1x96xf32>
    %120 = arith.addf %118, %119 : vector<1x96xf32>
    %c0_88 = arith.constant 0 : index
    %c0_89 = arith.constant 0 : index
    %c0_90 = arith.constant 0 : index
    %121 = vector.load %arg28[%c0_88, %c0_89, %c0_90] : memref<1x1x96xf32, #tpu.memory_space<vmem>>, vector<1x1x96xf32>
    %122 = vector.shape_cast %121 : vector<1x1x96xf32> to vector<1x96xf32>
    %123 = vector.shape_cast %120 : vector<1x96xf32> to vector<1x1x96xf32>
    tpu.vector_store %arg28[%c0_88, %c0_89, %c0_90], %123 {strides = array<i32>} : memref<1x1x96xf32, #tpu.memory_space<vmem>>, vector<1x1x96xf32>,
    %124 = tpu.iota {dimensions = array<i32: 0>} : vector<64x1xi32>
    %125 = tpu.iota {dimensions = array<i32: 0>} : vector<16x1xi32>
    %126 = vector.extract_strided_slice %0 {offsets = [0, 0], sizes = [64, 3], strides = [1, 1]} : vector<128x3xf32> to vector<64x3xf32>
    %cst_91 = arith.constant 0x7F800000 : f32
    %127 = vector.broadcast %cst_91 : f32 to vector<64x1xf32>
    %128 = vector.extract_strided_slice %126 {offsets = [0, 0], sizes = [1, 3], strides = [1, 1]} : vector<64x3xf32> to vector<1x3xf32>
    %c0_i32 = arith.constant 0 : i32
    %129 = vector.broadcast %c0_i32 : i32 to vector<16x1xi32>
    %130 = arith.cmpi eq, %125, %129 : vector<16x1xi32>
    %131 = arith.extui %130 : vector<16x1xi1> to vector<16x1xi32>
    %132 = arith.sitofp %131 : vector<16x1xi32> to vector<16x1xf32>
    %133 = vector.broadcast %132 : vector<16x1xf32> to vector<16x3xf32>
    %134 = vector.broadcast %128 : vector<1x3xf32> to vector<16x3xf32>
    %135 = arith.mulf %133, %134 : vector<16x3xf32>
    %c1_i32 = arith.constant 1 : i32
    %c15_i32 = arith.constant 15 : i32
    %136 = arith.addi %c1_i32, %c15_i32 : i32
    %c1_i32_92 = arith.constant 1 : i32
    %137:3 = scf.for %arg30 = %c1_i32 to %136 step %c1_i32_92 iter_args(%arg31 = %127, %arg32 = %128, %arg33 = %135) -> (vector<64x1xf32>, vector<1x3xf32>, vector<16x3xf32>)  : i32 {
      %156 = vector.broadcast %arg32 : vector<1x3xf32> to vector<64x3xf32>
      %157 = arith.subf %126, %156 : vector<64x3xf32>
      %158 = arith.mulf %157, %157 : vector<64x3xf32>
      %cst_107 = arith.constant dense<0.000000e+00> : vector<64xf32>
      %159 = vector.multi_reduction <add>, %158, %cst_107 [1] : vector<64x3xf32> to vector<64xf32>
      %160 = vector.shape_cast %159 : vector<64xf32> to vector<64x1xf32>
      %161 = arith.minimumf %arg31, %160 : vector<64x1xf32>
      %cst_108 = arith.constant dense<0xFF800000> : vector<1xf32>
      %162 = vector.multi_reduction <maximumf>, %161, %cst_108 [0] : vector<64x1xf32> to vector<1xf32>
      %163 = vector.shape_cast %162 : vector<1xf32> to vector<1x1xf32>
      %164 = vector.broadcast %163 : vector<1x1xf32> to vector<64x1xf32>
      %165 = arith.cmpf oge, %161, %164 : vector<64x1xf32>
      %c64_i32 = arith.constant 64 : i32
      %166 = vector.broadcast %c64_i32 : i32 to vector<64x1xi32>
      %167 = arith.select %165, %124, %166 : vector<64x1xi1>, vector<64x1xi32>
      %cst_109 = arith.constant dense<2147483647> : vector<1xi32>
      %168 = vector.multi_reduction <minsi>, %167, %cst_109 [0] : vector<64x1xi32> to vector<1xi32>
      %169 = vector.shape_cast %168 : vector<1xi32> to vector<1x1xi32>
      %170 = vector.broadcast %169 : vector<1x1xi32> to vector<64x1xi32>
      %171 = arith.cmpi eq, %124, %170 : vector<64x1xi32>
      %172 = arith.extui %171 : vector<64x1xi1> to vector<64x1xi32>
      %173 = arith.sitofp %172 : vector<64x1xi32> to vector<64x1xf32>
      %174 = vector.broadcast %173 : vector<64x1xf32> to vector<64x3xf32>
      %175 = arith.mulf %126, %174 : vector<64x3xf32>
      %cst_110 = arith.constant dense<0.000000e+00> : vector<3xf32>
      %176 = vector.multi_reduction <add>, %175, %cst_110 [0] : vector<64x3xf32> to vector<3xf32>
      %177 = vector.shape_cast %176 : vector<3xf32> to vector<1x3xf32>
      %178 = vector.broadcast %arg30 : i32 to vector<16x1xi32>
      %179 = arith.cmpi eq, %125, %178 : vector<16x1xi32>
      %180 = arith.extui %179 : vector<16x1xi1> to vector<16x1xi32>
      %181 = arith.sitofp %180 : vector<16x1xi32> to vector<16x1xf32>
      %182 = vector.broadcast %181 : vector<16x1xf32> to vector<16x3xf32>
      %183 = vector.broadcast %177 : vector<1x3xf32> to vector<16x3xf32>
      %184 = arith.mulf %182, %183 : vector<16x3xf32>
      %185 = arith.addf %arg33, %184 : vector<16x3xf32>
      scf.yield %161, %177, %185 : vector<64x1xf32>, vector<1x3xf32>, vector<16x3xf32>
    }
    %c15_i32_93 = arith.constant 15 : i32
    %c0_94 = arith.constant 0 : index
    %c0_95 = arith.constant 0 : index
    %c0_96 = arith.constant 0 : index
    %c0_97 = arith.constant 0 : index
    %138 = vector.load %arg29[%c0_94, %c0_95, %c0_96, %c0_97] : memref<1x2x16x3xf32, #tpu.memory_space<vmem>>, vector<1x1x16x3xf32>
    %139 = vector.shape_cast %138 : vector<1x1x16x3xf32> to vector<16x3xf32>
    %140 = vector.shape_cast %137#2 : vector<16x3xf32> to vector<1x1x16x3xf32>
    tpu.vector_store %arg29[%c0_94, %c0_95, %c0_96, %c0_97], %140 {strides = array<i32>} : memref<1x2x16x3xf32, #tpu.memory_space<vmem>>, vector<1x1x16x3xf32>,
    %141 = vector.extract_strided_slice %0 {offsets = [64, 0], sizes = [64, 3], strides = [1, 1]} : vector<128x3xf32> to vector<64x3xf32>
    %cst_98 = arith.constant 0x7F800000 : f32
    %142 = vector.broadcast %cst_98 : f32 to vector<64x1xf32>
    %143 = vector.extract_strided_slice %141 {offsets = [0, 0], sizes = [1, 3], strides = [1, 1]} : vector<64x3xf32> to vector<1x3xf32>
    %c0_i32_99 = arith.constant 0 : i32
    %144 = vector.broadcast %c0_i32_99 : i32 to vector<16x1xi32>
    %145 = arith.cmpi eq, %125, %144 : vector<16x1xi32>
    %146 = arith.extui %145 : vector<16x1xi1> to vector<16x1xi32>
    %147 = arith.sitofp %146 : vector<16x1xi32> to vector<16x1xf32>
    %148 = vector.broadcast %147 : vector<16x1xf32> to vector<16x3xf32>
    %149 = vector.broadcast %143 : vector<1x3xf32> to vector<16x3xf32>
    %150 = arith.mulf %148, %149 : vector<16x3xf32>
    %c1_i32_100 = arith.constant 1 : i32
    %c15_i32_101 = arith.constant 15 : i32
    %151 = arith.addi %c1_i32_100, %c15_i32_101 : i32
    %c1_i32_102 = arith.constant 1 : i32
    %152:3 = scf.for %arg30 = %c1_i32_100 to %151 step %c1_i32_102 iter_args(%arg31 = %142, %arg32 = %143, %arg33 = %150) -> (vector<64x1xf32>, vector<1x3xf32>, vector<16x3xf32>)  : i32 {
      %156 = vector.broadcast %arg32 : vector<1x3xf32> to vector<64x3xf32>
      %157 = arith.subf %141, %156 : vector<64x3xf32>
      %158 = arith.mulf %157, %157 : vector<64x3xf32>
      %cst_107 = arith.constant dense<0.000000e+00> : vector<64xf32>
      %159 = vector.multi_reduction <add>, %158, %cst_107 [1] : vector<64x3xf32> to vector<64xf32>
      %160 = vector.shape_cast %159 : vector<64xf32> to vector<64x1xf32>
      %161 = arith.minimumf %arg31, %160 : vector<64x1xf32>
      %cst_108 = arith.constant dense<0xFF800000> : vector<1xf32>
      %162 = vector.multi_reduction <maximumf>, %161, %cst_108 [0] : vector<64x1xf32> to vector<1xf32>
      %163 = vector.shape_cast %162 : vector<1xf32> to vector<1x1xf32>
      %164 = vector.broadcast %163 : vector<1x1xf32> to vector<64x1xf32>
      %165 = arith.cmpf oge, %161, %164 : vector<64x1xf32>
      %c64_i32 = arith.constant 64 : i32
      %166 = vector.broadcast %c64_i32 : i32 to vector<64x1xi32>
      %167 = arith.select %165, %124, %166 : vector<64x1xi1>, vector<64x1xi32>
      %cst_109 = arith.constant dense<2147483647> : vector<1xi32>
      %168 = vector.multi_reduction <minsi>, %167, %cst_109 [0] : vector<64x1xi32> to vector<1xi32>
      %169 = vector.shape_cast %168 : vector<1xi32> to vector<1x1xi32>
      %170 = vector.broadcast %169 : vector<1x1xi32> to vector<64x1xi32>
      %171 = arith.cmpi eq, %124, %170 : vector<64x1xi32>
      %172 = arith.extui %171 : vector<64x1xi1> to vector<64x1xi32>
      %173 = arith.sitofp %172 : vector<64x1xi32> to vector<64x1xf32>
      %174 = vector.broadcast %173 : vector<64x1xf32> to vector<64x3xf32>
      %175 = arith.mulf %141, %174 : vector<64x3xf32>
      %cst_110 = arith.constant dense<0.000000e+00> : vector<3xf32>
      %176 = vector.multi_reduction <add>, %175, %cst_110 [0] : vector<64x3xf32> to vector<3xf32>
      %177 = vector.shape_cast %176 : vector<3xf32> to vector<1x3xf32>
      %178 = vector.broadcast %arg30 : i32 to vector<16x1xi32>
      %179 = arith.cmpi eq, %125, %178 : vector<16x1xi32>
      %180 = arith.extui %179 : vector<16x1xi1> to vector<16x1xi32>
      %181 = arith.sitofp %180 : vector<16x1xi32> to vector<16x1xf32>
      %182 = vector.broadcast %181 : vector<16x1xf32> to vector<16x3xf32>
      %183 = vector.broadcast %177 : vector<1x3xf32> to vector<16x3xf32>
      %184 = arith.mulf %182, %183 : vector<16x3xf32>
      %185 = arith.addf %arg33, %184 : vector<16x3xf32>
      scf.yield %161, %177, %185 : vector<64x1xf32>, vector<1x3xf32>, vector<16x3xf32>
    }
    %c15_i32_103 = arith.constant 15 : i32
    %c0_104 = arith.constant 0 : index
    %c1 = arith.constant 1 : index
    %c0_105 = arith.constant 0 : index
    %c0_106 = arith.constant 0 : index
    %153 = vector.load %arg29[%c0_104, %c1, %c0_105, %c0_106] : memref<1x2x16x3xf32, #tpu.memory_space<vmem>>, vector<1x1x16x3xf32>
    %154 = vector.shape_cast %153 : vector<1x1x16x3xf32> to vector<16x3xf32>
    %155 = vector.shape_cast %152#2 : vector<16x3xf32> to vector<1x1x16x3xf32>
    tpu.vector_store %arg29[%c0_104, %c1, %c0_105, %c0_106], %155 {strides = array<i32>} : memref<1x2x16x3xf32, #tpu.memory_space<vmem>>, vector<1x1x16x3xf32>,
    return
  }
  func.func @transform_0(%arg0: i32) -> (i32, i32) {
    %c0_i32 = arith.constant 0 : i32
    %c0_i32_0 = arith.constant 0 : i32
    return %arg0, %c0_i32 : i32, i32
  }
  func.func @transform_1(%arg0: i32) -> (i32, i32) {
    %c0_i32 = arith.constant 0 : i32
    %c0_i32_0 = arith.constant 0 : i32
    return %arg0, %c0_i32 : i32, i32
  }
  func.func @transform_2(%arg0: i32) -> (i32, i32) {
    %c0_i32 = arith.constant 0 : i32
    %c0_i32_0 = arith.constant 0 : i32
    %c0_i32_1 = arith.constant 0 : i32
    return %c0_i32, %c0_i32_0 : i32, i32
  }
  func.func @transform_3(%arg0: i32) -> (i32, i32) {
    %c0_i32 = arith.constant 0 : i32
    %c0_i32_0 = arith.constant 0 : i32
    %c0_i32_1 = arith.constant 0 : i32
    return %c0_i32, %c0_i32_0 : i32, i32
  }
  func.func @transform_4(%arg0: i32) -> (i32, i32) {
    %c0_i32 = arith.constant 0 : i32
    %c0_i32_0 = arith.constant 0 : i32
    %c0_i32_1 = arith.constant 0 : i32
    return %c0_i32, %c0_i32_0 : i32, i32
  }
  func.func @transform_5(%arg0: i32) -> (i32, i32) {
    %c0_i32 = arith.constant 0 : i32
    %c0_i32_0 = arith.constant 0 : i32
    %c0_i32_1 = arith.constant 0 : i32
    return %c0_i32, %c0_i32_0 : i32, i32
  }
  func.func @transform_6(%arg0: i32) -> (i32, i32) {
    %c0_i32 = arith.constant 0 : i32
    %c0_i32_0 = arith.constant 0 : i32
    %c0_i32_1 = arith.constant 0 : i32
    return %c0_i32, %c0_i32_0 : i32, i32
  }
  func.func @transform_7(%arg0: i32) -> (i32, i32) {
    %c0_i32 = arith.constant 0 : i32
    %c0_i32_0 = arith.constant 0 : i32
    %c0_i32_1 = arith.constant 0 : i32
    return %c0_i32, %c0_i32_0 : i32, i32
  }
  func.func @transform_8(%arg0: i32) -> (i32, i32) {
    %c0_i32 = arith.constant 0 : i32
    %c0_i32_0 = arith.constant 0 : i32
    %c0_i32_1 = arith.constant 0 : i32
    return %c0_i32, %c0_i32_0 : i32, i32
  }
  func.func @transform_9(%arg0: i32) -> (i32, i32) {
    %c0_i32 = arith.constant 0 : i32
    %c0_i32_0 = arith.constant 0 : i32
    %c0_i32_1 = arith.constant 0 : i32
    return %c0_i32, %c0_i32_0 : i32, i32
  }
  func.func @transform_10(%arg0: i32) -> (i32, i32) {
    %c0_i32 = arith.constant 0 : i32
    %c0_i32_0 = arith.constant 0 : i32
    %c0_i32_1 = arith.constant 0 : i32
    return %c0_i32, %c0_i32_0 : i32, i32
  }
  func.func @transform_11(%arg0: i32) -> (i32, i32) {
    %c0_i32 = arith.constant 0 : i32
    %c0_i32_0 = arith.constant 0 : i32
    %c0_i32_1 = arith.constant 0 : i32
    return %c0_i32, %c0_i32_0 : i32, i32
  }
  func.func @transform_12(%arg0: i32) -> (i32, i32) {
    %c0_i32 = arith.constant 0 : i32
    %c0_i32_0 = arith.constant 0 : i32
    %c0_i32_1 = arith.constant 0 : i32
    return %c0_i32, %c0_i32_0 : i32, i32
  }
  func.func @transform_13(%arg0: i32) -> (i32, i32) {
    %c0_i32 = arith.constant 0 : i32
    %c0_i32_0 = arith.constant 0 : i32
    %c0_i32_1 = arith.constant 0 : i32
    return %c0_i32, %c0_i32_0 : i32, i32
  }
  func.func @transform_14(%arg0: i32) -> (i32, i32) {
    %c0_i32 = arith.constant 0 : i32
    %c0_i32_0 = arith.constant 0 : i32
    %c0_i32_1 = arith.constant 0 : i32
    return %c0_i32, %c0_i32_0 : i32, i32
  }
  func.func @transform_15(%arg0: i32) -> (i32, i32) {
    %c0_i32 = arith.constant 0 : i32
    %c0_i32_0 = arith.constant 0 : i32
    %c0_i32_1 = arith.constant 0 : i32
    return %c0_i32, %c0_i32_0 : i32, i32
  }
  func.func @transform_16(%arg0: i32) -> (i32, i32) {
    %c0_i32 = arith.constant 0 : i32
    %c0_i32_0 = arith.constant 0 : i32
    %c0_i32_1 = arith.constant 0 : i32
    return %c0_i32, %c0_i32_0 : i32, i32
  }
  func.func @transform_17(%arg0: i32) -> (i32, i32) {
    %c0_i32 = arith.constant 0 : i32
    %c0_i32_0 = arith.constant 0 : i32
    %c0_i32_1 = arith.constant 0 : i32
    return %c0_i32, %c0_i32_0 : i32, i32
  }
  func.func @transform_18(%arg0: i32) -> (i32, i32) {
    %c0_i32 = arith.constant 0 : i32
    %c0_i32_0 = arith.constant 0 : i32
    %c0_i32_1 = arith.constant 0 : i32
    return %c0_i32, %c0_i32_0 : i32, i32
  }
  func.func @transform_19(%arg0: i32) -> (i32, i32) {
    %c0_i32 = arith.constant 0 : i32
    %c0_i32_0 = arith.constant 0 : i32
    %c0_i32_1 = arith.constant 0 : i32
    return %c0_i32, %c0_i32_0 : i32, i32
  }
  func.func @transform_20(%arg0: i32) -> (i32, i32) {
    %c0_i32 = arith.constant 0 : i32
    %c0_i32_0 = arith.constant 0 : i32
    %c0_i32_1 = arith.constant 0 : i32
    return %c0_i32, %c0_i32_0 : i32, i32
  }
  func.func @transform_21(%arg0: i32) -> (i32, i32) {
    %c0_i32 = arith.constant 0 : i32
    %c0_i32_0 = arith.constant 0 : i32
    %c0_i32_1 = arith.constant 0 : i32
    return %c0_i32, %c0_i32_0 : i32, i32
  }
  func.func @transform_22(%arg0: i32) -> (i32, i32) {
    %c0_i32 = arith.constant 0 : i32
    %c0_i32_0 = arith.constant 0 : i32
    %c0_i32_1 = arith.constant 0 : i32
    return %c0_i32, %c0_i32_0 : i32, i32
  }
  func.func @transform_23(%arg0: i32) -> (i32, i32) {
    %c0_i32 = arith.constant 0 : i32
    %c0_i32_0 = arith.constant 0 : i32
    %c0_i32_1 = arith.constant 0 : i32
    return %c0_i32, %c0_i32_0 : i32, i32
  }
  func.func @transform_24(%arg0: i32) -> (i32, i32) {
    %c0_i32 = arith.constant 0 : i32
    %c0_i32_0 = arith.constant 0 : i32
    %c0_i32_1 = arith.constant 0 : i32
    return %c0_i32, %c0_i32_0 : i32, i32
  }
  func.func @transform_25(%arg0: i32) -> (i32, i32) {
    %c0_i32 = arith.constant 0 : i32
    %c0_i32_0 = arith.constant 0 : i32
    %c0_i32_1 = arith.constant 0 : i32
    return %c0_i32, %c0_i32_0 : i32, i32
  }
  func.func @transform_26(%arg0: i32) -> (i32, i32, i32) {
    %c0_i32 = arith.constant 0 : i32
    %c0_i32_0 = arith.constant 0 : i32
    %c0_i32_1 = arith.constant 0 : i32
    return %arg0, %c0_i32, %c0_i32_0 : i32, i32, i32
  }
  func.func @transform_27(%arg0: i32) -> (i32, i32, i32) {
    %c0_i32 = arith.constant 0 : i32
    %c0_i32_0 = arith.constant 0 : i32
    %c0_i32_1 = arith.constant 0 : i32
    return %arg0, %c0_i32, %c0_i32_0 : i32, i32, i32
  }
  func.func @transform_28(%arg0: i32) -> (i32, i32, i32, i32) {
    %c0_i32 = arith.constant 0 : i32
    %c0_i32_0 = arith.constant 0 : i32
    %c0_i32_1 = arith.constant 0 : i32
    %c0_i32_2 = arith.constant 0 : i32
    return %arg0, %c0_i32, %c0_i32_0, %c0_i32_1 : i32, i32, i32, i32
  }
}

</mosaic_0001>

<llo_original>
// kernel: cage_skinning_forward.2
$region0: #{cage_skinning_forward.2}
  #allocation0 [shape = 'u32[]', space=smem, size = 0x4, offset = 0x4, fixed_abs, tag = 'smem constant byte address 0x4 - core index']
  #allocation1 [shape = 'u32[144,128]{1,0:T(1,128)}', space=vmem, size = 0x12000, scoped, tag = 'internal scratch']
  %s0 = inlined_call_operand.vmem [shape: f32[256,3], index: 0, kind: input, shape index: {}, may-alias: {0,1}]
  %s1 = inlined_call_operand.vmem [shape: f32[256,3], index: 1, kind: input, shape index: {}, may-alias: {0,1}]
  %s2 = inlined_call_operand.vmem [shape: f32[3,64], index: 2, kind: input, shape index: {}]
  %s3 = inlined_call_operand.vmem [shape: f32[1,64], index: 3, kind: input, shape index: {}]
  %s4 = inlined_call_operand.vmem [shape: f32[64,128], index: 4, kind: input, shape index: {}]
  %s5 = inlined_call_operand.vmem [shape: f32[1,128], index: 5, kind: input, shape index: {}]
  %s6 = inlined_call_operand.vmem [shape: f32[128,32], index: 6, kind: input, shape index: {}]
  %s7 = inlined_call_operand.vmem [shape: f32[1,32], index: 7, kind: input, shape index: {}]
  %s8 = inlined_call_operand.vmem [shape: f32[32,32], index: 8, kind: input, shape index: {}]
  %s9 = inlined_call_operand.vmem [shape: f32[1,32], index: 9, kind: input, shape index: {}]
  %s10 = inlined_call_operand.vmem [shape: f32[32,64], index: 10, kind: input, shape index: {}]
  %s11 = inlined_call_operand.vmem [shape: f32[1,64], index: 11, kind: input, shape index: {}]
  %s12 = inlined_call_operand.vmem [shape: f32[64,24], index: 12, kind: input, shape index: {}]
  %s13 = inlined_call_operand.vmem [shape: f32[1,24], index: 13, kind: input, shape index: {}]
  %s14 = inlined_call_operand.vmem [shape: f32[3,64], index: 14, kind: input, shape index: {}]
  %s15 = inlined_call_operand.vmem [shape: f32[1,64], index: 15, kind: input, shape index: {}]
  %s16 = inlined_call_operand.vmem [shape: f32[64,128], index: 16, kind: input, shape index: {}]
  %s17 = inlined_call_operand.vmem [shape: f32[1,128], index: 17, kind: input, shape index: {}]
  %s18 = inlined_call_operand.vmem [shape: f32[128,96], index: 18, kind: input, shape index: {}]
  %s19 = inlined_call_operand.vmem [shape: f32[1,96], index: 19, kind: input, shape index: {}]
  %s20 = inlined_call_operand.vmem [shape: f32[96,96], index: 20, kind: input, shape index: {}]
  %s21 = inlined_call_operand.vmem [shape: f32[1,96], index: 21, kind: input, shape index: {}]
  %s22 = inlined_call_operand.vmem [shape: f32[96,96], index: 22, kind: input, shape index: {}]
  %s23 = inlined_call_operand.vmem [shape: f32[1,96], index: 23, kind: input, shape index: {}]
  %s24 = inlined_call_operand.vmem [shape: f32[96,96], index: 24, kind: input, shape index: {}]
  %s25 = inlined_call_operand.vmem [shape: f32[1,96], index: 25, kind: input, shape index: {}]
  %s26 = inlined_call_operand.vmem [shape: f32[2,2,24], index: 26, kind: output, shape index: {0}]
  %s27 = inlined_call_operand.vmem [shape: f32[2,1,96], index: 27, kind: output, shape index: {1}]
  %s28 = inlined_call_operand.vmem [shape: f32[2,2,16,3], index: 28, kind: output, shape index: {2}]
  %29 = xla_tuple %s26, %s27, %s28
  %s30 = sld [smem:[#allocation0]]
  $region167: #{cage_skinning_forward.2} parent=0
    _
  %s32 = ssub.s32 1, %s30
  %s33 = scalar_select 0, %s32, %s30
  loop: start=0, step=1, limit=4
  $region2: #{cage_skinning_forward.2} parent=0 // loop_pre_header
    _
  $region3: #{cage_skinning_forward.2} parent=0 // loop_header
    %s35 = sphi 0, %s39
    %p36 = scmp.ge.s32.totalorder %s35, 4
    %s45 = sphi 0, %s47
    %s48 = sphi 0, %s45
    %s49 = sphi 0, %s48
    %s65 = sphi 0, %s49
    %s71 = sphi 0, %s73
    %s74 = sphi 0, %s71
    %s75 = sphi 0, %s74
    %s91 = sphi 0, %s75
    %s95 = sphi 0, %s95
    %s97 = sphi 0, %s95
    %s98 = sphi 0, %s97
    %s112 = sphi 0, %s98
    %s116 = sphi 0, %s116
    %s118 = sphi 0, %s116
    %s119 = sphi 0, %s118
    %s133 = sphi 0, %s119
    %s137 = sphi 0, %s137
    %s139 = sphi 0, %s137
    %s140 = sphi 0, %s139
    %s154 = sphi 0, %s140
    %s158 = sphi 0, %s158
    %s160 = sphi 0, %s158
    %s161 = sphi 0, %s160
    %s175 = sphi 0, %s161
    %s179 = sphi 0, %s179
    %s181 = sphi 0, %s179
    %s182 = sphi 0, %s181
    %s196 = sphi 0, %s182
    %s200 = sphi 0, %s200
    %s202 = sphi 0, %s200
    %s203 = sphi 0, %s202
    %s217 = sphi 0, %s203
    %s221 = sphi 0, %s221
    %s223 = sphi 0, %s221
    %s224 = sphi 0, %s223
    %s238 = sphi 0, %s224
    %s242 = sphi 0, %s242
    %s244 = sphi 0, %s242
    %s245 = sphi 0, %s244
    %s259 = sphi 0, %s245
    %s263 = sphi 0, %s263
    %s265 = sphi 0, %s263
    %s266 = sphi 0, %s265
    %s280 = sphi 0, %s266
    %s284 = sphi 0, %s284
    %s286 = sphi 0, %s284
    %s287 = sphi 0, %s286
    %s301 = sphi 0, %s287
    %s305 = sphi 0, %s305
    %s307 = sphi 0, %s305
    %s308 = sphi 0, %s307
    %s322 = sphi 0, %s308
    %s326 = sphi 0, %s326
    %s328 = sphi 0, %s326
    %s329 = sphi 0, %s328
    %s343 = sphi 0, %s329
    %s347 = sphi 0, %s347
    %s349 = sphi 0, %s347
    %s350 = sphi 0, %s349
    %s364 = sphi 0, %s350
    %s368 = sphi 0, %s368
    %s370 = sphi 0, %s368
    %s371 = sphi 0, %s370
    %s385 = sphi 0, %s371
    %s389 = sphi 0, %s389
    %s391 = sphi 0, %s389
    %s392 = sphi 0, %s391
    %s406 = sphi 0, %s392
    %s410 = sphi 0, %s410
    %s412 = sphi 0, %s410
    %s413 = sphi 0, %s412
    %s427 = sphi 0, %s413
    %s431 = sphi 0, %s431
    %s433 = sphi 0, %s431
    %s434 = sphi 0, %s433
    %s448 = sphi 0, %s434
    %s452 = sphi 0, %s452
    %s454 = sphi 0, %s452
    %s455 = sphi 0, %s454
    %s469 = sphi 0, %s455
    %s473 = sphi 0, %s473
    %s475 = sphi 0, %s473
    %s476 = sphi 0, %s475
    %s490 = sphi 0, %s476
    %s494 = sphi 0, %s494
    %s496 = sphi 0, %s494
    %s497 = sphi 0, %s496
    %s511 = sphi 0, %s497
    %s515 = sphi 0, %s515
    %s517 = sphi 0, %s515
    %s518 = sphi 0, %s517
    %s532 = sphi 0, %s518
    %s536 = sphi 0, %s536
    %s538 = sphi 0, %s536
    %s539 = sphi 0, %s538
    %s553 = sphi 0, %s539
    %s557 = sphi 0, %s557
    %s559 = sphi 0, %s557
    %s560 = sphi 0, %s559
    %s574 = sphi 0, %s560
    %s578 = sphi 0, %s578
    %s580 = sphi 0, %s578
    %s581 = sphi 0, %s580
    %s595 = sphi 0, %s581
    %s601 = sphi 0, %s603
    %s604 = sphi 0, %s601
    %s605 = sphi 0, %s604
    %s621 = sphi 0, %s605
    %s627 = sphi 0, %s629
    %s630 = sphi 0, %s627
    %s631 = sphi 0, %s630
    %s647 = sphi 0, %s631
    %s653 = sphi 0, %s655
    %s656 = sphi 0, %s653
    %s657 = sphi 0, %s656
    %s673 = sphi 0, %s657
  $region4: #{cage_skinning_forward.2} parent=0 // loop_header_branch
    %38 = sbr.rel (%p36) target = $region8
  $region5: #{cage_skinning_forward.2} parent=0 // loop_body
    %s40 = ssub.s32 %s35, 1
    %s41 = ssub.s32 %s35, 2
    %s42 = sadd.s32 %s35, 1
    %s43 = ssub.s32 %s35, %s42
    %p44 = scmp.eq.s32.totalorder %s43, 0
    %s46 = sadd.s32 %s45, 1
    %s47 = scalar_select %p44, %s45, %s46
    %p50 = pneg %p44
    %p51 = scmp.eq.s32.totalorder %s35, 1
    %p52 = por %p50, %p51
    %p53 = scmp.ne.s32.totalorder %s45, %s48
    %p54 = scmp.eq.s32.totalorder %s35, 0
    %p55 = por %p53, %p54
    %p56 = scmp.ne.s32.totalorder %s45, %s48
    %p57 = scmp.eq.s32.totalorder %s40, 1
    %p58 = por %p56, %p57
    %p59 = scmp.ne.s32.totalorder %s48, %s49
    %p60 = scmp.eq.s32.totalorder %s40, 0
    %p61 = por %p59, %p60
    %p62 = scmp.ne.s32.totalorder %s48, %s49
    %p63 = scmp.eq.s32.totalorder %s41, 1
    %p64 = por %p62, %p63
    %p66 = scmp.ne.s32.totalorder %s49, %s65
    %p67 = scmp.eq.s32.totalorder %s41, 0
    %p68 = por %p66, %p67
    %s69 = ssub.s32 %s35, %s42
    %p70 = scmp.eq.s32.totalorder %s69, 0
    %s72 = sadd.s32 %s71, 1
    %s73 = scalar_select %p70, %s71, %s72
    %p76 = pneg %p70
    %p77 = scmp.eq.s32.totalorder %s35, 1
    %p78 = por %p76, %p77
    %p79 = scmp.ne.s32.totalorder %s71, %s74
    %p80 = scmp.eq.s32.totalorder %s35, 0
    %p81 = por %p79, %p80
    %p82 = scmp.ne.s32.totalorder %s71, %s74
    %p83 = scmp.eq.s32.totalorder %s40, 1
    %p84 = por %p82, %p83
    %p85 = scmp.ne.s32.totalorder %s74, %s75
    %p86 = scmp.eq.s32.totalorder %s40, 0
    %p87 = por %p85, %p86
    %p88 = scmp.ne.s32.totalorder %s74, %s75
    %p89 = scmp.eq.s32.totalorder %s41, 1
    %p90 = por %p88, %p89
    %p92 = scmp.ne.s32.totalorder %s75, %s91
    %p93 = scmp.eq.s32.totalorder %s41, 0
    %p94 = por %p92, %p93
    %s96 = sadd.s32 %s95, 1
    %p99 = scmp.eq.s32.totalorder %s35, 1
    %p100 = scmp.ne.s32.totalorder %s95, %s97
    %p101 = scmp.eq.s32.totalorder %s35, 0
    %p102 = por %p100, %p101
    %p103 = scmp.ne.s32.totalorder %s95, %s97
    %p104 = scmp.eq.s32.totalorder %s40, 1
    %p105 = por %p103, %p104
    %p106 = scmp.ne.s32.totalorder %s97, %s98
    %p107 = scmp.eq.s32.totalorder %s40, 0
    %p108 = por %p106, %p107
    %p109 = scmp.ne.s32.totalorder %s97, %s98
    %p110 = scmp.eq.s32.totalorder %s41, 1
    %p111 = por %p109, %p110
    %p113 = scmp.ne.s32.totalorder %s98, %s112
    %p114 = scmp.eq.s32.totalorder %s41, 0
    %p115 = por %p113, %p114
    %s117 = sadd.s32 %s116, 1
    %p120 = scmp.eq.s32.totalorder %s35, 1
    %p121 = scmp.ne.s32.totalorder %s116, %s118
    %p122 = scmp.eq.s32.totalorder %s35, 0
    %p123 = por %p121, %p122
    %p124 = scmp.ne.s32.totalorder %s116, %s118
    %p125 = scmp.eq.s32.totalorder %s40, 1
    %p126 = por %p124, %p125
    %p127 = scmp.ne.s32.totalorder %s118, %s119
    %p128 = scmp.eq.s32.totalorder %s40, 0
    %p129 = por %p127, %p128
    %p130 = scmp.ne.s32.totalorder %s118, %s119
    %p131 = scmp.eq.s32.totalorder %s41, 1
    %p132 = por %p130, %p131
    %p134 = scmp.ne.s32.totalorder %s119, %s133
    %p135 = scmp.eq.s32.totalorder %s41, 0
    %p136 = por %p134, %p135
    %s138 = sadd.s32 %s137, 1
    %p141 = scmp.eq.s32.totalorder %s35, 1
    %p142 = scmp.ne.s32.totalorder %s137, %s139
    %p143 = scmp.eq.s32.totalorder %s35, 0
    %p144 = por %p142, %p143
    %p145 = scmp.ne.s32.totalorder %s137, %s139
    %p146 = scmp.eq.s32.totalorder %s40, 1
    %p147 = por %p145, %p146
    %p148 = scmp.ne.s32.totalorder %s139, %s140
    %p149 = scmp.eq.s32.totalorder %s40, 0
    %p150 = por %p148, %p149
    %p151 = scmp.ne.s32.totalorder %s139, %s140
    %p152 = scmp.eq.s32.totalorder %s41, 1
    %p153 = por %p151, %p152
    %p155 = scmp.ne.s32.totalorder %s140, %s154
    %p156 = scmp.eq.s32.totalorder %s41, 0
    %p157 = por %p155, %p156
    %s159 = sadd.s32 %s158, 1
    %p162 = scmp.eq.s32.totalorder %s35, 1
    %p163 = scmp.ne.s32.totalorder %s158, %s160
    %p164 = scmp.eq.s32.totalorder %s35, 0
    %p165 = por %p163, %p164
    %p166 = scmp.ne.s32.totalorder %s158, %s160
    %p167 = scmp.eq.s32.totalorder %s40, 1
    %p168 = por %p166, %p167
    %p169 = scmp.ne.s32.totalorder %s160, %s161
    %p170 = scmp.eq.s32.totalorder %s40, 0
    %p171 = por %p169, %p170
    %p172 = scmp.ne.s32.totalorder %s160, %s161
    %p173 = scmp.eq.s32.totalorder %s41, 1
    %p174 = por %p172, %p173
    %p176 = scmp.ne.s32.totalorder %s161, %s175
    %p177 = scmp.eq.s32.totalorder %s41, 0
    %p178 = por %p176, %p177
    %s180 = sadd.s32 %s179, 1
    %p183 = scmp.eq.s32.totalorder %s35, 1
    %p184 = scmp.ne.s32.totalorder %s179, %s181
    %p185 = scmp.eq.s32.totalorder %s35, 0
    %p186 = por %p184, %p185
    %p187 = scmp.ne.s32.totalorder %s179, %s181
    %p188 = scmp.eq.s32.totalorder %s40, 1
    %p189 = por %p187, %p188
    %p190 = scmp.ne.s32.totalorder %s181, %s182
    %p191 = scmp.eq.s32.totalorder %s40, 0
    %p192 = por %p190, %p191
    %p193 = scmp.ne.s32.totalorder %s181, %s182
    %p194 = scmp.eq.s32.totalorder %s41, 1
    %p195 = por %p193, %p194
    %p197 = scmp.ne.s32.totalorder %s182, %s196
    %p198 = scmp.eq.s32.totalorder %s41, 0
    %p199 = por %p197, %p198
    %s201 = sadd.s32 %s200, 1
    %p204 = scmp.eq.s32.totalorder %s35, 1
    %p205 = scmp.ne.s32.totalorder %s200, %s202
    %p206 = scmp.eq.s32.totalorder %s35, 0
    %p207 = por %p205, %p206
    %p208 = scmp.ne.s32.totalorder %s200, %s202
    %p209 = scmp.eq.s32.totalorder %s40, 1
    %p210 = por %p208, %p209
    %p211 = scmp.ne.s32.totalorder %s202, %s203
    %p212 = scmp.eq.s32.totalorder %s40, 0
    %p213 = por %p211, %p212
    %p214 = scmp.ne.s32.totalorder %s202, %s203
    %p215 = scmp.eq.s32.totalorder %s41, 1
    %p216 = por %p214, %p215
    %p218 = scmp.ne.s32.totalorder %s203, %s217
    %p219 = scmp.eq.s32.totalorder %s41, 0
    %p220 = por %p218, %p219
    %s222 = sadd.s32 %s221, 1
    %p225 = scmp.eq.s32.totalorder %s35, 1
    %p226 = scmp.ne.s32.totalorder %s221, %s223
    %p227 = scmp.eq.s32.totalorder %s35, 0
    %p228 = por %p226, %p227
    %p229 = scmp.ne.s32.totalorder %s221, %s223
    %p230 = scmp.eq.s32.totalorder %s40, 1
    %p231 = por %p229, %p230
    %p232 = scmp.ne.s32.totalorder %s223, %s224
    %p233 = scmp.eq.s32.totalorder %s40, 0
    %p234 = por %p232, %p233
    %p235 = scmp.ne.s32.totalorder %s223, %s224
    %p236 = scmp.eq.s32.totalorder %s41, 1
    %p237 = por %p235, %p236
    %p239 = scmp.ne.s32.totalorder %s224, %s238
    %p240 = scmp.eq.s32.totalorder %s41, 0
    %p241 = por %p239, %p240
    %s243 = sadd.s32 %s242, 1
    %p246 = scmp.eq.s32.totalorder %s35, 1
    %p247 = scmp.ne.s32.totalorder %s242, %s244
    %p248 = scmp.eq.s32.totalorder %s35, 0
    %p249 = por %p247, %p248
    %p250 = scmp.ne.s32.totalorder %s242, %s244
    %p251 = scmp.eq.s32.totalorder %s40, 1
    %p252 = por %p250, %p251
    %p253 = scmp.ne.s32.totalorder %s244, %s245
    %p254 = scmp.eq.s32.totalorder %s40, 0
    %p255 = por %p253, %p254
    %p256 = scmp.ne.s32.totalorder %s244, %s245
    %p257 = scmp.eq.s32.totalorder %s41, 1
    %p258 = por %p256, %p257
    %p260 = scmp.ne.s32.totalorder %s245, %s259
    %p261 = scmp.eq.s32.totalorder %s41, 0
    %p262 = por %p260, %p261
    %s264 = sadd.s32 %s263, 1
    %p267 = scmp.eq.s32.totalorder %s35, 1
    %p268 = scmp.ne.s32.totalorder %s263, %s265
    %p269 = scmp.eq.s32.totalorder %s35, 0
    %p270 = por %p268, %p269
    %p271 = scmp.ne.s32.totalorder %s263, %s265
    %p272 = scmp.eq.s32.totalorder %s40, 1
    %p273 = por %p271, %p272
    %p274 = scmp.ne.s32.totalorder %s265, %s266
    %p275 = scmp.eq.s32.totalorder %s40, 0
    %p276 = por %p274, %p275
    %p277 = scmp.ne.s32.totalorder %s265, %s266
    %p278 = scmp.eq.s32.totalorder %s41, 1
    %p279 = por %p277, %p278
    %p281 = scmp.ne.s32.totalorder %s266, %s280
    %p282 = scmp.eq.s32.totalorder %s41, 0
    %p283 = por %p281, %p282
    %s285 = sadd.s32 %s284, 1
    %p288 = scmp.eq.s32.totalorder %s35, 1
    %p289 = scmp.ne.s32.totalorder %s284, %s286
    %p290 = scmp.eq.s32.totalorder %s35, 0
    %p291 = por %p289, %p290
    %p292 = scmp.ne.s32.totalorder %s284, %s286
    %p293 = scmp.eq.s32.totalorder %s40, 1
    %p294 = por %p292, %p293
    %p295 = scmp.ne.s32.totalorder %s286, %s287
    %p296 = scmp.eq.s32.totalorder %s40, 0
    %p297 = por %p295, %p296
    %p298 = scmp.ne.s32.totalorder %s286, %s287
    %p299 = scmp.eq.s32.totalorder %s41, 1
    %p300 = por %p298, %p299
    %p302 = scmp.ne.s32.totalorder %s287, %s301
    %p303 = scmp.eq.s32.totalorder %s41, 0
    %p304 = por %p302, %p303
    %s306 = sadd.s32 %s305, 1
    %p309 = scmp.eq.s32.totalorder %s35, 1
    %p310 = scmp.ne.s32.totalorder %s305, %s307
    %p311 = scmp.eq.s32.totalorder %s35, 0
    %p312 = por %p310, %p311
    %p313 = scmp.ne.s32.totalorder %s305, %s307
    %p314 = scmp.eq.s32.totalorder %s40, 1
    %p315 = por %p313, %p314
    %p316 = scmp.ne.s32.totalorder %s307, %s308
    %p317 = scmp.eq.s32.totalorder %s40, 0
    %p318 = por %p316, %p317
    %p319 = scmp.ne.s32.totalorder %s307, %s308
    %p320 = scmp.eq.s32.totalorder %s41, 1
    %p321 = por %p319, %p320
    %p323 = scmp.ne.s32.totalorder %s308, %s322
    %p324 = scmp.eq.s32.totalorder %s41, 0
    %p325 = por %p323, %p324
    %s327 = sadd.s32 %s326, 1
    %p330 = scmp.eq.s32.totalorder %s35, 1
    %p331 = scmp.ne.s32.totalorder %s326, %s328
    %p332 = scmp.eq.s32.totalorder %s35, 0
    %p333 = por %p331, %p332
    %p334 = scmp.ne.s32.totalorder %s326, %s328
    %p335 = scmp.eq.s32.totalorder %s40, 1
    %p336 = por %p334, %p335
    %p337 = scmp.ne.s32.totalorder %s328, %s329
    %p338 = scmp.eq.s32.totalorder %s40, 0
    %p339 = por %p337, %p338
    %p340 = scmp.ne.s32.totalorder %s328, %s329
    %p341 = scmp.eq.s32.totalorder %s41, 1
    %p342 = por %p340, %p341
    %p344 = scmp.ne.s32.totalorder %s329, %s343
    %p345 = scmp.eq.s32.totalorder %s41, 0
    %p346 = por %p344, %p345
    %s348 = sadd.s32 %s347, 1
    %p351 = scmp.eq.s32.totalorder %s35, 1
    %p352 = scmp.ne.s32.totalorder %s347, %s349
    %p353 = scmp.eq.s32.totalorder %s35, 0
    %p354 = por %p352, %p353
    %p355 = scmp.ne.s32.totalorder %s347, %s349
    %p356 = scmp.eq.s32.totalorder %s40, 1
    %p357 = por %p355, %p356
    %p358 = scmp.ne.s32.totalorder %s349, %s350
    %p359 = scmp.eq.s32.totalorder %s40, 0
    %p360 = por %p358, %p359
    %p361 = scmp.ne.s32.totalorder %s349, %s350
    %p362 = scmp.eq.s32.totalorder %s41, 1
    %p363 = por %p361, %p362
    %p365 = scmp.ne.s32.totalorder %s350, %s364
    %p366 = scmp.eq.s32.totalorder %s41, 0
    %p367 = por %p365, %p366
    %s369 = sadd.s32 %s368, 1
    %p372 = scmp.eq.s32.totalorder %s35, 1
    %p373 = scmp.ne.s32.totalorder %s368, %s370
    %p374 = scmp.eq.s32.totalorder %s35, 0
    %p375 = por %p373, %p374
    %p376 = scmp.ne.s32.totalorder %s368, %s370
    %p377 = scmp.eq.s32.totalorder %s40, 1
    %p378 = por %p376, %p377
    %p379 = scmp.ne.s32.totalorder %s370, %s371
    %p380 = scmp.eq.s32.totalorder %s40, 0
    %p381 = por %p379, %p380
    %p382 = scmp.ne.s32.totalorder %s370, %s371
    %p383 = scmp.eq.s32.totalorder %s41, 1
    %p384 = por %p382, %p383
    %p386 = scmp.ne.s32.totalorder %s371, %s385
    %p387 = scmp.eq.s32.totalorder %s41, 0
    %p388 = por %p386, %p387
    %s390 = sadd.s32 %s389, 1
    %p393 = scmp.eq.s32.totalorder %s35, 1
    %p394 = scmp.ne.s32.totalorder %s389, %s391
    %p395 = scmp.eq.s32.totalorder %s35, 0
    %p396 = por %p394, %p395
    %p397 = scmp.ne.s32.totalorder %s389, %s391
    %p398 = scmp.eq.s32.totalorder %s40, 1
    %p399 = por %p397, %p398
    %p400 = scmp.ne.s32.totalorder %s391, %s392
    %p401 = scmp.eq.s32.totalorder %s40, 0
    %p402 = por %p400, %p401
    %p403 = scmp.ne.s32.totalorder %s391, %s392
    %p404 = scmp.eq.s32.totalorder %s41, 1
    %p405 = por %p403, %p404
    %p407 = scmp.ne.s32.totalorder %s392, %s406
    %p408 = scmp.eq.s32.totalorder %s41, 0
    %p409 = por %p407, %p408
    %s411 = sadd.s32 %s410, 1
    %p414 = scmp.eq.s32.totalorder %s35, 1
    %p415 = scmp.ne.s32.totalorder %s410, %s412
    %p416 = scmp.eq.s32.totalorder %s35, 0
    %p417 = por %p415, %p416
    %p418 = scmp.ne.s32.totalorder %s410, %s412
    %p419 = scmp.eq.s32.totalorder %s40, 1
    %p420 = por %p418, %p419
    %p421 = scmp.ne.s32.totalorder %s412, %s413
    %p422 = scmp.eq.s32.totalorder %s40, 0
    %p423 = por %p421, %p422
    %p424 = scmp.ne.s32.totalorder %s412, %s413
    %p425 = scmp.eq.s32.totalorder %s41, 1
    %p426 = por %p424, %p425
    %p428 = scmp.ne.s32.totalorder %s413, %s427
    %p429 = scmp.eq.s32.totalorder %s41, 0
    %p430 = por %p428, %p429
    %s432 = sadd.s32 %s431, 1
    %p435 = scmp.eq.s32.totalorder %s35, 1
    %p436 = scmp.ne.s32.totalorder %s431, %s433
    %p437 = scmp.eq.s32.totalorder %s35, 0
    %p438 = por %p436, %p437
    %p439 = scmp.ne.s32.totalorder %s431, %s433
    %p440 = scmp.eq.s32.totalorder %s40, 1
    %p441 = por %p439, %p440
    %p442 = scmp.ne.s32.totalorder %s433, %s434
    %p443 = scmp.eq.s32.totalorder %s40, 0
    %p444 = por %p442, %p443
    %p445 = scmp.ne.s32.totalorder %s433, %s434
    %p446 = scmp.eq.s32.totalorder %s41, 1
    %p447 = por %p445, %p446
    %p449 = scmp.ne.s32.totalorder %s434, %s448
    %p450 = scmp.eq.s32.totalorder %s41, 0
    %p451 = por %p449, %p450
    %s453 = sadd.s32 %s452, 1
    %p456 = scmp.eq.s32.totalorder %s35, 1
    %p457 = scmp.ne.s32.totalorder %s452, %s454
    %p458 = scmp.eq.s32.totalorder %s35, 0
    %p459 = por %p457, %p458
    %p460 = scmp.ne.s32.totalorder %s452, %s454
    %p461 = scmp.eq.s32.totalorder %s40, 1
    %p462 = por %p460, %p461
    %p463 = scmp.ne.s32.totalorder %s454, %s455
    %p464 = scmp.eq.s32.totalorder %s40, 0
    %p465 = por %p463, %p464
    %p466 = scmp.ne.s32.totalorder %s454, %s455
    %p467 = scmp.eq.s32.totalorder %s41, 1
    %p468 = por %p466, %p467
    %p470 = scmp.ne.s32.totalorder %s455, %s469
    %p471 = scmp.eq.s32.totalorder %s41, 0
    %p472 = por %p470, %p471
    %s474 = sadd.s32 %s473, 1
    %p477 = scmp.eq.s32.totalorder %s35, 1
    %p478 = scmp.ne.s32.totalorder %s473, %s475
    %p479 = scmp.eq.s32.totalorder %s35, 0
    %p480 = por %p478, %p479
    %p481 = scmp.ne.s32.totalorder %s473, %s475
    %p482 = scmp.eq.s32.totalorder %s40, 1
    %p483 = por %p481, %p482
    %p484 = scmp.ne.s32.totalorder %s475, %s476
    %p485 = scmp.eq.s32.totalorder %s40, 0
    %p486 = por %p484, %p485
    %p487 = scmp.ne.s32.totalorder %s475, %s476
    %p488 = scmp.eq.s32.totalorder %s41, 1
    %p489 = por %p487, %p488
    %p491 = scmp.ne.s32.totalorder %s476, %s490
    %p492 = scmp.eq.s32.totalorder %s41, 0
    %p493 = por %p491, %p492
    %s495 = sadd.s32 %s494, 1
    %p498 = scmp.eq.s32.totalorder %s35, 1
    %p499 = scmp.ne.s32.totalorder %s494, %s496
    %p500 = scmp.eq.s32.totalorder %s35, 0
    %p501 = por %p499, %p500
    %p502 = scmp.ne.s32.totalorder %s494, %s496
    %p503 = scmp.eq.s32.totalorder %s40, 1
    %p504 = por %p502, %p503
    %p505 = scmp.ne.s32.totalorder %s496, %s497
    %p506 = scmp.eq.s32.totalorder %s40, 0
    %p507 = por %p505, %p506
    %p508 = scmp.ne.s32.totalorder %s496, %s497
    %p509 = scmp.eq.s32.totalorder %s41, 1
    %p510 = por %p508, %p509
    %p512 = scmp.ne.s32.totalorder %s497, %s511
    %p513 = scmp.eq.s32.totalorder %s41, 0
    %p514 = por %p512, %p513
    %s516 = sadd.s32 %s515, 1
    %p519 = scmp.eq.s32.totalorder %s35, 1
    %p520 = scmp.ne.s32.totalorder %s515, %s517
    %p521 = scmp.eq.s32.totalorder %s35, 0
    %p522 = por %p520, %p521
    %p523 = scmp.ne.s32.totalorder %s515, %s517
    %p524 = scmp.eq.s32.totalorder %s40, 1
    %p525 = por %p523, %p524
    %p526 = scmp.ne.s32.totalorder %s517, %s518
    %p527 = scmp.eq.s32.totalorder %s40, 0
    %p528 = por %p526, %p527
    %p529 = scmp.ne.s32.totalorder %s517, %s518
    %p530 = scmp.eq.s32.totalorder %s41, 1
    %p531 = por %p529, %p530
    %p533 = scmp.ne.s32.totalorder %s518, %s532
    %p534 = scmp.eq.s32.totalorder %s41, 0
    %p535 = por %p533, %p534
    %s537 = sadd.s32 %s536, 1
    %p540 = scmp.eq.s32.totalorder %s35, 1
    %p541 = scmp.ne.s32.totalorder %s536, %s538
    %p542 = scmp.eq.s32.totalorder %s35, 0
    %p543 = por %p541, %p542
    %p544 = scmp.ne.s32.totalorder %s536, %s538
    %p545 = scmp.eq.s32.totalorder %s40, 1
    %p546 = por %p544, %p545
    %p547 = scmp.ne.s32.totalorder %s538, %s539
    %p548 = scmp.eq.s32.totalorder %s40, 0
    %p549 = por %p547, %p548
    %p550 = scmp.ne.s32.totalorder %s538, %s539
    %p551 = scmp.eq.s32.totalorder %s41, 1
    %p552 = por %p550, %p551
    %p554 = scmp.ne.s32.totalorder %s539, %s553
    %p555 = scmp.eq.s32.totalorder %s41, 0
    %p556 = por %p554, %p555
    %s558 = sadd.s32 %s557, 1
    %p561 = scmp.eq.s32.totalorder %s35, 1
    %p562 = scmp.ne.s32.totalorder %s557, %s559
    %p563 = scmp.eq.s32.totalorder %s35, 0
    %p564 = por %p562, %p563
    %p565 = scmp.ne.s32.totalorder %s557, %s559
    %p566 = scmp.eq.s32.totalorder %s40, 1
    %p567 = por %p565, %p566
    %p568 = scmp.ne.s32.totalorder %s559, %s560
    %p569 = scmp.eq.s32.totalorder %s40, 0
    %p570 = por %p568, %p569
    %p571 = scmp.ne.s32.totalorder %s559, %s560
    %p572 = scmp.eq.s32.totalorder %s41, 1
    %p573 = por %p571, %p572
    %p575 = scmp.ne.s32.totalorder %s560, %s574
    %p576 = scmp.eq.s32.totalorder %s41, 0
    %p577 = por %p575, %p576
    %s579 = sadd.s32 %s578, 1
    %p582 = scmp.eq.s32.totalorder %s35, 1
    %p583 = scmp.ne.s32.totalorder %s578, %s580
    %p584 = scmp.eq.s32.totalorder %s35, 0
    %p585 = por %p583, %p584
    %p586 = scmp.ne.s32.totalorder %s578, %s580
    %p587 = scmp.eq.s32.totalorder %s40, 1
    %p588 = por %p586, %p587
    %p589 = scmp.ne.s32.totalorder %s580, %s581
    %p590 = scmp.eq.s32.totalorder %s40, 0
    %p591 = por %p589, %p590
    %p592 = scmp.ne.s32.totalorder %s580, %s581
    %p593 = scmp.eq.s32.totalorder %s41, 1
    %p594 = por %p592, %p593
    %p596 = scmp.ne.s32.totalorder %s581, %s595
    %p597 = scmp.eq.s32.totalorder %s41, 0
    %p598 = por %p596, %p597
    %s599 = ssub.s32 %s35, %s42
    %p600 = scmp.eq.s32.totalorder %s599, 0
    %s602 = sadd.s32 %s601, 1
    %s603 = scalar_select %p600, %s601, %s602
    %p606 = pneg %p600
    %p607 = scmp.eq.s32.totalorder %s35, 1
    %p608 = por %p606, %p607
    %p609 = scmp.ne.s32.totalorder %s601, %s604
    %p610 = scmp.eq.s32.totalorder %s35, 0
    %p611 = por %p609, %p610
    %p612 = scmp.ne.s32.totalorder %s601, %s604
    %p613 = scmp.eq.s32.totalorder %s40, 1
    %p614 = por %p612, %p613
    %p615 = scmp.ne.s32.totalorder %s604, %s605
    %p616 = scmp.eq.s32.totalorder %s40, 0
    %p617 = por %p615, %p616
    %p618 = scmp.ne.s32.totalorder %s604, %s605
    %p619 = scmp.eq.s32.totalorder %s41, 1
    %p620 = por %p618, %p619
    %p622 = scmp.ne.s32.totalorder %s605, %s621
    %p623 = scmp.eq.s32.totalorder %s41, 0
    %p624 = por %p622, %p623
    %s625 = ssub.s32 %s35, %s42
    %p626 = scmp.eq.s32.totalorder %s625, 0
    %s628 = sadd.s32 %s627, 1
    %s629 = scalar_select %p626, %s627, %s628
    %p632 = pneg %p626
    %p633 = scmp.eq.s32.totalorder %s35, 1
    %p634 = por %p632, %p633
    %p635 = scmp.ne.s32.totalorder %s627, %s630
    %p636 = scmp.eq.s32.totalorder %s35, 0
    %p637 = por %p635, %p636
    %p638 = scmp.ne.s32.totalorder %s627, %s630
    %p639 = scmp.eq.s32.totalorder %s40, 1
    %p640 = por %p638, %p639
    %p641 = scmp.ne.s32.totalorder %s630, %s631
    %p642 = scmp.eq.s32.totalorder %s40, 0
    %p643 = por %p641, %p642
    %p644 = scmp.ne.s32.totalorder %s630, %s631
    %p645 = scmp.eq.s32.totalorder %s41, 1
    %p646 = por %p644, %p645
    %p648 = scmp.ne.s32.totalorder %s631, %s647
    %p649 = scmp.eq.s32.totalorder %s41, 0
    %p650 = por %p648, %p649
    %s651 = ssub.s32 %s35, %s42
    %p652 = scmp.eq.s32.totalorder %s651, 0
    %s654 = sadd.s32 %s653, 1
    %s655 = scalar_select %p652, %s653, %s654
    %p658 = pneg %p652
    %p659 = scmp.eq.s32.totalorder %s35, 1
    %p660 = por %p658, %p659
    %p661 = scmp.ne.s32.totalorder %s653, %s656
    %p662 = scmp.eq.s32.totalorder %s35, 0
    %p663 = por %p661, %p662
    %p664 = scmp.ne.s32.totalorder %s653, %s656
    %p665 = scmp.eq.s32.totalorder %s40, 1
    %p666 = por %p664, %p665
    %p667 = scmp.ne.s32.totalorder %s656, %s657
    %p668 = scmp.eq.s32.totalorder %s40, 0
    %p669 = por %p667, %p668
    %p670 = scmp.ne.s32.totalorder %s656, %s657
    %p671 = scmp.eq.s32.totalorder %s41, 1
    %p672 = por %p670, %p671
    %p674 = scmp.ne.s32.totalorder %s657, %s673
    %p675 = scmp.eq.s32.totalorder %s41, 0
    %p676 = por %p674, %p675
    %p677 = scmp.le.s32.totalorder 1, %s35
    %p678 = scmp.lt.s32.totalorder %s35, 3
    %p679 = pnand %p677, %p678
    %p680 = pneg %p679
    // Predicated region
    $region9: #{cage_skinning_forward.2} parent=5 // pred_check
      _
    $region10: #{cage_skinning_forward.2} parent=5 // pred_check_branch
      %682 = sbr.rel (%p679) target = $region12
    $region11: #{cage_skinning_forward.2} parent=5 // pred_region
      %s683 = ssub.s32 %s35, 1
      // Predicated region
      $region13: #{cage_skinning_forward.2} parent=11 // pred_check
        %p684 = pneg %p108
      $region14: #{cage_skinning_forward.2} parent=11 // pred_check_branch
        %686 = sbr.rel (%p684) target = $region16
      $region15: #{cage_skinning_forward.2} parent=11 // pred_region
        _
      $region16: #{cage_skinning_forward.2} parent=11 // pred_fallthru
        _
      // Predicated region
      $region17: #{cage_skinning_forward.2} parent=11 // pred_check
        %p687 = pneg %p129
      $region18: #{cage_skinning_forward.2} parent=11 // pred_check_branch
        %689 = sbr.rel (%p687) target = $region20
      $region19: #{cage_skinning_forward.2} parent=11 // pred_region
        _
      $region20: #{cage_skinning_forward.2} parent=11 // pred_fallthru
        _
      // Predicated region
      $region21: #{cage_skinning_forward.2} parent=11 // pred_check
        %p690 = pneg %p150
      $region22: #{cage_skinning_forward.2} parent=11 // pred_check_branch
        %692 = sbr.rel (%p690) target = $region24
      $region23: #{cage_skinning_forward.2} parent=11 // pred_region
        _
      $region24: #{cage_skinning_forward.2} parent=11 // pred_fallthru
        _
      // Predicated region
      $region25: #{cage_skinning_forward.2} parent=11 // pred_check
        %p693 = pneg %p171
      $region26: #{cage_skinning_forward.2} parent=11 // pred_check_branch
        %695 = sbr.rel (%p693) target = $region28
      $region27: #{cage_skinning_forward.2} parent=11 // pred_region
        _
      $region28: #{cage_skinning_forward.2} parent=11 // pred_fallthru
        _
      // Predicated region
      $region29: #{cage_skinning_forward.2} parent=11 // pred_check
        %p696 = pneg %p192
      $region30: #{cage_skinning_forward.2} parent=11 // pred_check_branch
        %698 = sbr.rel (%p696) target = $region32
      $region31: #{cage_skinning_forward.2} parent=11 // pred_region
        _
      $region32: #{cage_skinning_forward.2} parent=11 // pred_fallthru
        _
      // Predicated region
      $region33: #{cage_skinning_forward.2} parent=11 // pred_check
        %p699 = pneg %p213
      $region34: #{cage_skinning_forward.2} parent=11 // pred_check_branch
        %701 = sbr.rel (%p699) target = $region36
      $region35: #{cage_skinning_forward.2} parent=11 // pred_region
        _
      $region36: #{cage_skinning_forward.2} parent=11 // pred_fallthru
        _
      // Predicated region
      $region37: #{cage_skinning_forward.2} parent=11 // pred_check
        %p702 = pneg %p234
      $region38: #{cage_skinning_forward.2} parent=11 // pred_check_branch
        %704 = sbr.rel (%p702) target = $region40
      $region39: #{cage_skinning_forward.2} parent=11 // pred_region
        _
      $region40: #{cage_skinning_forward.2} parent=11 // pred_fallthru
        _
      // Predicated region
      $region41: #{cage_skinning_forward.2} parent=11 // pred_check
        %p705 = pneg %p255
      $region42: #{cage_skinning_forward.2} parent=11 // pred_check_branch
        %707 = sbr.rel (%p705) target = $region44
      $region43: #{cage_skinning_forward.2} parent=11 // pred_region
        _
      $region44: #{cage_skinning_forward.2} parent=11 // pred_fallthru
        _
      // Predicated region
      $region45: #{cage_skinning_forward.2} parent=11 // pred_check
        %p708 = pneg %p276
      $region46: #{cage_skinning_forward.2} parent=11 // pred_check_branch
        %710 = sbr.rel (%p708) target = $region48
      $region47: #{cage_skinning_forward.2} parent=11 // pred_region
        _
      $region48: #{cage_skinning_forward.2} parent=11 // pred_fallthru
        _
      // Predicated region
      $region49: #{cage_skinning_forward.2} parent=11 // pred_check
        %p711 = pneg %p297
      $region50: #{cage_skinning_forward.2} parent=11 // pred_check_branch
        %713 = sbr.rel (%p711) target = $region52
      $region51: #{cage_skinning_forward.2} parent=11 // pred_region
        _
      $region52: #{cage_skinning_forward.2} parent=11 // pred_fallthru
        _
      // Predicated region
      $region53: #{cage_skinning_forward.2} parent=11 // pred_check
        %p714 = pneg %p318
      $region54: #{cage_skinning_forward.2} parent=11 // pred_check_branch
        %716 = sbr.rel (%p714) target = $region56
      $region55: #{cage_skinning_forward.2} parent=11 // pred_region
        _
      $region56: #{cage_skinning_forward.2} parent=11 // pred_fallthru
        _
      // Predicated region
      $region57: #{cage_skinning_forward.2} parent=11 // pred_check
        %p717 = pneg %p339
      $region58: #{cage_skinning_forward.2} parent=11 // pred_check_branch
        %719 = sbr.rel (%p717) target = $region60
      $region59: #{cage_skinning_forward.2} parent=11 // pred_region
        _
      $region60: #{cage_skinning_forward.2} parent=11 // pred_fallthru
        _
      // Predicated region
      $region61: #{cage_skinning_forward.2} parent=11 // pred_check
        %p720 = pneg %p360
      $region62: #{cage_skinning_forward.2} parent=11 // pred_check_branch
        %722 = sbr.rel (%p720) target = $region64
      $region63: #{cage_skinning_forward.2} parent=11 // pred_region
        _
      $region64: #{cage_skinning_forward.2} parent=11 // pred_fallthru
        _
      // Predicated region
      $region65: #{cage_skinning_forward.2} parent=11 // pred_check
        %p723 = pneg %p381
      $region66: #{cage_skinning_forward.2} parent=11 // pred_check_branch
        %725 = sbr.rel (%p723) target = $region68
      $region67: #{cage_skinning_forward.2} parent=11 // pred_region
        _
      $region68: #{cage_skinning_forward.2} parent=11 // pred_fallthru
        _
      // Predicated region
      $region69: #{cage_skinning_forward.2} parent=11 // pred_check
        %p726 = pneg %p402
      $region70: #{cage_skinning_forward.2} parent=11 // pred_check_branch
        %728 = sbr.rel (%p726) target = $region72
      $region71: #{cage_skinning_forward.2} parent=11 // pred_region
        _
      $region72: #{cage_skinning_forward.2} parent=11 // pred_fallthru
        _
      // Predicated region
      $region73: #{cage_skinning_forward.2} parent=11 // pred_check
        %p729 = pneg %p423
      $region74: #{cage_skinning_forward.2} parent=11 // pred_check_branch
        %731 = sbr.rel (%p729) target = $region76
      $region75: #{cage_skinning_forward.2} parent=11 // pred_region
        _
      $region76: #{cage_skinning_forward.2} parent=11 // pred_fallthru
        _
      // Predicated region
      $region77: #{cage_skinning_forward.2} parent=11 // pred_check
        %p732 = pneg %p444
      $region78: #{cage_skinning_forward.2} parent=11 // pred_check_branch
        %734 = sbr.rel (%p732) target = $region80
      $region79: #{cage_skinning_forward.2} parent=11 // pred_region
        _
      $region80: #{cage_skinning_forward.2} parent=11 // pred_fallthru
        _
      // Predicated region
      $region81: #{cage_skinning_forward.2} parent=11 // pred_check
        %p735 = pneg %p465
      $region82: #{cage_skinning_forward.2} parent=11 // pred_check_branch
        %737 = sbr.rel (%p735) target = $region84
      $region83: #{cage_skinning_forward.2} parent=11 // pred_region
        _
      $region84: #{cage_skinning_forward.2} parent=11 // pred_fallthru
        _
      // Predicated region
      $region85: #{cage_skinning_forward.2} parent=11 // pred_check
        %p738 = pneg %p486
      $region86: #{cage_skinning_forward.2} parent=11 // pred_check_branch
        %740 = sbr.rel (%p738) target = $region88
      $region87: #{cage_skinning_forward.2} parent=11 // pred_region
        _
      $region88: #{cage_skinning_forward.2} parent=11 // pred_fallthru
        _
      // Predicated region
      $region89: #{cage_skinning_forward.2} parent=11 // pred_check
        %p741 = pneg %p507
      $region90: #{cage_skinning_forward.2} parent=11 // pred_check_branch
        %743 = sbr.rel (%p741) target = $region92
      $region91: #{cage_skinning_forward.2} parent=11 // pred_region
        _
      $region92: #{cage_skinning_forward.2} parent=11 // pred_fallthru
        _
      // Predicated region
      $region93: #{cage_skinning_forward.2} parent=11 // pred_check
        %p744 = pneg %p528
      $region94: #{cage_skinning_forward.2} parent=11 // pred_check_branch
        %746 = sbr.rel (%p744) target = $region96
      $region95: #{cage_skinning_forward.2} parent=11 // pred_region
        _
      $region96: #{cage_skinning_forward.2} parent=11 // pred_fallthru
        _
      // Predicated region
      $region97: #{cage_skinning_forward.2} parent=11 // pred_check
        %p747 = pneg %p549
      $region98: #{cage_skinning_forward.2} parent=11 // pred_check_branch
        %749 = sbr.rel (%p747) target = $region100
      $region99: #{cage_skinning_forward.2} parent=11 // pred_region
        _
      $region100: #{cage_skinning_forward.2} parent=11 // pred_fallthru
        _
      // Predicated region
      $region101: #{cage_skinning_forward.2} parent=11 // pred_check
        %p750 = pneg %p570
      $region102: #{cage_skinning_forward.2} parent=11 // pred_check_branch
        %752 = sbr.rel (%p750) target = $region104
      $region103: #{cage_skinning_forward.2} parent=11 // pred_region
        _
      $region104: #{cage_skinning_forward.2} parent=11 // pred_fallthru
        _
      // Predicated region
      $region105: #{cage_skinning_forward.2} parent=11 // pred_check
        %p753 = pneg %p591
      $region106: #{cage_skinning_forward.2} parent=11 // pred_check_branch
        %755 = sbr.rel (%p753) target = $region108
      $region107: #{cage_skinning_forward.2} parent=11 // pred_region
        _
      $region108: #{cage_skinning_forward.2} parent=11 // pred_fallthru
        _
    $region12: #{cage_skinning_forward.2} parent=5 // pred_fallthru
      _
    %p756 = scmp.lt.s32.totalorder %s35, 2
    // Predicated region
    $region109: #{cage_skinning_forward.2} parent=5 // pred_check
      %p757 = pneg %p756
    $region110: #{cage_skinning_forward.2} parent=5 // pred_check_branch
      %759 = sbr.rel (%p757) target = $region112
    $region111: #{cage_skinning_forward.2} parent=5 // pred_region
      // Predicated region
      $region113: #{cage_skinning_forward.2} parent=111 // pred_check
        %p760 = pneg %p55
      $region114: #{cage_skinning_forward.2} parent=111 // pred_check_branch
        %762 = sbr.rel (%p760) target = $region116
      $region115: #{cage_skinning_forward.2} parent=111 // pred_region
        %s763 = smul.u32 16, %s35
        %p764 = scmp.lt.s32.totalorder %s763, 31
        %s765 = scalar_select %p764, %s763, 31
        %s766 = smul.addr %s765, 8
        %s767 = scalar_lea.vmem %s0, %s766
        %s768 = smul.u32 16, %s35
      $region116: #{cage_skinning_forward.2} parent=111 // pred_fallthru
        _
      // Predicated region
      $region117: #{cage_skinning_forward.2} parent=111 // pred_check
        %p769 = pneg %p81
      $region118: #{cage_skinning_forward.2} parent=111 // pred_check_branch
        %771 = sbr.rel (%p769) target = $region120
      $region119: #{cage_skinning_forward.2} parent=111 // pred_region
        %s772 = smul.u32 8, %s35
        %p773 = scmp.lt.s32.totalorder %s772, 31
        %s774 = scalar_select %p773, %s772, 31
        %s775 = smul.addr %s774, 8
        %s776 = scalar_lea.vmem %s1, %s775
        %s777 = smul.u32 8, %s35
      $region120: #{cage_skinning_forward.2} parent=111 // pred_fallthru
        _
    $region112: #{cage_skinning_forward.2} parent=5 // pred_fallthru
      _
    %p778 = scmp.le.s32.totalorder 1, %s35
    %p779 = scmp.lt.s32.totalorder %s35, 3
    %p780 = pnand %p778, %p779
    %p781 = pneg %p780
    // Predicated region
    $region121: #{cage_skinning_forward.2} parent=5 // pred_check
      _
    $region122: #{cage_skinning_forward.2} parent=5 // pred_check_branch
      %783 = sbr.rel (%p780) target = $region124
    $region123: #{cage_skinning_forward.2} parent=5 // pred_region
      %s784 = ssub.s32 %s35, 1
      %s785 = smul.u32 16, %s40
      %p786 = scmp.lt.s32.totalorder %s785, 31
      %s787 = scalar_select %p786, %s785, 31
      %s788 = smul.addr %s787, 8
      %s789 = scalar_lea.vmem %s0, %s788
      %p790 = pneg %p61
      %p791 = pneg %p58
      %s792 = smul.u32 8, %s40
      %p793 = scmp.lt.s32.totalorder %s792, 31
      %s794 = scalar_select %p793, %s792, 31
      %s795 = smul.addr %s794, 8
      %s796 = scalar_lea.vmem %s1, %s795
      %p797 = pneg %p87
      %p798 = pneg %p84
      %p799 = pneg %p108
      %p800 = pneg %p105
      %p801 = pneg %p129
      %p802 = pneg %p126
      %p803 = pneg %p150
      %p804 = pneg %p147
      %p805 = pneg %p171
      %p806 = pneg %p168
      %p807 = pneg %p192
      %p808 = pneg %p189
      %p809 = pneg %p213
      %p810 = pneg %p210
      %p811 = pneg %p234
      %p812 = pneg %p231
      %p813 = pneg %p255
      %p814 = pneg %p252
      %p815 = pneg %p276
      %p816 = pneg %p273
      %p817 = pneg %p297
      %p818 = pneg %p294
      %p819 = pneg %p318
      %p820 = pneg %p315
      %p821 = pneg %p339
      %p822 = pneg %p336
      %p823 = pneg %p360
      %p824 = pneg %p357
      %p825 = pneg %p381
      %p826 = pneg %p378
      %p827 = pneg %p402
      %p828 = pneg %p399
      %p829 = pneg %p423
      %p830 = pneg %p420
      %p831 = pneg %p444
      %p832 = pneg %p441
      %p833 = pneg %p465
      %p834 = pneg %p462
      %p835 = pneg %p486
      %p836 = pneg %p483
      %p837 = pneg %p507
      %p838 = pneg %p504
      %p839 = pneg %p528
      %p840 = pneg %p525
      %p841 = pneg %p549
      %p842 = pneg %p546
      %p843 = pneg %p570
      %p844 = pneg %p567
      %p845 = pneg %p591
      %p846 = pneg %p588
      %p847 = pneg %p617
      %p848 = pneg %p614
      %p849 = scmp.lt.s32.totalorder %s40, 1
      %s850 = scalar_select %p849, %s40, 1
      %s851 = smul.addr %s850, 2
      %s852 = scalar_lea.vmem %s26, %s851
      %p853 = pneg %p643
      %p854 = pneg %p640
      %p855 = scmp.lt.s32.totalorder %s40, 1
      %s856 = scalar_select %p855, %s40, 1
      %s857 = scalar_lea.vmem %s27, %s856
      %p858 = pneg %p669
      %p859 = pneg %p666
      %p860 = scmp.lt.s32.totalorder %s40, 1
      %s861 = scalar_select %p860, %s40, 1
      %s862 = smul.addr %s861, 4
      %s863 = smul.addr %s862, 8
      %s864 = scalar_lea.vmem %s28, %s863
      %s865 = smul.u32 16, %s40
      %p866 = scmp.lt.s32.totalorder %s865, 31
      %s867 = scalar_select %p866, %s865, 31
      %s868 = smul.addr %s867, 8
      %s869 = scalar_lea.vmem %s0, %s868
      %s870 = smul.u32 16, %s40
      %s871 = smul.u32 8, %s40
      %p872 = scmp.lt.s32.totalorder %s871, 31
      %s873 = scalar_select %p872, %s871, 31
      %s874 = smul.addr %s873, 8
      %s875 = scalar_lea.vmem %s1, %s874
      %s876 = smul.u32 8, %s40
      %p877 = scmp.lt.s32.totalorder %s40, 1
      %s878 = scalar_select %p877, %s40, 1
      %s879 = smul.addr %s878, 2
      %s880 = scalar_lea.vmem %s26, %s879
      %p881 = scmp.lt.s32.totalorder %s40, 1
      %s882 = scalar_select %p881, %s40, 1
      %s883 = scalar_lea.vmem %s27, %s882
      %p884 = scmp.lt.s32.totalorder %s40, 1
      %s885 = scalar_select %p884, %s40, 1
      %s886 = smul.addr %s885, 4
      %s887 = smul.addr %s886, 8
      %s888 = scalar_lea.vmem %s28, %s887
      %v889 = vld [vmem:[%s869] sm:$0xff]
      %v890 = vld [vmem:[%s869 + $0x8] sm:$0xff]
      %v891 = vld [vmem:[%s869 + $0x10] sm:$0xff]
      %v892 = vld [vmem:[%s869 + $0x18] sm:$0xff]
      %v893 = vld [vmem:[%s869 + $0x20] sm:$0xff]
      %v894 = vld [vmem:[%s869 + $0x28] sm:$0xff]
      %v895 = vld [vmem:[%s869 + $0x30] sm:$0xff]
      %v896 = vld [vmem:[%s869 + $0x38] sm:$0xff]
      %v897 = vld [vmem:[%s869 + $0x40] sm:$0xff]
      %v898 = vld [vmem:[%s869 + $0x48] sm:$0xff]
      %v899 = vld [vmem:[%s869 + $0x50] sm:$0xff]
      %v900 = vld [vmem:[%s869 + $0x58] sm:$0xff]
      %v901 = vld [vmem:[%s869 + $0x60] sm:$0xff]
      %v902 = vld [vmem:[%s869 + $0x68] sm:$0xff]
      %v903 = vld [vmem:[%s869 + $0x70] sm:$0xff]
      %v904 = vld [vmem:[%s869 + $0x78] sm:$0xff]
      %v905 = vld [vmem:[%s2] sm:$0x7]
      %v906 = vld [vmem:[%s3] sm:$0x1]
      %v908 = vlaneseq
      %v909 = vshrl.u32 %v908, 7
      %v910 = vsub.s32 0, %v909
      %v911 = vrot.slane %v906, %v910
      %vm913 = vcmask 23552
      %v915 = vsel %vm913, %v889, 0
      %v918 = vsel %vm913, %v890, 0
      %v921 = vsel %vm913, %v891, 0
      %v924 = vsel %vm913, %v892, 0
      %v927 = vsel %vm913, %v893, 0
      %v930 = vsel %vm913, %v894, 0
      %v933 = vsel %vm913, %v895, 0
      %v936 = vsel %vm913, %v896, 0
      %v939 = vsel %vm913, %v897, 0
      %v942 = vsel %vm913, %v898, 0
      %v945 = vsel %vm913, %v899, 0
      %v948 = vsel %vm913, %v900, 0
      %v951 = vsel %vm913, %v901, 0
      %v954 = vsel %vm913, %v902, 0
      %v957 = vsel %vm913, %v903, 0
      %v960 = vsel %vm913, %v904, 0
      %vm962 = vcmask 1042432
      %v964 = vsel %vm962, %v905, 0
      %966 = vmatprep.subr.mxu0 0.0
      %967 = vmatpush1.msra.mxu0 0.0
      %968 = vmatprep.subr.mxu0 0.0
      %969 = vmatpush1.msra.mxu0 0.0
      %970 = vmatprep.subr.mxu0 0.0
      %971 = vmatpush1.msra.mxu0 0.0
      %972 = vmatprep.subr.mxu0 0.0
      %973 = vmatpush1.msra.mxu0 0.0
      %974 = vmatprep.subr.mxu0 0.0
      %975 = vmatpush1.msra.mxu0 0.0
      %976 = vmatprep.subr.mxu0 0.0
      %977 = vmatpush1.msra.mxu0 0.0
      %978 = vmatprep.subr.mxu0 0.0
      %979 = vmatpush1.msra.mxu0 0.0
      %980 = vmatprep.subr.mxu0 0.0
      %981 = vmatpush1.msra.mxu0 0.0
      %982 = vmatprep.subr.mxu0 0.0
      %983 = vmatpush1.msra.mxu0 0.0
      %984 = vmatprep.subr.mxu0 0.0
      %985 = vmatpush1.msra.mxu0 0.0
      %986 = vmatprep.subr.mxu0 0.0
      %987 = vmatpush1.msra.mxu0 0.0
      %988 = vmatprep.subr.mxu0 0.0
      %989 = vmatpush1.msra.mxu0 0.0
      %990 = vmatprep.subr.mxu0 0.0
      %991 = vmatpush1.msra.mxu0 0.0
      %992 = vmatprep.subr.mxu0 0.0
      %993 = vmatpush1.msra.mxu0 0.0
      %994 = vmatprep.subr.mxu0 0.0
      %995 = vmatpush1.msra.mxu0 0.0
      %996 = vmatprep.subr.mxu0 0.0
      %997 = vmatpush1.msra.mxu0 %v964
      %998 = vmatprep.subr.mxu0 0.0
      %999 = vmatpush2.msra.mxu0 0.0
      %1000 = vmatprep.subr.mxu0 0.0
      %1001 = vmatpush2.msra.mxu0 0.0
      %1002 = vmatprep.subr.mxu0 0.0
      %1003 = vmatpush2.msra.mxu0 0.0
      %1004 = vmatprep.subr.mxu0 0.0
      %1005 = vmatpush2.msra.mxu0 0.0
      %1006 = vmatprep.subr.mxu0 0.0
      %1007 = vmatpush2.msra.mxu0 0.0
      %1008 = vmatprep.subr.mxu0 0.0
      %1009 = vmatpush2.msra.mxu0 0.0
      %1010 = vmatprep.subr.mxu0 0.0
      %1011 = vmatpush2.msra.mxu0 0.0
      %1012 = vmatprep.subr.mxu0 0.0
      %1013 = vmatpush2.msra.mxu0 0.0
      %1014 = vmatprep.subr.mxu0 0.0
      %1015 = vmatpush2.msra.mxu0 0.0
      %1016 = vmatprep.subr.mxu0 0.0
      %1017 = vmatpush2.msra.mxu0 0.0
      %1018 = vmatprep.subr.mxu0 0.0
      %1019 = vmatpush2.msra.mxu0 0.0
      %1020 = vmatprep.subr.mxu0 0.0
      %1021 = vmatpush2.msra.mxu0 0.0
      %1022 = vmatprep.subr.mxu0 0.0
      %1023 = vmatpush2.msra.mxu0 0.0
      %1024 = vmatprep.subr.mxu0 0.0
      %1025 = vmatpush2.msra.mxu0 0.0
      %1026 = vmatprep.subr.mxu0 0.0
      %1027 = vmatpush2.msra.mxu0 0.0
      %1028 = vmatprep.subr.mxu0 0.0
      %1029 = vmatpush2.msra.mxu0 0.0
      %1030 = vmatprep.mubr.f32.mxu0 0.0
      %1031 = vmatmul.mubr.f32.gmra.mxu0 %v915
      %v1032 = vpop.f32.mrf.mxu0
      %v1033 = vadd.f32 %v911, %v1032
      %v1034 = vpop.f32.mrf.mxu0
      %1035 = vmatprep.mubr.f32.mxu0 0.0
      %1036 = vmatmul.mubr.f32.gmra.mxu0 %v918
      %v1037 = vpop.f32.mrf.mxu0
      %v1038 = vadd.f32 %v911, %v1037
      %v1039 = vpop.f32.mrf.mxu0
      %1040 = vmatprep.mubr.f32.mxu0 0.0
      %1041 = vmatmul.mubr.f32.gmra.mxu0 %v921
      %v1042 = vpop.f32.mrf.mxu0
      %v1043 = vadd.f32 %v911, %v1042
      %v1044 = vpop.f32.mrf.mxu0
      %1045 = vmatprep.mubr.f32.mxu0 0.0
      %1046 = vmatmul.mubr.f32.gmra.mxu0 %v924
      %v1047 = vpop.f32.mrf.mxu0
      %v1048 = vadd.f32 %v911, %v1047
      %v1049 = vpop.f32.mrf.mxu0
      %1050 = vmatprep.mubr.f32.mxu0 0.0
      %1051 = vmatmul.mubr.f32.gmra.mxu0 %v927
      %v1052 = vpop.f32.mrf.mxu0
      %v1053 = vadd.f32 %v911, %v1052
      %v1054 = vpop.f32.mrf.mxu0
      %1055 = vmatprep.mubr.f32.mxu0 0.0
      %1056 = vmatmul.mubr.f32.gmra.mxu0 %v930
      %v1057 = vpop.f32.mrf.mxu0
      %v1058 = vadd.f32 %v911, %v1057
      %v1059 = vpop.f32.mrf.mxu0
      %1060 = vmatprep.mubr.f32.mxu0 0.0
      %1061 = vmatmul.mubr.f32.gmra.mxu0 %v933
      %v1062 = vpop.f32.mrf.mxu0
      %v1063 = vadd.f32 %v911, %v1062
      %v1064 = vpop.f32.mrf.mxu0
      %1065 = vmatprep.mubr.f32.mxu0 0.0
      %1066 = vmatmul.mubr.f32.gmra.mxu0 %v936
      %v1067 = vpop.f32.mrf.mxu0
      %v1068 = vadd.f32 %v911, %v1067
      %v1069 = vpop.f32.mrf.mxu0
      %1070 = vmatprep.mubr.f32.mxu0 0.0
      %1071 = vmatmul.mubr.f32.gmra.mxu0 %v939
      %v1072 = vpop.f32.mrf.mxu0
      %v1073 = vadd.f32 %v911, %v1072
      %v1074 = vpop.f32.mrf.mxu0
      %1075 = vmatprep.mubr.f32.mxu0 0.0
      %1076 = vmatmul.mubr.f32.gmra.mxu0 %v942
      %v1077 = vpop.f32.mrf.mxu0
      %v1078 = vadd.f32 %v911, %v1077
      %v1079 = vpop.f32.mrf.mxu0
      %1080 = vmatprep.mubr.f32.mxu0 0.0
      %1081 = vmatmul.mubr.f32.gmra.mxu0 %v945
      %v1082 = vpop.f32.mrf.mxu0
      %v1083 = vadd.f32 %v911, %v1082
      %v1084 = vpop.f32.mrf.mxu0
      %1085 = vmatprep.mubr.f32.mxu0 0.0
      %1086 = vmatmul.mubr.f32.gmra.mxu0 %v948
      %v1087 = vpop.f32.mrf.mxu0
      %v1088 = vadd.f32 %v911, %v1087
      %v1089 = vpop.f32.mrf.mxu0
      %1090 = vmatprep.mubr.f32.mxu0 0.0
      %1091 = vmatmul.mubr.f32.gmra.mxu0 %v951
      %v1092 = vpop.f32.mrf.mxu0
      %v1093 = vadd.f32 %v911, %v1092
      %v1094 = vpop.f32.mrf.mxu0
      %1095 = vmatprep.mubr.f32.mxu0 0.0
      %1096 = vmatmul.mubr.f32.gmra.mxu0 %v954
      %v1097 = vpop.f32.mrf.mxu0
      %v1098 = vadd.f32 %v911, %v1097
      %v1099 = vpop.f32.mrf.mxu0
      %1100 = vmatprep.mubr.f32.mxu0 0.0
      %1101 = vmatmul.mubr.f32.gmra.mxu0 %v957
      %v1102 = vpop.f32.mrf.mxu0
      %v1103 = vadd.f32 %v911, %v1102
      %v1104 = vpop.f32.mrf.mxu0
      %1105 = vmatprep.mubr.f32.mxu0 0.0
      %1106 = vmatmul.mubr.f32.gmra.mxu0 %v960
      %v1107 = vpop.f32.mrf.mxu0
      %v1108 = vadd.f32 %v911, %v1107
      %v1109 = vpop.f32.mrf.mxu0
      %1110 = vdwg.mxu0
      %vm1111 = vcmp.ge.f32.partialorder %v1033, 0.0
      %vm1112 = vcmp.ge.f32.partialorder %v1038, 0.0
      %vm1113 = vcmp.ge.f32.partialorder %v1043, 0.0
      %vm1114 = vcmp.ge.f32.partialorder %v1048, 0.0
      %vm1115 = vcmp.ge.f32.partialorder %v1053, 0.0
      %vm1116 = vcmp.ge.f32.partialorder %v1058, 0.0
      %vm1117 = vcmp.ge.f32.partialorder %v1063, 0.0
      %vm1118 = vcmp.ge.f32.partialorder %v1068, 0.0
      %vm1119 = vcmp.ge.f32.partialorder %v1073, 0.0
      %vm1120 = vcmp.ge.f32.partialorder %v1078, 0.0
      %vm1121 = vcmp.ge.f32.partialorder %v1083, 0.0
      %vm1122 = vcmp.ge.f32.partialorder %v1088, 0.0
      %vm1123 = vcmp.ge.f32.partialorder %v1093, 0.0
      %vm1124 = vcmp.ge.f32.partialorder %v1098, 0.0
      %vm1125 = vcmp.ge.f32.partialorder %v1103, 0.0
      %vm1126 = vcmp.ge.f32.partialorder %v1108, 0.0
      %v1127 = vmul.f32 %v1033, 0.2
      %v1128 = vmul.f32 %v1038, 0.2
      %v1129 = vmul.f32 %v1043, 0.2
      %v1130 = vmul.f32 %v1048, 0.2
      %v1131 = vmul.f32 %v1053, 0.2
      %v1132 = vmul.f32 %v1058, 0.2
      %v1133 = vmul.f32 %v1063, 0.2
      %v1134 = vmul.f32 %v1068, 0.2
      %v1135 = vmul.f32 %v1073, 0.2
      %v1136 = vmul.f32 %v1078, 0.2
      %v1137 = vmul.f32 %v1083, 0.2
      %v1138 = vmul.f32 %v1088, 0.2
      %v1139 = vmul.f32 %v1093, 0.2
      %v1140 = vmul.f32 %v1098, 0.2
      %v1141 = vmul.f32 %v1103, 0.2
      %v1142 = vmul.f32 %v1108, 0.2
      %v1143 = vsel %vm1111, %v1033, %v1127
      %v1144 = vsel %vm1112, %v1038, %v1128
      %v1145 = vsel %vm1113, %v1043, %v1129
      %v1146 = vsel %vm1114, %v1048, %v1130
      %v1147 = vsel %vm1115, %v1053, %v1131
      %v1148 = vsel %vm1116, %v1058, %v1132
      %v1149 = vsel %vm1117, %v1063, %v1133
      %v1150 = vsel %vm1118, %v1068, %v1134
      %v1151 = vsel %vm1119, %v1073, %v1135
      %v1152 = vsel %vm1120, %v1078, %v1136
      %v1153 = vsel %vm1121, %v1083, %v1137
      %v1154 = vsel %vm1122, %v1088, %v1138
      %v1155 = vsel %vm1123, %v1093, %v1139
      %v1156 = vsel %vm1124, %v1098, %v1140
      %v1157 = vsel %vm1125, %v1103, %v1141
      %v1158 = vsel %vm1126, %v1108, %v1142
      %v1159 = vld [vmem:[%s4] sm:$0xff]
      %v1160 = vld [vmem:[%s4 + $0x8] sm:$0xff]
      %v1161 = vld [vmem:[%s4 + $0x10] sm:$0xff]
      %v1162 = vld [vmem:[%s4 + $0x18] sm:$0xff]
      %v1163 = vld [vmem:[%s4 + $0x20] sm:$0xff]
      %v1164 = vld [vmem:[%s4 + $0x28] sm:$0xff]
      %v1165 = vld [vmem:[%s4 + $0x30] sm:$0xff]
      %v1166 = vld [vmem:[%s4 + $0x38] sm:$0xff]
      %v1167 = vld [vmem:[%s5] sm:$0x1]
      %v1169 = vlaneseq
      %v1170 = vshrl.u32 %v1169, 7
      %v1171 = vsub.s32 0, %v1170
      %v1172 = vrot.slane %v1167, %v1171
      %vm1174 = vcmask 523264
      %v1176 = vsel %vm1174, %v1143, 0
      %v1179 = vsel %vm1174, %v1144, 0
      %v1182 = vsel %vm1174, %v1145, 0
      %v1185 = vsel %vm1174, %v1146, 0
      %v1188 = vsel %vm1174, %v1147, 0
      %v1191 = vsel %vm1174, %v1148, 0
      %v1194 = vsel %vm1174, %v1149, 0
      %v1197 = vsel %vm1174, %v1150, 0
      %v1200 = vsel %vm1174, %v1151, 0
      %v1203 = vsel %vm1174, %v1152, 0
      %v1206 = vsel %vm1174, %v1153, 0
      %v1209 = vsel %vm1174, %v1154, 0
      %v1212 = vsel %vm1174, %v1155, 0
      %v1215 = vsel %vm1174, %v1156, 0
      %v1218 = vsel %vm1174, %v1157, 0
      %v1221 = vsel %vm1174, %v1158, 0
      %1223 = vmatprep.subr.mxu0 0.0
      %1224 = vmatpush1.msra.mxu0 0.0
      %1225 = vmatprep.subr.mxu0 0.0
      %1226 = vmatpush1.msra.mxu0 0.0
      %1227 = vmatprep.subr.mxu0 0.0
      %1228 = vmatpush1.msra.mxu0 0.0
      %1229 = vmatprep.subr.mxu0 0.0
      %1230 = vmatpush1.msra.mxu0 0.0
      %1231 = vmatprep.subr.mxu0 0.0
      %1232 = vmatpush1.msra.mxu0 0.0
      %1233 = vmatprep.subr.mxu0 0.0
      %1234 = vmatpush1.msra.mxu0 0.0
      %1235 = vmatprep.subr.mxu0 0.0
      %1236 = vmatpush1.msra.mxu0 0.0
      %1237 = vmatprep.subr.mxu0 0.0
      %1238 = vmatpush1.msra.mxu0 0.0
      %1239 = vmatprep.subr.mxu0 0.0
      %1240 = vmatpush1.msra.mxu0 %v1166
      %1241 = vmatprep.subr.mxu0 0.0
      %1242 = vmatpush1.msra.mxu0 %v1165
      %1243 = vmatprep.subr.mxu0 0.0
      %1244 = vmatpush1.msra.mxu0 %v1164
      %1245 = vmatprep.subr.mxu0 0.0
      %1246 = vmatpush1.msra.mxu0 %v1163
      %1247 = vmatprep.subr.mxu0 0.0
      %1248 = vmatpush1.msra.mxu0 %v1162
      %1249 = vmatprep.subr.mxu0 0.0
      %1250 = vmatpush1.msra.mxu0 %v1161
      %1251 = vmatprep.subr.mxu0 0.0
      %1252 = vmatpush1.msra.mxu0 %v1160
      %1253 = vmatprep.subr.mxu0 0.0
      %1254 = vmatpush1.msra.mxu0 %v1159
      %1255 = vmatprep.subr.mxu0 0.0
      %1256 = vmatpush2.msra.mxu0 0.0
      %1257 = vmatprep.subr.mxu0 0.0
      %1258 = vmatpush2.msra.mxu0 0.0
      %1259 = vmatprep.subr.mxu0 0.0
      %1260 = vmatpush2.msra.mxu0 0.0
      %1261 = vmatprep.subr.mxu0 0.0
      %1262 = vmatpush2.msra.mxu0 0.0
      %1263 = vmatprep.subr.mxu0 0.0
      %1264 = vmatpush2.msra.mxu0 0.0
      %1265 = vmatprep.subr.mxu0 0.0
      %1266 = vmatpush2.msra.mxu0 0.0
      %1267 = vmatprep.subr.mxu0 0.0
      %1268 = vmatpush2.msra.mxu0 0.0
      %1269 = vmatprep.subr.mxu0 0.0
      %1270 = vmatpush2.msra.mxu0 0.0
      %1271 = vmatprep.subr.mxu0 0.0
      %1272 = vmatpush2.msra.mxu0 0.0
      %1273 = vmatprep.subr.mxu0 0.0
      %1274 = vmatpush2.msra.mxu0 0.0
      %1275 = vmatprep.subr.mxu0 0.0
      %1276 = vmatpush2.msra.mxu0 0.0
      %1277 = vmatprep.subr.mxu0 0.0
      %1278 = vmatpush2.msra.mxu0 0.0
      %1279 = vmatprep.subr.mxu0 0.0
      %1280 = vmatpush2.msra.mxu0 0.0
      %1281 = vmatprep.subr.mxu0 0.0
      %1282 = vmatpush2.msra.mxu0 0.0
      %1283 = vmatprep.subr.mxu0 0.0
      %1284 = vmatpush2.msra.mxu0 0.0
      %1285 = vmatprep.subr.mxu0 0.0
      %1286 = vmatpush2.msra.mxu0 0.0
      %1287 = vmatprep.mubr.f32.mxu0 0.0
      %1288 = vmatmul.mubr.f32.gmra.mxu0 %v1176
      %v1289 = vpop.f32.mrf.mxu0
      %v1290 = vadd.f32 %v1172, %v1289
      %v1291 = vpop.f32.mrf.mxu0
      %1292 = vmatprep.mubr.f32.mxu0 0.0
      %1293 = vmatmul.mubr.f32.gmra.mxu0 %v1179
      %v1294 = vpop.f32.mrf.mxu0
      %v1295 = vadd.f32 %v1172, %v1294
      %v1296 = vpop.f32.mrf.mxu0
      %1297 = vmatprep.mubr.f32.mxu0 0.0
      %1298 = vmatmul.mubr.f32.gmra.mxu0 %v1182
      %v1299 = vpop.f32.mrf.mxu0
      %v1300 = vadd.f32 %v1172, %v1299
      %v1301 = vpop.f32.mrf.mxu0
      %1302 = vmatprep.mubr.f32.mxu0 0.0
      %1303 = vmatmul.mubr.f32.gmra.mxu0 %v1185
      %v1304 = vpop.f32.mrf.mxu0
      %v1305 = vadd.f32 %v1172, %v1304
      %v1306 = vpop.f32.mrf.mxu0
      %1307 = vmatprep.mubr.f32.mxu0 0.0
      %1308 = vmatmul.mubr.f32.gmra.mxu0 %v1188
      %v1309 = vpop.f32.mrf.mxu0
      %v1310 = vadd.f32 %v1172, %v1309
      %v1311 = vpop.f32.mrf.mxu0
      %1312 = vmatprep.mubr.f32.mxu0 0.0
      %1313 = vmatmul.mubr.f32.gmra.mxu0 %v1191
      %v1314 = vpop.f32.mrf.mxu0
      %v1315 = vadd.f32 %v1172, %v1314
      %v1316 = vpop.f32.mrf.mxu0
      %1317 = vmatprep.mubr.f32.mxu0 0.0
      %1318 = vmatmul.mubr.f32.gmra.mxu0 %v1194
      %v1319 = vpop.f32.mrf.mxu0
      %v1320 = vadd.f32 %v1172, %v1319
      %v1321 = vpop.f32.mrf.mxu0
      %1322 = vmatprep.mubr.f32.mxu0 0.0
      %1323 = vmatmul.mubr.f32.gmra.mxu0 %v1197
      %v1324 = vpop.f32.mrf.mxu0
      %v1325 = vadd.f32 %v1172, %v1324
      %v1326 = vpop.f32.mrf.mxu0
      %1327 = vmatprep.mubr.f32.mxu0 0.0
      %1328 = vmatmul.mubr.f32.gmra.mxu0 %v1200
      %v1329 = vpop.f32.mrf.mxu0
      %v1330 = vadd.f32 %v1172, %v1329
      %v1331 = vpop.f32.mrf.mxu0
      %1332 = vmatprep.mubr.f32.mxu0 0.0
      %1333 = vmatmul.mubr.f32.gmra.mxu0 %v1203
      %v1334 = vpop.f32.mrf.mxu0
      %v1335 = vadd.f32 %v1172, %v1334
      %v1336 = vpop.f32.mrf.mxu0
      %1337 = vmatprep.mubr.f32.mxu0 0.0
      %1338 = vmatmul.mubr.f32.gmra.mxu0 %v1206
      %v1339 = vpop.f32.mrf.mxu0
      %v1340 = vadd.f32 %v1172, %v1339
      %v1341 = vpop.f32.mrf.mxu0
      %1342 = vmatprep.mubr.f32.mxu0 0.0
      %1343 = vmatmul.mubr.f32.gmra.mxu0 %v1209
      %v1344 = vpop.f32.mrf.mxu0
      %v1345 = vadd.f32 %v1172, %v1344
      %v1346 = vpop.f32.mrf.mxu0
      %1347 = vmatprep.mubr.f32.mxu0 0.0
      %1348 = vmatmul.mubr.f32.gmra.mxu0 %v1212
      %v1349 = vpop.f32.mrf.mxu0
      %v1350 = vadd.f32 %v1172, %v1349
      %v1351 = vpop.f32.mrf.mxu0
      %1352 = vmatprep.mubr.f32.mxu0 0.0
      %1353 = vmatmul.mubr.f32.gmra.mxu0 %v1215
      %v1354 = vpop.f32.mrf.mxu0
      %v1355 = vadd.f32 %v1172, %v1354
      %v1356 = vpop.f32.mrf.mxu0
      %1357 = vmatprep.mubr.f32.mxu0 0.0
      %1358 = vmatmul.mubr.f32.gmra.mxu0 %v1218
      %v1359 = vpop.f32.mrf.mxu0
      %v1360 = vadd.f32 %v1172, %v1359
      %v1361 = vpop.f32.mrf.mxu0
      %1362 = vmatprep.mubr.f32.mxu0 0.0
      %1363 = vmatmul.mubr.f32.gmra.mxu0 %v1221
      %v1364 = vpop.f32.mrf.mxu0
      %v1365 = vadd.f32 %v1172, %v1364
      %v1366 = vpop.f32.mrf.mxu0
      %1367 = vdwg.mxu0
      %vm1368 = vcmp.ge.f32.partialorder %v1290, 0.0
      %vm1369 = vcmp.ge.f32.partialorder %v1295, 0.0
      %vm1370 = vcmp.ge.f32.partialorder %v1300, 0.0
      %vm1371 = vcmp.ge.f32.partialorder %v1305, 0.0
      %vm1372 = vcmp.ge.f32.partialorder %v1310, 0.0
      %vm1373 = vcmp.ge.f32.partialorder %v1315, 0.0
      %vm1374 = vcmp.ge.f32.partialorder %v1320, 0.0
      %vm1375 = vcmp.ge.f32.partialorder %v1325, 0.0
      %vm1376 = vcmp.ge.f32.partialorder %v1330, 0.0
      %vm1377 = vcmp.ge.f32.partialorder %v1335, 0.0
      %vm1378 = vcmp.ge.f32.partialorder %v1340, 0.0
      %vm1379 = vcmp.ge.f32.partialorder %v1345, 0.0
      %vm1380 = vcmp.ge.f32.partialorder %v1350, 0.0
      %vm1381 = vcmp.ge.f32.partialorder %v1355, 0.0
      %vm1382 = vcmp.ge.f32.partialorder %v1360, 0.0
      %vm1383 = vcmp.ge.f32.partialorder %v1365, 0.0
      %v1384 = vmul.f32 %v1290, 0.2
      %v1385 = vmul.f32 %v1295, 0.2
      %v1386 = vmul.f32 %v1300, 0.2
      %v1387 = vmul.f32 %v1305, 0.2
      %v1388 = vmul.f32 %v1310, 0.2
      %v1389 = vmul.f32 %v1315, 0.2
      %v1390 = vmul.f32 %v1320, 0.2
      %v1391 = vmul.f32 %v1325, 0.2
      %v1392 = vmul.f32 %v1330, 0.2
      %v1393 = vmul.f32 %v1335, 0.2
      %v1394 = vmul.f32 %v1340, 0.2
      %v1395 = vmul.f32 %v1345, 0.2
      %v1396 = vmul.f32 %v1350, 0.2
      %v1397 = vmul.f32 %v1355, 0.2
      %v1398 = vmul.f32 %v1360, 0.2
      %v1399 = vmul.f32 %v1365, 0.2
      %v1400 = vsel %vm1368, %v1290, %v1384
      %v1401 = vsel %vm1369, %v1295, %v1385
      %v1402 = vsel %vm1370, %v1300, %v1386
      %v1403 = vsel %vm1371, %v1305, %v1387
      %v1404 = vsel %vm1372, %v1310, %v1388
      %v1405 = vsel %vm1373, %v1315, %v1389
      %v1406 = vsel %vm1374, %v1320, %v1390
      %v1407 = vsel %vm1375, %v1325, %v1391
      %v1408 = vsel %vm1376, %v1330, %v1392
      %v1409 = vsel %vm1377, %v1335, %v1393
      %v1410 = vsel %vm1378, %v1340, %v1394
      %v1411 = vsel %vm1379, %v1345, %v1395
      %v1412 = vsel %vm1380, %v1350, %v1396
      %v1413 = vsel %vm1381, %v1355, %v1397
      %v1414 = vsel %vm1382, %v1360, %v1398
      %v1415 = vsel %vm1383, %v1365, %v1399
      %v1416 = vld [vmem:[%s6] sm:$0xff]
      %v1417 = vld [vmem:[%s6 + $0x8] sm:$0xff]
      %v1418 = vld [vmem:[%s6 + $0x10] sm:$0xff]
      %v1419 = vld [vmem:[%s6 + $0x18] sm:$0xff]
      %v1420 = vld [vmem:[%s6 + $0x20] sm:$0xff]
      %v1421 = vld [vmem:[%s6 + $0x28] sm:$0xff]
      %v1422 = vld [vmem:[%s6 + $0x30] sm:$0xff]
      %v1423 = vld [vmem:[%s6 + $0x38] sm:$0xff]
      %v1424 = vld [vmem:[%s6 + $0x40] sm:$0xff]
      %v1425 = vld [vmem:[%s6 + $0x48] sm:$0xff]
      %v1426 = vld [vmem:[%s6 + $0x50] sm:$0xff]
      %v1427 = vld [vmem:[%s6 + $0x58] sm:$0xff]
      %v1428 = vld [vmem:[%s6 + $0x60] sm:$0xff]
      %v1429 = vld [vmem:[%s6 + $0x68] sm:$0xff]
      %v1430 = vld [vmem:[%s6 + $0x70] sm:$0xff]
      %v1431 = vld [vmem:[%s6 + $0x78] sm:$0xff]
      %v1432 = vld [vmem:[%s7] sm:$0x1]
      %v1434 = vlaneseq
      %v1435 = vshrl.u32 %v1434, 7
      %v1436 = vsub.s32 0, %v1435
      %v1437 = vrot.slane %v1432, %v1436
      %1439 = vmatprep.subr.mxu0 0.0
      %1440 = vmatpush1.msra.mxu0 %v1431
      %1441 = vmatprep.subr.mxu0 0.0
      %1442 = vmatpush1.msra.mxu0 %v1430
      %1443 = vmatprep.subr.mxu0 0.0
      %1444 = vmatpush1.msra.mxu0 %v1429
      %1445 = vmatprep.subr.mxu0 0.0
      %1446 = vmatpush1.msra.mxu0 %v1428
      %1447 = vmatprep.subr.mxu0 0.0
      %1448 = vmatpush1.msra.mxu0 %v1427
      %1449 = vmatprep.subr.mxu0 0.0
      %1450 = vmatpush1.msra.mxu0 %v1426
      %1451 = vmatprep.subr.mxu0 0.0
      %1452 = vmatpush1.msra.mxu0 %v1425
      %1453 = vmatprep.subr.mxu0 0.0
      %1454 = vmatpush1.msra.mxu0 %v1424
      %1455 = vmatprep.subr.mxu0 0.0
      %1456 = vmatpush1.msra.mxu0 %v1423
      %1457 = vmatprep.subr.mxu0 0.0
      %1458 = vmatpush1.msra.mxu0 %v1422
      %1459 = vmatprep.subr.mxu0 0.0
      %1460 = vmatpush1.msra.mxu0 %v1421
      %1461 = vmatprep.subr.mxu0 0.0
      %1462 = vmatpush1.msra.mxu0 %v1420
      %1463 = vmatprep.subr.mxu0 0.0
      %1464 = vmatpush1.msra.mxu0 %v1419
      %1465 = vmatprep.subr.mxu0 0.0
      %1466 = vmatpush1.msra.mxu0 %v1418
      %1467 = vmatprep.subr.mxu0 0.0
      %1468 = vmatpush1.msra.mxu0 %v1417
      %1469 = vmatprep.subr.mxu0 0.0
      %1470 = vmatpush1.msra.mxu0 %v1416
      %1471 = vmatprep.subr.mxu0 0.0
      %1472 = vmatpush2.msra.mxu0 0.0
      %1473 = vmatprep.subr.mxu0 0.0
      %1474 = vmatpush2.msra.mxu0 0.0
      %1475 = vmatprep.subr.mxu0 0.0
      %1476 = vmatpush2.msra.mxu0 0.0
      %1477 = vmatprep.subr.mxu0 0.0
      %1478 = vmatpush2.msra.mxu0 0.0
      %1479 = vmatprep.subr.mxu0 0.0
      %1480 = vmatpush2.msra.mxu0 0.0
      %1481 = vmatprep.subr.mxu0 0.0
      %1482 = vmatpush2.msra.mxu0 0.0
      %1483 = vmatprep.subr.mxu0 0.0
      %1484 = vmatpush2.msra.mxu0 0.0
      %1485 = vmatprep.subr.mxu0 0.0
      %1486 = vmatpush2.msra.mxu0 0.0
      %1487 = vmatprep.subr.mxu0 0.0
      %1488 = vmatpush2.msra.mxu0 0.0
      %1489 = vmatprep.subr.mxu0 0.0
      %1490 = vmatpush2.msra.mxu0 0.0
      %1491 = vmatprep.subr.mxu0 0.0
      %1492 = vmatpush2.msra.mxu0 0.0
      %1493 = vmatprep.subr.mxu0 0.0
      %1494 = vmatpush2.msra.mxu0 0.0
      %1495 = vmatprep.subr.mxu0 0.0
      %1496 = vmatpush2.msra.mxu0 0.0
      %1497 = vmatprep.subr.mxu0 0.0
      %1498 = vmatpush2.msra.mxu0 0.0
      %1499 = vmatprep.subr.mxu0 0.0
      %1500 = vmatpush2.msra.mxu0 0.0
      %1501 = vmatprep.subr.mxu0 0.0
      %1502 = vmatpush2.msra.mxu0 0.0
      %1503 = vmatprep.mubr.f32.mxu0 0.0
      %1504 = vmatmul.mubr.f32.gmra.mxu0 %v1400
      %v1505 = vpop.f32.mrf.mxu0
      %v1506 = vadd.f32 %v1437, %v1505
      %v1507 = vpop.f32.mrf.mxu0
      %1508 = vmatprep.mubr.f32.mxu0 0.0
      %1509 = vmatmul.mubr.f32.gmra.mxu0 %v1401
      %v1510 = vpop.f32.mrf.mxu0
      %v1511 = vadd.f32 %v1437, %v1510
      %v1512 = vpop.f32.mrf.mxu0
      %1513 = vmatprep.mubr.f32.mxu0 0.0
      %1514 = vmatmul.mubr.f32.gmra.mxu0 %v1402
      %v1515 = vpop.f32.mrf.mxu0
      %v1516 = vadd.f32 %v1437, %v1515
      %v1517 = vpop.f32.mrf.mxu0
      %1518 = vmatprep.mubr.f32.mxu0 0.0
      %1519 = vmatmul.mubr.f32.gmra.mxu0 %v1403
      %v1520 = vpop.f32.mrf.mxu0
      %v1521 = vadd.f32 %v1437, %v1520
      %v1522 = vpop.f32.mrf.mxu0
      %1523 = vmatprep.mubr.f32.mxu0 0.0
      %1524 = vmatmul.mubr.f32.gmra.mxu0 %v1404
      %v1525 = vpop.f32.mrf.mxu0
      %v1526 = vadd.f32 %v1437, %v1525
      %v1527 = vpop.f32.mrf.mxu0
      %1528 = vmatprep.mubr.f32.mxu0 0.0
      %1529 = vmatmul.mubr.f32.gmra.mxu0 %v1405
      %v1530 = vpop.f32.mrf.mxu0
      %v1531 = vadd.f32 %v1437, %v1530
      %v1532 = vpop.f32.mrf.mxu0
      %1533 = vmatprep.mubr.f32.mxu0 0.0
      %1534 = vmatmul.mubr.f32.gmra.mxu0 %v1406
      %v1535 = vpop.f32.mrf.mxu0
      %v1536 = vadd.f32 %v1437, %v1535
      %v1537 = vpop.f32.mrf.mxu0
      %1538 = vmatprep.mubr.f32.mxu0 0.0
      %1539 = vmatmul.mubr.f32.gmra.mxu0 %v1407
      %v1540 = vpop.f32.mrf.mxu0
      %v1541 = vadd.f32 %v1437, %v1540
      %v1542 = vpop.f32.mrf.mxu0
      %1543 = vmatprep.mubr.f32.mxu0 0.0
      %1544 = vmatmul.mubr.f32.gmra.mxu0 %v1408
      %v1545 = vpop.f32.mrf.mxu0
      %v1546 = vadd.f32 %v1437, %v1545
      %v1547 = vpop.f32.mrf.mxu0
      %1548 = vmatprep.mubr.f32.mxu0 0.0
      %1549 = vmatmul.mubr.f32.gmra.mxu0 %v1409
      %v1550 = vpop.f32.mrf.mxu0
      %v1551 = vadd.f32 %v1437, %v1550
      %v1552 = vpop.f32.mrf.mxu0
      %1553 = vmatprep.mubr.f32.mxu0 0.0
      %1554 = vmatmul.mubr.f32.gmra.mxu0 %v1410
      %v1555 = vpop.f32.mrf.mxu0
      %v1556 = vadd.f32 %v1437, %v1555
      %v1557 = vpop.f32.mrf.mxu0
      %1558 = vmatprep.mubr.f32.mxu0 0.0
      %1559 = vmatmul.mubr.f32.gmra.mxu0 %v1411
      %v1560 = vpop.f32.mrf.mxu0
      %v1561 = vadd.f32 %v1437, %v1560
      %v1562 = vpop.f32.mrf.mxu0
      %1563 = vmatprep.mubr.f32.mxu0 0.0
      %1564 = vmatmul.mubr.f32.gmra.mxu0 %v1412
      %v1565 = vpop.f32.mrf.mxu0
      %v1566 = vadd.f32 %v1437, %v1565
      %v1567 = vpop.f32.mrf.mxu0
      %1568 = vmatprep.mubr.f32.mxu0 0.0
      %1569 = vmatmul.mubr.f32.gmra.mxu0 %v1413
      %v1570 = vpop.f32.mrf.mxu0
      %v1571 = vadd.f32 %v1437, %v1570
      %v1572 = vpop.f32.mrf.mxu0
      %1573 = vmatprep.mubr.f32.mxu0 0.0
      %1574 = vmatmul.mubr.f32.gmra.mxu0 %v1414
      %v1575 = vpop.f32.mrf.mxu0
      %v1576 = vadd.f32 %v1437, %v1575
      %v1577 = vpop.f32.mrf.mxu0
      %1578 = vmatprep.mubr.f32.mxu0 0.0
      %1579 = vmatmul.mubr.f32.gmra.mxu0 %v1415
      %v1580 = vpop.f32.mrf.mxu0
      %v1581 = vadd.f32 %v1437, %v1580
      %v1582 = vpop.f32.mrf.mxu0
      %1583 = vdwg.mxu0
      %vm1584 = vcmp.ge.f32.partialorder %v1506, 0.0
      %vm1585 = vcmp.ge.f32.partialorder %v1511, 0.0
      %vm1586 = vcmp.ge.f32.partialorder %v1516, 0.0
      %vm1587 = vcmp.ge.f32.partialorder %v1521, 0.0
      %vm1588 = vcmp.ge.f32.partialorder %v1526, 0.0
      %vm1589 = vcmp.ge.f32.partialorder %v1531, 0.0
      %vm1590 = vcmp.ge.f32.partialorder %v1536, 0.0
      %vm1591 = vcmp.ge.f32.partialorder %v1541, 0.0
      %vm1592 = vcmp.ge.f32.partialorder %v1546, 0.0
      %vm1593 = vcmp.ge.f32.partialorder %v1551, 0.0
      %vm1594 = vcmp.ge.f32.partialorder %v1556, 0.0
      %vm1595 = vcmp.ge.f32.partialorder %v1561, 0.0
      %vm1596 = vcmp.ge.f32.partialorder %v1566, 0.0
      %vm1597 = vcmp.ge.f32.partialorder %v1571, 0.0
      %vm1598 = vcmp.ge.f32.partialorder %v1576, 0.0
      %vm1599 = vcmp.ge.f32.partialorder %v1581, 0.0
      %v1600 = vmul.f32 %v1506, 0.2
      %v1601 = vmul.f32 %v1511, 0.2
      %v1602 = vmul.f32 %v1516, 0.2
      %v1603 = vmul.f32 %v1521, 0.2
      %v1604 = vmul.f32 %v1526, 0.2
      %v1605 = vmul.f32 %v1531, 0.2
      %v1606 = vmul.f32 %v1536, 0.2
      %v1607 = vmul.f32 %v1541, 0.2
      %v1608 = vmul.f32 %v1546, 0.2
      %v1609 = vmul.f32 %v1551, 0.2
      %v1610 = vmul.f32 %v1556, 0.2
      %v1611 = vmul.f32 %v1561, 0.2
      %v1612 = vmul.f32 %v1566, 0.2
      %v1613 = vmul.f32 %v1571, 0.2
      %v1614 = vmul.f32 %v1576, 0.2
      %v1615 = vmul.f32 %v1581, 0.2
      %v1616 = vsel %vm1584, %v1506, %v1600
      %v1617 = vsel %vm1585, %v1511, %v1601
      %v1618 = vsel %vm1586, %v1516, %v1602
      %v1619 = vsel %vm1587, %v1521, %v1603
      %v1620 = vsel %vm1588, %v1526, %v1604
      %v1621 = vsel %vm1589, %v1531, %v1605
      %v1622 = vsel %vm1590, %v1536, %v1606
      %v1623 = vsel %vm1591, %v1541, %v1607
      %v1624 = vsel %vm1592, %v1546, %v1608
      %v1625 = vsel %vm1593, %v1551, %v1609
      %v1626 = vsel %vm1594, %v1556, %v1610
      %v1627 = vsel %vm1595, %v1561, %v1611
      %v1628 = vsel %vm1596, %v1566, %v1612
      %v1629 = vsel %vm1597, %v1571, %v1613
      %v1630 = vsel %vm1598, %v1576, %v1614
      %v1631 = vsel %vm1599, %v1581, %v1615
      %vm1632 = vcmask 261120
      %v1633 = vsel %vm1632, %v1616, -inf
      %v1634 = vsel %vm1632, %v1617, -inf
      %v1635 = vsel %vm1632, %v1618, -inf
      %v1636 = vsel %vm1632, %v1619, -inf
      %v1637 = vsel %vm1632, %v1620, -inf
      %v1638 = vmax.f32 %v1633, %v1637
      %v1639 = vsel %vm1632, %v1621, -inf
      %v1640 = vmax.f32 %v1634, %v1639
      %v1641 = vsel %vm1632, %v1622, -inf
      %v1642 = vmax.f32 %v1635, %v1641
      %v1643 = vsel %vm1632, %v1623, -inf
      %v1644 = vmax.f32 %v1636, %v1643
      %v1645 = vmax.f32 %v1638, %v1640
      %v1646 = vmax.f32 %v1642, %v1644
      %v1647 = vmax.f32 %v1645, %v1646
      %v1648 = vrot.slane %v1647, 4
      %v1649 = vmax.f32 %v1647, %v1648
      %v1650 = vrot.slane %v1649, 2
      %v1651 = vmax.f32 %v1649, %v1650
      %v1652 = vrot.slane %v1651, 1
      %v1653 = vmax.f32 %v1651, %v1652
      %v1654 = vsel %vm1632, %v1624, -inf
      %v1655 = vsel %vm1632, %v1625, -inf
      %v1656 = vsel %vm1632, %v1626, -inf
      %v1657 = vsel %vm1632, %v1627, -inf
      %v1658 = vsel %vm1632, %v1628, -inf
      %v1659 = vmax.f32 %v1654, %v1658
      %v1660 = vsel %vm1632, %v1629, -inf
      %v1661 = vmax.f32 %v1655, %v1660
      %v1662 = vsel %vm1632, %v1630, -inf
      %v1663 = vmax.f32 %v1656, %v1662
      %v1664 = vsel %vm1632, %v1631, -inf
      %v1665 = vmax.f32 %v1657, %v1664
      %v1666 = vmax.f32 %v1659, %v1661
      %v1667 = vmax.f32 %v1663, %v1665
      %v1668 = vmax.f32 %v1666, %v1667
      %v1669 = vrot.slane %v1668, 4
      %v1670 = vmax.f32 %v1668, %v1669
      %v1671 = vrot.slane %v1670, 2
      %v1672 = vmax.f32 %v1670, %v1671
      %v1673 = vrot.slane %v1672, 1
      %v1674 = vmax.f32 %v1672, %v1673
      %vm1675 = vcmask 1040384
      %v1676 = vsel %vm1675, %v1653, %v1674
      %v1677 = vld [vmem:[%s8] sm:$0xff]
      %v1678 = vld [vmem:[%s8 + $0x8] sm:$0xff]
      %v1679 = vld [vmem:[%s8 + $0x10] sm:$0xff]
      %v1680 = vld [vmem:[%s8 + $0x18] sm:$0xff]
      %v1681 = vld [vmem:[%s9] sm:$0x1]
      %v1683 = vlaneseq
      %v1684 = vshrl.u32 %v1683, 7
      %v1685 = vsub.s32 0, %v1684
      %v1686 = vrot.slane %v1681, %v1685
      %v1689 = vsel %vm1632, %v1676, 0
      %1691 = vmatprep.subr.mxu0 0.0
      %1692 = vmatpush1.msra.mxu0 0.0
      %1693 = vmatprep.subr.mxu0 0.0
      %1694 = vmatpush1.msra.mxu0 0.0
      %1695 = vmatprep.subr.mxu0 0.0
      %1696 = vmatpush1.msra.mxu0 0.0
      %1697 = vmatprep.subr.mxu0 0.0
      %1698 = vmatpush1.msra.mxu0 0.0
      %1699 = vmatprep.subr.mxu0 0.0
      %1700 = vmatpush1.msra.mxu0 0.0
      %1701 = vmatprep.subr.mxu0 0.0
      %1702 = vmatpush1.msra.mxu0 0.0
      %1703 = vmatprep.subr.mxu0 0.0
      %1704 = vmatpush1.msra.mxu0 0.0
      %1705 = vmatprep.subr.mxu0 0.0
      %1706 = vmatpush1.msra.mxu0 0.0
      %1707 = vmatprep.subr.mxu0 0.0
      %1708 = vmatpush1.msra.mxu0 0.0
      %1709 = vmatprep.subr.mxu0 0.0
      %1710 = vmatpush1.msra.mxu0 0.0
      %1711 = vmatprep.subr.mxu0 0.0
      %1712 = vmatpush1.msra.mxu0 0.0
      %1713 = vmatprep.subr.mxu0 0.0
      %1714 = vmatpush1.msra.mxu0 0.0
      %1715 = vmatprep.subr.mxu0 0.0
      %1716 = vmatpush1.msra.mxu0 %v1680
      %1717 = vmatprep.subr.mxu0 0.0
      %1718 = vmatpush1.msra.mxu0 %v1679
      %1719 = vmatprep.subr.mxu0 0.0
      %1720 = vmatpush1.msra.mxu0 %v1678
      %1721 = vmatprep.subr.mxu0 0.0
      %1722 = vmatpush1.msra.mxu0 %v1677
      %1723 = vmatprep.subr.mxu0 0.0
      %1724 = vmatpush2.msra.mxu0 0.0
      %1725 = vmatprep.subr.mxu0 0.0
      %1726 = vmatpush2.msra.mxu0 0.0
      %1727 = vmatprep.subr.mxu0 0.0
      %1728 = vmatpush2.msra.mxu0 0.0
      %1729 = vmatprep.subr.mxu0 0.0
      %1730 = vmatpush2.msra.mxu0 0.0
      %1731 = vmatprep.subr.mxu0 0.0
      %1732 = vmatpush2.msra.mxu0 0.0
      %1733 = vmatprep.subr.mxu0 0.0
      %1734 = vmatpush2.msra.mxu0 0.0
      %1735 = vmatprep.subr.mxu0 0.0
      %1736 = vmatpush2.msra.mxu0 0.0
      %1737 = vmatprep.subr.mxu0 0.0
      %1738 = vmatpush2.msra.mxu0 0.0
      %1739 = vmatprep.subr.mxu0 0.0
      %1740 = vmatpush2.msra.mxu0 0.0
      %1741 = vmatprep.subr.mxu0 0.0
      %1742 = vmatpush2.msra.mxu0 0.0
      %1743 = vmatprep.subr.mxu0 0.0
      %1744 = vmatpush2.msra.mxu0 0.0
      %1745 = vmatprep.subr.mxu0 0.0
      %1746 = vmatpush2.msra.mxu0 0.0
      %1747 = vmatprep.subr.mxu0 0.0
      %1748 = vmatpush2.msra.mxu0 0.0
      %1749 = vmatprep.subr.mxu0 0.0
      %1750 = vmatpush2.msra.mxu0 0.0
      %1751 = vmatprep.subr.mxu0 0.0
      %1752 = vmatpush2.msra.mxu0 0.0
      %1753 = vmatprep.subr.mxu0 0.0
      %1754 = vmatpush2.msra.mxu0 0.0
      %1755 = vmatprep.mubr.f32.mxu0 0.0
      %1756 = vmatmul.mubr.f32.gmra.mxu0 %v1689
      %v1757 = vpop.f32.mrf.mxu0
      %v1758 = vadd.f32 %v1686, %v1757
      %v1759 = vpop.f32.mrf.mxu0
      %1760 = vdwg.mxu0
      %vm1761 = vcmp.ge.f32.partialorder %v1758, 0.0
      %v1762 = vmul.f32 %v1758, 0.2
      %v1763 = vsel %vm1761, %v1758, %v1762
      %v1764 = vld [vmem:[%s10] sm:$0xff]
      %v1765 = vld [vmem:[%s10 + $0x8] sm:$0xff]
      %v1766 = vld [vmem:[%s10 + $0x10] sm:$0xff]
      %v1767 = vld [vmem:[%s10 + $0x18] sm:$0xff]
      %v1768 = vld [vmem:[%s11] sm:$0x1]
      %v1770 = vlaneseq
      %v1771 = vshrl.u32 %v1770, 7
      %v1772 = vsub.s32 0, %v1771
      %v1773 = vrot.slane %v1768, %v1772
      %v1776 = vsel %vm1632, %v1763, 0
      %1778 = vmatprep.subr.mxu0 0.0
      %1779 = vmatpush1.msra.mxu0 0.0
      %1780 = vmatprep.subr.mxu0 0.0
      %1781 = vmatpush1.msra.mxu0 0.0
      %1782 = vmatprep.subr.mxu0 0.0
      %1783 = vmatpush1.msra.mxu0 0.0
      %1784 = vmatprep.subr.mxu0 0.0
      %1785 = vmatpush1.msra.mxu0 0.0
      %1786 = vmatprep.subr.mxu0 0.0
      %1787 = vmatpush1.msra.mxu0 0.0
      %1788 = vmatprep.subr.mxu0 0.0
      %1789 = vmatpush1.msra.mxu0 0.0
      %1790 = vmatprep.subr.mxu0 0.0
      %1791 = vmatpush1.msra.mxu0 0.0
      %1792 = vmatprep.subr.mxu0 0.0
      %1793 = vmatpush1.msra.mxu0 0.0
      %1794 = vmatprep.subr.mxu0 0.0
      %1795 = vmatpush1.msra.mxu0 0.0
      %1796 = vmatprep.subr.mxu0 0.0
      %1797 = vmatpush1.msra.mxu0 0.0
      %1798 = vmatprep.subr.mxu0 0.0
      %1799 = vmatpush1.msra.mxu0 0.0
      %1800 = vmatprep.subr.mxu0 0.0
      %1801 = vmatpush1.msra.mxu0 0.0
      %1802 = vmatprep.subr.mxu0 0.0
      %1803 = vmatpush1.msra.mxu0 %v1767
      %1804 = vmatprep.subr.mxu0 0.0
      %1805 = vmatpush1.msra.mxu0 %v1766
      %1806 = vmatprep.subr.mxu0 0.0
      %1807 = vmatpush1.msra.mxu0 %v1765
      %1808 = vmatprep.subr.mxu0 0.0
      %1809 = vmatpush1.msra.mxu0 %v1764
      %1810 = vmatprep.subr.mxu0 0.0
      %1811 = vmatpush2.msra.mxu0 0.0
      %1812 = vmatprep.subr.mxu0 0.0
      %1813 = vmatpush2.msra.mxu0 0.0
      %1814 = vmatprep.subr.mxu0 0.0
      %1815 = vmatpush2.msra.mxu0 0.0
      %1816 = vmatprep.subr.mxu0 0.0
      %1817 = vmatpush2.msra.mxu0 0.0
      %1818 = vmatprep.subr.mxu0 0.0
      %1819 = vmatpush2.msra.mxu0 0.0
      %1820 = vmatprep.subr.mxu0 0.0
      %1821 = vmatpush2.msra.mxu0 0.0
      %1822 = vmatprep.subr.mxu0 0.0
      %1823 = vmatpush2.msra.mxu0 0.0
      %1824 = vmatprep.subr.mxu0 0.0
      %1825 = vmatpush2.msra.mxu0 0.0
      %1826 = vmatprep.subr.mxu0 0.0
      %1827 = vmatpush2.msra.mxu0 0.0
      %1828 = vmatprep.subr.mxu0 0.0
      %1829 = vmatpush2.msra.mxu0 0.0
      %1830 = vmatprep.subr.mxu0 0.0
      %1831 = vmatpush2.msra.mxu0 0.0
      %1832 = vmatprep.subr.mxu0 0.0
      %1833 = vmatpush2.msra.mxu0 0.0
      %1834 = vmatprep.subr.mxu0 0.0
      %1835 = vmatpush2.msra.mxu0 0.0
      %1836 = vmatprep.subr.mxu0 0.0
      %1837 = vmatpush2.msra.mxu0 0.0
      %1838 = vmatprep.subr.mxu0 0.0
      %1839 = vmatpush2.msra.mxu0 0.0
      %1840 = vmatprep.subr.mxu0 0.0
      %1841 = vmatpush2.msra.mxu0 0.0
      %1842 = vmatprep.mubr.f32.mxu0 0.0
      %1843 = vmatmul.mubr.f32.gmra.mxu0 %v1776
      %v1844 = vpop.f32.mrf.mxu0
      %v1845 = vadd.f32 %v1773, %v1844
      %v1846 = vpop.f32.mrf.mxu0
      %1847 = vdwg.mxu0
      %vm1848 = vcmp.ge.f32.partialorder %v1845, 0.0
      %v1849 = vmul.f32 %v1845, 0.2
      %v1850 = vsel %vm1848, %v1845, %v1849
      %v1851 = vld [vmem:[%s12] sm:$0xff]
      %v1852 = vld [vmem:[%s12 + $0x8] sm:$0xff]
      %v1853 = vld [vmem:[%s12 + $0x10] sm:$0xff]
      %v1854 = vld [vmem:[%s12 + $0x18] sm:$0xff]
      %v1855 = vld [vmem:[%s12 + $0x20] sm:$0xff]
      %v1856 = vld [vmem:[%s12 + $0x28] sm:$0xff]
      %v1857 = vld [vmem:[%s12 + $0x30] sm:$0xff]
      %v1858 = vld [vmem:[%s12 + $0x38] sm:$0xff]
      %v1859 = vld [vmem:[%s13] sm:$0x1]
      %v1861 = vlaneseq
      %v1862 = vshrl.u32 %v1861, 7
      %v1863 = vsub.s32 0, %v1862
      %v1864 = vrot.slane %v1859, %v1863
      %v1867 = vsel %vm1174, %v1850, 0
      %1869 = vmatprep.subr.mxu0 0.0
      %1870 = vmatpush1.msra.mxu0 0.0
      %1871 = vmatprep.subr.mxu0 0.0
      %1872 = vmatpush1.msra.mxu0 0.0
      %1873 = vmatprep.subr.mxu0 0.0
      %1874 = vmatpush1.msra.mxu0 0.0
      %1875 = vmatprep.subr.mxu0 0.0
      %1876 = vmatpush1.msra.mxu0 0.0
      %1877 = vmatprep.subr.mxu0 0.0
      %1878 = vmatpush1.msra.mxu0 0.0
      %1879 = vmatprep.subr.mxu0 0.0
      %1880 = vmatpush1.msra.mxu0 0.0
      %1881 = vmatprep.subr.mxu0 0.0
      %1882 = vmatpush1.msra.mxu0 0.0
      %1883 = vmatprep.subr.mxu0 0.0
      %1884 = vmatpush1.msra.mxu0 0.0
      %1885 = vmatprep.subr.mxu0 0.0
      %1886 = vmatpush1.msra.mxu0 %v1858
      %1887 = vmatprep.subr.mxu0 0.0
      %1888 = vmatpush1.msra.mxu0 %v1857
      %1889 = vmatprep.subr.mxu0 0.0
      %1890 = vmatpush1.msra.mxu0 %v1856
      %1891 = vmatprep.subr.mxu0 0.0
      %1892 = vmatpush1.msra.mxu0 %v1855
      %1893 = vmatprep.subr.mxu0 0.0
      %1894 = vmatpush1.msra.mxu0 %v1854
      %1895 = vmatprep.subr.mxu0 0.0
      %1896 = vmatpush1.msra.mxu0 %v1853
      %1897 = vmatprep.subr.mxu0 0.0
      %1898 = vmatpush1.msra.mxu0 %v1852
      %1899 = vmatprep.subr.mxu0 0.0
      %1900 = vmatpush1.msra.mxu0 %v1851
      %1901 = vmatprep.subr.mxu0 0.0
      %1902 = vmatpush2.msra.mxu0 0.0
      %1903 = vmatprep.subr.mxu0 0.0
      %1904 = vmatpush2.msra.mxu0 0.0
      %1905 = vmatprep.subr.mxu0 0.0
      %1906 = vmatpush2.msra.mxu0 0.0
      %1907 = vmatprep.subr.mxu0 0.0
      %1908 = vmatpush2.msra.mxu0 0.0
      %1909 = vmatprep.subr.mxu0 0.0
      %1910 = vmatpush2.msra.mxu0 0.0
      %1911 = vmatprep.subr.mxu0 0.0
      %1912 = vmatpush2.msra.mxu0 0.0
      %1913 = vmatprep.subr.mxu0 0.0
      %1914 = vmatpush2.msra.mxu0 0.0
      %1915 = vmatprep.subr.mxu0 0.0
      %1916 = vmatpush2.msra.mxu0 0.0
      %1917 = vmatprep.subr.mxu0 0.0
      %1918 = vmatpush2.msra.mxu0 0.0
      %1919 = vmatprep.subr.mxu0 0.0
      %1920 = vmatpush2.msra.mxu0 0.0
      %1921 = vmatprep.subr.mxu0 0.0
      %1922 = vmatpush2.msra.mxu0 0.0
      %1923 = vmatprep.subr.mxu0 0.0
      %1924 = vmatpush2.msra.mxu0 0.0
      %1925 = vmatprep.subr.mxu0 0.0
      %1926 = vmatpush2.msra.mxu0 0.0
      %1927 = vmatprep.subr.mxu0 0.0
      %1928 = vmatpush2.msra.mxu0 0.0
      %1929 = vmatprep.subr.mxu0 0.0
      %1930 = vmatpush2.msra.mxu0 0.0
      %1931 = vmatprep.subr.mxu0 0.0
      %1932 = vmatpush2.msra.mxu0 0.0
      %1933 = vmatprep.mubr.f32.mxu0 0.0
      %1934 = vmatmul.mubr.f32.gmra.mxu0 %v1867
      %v1935 = vpop.f32.mrf.mxu0
      %v1936 = vadd.f32 %v1864, %v1935
      %v1937 = vpop.f32.mrf.mxu0
      %1938 = vdwg.mxu0
      %vm1939 = vcmask 189440
      %1940 = vst.msk [vmem:[%s880] sm:$0x3] %vm1939, %v1936
      %v1941 = vld [vmem:[%s875] sm:$0xff]
      %v1942 = vld [vmem:[%s875 + $0x8] sm:$0xff]
      %v1943 = vld [vmem:[%s875 + $0x10] sm:$0xff]
      %v1944 = vld [vmem:[%s875 + $0x18] sm:$0xff]
      %v1945 = vld [vmem:[%s875 + $0x20] sm:$0xff]
      %v1946 = vld [vmem:[%s875 + $0x28] sm:$0xff]
      %v1947 = vld [vmem:[%s875 + $0x30] sm:$0xff]
      %v1948 = vld [vmem:[%s875 + $0x38] sm:$0xff]
      %v1949 = vld [vmem:[%s14] sm:$0x7]
      %v1950 = vld [vmem:[%s15] sm:$0x1]
      %v1952 = vlaneseq
      %v1953 = vshrl.u32 %v1952, 7
      %v1954 = vsub.s32 0, %v1953
      %v1955 = vrot.slane %v1950, %v1954
      %v1958 = vsel %vm913, %v1941, 0
      %v1961 = vsel %vm913, %v1942, 0
      %v1964 = vsel %vm913, %v1943, 0
      %v1967 = vsel %vm913, %v1944, 0
      %v1970 = vsel %vm913, %v1945, 0
      %v1973 = vsel %vm913, %v1946, 0
      %v1976 = vsel %vm913, %v1947, 0
      %v1979 = vsel %vm913, %v1948, 0
      %v1982 = vsel %vm962, %v1949, 0
      %1984 = vmatprep.subr.mxu0 0.0
      %1985 = vmatpush1.msra.mxu0 0.0
      %1986 = vmatprep.subr.mxu0 0.0
      %1987 = vmatpush1.msra.mxu0 0.0
      %1988 = vmatprep.subr.mxu0 0.0
      %1989 = vmatpush1.msra.mxu0 0.0
      %1990 = vmatprep.subr.mxu0 0.0
      %1991 = vmatpush1.msra.mxu0 0.0
      %1992 = vmatprep.subr.mxu0 0.0
      %1993 = vmatpush1.msra.mxu0 0.0
      %1994 = vmatprep.subr.mxu0 0.0
      %1995 = vmatpush1.msra.mxu0 0.0
      %1996 = vmatprep.subr.mxu0 0.0
      %1997 = vmatpush1.msra.mxu0 0.0
      %1998 = vmatprep.subr.mxu0 0.0
      %1999 = vmatpush1.msra.mxu0 0.0
      %2000 = vmatprep.subr.mxu0 0.0
      %2001 = vmatpush1.msra.mxu0 0.0
      %2002 = vmatprep.subr.mxu0 0.0
      %2003 = vmatpush1.msra.mxu0 0.0
      %2004 = vmatprep.subr.mxu0 0.0
      %2005 = vmatpush1.msra.mxu0 0.0
      %2006 = vmatprep.subr.mxu0 0.0
      %2007 = vmatpush1.msra.mxu0 0.0
      %2008 = vmatprep.subr.mxu0 0.0
      %2009 = vmatpush1.msra.mxu0 0.0
      %2010 = vmatprep.subr.mxu0 0.0
      %2011 = vmatpush1.msra.mxu0 0.0
      %2012 = vmatprep.subr.mxu0 0.0
      %2013 = vmatpush1.msra.mxu0 0.0
      %2014 = vmatprep.subr.mxu0 0.0
      %2015 = vmatpush1.msra.mxu0 %v1982
      %2016 = vmatprep.subr.mxu0 0.0
      %2017 = vmatpush2.msra.mxu0 0.0
      %2018 = vmatprep.subr.mxu0 0.0
      %2019 = vmatpush2.msra.mxu0 0.0
      %2020 = vmatprep.subr.mxu0 0.0
      %2021 = vmatpush2.msra.mxu0 0.0
      %2022 = vmatprep.subr.mxu0 0.0
      %2023 = vmatpush2.msra.mxu0 0.0
      %2024 = vmatprep.subr.mxu0 0.0
      %2025 = vmatpush2.msra.mxu0 0.0
      %2026 = vmatprep.subr.mxu0 0.0
      %2027 = vmatpush2.msra.mxu0 0.0
      %2028 = vmatprep.subr.mxu0 0.0
      %2029 = vmatpush2.msra.mxu0 0.0
      %2030 = vmatprep.subr.mxu0 0.0
      %2031 = vmatpush2.msra.mxu0 0.0
      %2032 = vmatprep.subr.mxu0 0.0
      %2033 = vmatpush2.msra.mxu0 0.0
      %2034 = vmatprep.subr.mxu0 0.0
      %2035 = vmatpush2.msra.mxu0 0.0
      %2036 = vmatprep.subr.mxu0 0.0
      %2037 = vmatpush2.msra.mxu0 0.0
      %2038 = vmatprep.subr.mxu0 0.0
      %2039 = vmatpush2.msra.mxu0 0.0
      %2040 = vmatprep.subr.mxu0 0.0
      %2041 = vmatpush2.msra.mxu0 0.0
      %2042 = vmatprep.subr.mxu0 0.0
      %2043 = vmatpush2.msra.mxu0 0.0
      %2044 = vmatprep.subr.mxu0 0.0
      %2045 = vmatpush2.msra.mxu0 0.0
      %2046 = vmatprep.subr.mxu0 0.0
      %2047 = vmatpush2.msra.mxu0 0.0
      %2048 = vmatprep.mubr.f32.mxu0 0.0
      %2049 = vmatmul.mubr.f32.gmra.mxu0 %v1958
      %v2050 = vpop.f32.mrf.mxu0
      %v2051 = vadd.f32 %v1955, %v2050
      %v2052 = vpop.f32.mrf.mxu0
      %2053 = vmatprep.mubr.f32.mxu0 0.0
      %2054 = vmatmul.mubr.f32.gmra.mxu0 %v1961
      %v2055 = vpop.f32.mrf.mxu0
      %v2056 = vadd.f32 %v1955, %v2055
      %v2057 = vpop.f32.mrf.mxu0
      %2058 = vmatprep.mubr.f32.mxu0 0.0
      %2059 = vmatmul.mubr.f32.gmra.mxu0 %v1964
      %v2060 = vpop.f32.mrf.mxu0
      %v2061 = vadd.f32 %v1955, %v2060
      %v2062 = vpop.f32.mrf.mxu0
      %2063 = vmatprep.mubr.f32.mxu0 0.0
      %2064 = vmatmul.mubr.f32.gmra.mxu0 %v1967
      %v2065 = vpop.f32.mrf.mxu0
      %v2066 = vadd.f32 %v1955, %v2065
      %v2067 = vpop.f32.mrf.mxu0
      %2068 = vmatprep.mubr.f32.mxu0 0.0
      %2069 = vmatmul.mubr.f32.gmra.mxu0 %v1970
      %v2070 = vpop.f32.mrf.mxu0
      %v2071 = vadd.f32 %v1955, %v2070
      %v2072 = vpop.f32.mrf.mxu0
      %2073 = vmatprep.mubr.f32.mxu0 0.0
      %2074 = vmatmul.mubr.f32.gmra.mxu0 %v1973
      %v2075 = vpop.f32.mrf.mxu0
      %v2076 = vadd.f32 %v1955, %v2075
      %v2077 = vpop.f32.mrf.mxu0
      %2078 = vmatprep.mubr.f32.mxu0 0.0
      %2079 = vmatmul.mubr.f32.gmra.mxu0 %v1976
      %v2080 = vpop.f32.mrf.mxu0
      %v2081 = vadd.f32 %v1955, %v2080
      %v2082 = vpop.f32.mrf.mxu0
      %2083 = vmatprep.mubr.f32.mxu0 0.0
      %2084 = vmatmul.mubr.f32.gmra.mxu0 %v1979
      %v2085 = vpop.f32.mrf.mxu0
      %v2086 = vadd.f32 %v1955, %v2085
      %v2087 = vpop.f32.mrf.mxu0
      %2088 = vdwg.mxu0
      %vm2089 = vcmp.ge.f32.partialorder %v2051, 0.0
      %vm2090 = vcmp.ge.f32.partialorder %v2056, 0.0
      %vm2091 = vcmp.ge.f32.partialorder %v2061, 0.0
      %vm2092 = vcmp.ge.f32.partialorder %v2066, 0.0
      %vm2093 = vcmp.ge.f32.partialorder %v2071, 0.0
      %vm2094 = vcmp.ge.f32.partialorder %v2076, 0.0
      %vm2095 = vcmp.ge.f32.partialorder %v2081, 0.0
      %vm2096 = vcmp.ge.f32.partialorder %v2086, 0.0
      %v2097 = vmul.f32 %v2051, 0.2
      %v2098 = vmul.f32 %v2056, 0.2
      %v2099 = vmul.f32 %v2061, 0.2
      %v2100 = vmul.f32 %v2066, 0.2
      %v2101 = vmul.f32 %v2071, 0.2
      %v2102 = vmul.f32 %v2076, 0.2
      %v2103 = vmul.f32 %v2081, 0.2
      %v2104 = vmul.f32 %v2086, 0.2
      %v2105 = vsel %vm2089, %v2051, %v2097
      %v2106 = vsel %vm2090, %v2056, %v2098
      %v2107 = vsel %vm2091, %v2061, %v2099
      %v2108 = vsel %vm2092, %v2066, %v2100
      %v2109 = vsel %vm2093, %v2071, %v2101
      %v2110 = vsel %vm2094, %v2076, %v2102
      %v2111 = vsel %vm2095, %v2081, %v2103
      %v2112 = vsel %vm2096, %v2086, %v2104
      %v2113 = vld [vmem:[%s16] sm:$0xff]
      %v2114 = vld [vmem:[%s16 + $0x8] sm:$0xff]
      %v2115 = vld [vmem:[%s16 + $0x10] sm:$0xff]
      %v2116 = vld [vmem:[%s16 + $0x18] sm:$0xff]
      %v2117 = vld [vmem:[%s16 + $0x20] sm:$0xff]
      %v2118 = vld [vmem:[%s16 + $0x28] sm:$0xff]
      %v2119 = vld [vmem:[%s16 + $0x30] sm:$0xff]
      %v2120 = vld [vmem:[%s16 + $0x38] sm:$0xff]
      %v2121 = vld [vmem:[%s17] sm:$0x1]
      %v2123 = vlaneseq
      %v2124 = vshrl.u32 %v2123, 7
      %v2125 = vsub.s32 0, %v2124
      %v2126 = vrot.slane %v2121, %v2125
      %v2129 = vsel %vm1174, %v2105, 0
      %v2132 = vsel %vm1174, %v2106, 0
      %v2135 = vsel %vm1174, %v2107, 0
      %v2138 = vsel %vm1174, %v2108, 0
      %v2141 = vsel %vm1174, %v2109, 0
      %v2144 = vsel %vm1174, %v2110, 0
      %v2147 = vsel %vm1174, %v2111, 0
      %v2150 = vsel %vm1174, %v2112, 0
      %2152 = vmatprep.subr.mxu0 0.0
      %2153 = vmatpush1.msra.mxu0 0.0
      %2154 = vmatprep.subr.mxu0 0.0
      %2155 = vmatpush1.msra.mxu0 0.0
      %2156 = vmatprep.subr.mxu0 0.0
      %2157 = vmatpush1.msra.mxu0 0.0
      %2158 = vmatprep.subr.mxu0 0.0
      %2159 = vmatpush1.msra.mxu0 0.0
      %2160 = vmatprep.subr.mxu0 0.0
      %2161 = vmatpush1.msra.mxu0 0.0
      %2162 = vmatprep.subr.mxu0 0.0
      %2163 = vmatpush1.msra.mxu0 0.0
      %2164 = vmatprep.subr.mxu0 0.0
      %2165 = vmatpush1.msra.mxu0 0.0
      %2166 = vmatprep.subr.mxu0 0.0
      %2167 = vmatpush1.msra.mxu0 0.0
      %2168 = vmatprep.subr.mxu0 0.0
      %2169 = vmatpush1.msra.mxu0 %v2120
      %2170 = vmatprep.subr.mxu0 0.0
      %2171 = vmatpush1.msra.mxu0 %v2119
      %2172 = vmatprep.subr.mxu0 0.0
      %2173 = vmatpush1.msra.mxu0 %v2118
      %2174 = vmatprep.subr.mxu0 0.0
      %2175 = vmatpush1.msra.mxu0 %v2117
      %2176 = vmatprep.subr.mxu0 0.0
      %2177 = vmatpush1.msra.mxu0 %v2116
      %2178 = vmatprep.subr.mxu0 0.0
      %2179 = vmatpush1.msra.mxu0 %v2115
      %2180 = vmatprep.subr.mxu0 0.0
      %2181 = vmatpush1.msra.mxu0 %v2114
      %2182 = vmatprep.subr.mxu0 0.0
      %2183 = vmatpush1.msra.mxu0 %v2113
      %2184 = vmatprep.subr.mxu0 0.0
      %2185 = vmatpush2.msra.mxu0 0.0
      %2186 = vmatprep.subr.mxu0 0.0
      %2187 = vmatpush2.msra.mxu0 0.0
      %2188 = vmatprep.subr.mxu0 0.0
      %2189 = vmatpush2.msra.mxu0 0.0
      %2190 = vmatprep.subr.mxu0 0.0
      %2191 = vmatpush2.msra.mxu0 0.0
      %2192 = vmatprep.subr.mxu0 0.0
      %2193 = vmatpush2.msra.mxu0 0.0
      %2194 = vmatprep.subr.mxu0 0.0
      %2195 = vmatpush2.msra.mxu0 0.0
      %2196 = vmatprep.subr.mxu0 0.0
      %2197 = vmatpush2.msra.mxu0 0.0
      %2198 = vmatprep.subr.mxu0 0.0
      %2199 = vmatpush2.msra.mxu0 0.0
      %2200 = vmatprep.subr.mxu0 0.0
      %2201 = vmatpush2.msra.mxu0 0.0
      %2202 = vmatprep.subr.mxu0 0.0
      %2203 = vmatpush2.msra.mxu0 0.0
      %2204 = vmatprep.subr.mxu0 0.0
      %2205 = vmatpush2.msra.mxu0 0.0
      %2206 = vmatprep.subr.mxu0 0.0
      %2207 = vmatpush2.msra.mxu0 0.0
      %2208 = vmatprep.subr.mxu0 0.0
      %2209 = vmatpush2.msra.mxu0 0.0
      %2210 = vmatprep.subr.mxu0 0.0
      %2211 = vmatpush2.msra.mxu0 0.0
      %2212 = vmatprep.subr.mxu0 0.0
      %2213 = vmatpush2.msra.mxu0 0.0
      %2214 = vmatprep.subr.mxu0 0.0
      %2215 = vmatpush2.msra.mxu0 0.0
      %2216 = vmatprep.mubr.f32.mxu0 0.0
      %2217 = vmatmul.mubr.f32.gmra.mxu0 %v2129
      %v2218 = vpop.f32.mrf.mxu0
      %v2219 = vadd.f32 %v2126, %v2218
      %v2220 = vpop.f32.mrf.mxu0
      %2221 = vmatprep.mubr.f32.mxu0 0.0
      %2222 = vmatmul.mubr.f32.gmra.mxu0 %v2132
      %v2223 = vpop.f32.mrf.mxu0
      %v2224 = vadd.f32 %v2126, %v2223
      %v2225 = vpop.f32.mrf.mxu0
      %2226 = vmatprep.mubr.f32.mxu0 0.0
      %2227 = vmatmul.mubr.f32.gmra.mxu0 %v2135
      %v2228 = vpop.f32.mrf.mxu0
      %v2229 = vadd.f32 %v2126, %v2228
      %v2230 = vpop.f32.mrf.mxu0
      %2231 = vmatprep.mubr.f32.mxu0 0.0
      %2232 = vmatmul.mubr.f32.gmra.mxu0 %v2138
      %v2233 = vpop.f32.mrf.mxu0
      %v2234 = vadd.f32 %v2126, %v2233
      %v2235 = vpop.f32.mrf.mxu0
      %2236 = vmatprep.mubr.f32.mxu0 0.0
      %2237 = vmatmul.mubr.f32.gmra.mxu0 %v2141
      %v2238 = vpop.f32.mrf.mxu0
      %v2239 = vadd.f32 %v2126, %v2238
      %v2240 = vpop.f32.mrf.mxu0
      %2241 = vmatprep.mubr.f32.mxu0 0.0
      %2242 = vmatmul.mubr.f32.gmra.mxu0 %v2144
      %v2243 = vpop.f32.mrf.mxu0
      %v2244 = vadd.f32 %v2126, %v2243
      %v2245 = vpop.f32.mrf.mxu0
      %2246 = vmatprep.mubr.f32.mxu0 0.0
      %2247 = vmatmul.mubr.f32.gmra.mxu0 %v2147
      %v2248 = vpop.f32.mrf.mxu0
      %v2249 = vadd.f32 %v2126, %v2248
      %v2250 = vpop.f32.mrf.mxu0
      %2251 = vmatprep.mubr.f32.mxu0 0.0
      %2252 = vmatmul.mubr.f32.gmra.mxu0 %v2150
      %v2253 = vpop.f32.mrf.mxu0
      %v2254 = vadd.f32 %v2126, %v2253
      %v2255 = vpop.f32.mrf.mxu0
      %2256 = vdwg.mxu0
      %vm2257 = vcmp.ge.f32.partialorder %v2219, 0.0
      %vm2258 = vcmp.ge.f32.partialorder %v2224, 0.0
      %vm2259 = vcmp.ge.f32.partialorder %v2229, 0.0
      %vm2260 = vcmp.ge.f32.partialorder %v2234, 0.0
      %vm2261 = vcmp.ge.f32.partialorder %v2239, 0.0
      %vm2262 = vcmp.ge.f32.partialorder %v2244, 0.0
      %vm2263 = vcmp.ge.f32.partialorder %v2249, 0.0
      %vm2264 = vcmp.ge.f32.partialorder %v2254, 0.0
      %v2265 = vmul.f32 %v2219, 0.2
      %v2266 = vmul.f32 %v2224, 0.2
      %v2267 = vmul.f32 %v2229, 0.2
      %v2268 = vmul.f32 %v2234, 0.2
      %v2269 = vmul.f32 %v2239, 0.2
      %v2270 = vmul.f32 %v2244, 0.2
      %v2271 = vmul.f32 %v2249, 0.2
      %v2272 = vmul.f32 %v2254, 0.2
      %v2273 = vsel %vm2257, %v2219, %v2265
      %v2274 = vsel %vm2258, %v2224, %v2266
      %v2275 = vsel %vm2259, %v2229, %v2267
      %v2276 = vsel %vm2260, %v2234, %v2268
      %v2277 = vsel %vm2261, %v2239, %v2269
      %v2278 = vsel %vm2262, %v2244, %v2270
      %v2279 = vsel %vm2263, %v2249, %v2271
      %v2280 = vsel %vm2264, %v2254, %v2272
      %v2281 = vld [vmem:[%s18] sm:$0xff]
      %v2282 = vld [vmem:[%s18 + $0x8] sm:$0xff]
      %v2283 = vld [vmem:[%s18 + $0x10] sm:$0xff]
      %v2284 = vld [vmem:[%s18 + $0x18] sm:$0xff]
      %v2285 = vld [vmem:[%s18 + $0x20] sm:$0xff]
      %v2286 = vld [vmem:[%s18 + $0x28] sm:$0xff]
      %v2287 = vld [vmem:[%s18 + $0x30] sm:$0xff]
      %v2288 = vld [vmem:[%s18 + $0x38] sm:$0xff]
      %v2289 = vld [vmem:[%s18 + $0x40] sm:$0xff]
      %v2290 = vld [vmem:[%s18 + $0x48] sm:$0xff]
      %v2291 = vld [vmem:[%s18 + $0x50] sm:$0xff]
      %v2292 = vld [vmem:[%s18 + $0x58] sm:$0xff]
      %v2293 = vld [vmem:[%s18 + $0x60] sm:$0xff]
      %v2294 = vld [vmem:[%s18 + $0x68] sm:$0xff]
      %v2295 = vld [vmem:[%s18 + $0x70] sm:$0xff]
      %v2296 = vld [vmem:[%s18 + $0x78] sm:$0xff]
      %v2297 = vld [vmem:[%s19] sm:$0x1]
      %v2299 = vlaneseq
      %v2300 = vshrl.u32 %v2299, 7
      %v2301 = vsub.s32 0, %v2300
      %v2302 = vrot.slane %v2297, %v2301
      %2304 = vmatprep.subr.mxu0 0.0
      %2305 = vmatpush1.msra.mxu0 %v2296
      %2306 = vmatprep.subr.mxu0 0.0
      %2307 = vmatpush1.msra.mxu0 %v2295
      %2308 = vmatprep.subr.mxu0 0.0
      %2309 = vmatpush1.msra.mxu0 %v2294
      %2310 = vmatprep.subr.mxu0 0.0
      %2311 = vmatpush1.msra.mxu0 %v2293
      %2312 = vmatprep.subr.mxu0 0.0
      %2313 = vmatpush1.msra.mxu0 %v2292
      %2314 = vmatprep.subr.mxu0 0.0
      %2315 = vmatpush1.msra.mxu0 %v2291
      %2316 = vmatprep.subr.mxu0 0.0
      %2317 = vmatpush1.msra.mxu0 %v2290
      %2318 = vmatprep.subr.mxu0 0.0
      %2319 = vmatpush1.msra.mxu0 %v2289
      %2320 = vmatprep.subr.mxu0 0.0
      %2321 = vmatpush1.msra.mxu0 %v2288
      %2322 = vmatprep.subr.mxu0 0.0
      %2323 = vmatpush1.msra.mxu0 %v2287
      %2324 = vmatprep.subr.mxu0 0.0
      %2325 = vmatpush1.msra.mxu0 %v2286
      %2326 = vmatprep.subr.mxu0 0.0
      %2327 = vmatpush1.msra.mxu0 %v2285
      %2328 = vmatprep.subr.mxu0 0.0
      %2329 = vmatpush1.msra.mxu0 %v2284
      %2330 = vmatprep.subr.mxu0 0.0
      %2331 = vmatpush1.msra.mxu0 %v2283
      %2332 = vmatprep.subr.mxu0 0.0
      %2333 = vmatpush1.msra.mxu0 %v2282
      %2334 = vmatprep.subr.mxu0 0.0
      %2335 = vmatpush1.msra.mxu0 %v2281
      %2336 = vmatprep.subr.mxu0 0.0
      %2337 = vmatpush2.msra.mxu0 0.0
      %2338 = vmatprep.subr.mxu0 0.0
      %2339 = vmatpush2.msra.mxu0 0.0
      %2340 = vmatprep.subr.mxu0 0.0
      %2341 = vmatpush2.msra.mxu0 0.0
      %2342 = vmatprep.subr.mxu0 0.0
      %2343 = vmatpush2.msra.mxu0 0.0
      %2344 = vmatprep.subr.mxu0 0.0
      %2345 = vmatpush2.msra.mxu0 0.0
      %2346 = vmatprep.subr.mxu0 0.0
      %2347 = vmatpush2.msra.mxu0 0.0
      %2348 = vmatprep.subr.mxu0 0.0
      %2349 = vmatpush2.msra.mxu0 0.0
      %2350 = vmatprep.subr.mxu0 0.0
      %2351 = vmatpush2.msra.mxu0 0.0
      %2352 = vmatprep.subr.mxu0 0.0
      %2353 = vmatpush2.msra.mxu0 0.0
      %2354 = vmatprep.subr.mxu0 0.0
      %2355 = vmatpush2.msra.mxu0 0.0
      %2356 = vmatprep.subr.mxu0 0.0
      %2357 = vmatpush2.msra.mxu0 0.0
      %2358 = vmatprep.subr.mxu0 0.0
      %2359 = vmatpush2.msra.mxu0 0.0
      %2360 = vmatprep.subr.mxu0 0.0
      %2361 = vmatpush2.msra.mxu0 0.0
      %2362 = vmatprep.subr.mxu0 0.0
      %2363 = vmatpush2.msra.mxu0 0.0
      %2364 = vmatprep.subr.mxu0 0.0
      %2365 = vmatpush2.msra.mxu0 0.0
      %2366 = vmatprep.subr.mxu0 0.0
      %2367 = vmatpush2.msra.mxu0 0.0
      %2368 = vmatprep.mubr.f32.mxu0 0.0
      %2369 = vmatmul.mubr.f32.gmra.mxu0 %v2273
      %v2370 = vpop.f32.mrf.mxu0
      %v2371 = vadd.f32 %v2302, %v2370
      %v2372 = vpop.f32.mrf.mxu0
      %2373 = vmatprep.mubr.f32.mxu0 0.0
      %2374 = vmatmul.mubr.f32.gmra.mxu0 %v2274
      %v2375 = vpop.f32.mrf.mxu0
      %v2376 = vadd.f32 %v2302, %v2375
      %v2377 = vpop.f32.mrf.mxu0
      %2378 = vmatprep.mubr.f32.mxu0 0.0
      %2379 = vmatmul.mubr.f32.gmra.mxu0 %v2275
      %v2380 = vpop.f32.mrf.mxu0
      %v2381 = vadd.f32 %v2302, %v2380
      %v2382 = vpop.f32.mrf.mxu0
      %2383 = vmatprep.mubr.f32.mxu0 0.0
      %2384 = vmatmul.mubr.f32.gmra.mxu0 %v2276
      %v2385 = vpop.f32.mrf.mxu0
      %v2386 = vadd.f32 %v2302, %v2385
      %v2387 = vpop.f32.mrf.mxu0
      %2388 = vmatprep.mubr.f32.mxu0 0.0
      %2389 = vmatmul.mubr.f32.gmra.mxu0 %v2277
      %v2390 = vpop.f32.mrf.mxu0
      %v2391 = vadd.f32 %v2302, %v2390
      %v2392 = vpop.f32.mrf.mxu0
      %2393 = vmatprep.mubr.f32.mxu0 0.0
      %2394 = vmatmul.mubr.f32.gmra.mxu0 %v2278
      %v2395 = vpop.f32.mrf.mxu0
      %v2396 = vadd.f32 %v2302, %v2395
      %v2397 = vpop.f32.mrf.mxu0
      %2398 = vmatprep.mubr.f32.mxu0 0.0
      %2399 = vmatmul.mubr.f32.gmra.mxu0 %v2279
      %v2400 = vpop.f32.mrf.mxu0
      %v2401 = vadd.f32 %v2302, %v2400
      %v2402 = vpop.f32.mrf.mxu0
      %2403 = vmatprep.mubr.f32.mxu0 0.0
      %2404 = vmatmul.mubr.f32.gmra.mxu0 %v2280
      %v2405 = vpop.f32.mrf.mxu0
      %v2406 = vadd.f32 %v2302, %v2405
      %v2407 = vpop.f32.mrf.mxu0
      %2408 = vdwg.mxu0
      %vm2409 = vcmp.ge.f32.partialorder %v2371, 0.0
      %vm2410 = vcmp.ge.f32.partialorder %v2376, 0.0
      %vm2411 = vcmp.ge.f32.partialorder %v2381, 0.0
      %vm2412 = vcmp.ge.f32.partialorder %v2386, 0.0
      %vm2413 = vcmp.ge.f32.partialorder %v2391, 0.0
      %vm2414 = vcmp.ge.f32.partialorder %v2396, 0.0
      %vm2415 = vcmp.ge.f32.partialorder %v2401, 0.0
      %vm2416 = vcmp.ge.f32.partialorder %v2406, 0.0
      %v2417 = vmul.f32 %v2371, 0.2
      %v2418 = vmul.f32 %v2376, 0.2
      %v2419 = vmul.f32 %v2381, 0.2
      %v2420 = vmul.f32 %v2386, 0.2
      %v2421 = vmul.f32 %v2391, 0.2
      %v2422 = vmul.f32 %v2396, 0.2
      %v2423 = vmul.f32 %v2401, 0.2
      %v2424 = vmul.f32 %v2406, 0.2
      %v2425 = vsel %vm2409, %v2371, %v2417
      %v2426 = vsel %vm2410, %v2376, %v2418
      %v2427 = vsel %vm2411, %v2381, %v2419
      %v2428 = vsel %vm2412, %v2386, %v2420
      %v2429 = vsel %vm2413, %v2391, %v2421
      %v2430 = vsel %vm2414, %v2396, %v2422
      %v2431 = vsel %vm2415, %v2401, %v2423
      %v2432 = vsel %vm2416, %v2406, %v2424
      %vm2433 = vcmask 785408
      %v2434 = vsel %vm2433, %v2425, -inf
      %v2435 = vsel %vm2433, %v2426, -inf
      %v2436 = vsel %vm2433, %v2427, -inf
      %v2437 = vsel %vm2433, %v2428, -inf
      %v2438 = vsel %vm2433, %v2429, -inf
      %v2439 = vmax.f32 %v2434, %v2438
      %v2440 = vsel %vm2433, %v2430, -inf
      %v2441 = vmax.f32 %v2435, %v2440
      %v2442 = vsel %vm2433, %v2431, -inf
      %v2443 = vmax.f32 %v2436, %v2442
      %v2444 = vsel %vm2433, %v2432, -inf
      %v2445 = vmax.f32 %v2437, %v2444
      %v2446 = vmax.f32 %v2439, %v2441
      %v2447 = vmax.f32 %v2443, %v2445
      %v2448 = vmax.f32 %v2446, %v2447
      %v2449 = vrot.slane %v2448, 4
      %v2450 = vmax.f32 %v2448, %v2449
      %v2451 = vrot.slane %v2450, 2
      %v2452 = vmax.f32 %v2450, %v2451
      %v2453 = vrot.slane %v2452, 1
      %v2454 = vmax.f32 %v2452, %v2453
      %v2455 = vld [vmem:[%s20] sm:$0xff]
      %v2456 = vld [vmem:[%s20 + $0x8] sm:$0xff]
      %v2457 = vld [vmem:[%s20 + $0x10] sm:$0xff]
      %v2458 = vld [vmem:[%s20 + $0x18] sm:$0xff]
      %v2459 = vld [vmem:[%s20 + $0x20] sm:$0xff]
      %v2460 = vld [vmem:[%s20 + $0x28] sm:$0xff]
      %v2461 = vld [vmem:[%s20 + $0x30] sm:$0xff]
      %v2462 = vld [vmem:[%s20 + $0x38] sm:$0xff]
      %v2463 = vld [vmem:[%s20 + $0x40] sm:$0xff]
      %v2464 = vld [vmem:[%s20 + $0x48] sm:$0xff]
      %v2465 = vld [vmem:[%s20 + $0x50] sm:$0xff]
      %v2466 = vld [vmem:[%s20 + $0x58] sm:$0xff]
      %v2467 = vld [vmem:[%s21] sm:$0x1]
      %v2469 = vsel %vm2433, %v2454, 0
      %2471 = vmatprep.subr.mxu0 0.0
      %2472 = vmatpush1.msra.mxu0 0.0
      %2473 = vmatprep.subr.mxu0 0.0
      %2474 = vmatpush1.msra.mxu0 0.0
      %2475 = vmatprep.subr.mxu0 0.0
      %2476 = vmatpush1.msra.mxu0 0.0
      %2477 = vmatprep.subr.mxu0 0.0
      %2478 = vmatpush1.msra.mxu0 0.0
      %2479 = vmatprep.subr.mxu0 0.0
      %2480 = vmatpush1.msra.mxu0 %v2466
      %2481 = vmatprep.subr.mxu0 0.0
      %2482 = vmatpush1.msra.mxu0 %v2465
      %2483 = vmatprep.subr.mxu0 0.0
      %2484 = vmatpush1.msra.mxu0 %v2464
      %2485 = vmatprep.subr.mxu0 0.0
      %2486 = vmatpush1.msra.mxu0 %v2463
      %2487 = vmatprep.subr.mxu0 0.0
      %2488 = vmatpush1.msra.mxu0 %v2462
      %2489 = vmatprep.subr.mxu0 0.0
      %2490 = vmatpush1.msra.mxu0 %v2461
      %2491 = vmatprep.subr.mxu0 0.0
      %2492 = vmatpush1.msra.mxu0 %v2460
      %2493 = vmatprep.subr.mxu0 0.0
      %2494 = vmatpush1.msra.mxu0 %v2459
      %2495 = vmatprep.subr.mxu0 0.0
      %2496 = vmatpush1.msra.mxu0 %v2458
      %2497 = vmatprep.subr.mxu0 0.0
      %2498 = vmatpush1.msra.mxu0 %v2457
      %2499 = vmatprep.subr.mxu0 0.0
      %2500 = vmatpush1.msra.mxu0 %v2456
      %2501 = vmatprep.subr.mxu0 0.0
      %2502 = vmatpush1.msra.mxu0 %v2455
      %2503 = vmatprep.subr.mxu0 0.0
      %2504 = vmatpush2.msra.mxu0 0.0
      %2505 = vmatprep.subr.mxu0 0.0
      %2506 = vmatpush2.msra.mxu0 0.0
      %2507 = vmatprep.subr.mxu0 0.0
      %2508 = vmatpush2.msra.mxu0 0.0
      %2509 = vmatprep.subr.mxu0 0.0
      %2510 = vmatpush2.msra.mxu0 0.0
      %2511 = vmatprep.subr.mxu0 0.0
      %2512 = vmatpush2.msra.mxu0 0.0
      %2513 = vmatprep.subr.mxu0 0.0
      %2514 = vmatpush2.msra.mxu0 0.0
      %2515 = vmatprep.subr.mxu0 0.0
      %2516 = vmatpush2.msra.mxu0 0.0
      %2517 = vmatprep.subr.mxu0 0.0
      %2518 = vmatpush2.msra.mxu0 0.0
      %2519 = vmatprep.subr.mxu0 0.0
      %2520 = vmatpush2.msra.mxu0 0.0
      %2521 = vmatprep.subr.mxu0 0.0
      %2522 = vmatpush2.msra.mxu0 0.0
      %2523 = vmatprep.subr.mxu0 0.0
      %2524 = vmatpush2.msra.mxu0 0.0
      %2525 = vmatprep.subr.mxu0 0.0
      %2526 = vmatpush2.msra.mxu0 0.0
      %2527 = vmatprep.subr.mxu0 0.0
      %2528 = vmatpush2.msra.mxu0 0.0
      %2529 = vmatprep.subr.mxu0 0.0
      %2530 = vmatpush2.msra.mxu0 0.0
      %2531 = vmatprep.subr.mxu0 0.0
      %2532 = vmatpush2.msra.mxu0 0.0
      %2533 = vmatprep.subr.mxu0 0.0
      %2534 = vmatpush2.msra.mxu0 0.0
      %2535 = vmatprep.mubr.f32.mxu0 0.0
      %2536 = vmatmul.mubr.f32.gmra.mxu0 %v2469
      %v2537 = vpop.f32.mrf.mxu0
      %v2538 = vadd.f32 %v2467, %v2537
      %v2539 = vpop.f32.mrf.mxu0
      %2540 = vdwg.mxu0
      %vm2541 = vcmp.ge.f32.partialorder %v2538, 0.0
      %v2542 = vmul.f32 %v2538, 0.2
      %v2543 = vsel %vm2541, %v2538, %v2542
      %v2544 = vld [vmem:[%s22] sm:$0xff]
      %v2545 = vld [vmem:[%s22 + $0x8] sm:$0xff]
      %v2546 = vld [vmem:[%s22 + $0x10] sm:$0xff]
      %v2547 = vld [vmem:[%s22 + $0x18] sm:$0xff]
      %v2548 = vld [vmem:[%s22 + $0x20] sm:$0xff]
      %v2549 = vld [vmem:[%s22 + $0x28] sm:$0xff]
      %v2550 = vld [vmem:[%s22 + $0x30] sm:$0xff]
      %v2551 = vld [vmem:[%s22 + $0x38] sm:$0xff]
      %v2552 = vld [vmem:[%s22 + $0x40] sm:$0xff]
      %v2553 = vld [vmem:[%s22 + $0x48] sm:$0xff]
      %v2554 = vld [vmem:[%s22 + $0x50] sm:$0xff]
      %v2555 = vld [vmem:[%s22 + $0x58] sm:$0xff]
      %v2556 = vld [vmem:[%s23] sm:$0x1]
      %v2558 = vsel %vm2433, %v2543, 0
      %2560 = vmatprep.subr.mxu0 0.0
      %2561 = vmatpush1.msra.mxu0 0.0
      %2562 = vmatprep.subr.mxu0 0.0
      %2563 = vmatpush1.msra.mxu0 0.0
      %2564 = vmatprep.subr.mxu0 0.0
      %2565 = vmatpush1.msra.mxu0 0.0
      %2566 = vmatprep.subr.mxu0 0.0
      %2567 = vmatpush1.msra.mxu0 0.0
      %2568 = vmatprep.subr.mxu0 0.0
      %2569 = vmatpush1.msra.mxu0 %v2555
      %2570 = vmatprep.subr.mxu0 0.0
      %2571 = vmatpush1.msra.mxu0 %v2554
      %2572 = vmatprep.subr.mxu0 0.0
      %2573 = vmatpush1.msra.mxu0 %v2553
      %2574 = vmatprep.subr.mxu0 0.0
      %2575 = vmatpush1.msra.mxu0 %v2552
      %2576 = vmatprep.subr.mxu0 0.0
      %2577 = vmatpush1.msra.mxu0 %v2551
      %2578 = vmatprep.subr.mxu0 0.0
      %2579 = vmatpush1.msra.mxu0 %v2550
      %2580 = vmatprep.subr.mxu0 0.0
      %2581 = vmatpush1.msra.mxu0 %v2549
      %2582 = vmatprep.subr.mxu0 0.0
      %2583 = vmatpush1.msra.mxu0 %v2548
      %2584 = vmatprep.subr.mxu0 0.0
      %2585 = vmatpush1.msra.mxu0 %v2547
      %2586 = vmatprep.subr.mxu0 0.0
      %2587 = vmatpush1.msra.mxu0 %v2546
      %2588 = vmatprep.subr.mxu0 0.0
      %2589 = vmatpush1.msra.mxu0 %v2545
      %2590 = vmatprep.subr.mxu0 0.0
      %2591 = vmatpush1.msra.mxu0 %v2544
      %2592 = vmatprep.subr.mxu0 0.0
      %2593 = vmatpush2.msra.mxu0 0.0
      %2594 = vmatprep.subr.mxu0 0.0
      %2595 = vmatpush2.msra.mxu0 0.0
      %2596 = vmatprep.subr.mxu0 0.0
      %2597 = vmatpush2.msra.mxu0 0.0
      %2598 = vmatprep.subr.mxu0 0.0
      %2599 = vmatpush2.msra.mxu0 0.0
      %2600 = vmatprep.subr.mxu0 0.0
      %2601 = vmatpush2.msra.mxu0 0.0
      %2602 = vmatprep.subr.mxu0 0.0
      %2603 = vmatpush2.msra.mxu0 0.0
      %2604 = vmatprep.subr.mxu0 0.0
      %2605 = vmatpush2.msra.mxu0 0.0
      %2606 = vmatprep.subr.mxu0 0.0
      %2607 = vmatpush2.msra.mxu0 0.0
      %2608 = vmatprep.subr.mxu0 0.0
      %2609 = vmatpush2.msra.mxu0 0.0
      %2610 = vmatprep.subr.mxu0 0.0
      %2611 = vmatpush2.msra.mxu0 0.0
      %2612 = vmatprep.subr.mxu0 0.0
      %2613 = vmatpush2.msra.mxu0 0.0
      %2614 = vmatprep.subr.mxu0 0.0
      %2615 = vmatpush2.msra.mxu0 0.0
      %2616 = vmatprep.subr.mxu0 0.0
      %2617 = vmatpush2.msra.mxu0 0.0
      %2618 = vmatprep.subr.mxu0 0.0
      %2619 = vmatpush2.msra.mxu0 0.0
      %2620 = vmatprep.subr.mxu0 0.0
      %2621 = vmatpush2.msra.mxu0 0.0
      %2622 = vmatprep.subr.mxu0 0.0
      %2623 = vmatpush2.msra.mxu0 0.0
      %2624 = vmatprep.mubr.f32.mxu0 0.0
      %2625 = vmatmul.mubr.f32.gmra.mxu0 %v2558
      %v2626 = vpop.f32.mrf.mxu0
      %v2627 = vadd.f32 %v2556, %v2626
      %v2628 = vpop.f32.mrf.mxu0
      %2629 = vdwg.mxu0
      %vm2630 = vcmp.ge.f32.partialorder %v2627, 0.0
      %v2631 = vmul.f32 %v2627, 0.2
      %v2632 = vsel %vm2630, %v2627, %v2631
      %v2633 = vld [vmem:[%s24] sm:$0xff]
      %v2634 = vld [vmem:[%s24 + $0x8] sm:$0xff]
      %v2635 = vld [vmem:[%s24 + $0x10] sm:$0xff]
      %v2636 = vld [vmem:[%s24 + $0x18] sm:$0xff]
      %v2637 = vld [vmem:[%s24 + $0x20] sm:$0xff]
      %v2638 = vld [vmem:[%s24 + $0x28] sm:$0xff]
      %v2639 = vld [vmem:[%s24 + $0x30] sm:$0xff]
      %v2640 = vld [vmem:[%s24 + $0x38] sm:$0xff]
      %v2641 = vld [vmem:[%s24 + $0x40] sm:$0xff]
      %v2642 = vld [vmem:[%s24 + $0x48] sm:$0xff]
      %v2643 = vld [vmem:[%s24 + $0x50] sm:$0xff]
      %v2644 = vld [vmem:[%s24 + $0x58] sm:$0xff]
      %v2645 = vld [vmem:[%s25] sm:$0x1]
      %v2647 = vsel %vm2433, %v2632, 0
      %2649 = vmatprep.subr.mxu0 0.0
      %2650 = vmatpush1.msra.mxu0 0.0
      %2651 = vmatprep.subr.mxu0 0.0
      %2652 = vmatpush1.msra.mxu0 0.0
      %2653 = vmatprep.subr.mxu0 0.0
      %2654 = vmatpush1.msra.mxu0 0.0
      %2655 = vmatprep.subr.mxu0 0.0
      %2656 = vmatpush1.msra.mxu0 0.0
      %2657 = vmatprep.subr.mxu0 0.0
      %2658 = vmatpush1.msra.mxu0 %v2644
      %2659 = vmatprep.subr.mxu0 0.0
      %2660 = vmatpush1.msra.mxu0 %v2643
      %2661 = vmatprep.subr.mxu0 0.0
      %2662 = vmatpush1.msra.mxu0 %v2642
      %2663 = vmatprep.subr.mxu0 0.0
      %2664 = vmatpush1.msra.mxu0 %v2641
      %2665 = vmatprep.subr.mxu0 0.0
      %2666 = vmatpush1.msra.mxu0 %v2640
      %2667 = vmatprep.subr.mxu0 0.0
      %2668 = vmatpush1.msra.mxu0 %v2639
      %2669 = vmatprep.subr.mxu0 0.0
      %2670 = vmatpush1.msra.mxu0 %v2638
      %2671 = vmatprep.subr.mxu0 0.0
      %2672 = vmatpush1.msra.mxu0 %v2637
      %2673 = vmatprep.subr.mxu0 0.0
      %2674 = vmatpush1.msra.mxu0 %v2636
      %2675 = vmatprep.subr.mxu0 0.0
      %2676 = vmatpush1.msra.mxu0 %v2635
      %2677 = vmatprep.subr.mxu0 0.0
      %2678 = vmatpush1.msra.mxu0 %v2634
      %2679 = vmatprep.subr.mxu0 0.0
      %2680 = vmatpush1.msra.mxu0 %v2633
      %2681 = vmatprep.subr.mxu0 0.0
      %2682 = vmatpush2.msra.mxu0 0.0
      %2683 = vmatprep.subr.mxu0 0.0
      %2684 = vmatpush2.msra.mxu0 0.0
      %2685 = vmatprep.subr.mxu0 0.0
      %2686 = vmatpush2.msra.mxu0 0.0
      %2687 = vmatprep.subr.mxu0 0.0
      %2688 = vmatpush2.msra.mxu0 0.0
      %2689 = vmatprep.subr.mxu0 0.0
      %2690 = vmatpush2.msra.mxu0 0.0
      %2691 = vmatprep.subr.mxu0 0.0
      %2692 = vmatpush2.msra.mxu0 0.0
      %2693 = vmatprep.subr.mxu0 0.0
      %2694 = vmatpush2.msra.mxu0 0.0
      %2695 = vmatprep.subr.mxu0 0.0
      %2696 = vmatpush2.msra.mxu0 0.0
      %2697 = vmatprep.subr.mxu0 0.0
      %2698 = vmatpush2.msra.mxu0 0.0
      %2699 = vmatprep.subr.mxu0 0.0
      %2700 = vmatpush2.msra.mxu0 0.0
      %2701 = vmatprep.subr.mxu0 0.0
      %2702 = vmatpush2.msra.mxu0 0.0
      %2703 = vmatprep.subr.mxu0 0.0
      %2704 = vmatpush2.msra.mxu0 0.0
      %2705 = vmatprep.subr.mxu0 0.0
      %2706 = vmatpush2.msra.mxu0 0.0
      %2707 = vmatprep.subr.mxu0 0.0
      %2708 = vmatpush2.msra.mxu0 0.0
      %2709 = vmatprep.subr.mxu0 0.0
      %2710 = vmatpush2.msra.mxu0 0.0
      %2711 = vmatprep.subr.mxu0 0.0
      %2712 = vmatpush2.msra.mxu0 0.0
      %2713 = vmatprep.mubr.f32.mxu0 0.0
      %2714 = vmatmul.mubr.f32.gmra.mxu0 %v2647
      %v2715 = vpop.f32.mrf.mxu0
      %v2716 = vadd.f32 %v2645, %v2715
      %v2717 = vpop.f32.mrf.mxu0
      %2718 = vdwg.mxu0
      %vm2719 = vcmask 778240
      %2720 = vst.msk [vmem:[%s883] sm:$0x1] %vm2719, %v2716
      %v2721 = vlaneseq
      %v2722 = vshrl.u32 %v2721, 7
      %v2723 = vadd.s32 %v2722, 8
      %v2724 = vadd.s32 %v2722, 16
      %v2725 = vadd.s32 %v2722, 24
      %v2726 = vadd.s32 %v2722, 32
      %v2727 = vadd.s32 %v2722, 40
      %v2728 = vadd.s32 %v2722, 48
      %v2729 = vadd.s32 %v2722, 56
      %vm2730 = vcmp.eq.s32.totalorder %v2722, 0
      %vm2731 = vcmp.eq.s32.totalorder %v2723, 0
      %v2732 = vsel %vm2730, 1, 0
      %v2733 = vsel %vm2731, 1, 0
      %v2734 = vcvt.s32.f32 %v2732
      %v2735 = vcvt.s32.f32 %v2733
      %v2736 = vlaneseq
      %v2737 = vshrl.u32 %v2736, 7
      %v2738 = vsub.s32 0, %v2737
      %v2739 = vrot.slane %v889, %v2738
      %v2740 = vmul.f32 %v2734, %v2739
      %v2741 = vmul.f32 %v2735, %v2739
      loop: start=1, step=1, limit=16
      $region125: #{cage_skinning_forward.2} parent=123 // loop_pre_header
        _
      $region126: #{cage_skinning_forward.2} parent=123 // loop_header
        %s2743 = sphi 1, %s2747
        %p2744 = scmp.ge.s32.totalorder %s2743, 16
        %v2748 = vphi inf, %v2803
        %v2749 = vphi inf, %v2804
        %v2750 = vphi inf, %v2805
        %v2751 = vphi inf, %v2806
        %v2752 = vphi inf, %v2807
        %v2753 = vphi inf, %v2808
        %v2754 = vphi inf, %v2809
        %v2755 = vphi inf, %v2810
        %v2756 = vphi %v889, %v2915
        %v2757 = vphi %v2740, %v2925
        %v2758 = vphi %v2741, %v2926
      $region127: #{cage_skinning_forward.2} parent=123 // loop_header_branch
        %2746 = sbr.rel (%p2744) target = $region131
      $region128: #{cage_skinning_forward.2} parent=123 // loop_body
        %v2759 = vlaneseq
        %v2760 = vshrl.u32 %v2759, 7
        %v2761 = vsub.s32 0, %v2760
        %v2762 = vrot.slane %v2756, %v2761
        %v2763 = vsub.f32 %v889, %v2762
        %v2764 = vsub.f32 %v890, %v2762
        %v2765 = vsub.f32 %v891, %v2762
        %v2766 = vsub.f32 %v892, %v2762
        %v2767 = vsub.f32 %v893, %v2762
        %v2768 = vsub.f32 %v894, %v2762
        %v2769 = vsub.f32 %v895, %v2762
        %v2770 = vsub.f32 %v896, %v2762
        %v2771 = vmul.f32 %v2763, %v2763
        %v2772 = vmul.f32 %v2764, %v2764
        %v2773 = vmul.f32 %v2765, %v2765
        %v2774 = vmul.f32 %v2766, %v2766
        %v2775 = vmul.f32 %v2767, %v2767
        %v2776 = vmul.f32 %v2768, %v2768
        %v2777 = vmul.f32 %v2769, %v2769
        %v2778 = vmul.f32 %v2770, %v2770
        %v2779 = vsel %vm913, %v2771, 0.0
        %2780 = vadd.xlane.f32.xlu0 %v2779
        %v2781 = vpop.xlane.xlu0 %2780
        %v2782 = vsel %vm913, %v2772, 0.0
        %2783 = vadd.xlane.f32.xlu0 %v2782
        %v2784 = vpop.xlane.xlu0 %2783
        %v2785 = vsel %vm913, %v2773, 0.0
        %2786 = vadd.xlane.f32.xlu0 %v2785
        %v2787 = vpop.xlane.xlu0 %2786
        %v2788 = vsel %vm913, %v2774, 0.0
        %2789 = vadd.xlane.f32.xlu0 %v2788
        %v2790 = vpop.xlane.xlu0 %2789
        %v2791 = vsel %vm913, %v2775, 0.0
        %2792 = vadd.xlane.f32.xlu0 %v2791
        %v2793 = vpop.xlane.xlu0 %2792
        %v2794 = vsel %vm913, %v2776, 0.0
        %2795 = vadd.xlane.f32.xlu0 %v2794
        %v2796 = vpop.xlane.xlu0 %2795
        %v2797 = vsel %vm913, %v2777, 0.0
        %2798 = vadd.xlane.f32.xlu0 %v2797
        %v2799 = vpop.xlane.xlu0 %2798
        %v2800 = vsel %vm913, %v2778, 0.0
        %2801 = vadd.xlane.f32.xlu0 %v2800
        %v2802 = vpop.xlane.xlu0 %2801
        %v2803 = vmin.f32 %v2748, %v2781
        %v2804 = vmin.f32 %v2749, %v2784
        %v2805 = vmin.f32 %v2750, %v2787
        %v2806 = vmin.f32 %v2751, %v2790
        %v2807 = vmin.f32 %v2752, %v2793
        %v2808 = vmin.f32 %v2753, %v2796
        %v2809 = vmin.f32 %v2754, %v2799
        %v2810 = vmin.f32 %v2755, %v2802
        %v2811 = vmax.f32 %v2803, %v2807
        %v2812 = vmax.f32 %v2804, %v2808
        %v2813 = vmax.f32 %v2805, %v2809
        %v2814 = vmax.f32 %v2806, %v2810
        %v2815 = vmax.f32 %v2811, %v2812
        %v2816 = vmax.f32 %v2813, %v2814
        %v2817 = vmax.f32 %v2815, %v2816
        %v2818 = vrot.slane %v2817, 4
        %v2819 = vmax.f32 %v2817, %v2818
        %v2820 = vrot.slane %v2819, 2
        %v2821 = vmax.f32 %v2819, %v2820
        %v2822 = vrot.slane %v2821, 1
        %v2823 = vmax.f32 %v2821, %v2822
        %vm2824 = vcmp.ge.f32.partialorder %v2803, %v2823
        %vm2825 = vcmp.ge.f32.partialorder %v2804, %v2823
        %vm2826 = vcmp.ge.f32.partialorder %v2805, %v2823
        %vm2827 = vcmp.ge.f32.partialorder %v2806, %v2823
        %vm2828 = vcmp.ge.f32.partialorder %v2807, %v2823
        %vm2829 = vcmp.ge.f32.partialorder %v2808, %v2823
        %vm2830 = vcmp.ge.f32.partialorder %v2809, %v2823
        %vm2831 = vcmp.ge.f32.partialorder %v2810, %v2823
        %v2832 = vsel %vm2824, %v2722, 64
        %v2833 = vsel %vm2825, %v2723, 64
        %v2834 = vsel %vm2826, %v2724, 64
        %v2835 = vsel %vm2827, %v2725, 64
        %v2836 = vsel %vm2828, %v2726, 64
        %v2837 = vsel %vm2829, %v2727, 64
        %v2838 = vsel %vm2830, %v2728, 64
        %v2839 = vsel %vm2831, %v2729, 64
        %vm2840 = vcmp.lt.s32.totalorder %v2832, %v2836
        %v2841 = vsel %vm2840, %v2832, %v2836
        %vm2842 = vcmp.lt.s32.totalorder %v2833, %v2837
        %v2843 = vsel %vm2842, %v2833, %v2837
        %vm2844 = vcmp.lt.s32.totalorder %v2834, %v2838
        %v2845 = vsel %vm2844, %v2834, %v2838
        %vm2846 = vcmp.lt.s32.totalorder %v2835, %v2839
        %v2847 = vsel %vm2846, %v2835, %v2839
        %vm2848 = vcmp.lt.s32.totalorder %v2841, %v2843
        %v2849 = vsel %vm2848, %v2841, %v2843
        %vm2850 = vcmp.lt.s32.totalorder %v2845, %v2847
        %v2851 = vsel %vm2850, %v2845, %v2847
        %vm2852 = vcmp.lt.s32.totalorder %v2849, %v2851
        %v2853 = vsel %vm2852, %v2849, %v2851
        %v2854 = vrot.slane %v2853, 4
        %vm2855 = vcmp.lt.s32.totalorder %v2853, %v2854
        %v2856 = vsel %vm2855, %v2853, %v2854
        %v2857 = vrot.slane %v2856, 2
        %vm2858 = vcmp.lt.s32.totalorder %v2856, %v2857
        %v2859 = vsel %vm2858, %v2856, %v2857
        %v2860 = vrot.slane %v2859, 1
        %vm2861 = vcmp.lt.s32.totalorder %v2859, %v2860
        %v2862 = vsel %vm2861, %v2859, %v2860
        %vm2863 = vcmp.eq.s32.totalorder %v2722, %v2862
        %vm2864 = vcmp.eq.s32.totalorder %v2723, %v2862
        %vm2865 = vcmp.eq.s32.totalorder %v2724, %v2862
        %vm2866 = vcmp.eq.s32.totalorder %v2725, %v2862
        %vm2867 = vcmp.eq.s32.totalorder %v2726, %v2862
        %vm2868 = vcmp.eq.s32.totalorder %v2727, %v2862
        %vm2869 = vcmp.eq.s32.totalorder %v2728, %v2862
        %vm2870 = vcmp.eq.s32.totalorder %v2729, %v2862
        %v2871 = vsel %vm2863, 1, 0
        %v2872 = vsel %vm2864, 1, 0
        %v2873 = vsel %vm2865, 1, 0
        %v2874 = vsel %vm2866, 1, 0
        %v2875 = vsel %vm2867, 1, 0
        %v2876 = vsel %vm2868, 1, 0
        %v2877 = vsel %vm2869, 1, 0
        %v2878 = vsel %vm2870, 1, 0
        %v2879 = vcvt.s32.f32 %v2871
        %v2880 = vcvt.s32.f32 %v2872
        %v2881 = vcvt.s32.f32 %v2873
        %v2882 = vcvt.s32.f32 %v2874
        %v2883 = vcvt.s32.f32 %v2875
        %v2884 = vcvt.s32.f32 %v2876
        %v2885 = vcvt.s32.f32 %v2877
        %v2886 = vcvt.s32.f32 %v2878
        %v2887 = vmul.f32 %v889, %v2879
        %v2888 = vmul.f32 %v890, %v2880
        %v2889 = vmul.f32 %v891, %v2881
        %v2890 = vmul.f32 %v892, %v2882
        %v2891 = vmul.f32 %v893, %v2883
        %v2892 = vmul.f32 %v894, %v2884
        %v2893 = vmul.f32 %v895, %v2885
        %v2894 = vmul.f32 %v896, %v2886
        %v2895 = vsel %vm913, %v2887, 0.0
        %v2896 = vsel %vm913, %v2888, 0.0
        %v2897 = vadd.f32 %v2895, %v2896
        %v2898 = vsel %vm913, %v2889, 0.0
        %v2899 = vadd.f32 %v2897, %v2898
        %v2900 = vsel %vm913, %v2890, 0.0
        %v2901 = vadd.f32 %v2899, %v2900
        %v2902 = vsel %vm913, %v2891, 0.0
        %v2903 = vadd.f32 %v2901, %v2902
        %v2904 = vsel %vm913, %v2892, 0.0
        %v2905 = vadd.f32 %v2903, %v2904
        %v2906 = vsel %vm913, %v2893, 0.0
        %v2907 = vadd.f32 %v2905, %v2906
        %v2908 = vsel %vm913, %v2894, 0.0
        %v2909 = vadd.f32 %v2907, %v2908
        %v2910 = vrot.slane %v2909, 4
        %v2911 = vadd.f32 %v2909, %v2910
        %v2912 = vrot.slane %v2911, 2
        %v2913 = vadd.f32 %v2911, %v2912
        %v2914 = vrot.slane %v2913, 1
        %v2915 = vadd.f32 %v2913, %v2914
        %v2916 = vstv %s2743
        %vm2917 = vcmp.eq.s32.totalorder %v2722, %v2916
        %vm2918 = vcmp.eq.s32.totalorder %v2723, %v2916
        %v2919 = vsel %vm2917, 1, 0
        %v2920 = vsel %vm2918, 1, 0
        %v2921 = vcvt.s32.f32 %v2919
        %v2922 = vcvt.s32.f32 %v2920
        %v2923 = vmul.f32 %v2921, %v2915
        %v2924 = vmul.f32 %v2922, %v2915
        %v2925 = vadd.f32 %v2757, %v2923
        %v2926 = vadd.f32 %v2758, %v2924
      $region129: #{cage_skinning_forward.2} parent=123 // loop_footer
        %s2747 = sadd.s32 1, %s2743
      $region130: #{cage_skinning_forward.2} parent=123 // loop_footer_branch
        %2742 = sbr.rel target = $region126
      $region131: #{cage_skinning_forward.2} parent=123 // loop_exit
        _
      %2927 = vst.msk [vmem:[%s888] sm:$0xff] %vm913, %v2757
      %2928 = vst.msk [vmem:[%s888 + $0x8] sm:$0xff] %vm913, %v2758
      %v2929 = vlaneseq
      %v2930 = vshrl.u32 %v2929, 7
      %v2931 = vsub.s32 0, %v2930
      %v2932 = vrot.slane %v897, %v2931
      %v2933 = vmul.f32 %v2734, %v2932
      %v2934 = vmul.f32 %v2735, %v2932
      loop: start=1, step=1, limit=16
      $region132: #{cage_skinning_forward.2} parent=123 // loop_pre_header
        _
      $region133: #{cage_skinning_forward.2} parent=123 // loop_header
        %s2936 = sphi 1, %s2940
        %p2937 = scmp.ge.s32.totalorder %s2936, 16
        %v2941 = vphi inf, %v2996
        %v2942 = vphi inf, %v2997
        %v2943 = vphi inf, %v2998
        %v2944 = vphi inf, %v2999
        %v2945 = vphi inf, %v3000
        %v2946 = vphi inf, %v3001
        %v2947 = vphi inf, %v3002
        %v2948 = vphi inf, %v3003
        %v2949 = vphi %v897, %v3108
        %v2950 = vphi %v2933, %v3118
        %v2951 = vphi %v2934, %v3119
      $region134: #{cage_skinning_forward.2} parent=123 // loop_header_branch
        %2939 = sbr.rel (%p2937) target = $region138
      $region135: #{cage_skinning_forward.2} parent=123 // loop_body
        %v2952 = vlaneseq
        %v2953 = vshrl.u32 %v2952, 7
        %v2954 = vsub.s32 0, %v2953
        %v2955 = vrot.slane %v2949, %v2954
        %v2956 = vsub.f32 %v897, %v2955
        %v2957 = vsub.f32 %v898, %v2955
        %v2958 = vsub.f32 %v899, %v2955
        %v2959 = vsub.f32 %v900, %v2955
        %v2960 = vsub.f32 %v901, %v2955
        %v2961 = vsub.f32 %v902, %v2955
        %v2962 = vsub.f32 %v903, %v2955
        %v2963 = vsub.f32 %v904, %v2955
        %v2964 = vmul.f32 %v2956, %v2956
        %v2965 = vmul.f32 %v2957, %v2957
        %v2966 = vmul.f32 %v2958, %v2958
        %v2967 = vmul.f32 %v2959, %v2959
        %v2968 = vmul.f32 %v2960, %v2960
        %v2969 = vmul.f32 %v2961, %v2961
        %v2970 = vmul.f32 %v2962, %v2962
        %v2971 = vmul.f32 %v2963, %v2963
        %v2972 = vsel %vm913, %v2964, 0.0
        %2973 = vadd.xlane.f32.xlu0 %v2972
        %v2974 = vpop.xlane.xlu0 %2973
        %v2975 = vsel %vm913, %v2965, 0.0
        %2976 = vadd.xlane.f32.xlu0 %v2975
        %v2977 = vpop.xlane.xlu0 %2976
        %v2978 = vsel %vm913, %v2966, 0.0
        %2979 = vadd.xlane.f32.xlu0 %v2978
        %v2980 = vpop.xlane.xlu0 %2979
        %v2981 = vsel %vm913, %v2967, 0.0
        %2982 = vadd.xlane.f32.xlu0 %v2981
        %v2983 = vpop.xlane.xlu0 %2982
        %v2984 = vsel %vm913, %v2968, 0.0
        %2985 = vadd.xlane.f32.xlu0 %v2984
        %v2986 = vpop.xlane.xlu0 %2985
        %v2987 = vsel %vm913, %v2969, 0.0
        %2988 = vadd.xlane.f32.xlu0 %v2987
        %v2989 = vpop.xlane.xlu0 %2988
        %v2990 = vsel %vm913, %v2970, 0.0
        %2991 = vadd.xlane.f32.xlu0 %v2990
        %v2992 = vpop.xlane.xlu0 %2991
        %v2993 = vsel %vm913, %v2971, 0.0
        %2994 = vadd.xlane.f32.xlu0 %v2993
        %v2995 = vpop.xlane.xlu0 %2994
        %v2996 = vmin.f32 %v2941, %v2974
        %v2997 = vmin.f32 %v2942, %v2977
        %v2998 = vmin.f32 %v2943, %v2980
        %v2999 = vmin.f32 %v2944, %v2983
        %v3000 = vmin.f32 %v2945, %v2986
        %v3001 = vmin.f32 %v2946, %v2989
        %v3002 = vmin.f32 %v2947, %v2992
        %v3003 = vmin.f32 %v2948, %v2995
        %v3004 = vmax.f32 %v2996, %v3000
        %v3005 = vmax.f32 %v2997, %v3001
        %v3006 = vmax.f32 %v2998, %v3002
        %v3007 = vmax.f32 %v2999, %v3003
        %v3008 = vmax.f32 %v3004, %v3005
        %v3009 = vmax.f32 %v3006, %v3007
        %v3010 = vmax.f32 %v3008, %v3009
        %v3011 = vrot.slane %v3010, 4
        %v3012 = vmax.f32 %v3010, %v3011
        %v3013 = vrot.slane %v3012, 2
        %v3014 = vmax.f32 %v3012, %v3013
        %v3015 = vrot.slane %v3014, 1
        %v3016 = vmax.f32 %v3014, %v3015
        %vm3017 = vcmp.ge.f32.partialorder %v2996, %v3016
        %vm3018 = vcmp.ge.f32.partialorder %v2997, %v3016
        %vm3019 = vcmp.ge.f32.partialorder %v2998, %v3016
        %vm3020 = vcmp.ge.f32.partialorder %v2999, %v3016
        %vm3021 = vcmp.ge.f32.partialorder %v3000, %v3016
        %vm3022 = vcmp.ge.f32.partialorder %v3001, %v3016
        %vm3023 = vcmp.ge.f32.partialorder %v3002, %v3016
        %vm3024 = vcmp.ge.f32.partialorder %v3003, %v3016
        %v3025 = vsel %vm3017, %v2722, 64
        %v3026 = vsel %vm3018, %v2723, 64
        %v3027 = vsel %vm3019, %v2724, 64
        %v3028 = vsel %vm3020, %v2725, 64
        %v3029 = vsel %vm3021, %v2726, 64
        %v3030 = vsel %vm3022, %v2727, 64
        %v3031 = vsel %vm3023, %v2728, 64
        %v3032 = vsel %vm3024, %v2729, 64
        %vm3033 = vcmp.lt.s32.totalorder %v3025, %v3029
        %v3034 = vsel %vm3033, %v3025, %v3029
        %vm3035 = vcmp.lt.s32.totalorder %v3026, %v3030
        %v3036 = vsel %vm3035, %v3026, %v3030
        %vm3037 = vcmp.lt.s32.totalorder %v3027, %v3031
        %v3038 = vsel %vm3037, %v3027, %v3031
        %vm3039 = vcmp.lt.s32.totalorder %v3028, %v3032
        %v3040 = vsel %vm3039, %v3028, %v3032
        %vm3041 = vcmp.lt.s32.totalorder %v3034, %v3036
        %v3042 = vsel %vm3041, %v3034, %v3036
        %vm3043 = vcmp.lt.s32.totalorder %v3038, %v3040
        %v3044 = vsel %vm3043, %v3038, %v3040
        %vm3045 = vcmp.lt.s32.totalorder %v3042, %v3044
        %v3046 = vsel %vm3045, %v3042, %v3044
        %v3047 = vrot.slane %v3046, 4
        %vm3048 = vcmp.lt.s32.totalorder %v3046, %v3047
        %v3049 = vsel %vm3048, %v3046, %v3047
        %v3050 = vrot.slane %v3049, 2
        %vm3051 = vcmp.lt.s32.totalorder %v3049, %v3050
        %v3052 = vsel %vm3051, %v3049, %v3050
        %v3053 = vrot.slane %v3052, 1
        %vm3054 = vcmp.lt.s32.totalorder %v3052, %v3053
        %v3055 = vsel %vm3054, %v3052, %v3053
        %vm3056 = vcmp.eq.s32.totalorder %v2722, %v3055
        %vm3057 = vcmp.eq.s32.totalorder %v2723, %v3055
        %vm3058 = vcmp.eq.s32.totalorder %v2724, %v3055
        %vm3059 = vcmp.eq.s32.totalorder %v2725, %v3055
        %vm3060 = vcmp.eq.s32.totalorder %v2726, %v3055
        %vm3061 = vcmp.eq.s32.totalorder %v2727, %v3055
        %vm3062 = vcmp.eq.s32.totalorder %v2728, %v3055
        %vm3063 = vcmp.eq.s32.totalorder %v2729, %v3055
        %v3064 = vsel %vm3056, 1, 0
        %v3065 = vsel %vm3057, 1, 0
        %v3066 = vsel %vm3058, 1, 0
        %v3067 = vsel %vm3059, 1, 0
        %v3068 = vsel %vm3060, 1, 0
        %v3069 = vsel %vm3061, 1, 0
        %v3070 = vsel %vm3062, 1, 0
        %v3071 = vsel %vm3063, 1, 0
        %v3072 = vcvt.s32.f32 %v3064
        %v3073 = vcvt.s32.f32 %v3065
        %v3074 = vcvt.s32.f32 %v3066
        %v3075 = vcvt.s32.f32 %v3067
        %v3076 = vcvt.s32.f32 %v3068
        %v3077 = vcvt.s32.f32 %v3069
        %v3078 = vcvt.s32.f32 %v3070
        %v3079 = vcvt.s32.f32 %v3071
        %v3080 = vmul.f32 %v897, %v3072
        %v3081 = vmul.f32 %v898, %v3073
        %v3082 = vmul.f32 %v899, %v3074
        %v3083 = vmul.f32 %v900, %v3075
        %v3084 = vmul.f32 %v901, %v3076
        %v3085 = vmul.f32 %v902, %v3077
        %v3086 = vmul.f32 %v903, %v3078
        %v3087 = vmul.f32 %v904, %v3079
        %v3088 = vsel %vm913, %v3080, 0.0
        %v3089 = vsel %vm913, %v3081, 0.0
        %v3090 = vadd.f32 %v3088, %v3089
        %v3091 = vsel %vm913, %v3082, 0.0
        %v3092 = vadd.f32 %v3090, %v3091
        %v3093 = vsel %vm913, %v3083, 0.0
        %v3094 = vadd.f32 %v3092, %v3093
        %v3095 = vsel %vm913, %v3084, 0.0
        %v3096 = vadd.f32 %v3094, %v3095
        %v3097 = vsel %vm913, %v3085, 0.0
        %v3098 = vadd.f32 %v3096, %v3097
        %v3099 = vsel %vm913, %v3086, 0.0
        %v3100 = vadd.f32 %v3098, %v3099
        %v3101 = vsel %vm913, %v3087, 0.0
        %v3102 = vadd.f32 %v3100, %v3101
        %v3103 = vrot.slane %v3102, 4
        %v3104 = vadd.f32 %v3102, %v3103
        %v3105 = vrot.slane %v3104, 2
        %v3106 = vadd.f32 %v3104, %v3105
        %v3107 = vrot.slane %v3106, 1
        %v3108 = vadd.f32 %v3106, %v3107
        %v3109 = vstv %s2936
        %vm3110 = vcmp.eq.s32.totalorder %v2722, %v3109
        %vm3111 = vcmp.eq.s32.totalorder %v2723, %v3109
        %v3112 = vsel %vm3110, 1, 0
        %v3113 = vsel %vm3111, 1, 0
        %v3114 = vcvt.s32.f32 %v3112
        %v3115 = vcvt.s32.f32 %v3113
        %v3116 = vmul.f32 %v3114, %v3108
        %v3117 = vmul.f32 %v3115, %v3108
        %v3118 = vadd.f32 %v2950, %v3116
        %v3119 = vadd.f32 %v2951, %v3117
      $region136: #{cage_skinning_forward.2} parent=123 // loop_footer
        %s2940 = sadd.s32 1, %s2936
      $region137: #{cage_skinning_forward.2} parent=123 // loop_footer_branch
        %2935 = sbr.rel target = $region133
      $region138: #{cage_skinning_forward.2} parent=123 // loop_exit
        _
      %s3120 = scalar_lea.vmem %s888, 16
      %3121 = vst.msk [vmem:[%s3120] sm:$0xff] %vm913, %v2950
      %3122 = vst.msk [vmem:[%s3120 + $0x8] sm:$0xff] %vm913, %v2951
      %p3123 = scmp.lt.s32.totalorder %s40, 1
      %s3124 = scalar_select %p3123, %s40, 1
      %s3125 = smul.addr %s3124, 2
      %s3126 = scalar_lea.vmem %s26, %s3125
      %p3127 = scmp.lt.s32.totalorder %s40, 1
      %s3128 = scalar_select %p3127, %s40, 1
      %s3129 = scalar_lea.vmem %s27, %s3128
      %p3130 = scmp.lt.s32.totalorder %s40, 1
      %s3131 = scalar_select %p3130, %s40, 1
      %s3132 = smul.addr %s3131, 4
      %s3133 = smul.addr %s3132, 8
      %s3134 = scalar_lea.vmem %s28, %s3133
      // Predicated region
      $region139: #{cage_skinning_forward.2} parent=123 // pred_check
        %p3135 = pneg %p614
      $region140: #{cage_skinning_forward.2} parent=123 // pred_check_branch
        %3137 = sbr.rel (%p3135) target = $region142
      $region141: #{cage_skinning_forward.2} parent=123 // pred_region
        _
      $region142: #{cage_skinning_forward.2} parent=123 // pred_fallthru
        _
      // Predicated region
      $region143: #{cage_skinning_forward.2} parent=123 // pred_check
        %p3138 = pneg %p640
      $region144: #{cage_skinning_forward.2} parent=123 // pred_check_branch
        %3140 = sbr.rel (%p3138) target = $region146
      $region145: #{cage_skinning_forward.2} parent=123 // pred_region
        _
      $region146: #{cage_skinning_forward.2} parent=123 // pred_fallthru
        _
      // Predicated region
      $region147: #{cage_skinning_forward.2} parent=123 // pred_check
        %p3141 = pneg %p666
      $region148: #{cage_skinning_forward.2} parent=123 // pred_check_branch
        %3143 = sbr.rel (%p3141) target = $region150
      $region149: #{cage_skinning_forward.2} parent=123 // pred_region
        _
      $region150: #{cage_skinning_forward.2} parent=123 // pred_fallthru
        _
    $region124: #{cage_skinning_forward.2} parent=5 // pred_fallthru
      _
    %p3144 = scmp.le.s32.totalorder 2, %s35
    // Predicated region
    $region151: #{cage_skinning_forward.2} parent=5 // pred_check
      %p3145 = pneg %p3144
    $region152: #{cage_skinning_forward.2} parent=5 // pred_check_branch
      %3147 = sbr.rel (%p3145) target = $region154
    $region153: #{cage_skinning_forward.2} parent=5 // pred_region
      %s3148 = ssub.s32 %s35, 2
      // Predicated region
      $region155: #{cage_skinning_forward.2} parent=153 // pred_check
        %p3149 = pneg %p620
      $region156: #{cage_skinning_forward.2} parent=153 // pred_check_branch
        %3151 = sbr.rel (%p3149) target = $region158
      $region157: #{cage_skinning_forward.2} parent=153 // pred_region
        %p3152 = scmp.lt.s32.totalorder %s41, 1
        %s3153 = scalar_select %p3152, %s41, 1
        %s3154 = smul.addr %s3153, 2
        %s3155 = scalar_lea.vmem %s26, %s3154
      $region158: #{cage_skinning_forward.2} parent=153 // pred_fallthru
        _
      // Predicated region
      $region159: #{cage_skinning_forward.2} parent=153 // pred_check
        %p3156 = pneg %p646
      $region160: #{cage_skinning_forward.2} parent=153 // pred_check_branch
        %3158 = sbr.rel (%p3156) target = $region162
      $region161: #{cage_skinning_forward.2} parent=153 // pred_region
        %p3159 = scmp.lt.s32.totalorder %s41, 1
        %s3160 = scalar_select %p3159, %s41, 1
        %s3161 = scalar_lea.vmem %s27, %s3160
      $region162: #{cage_skinning_forward.2} parent=153 // pred_fallthru
        _
      // Predicated region
      $region163: #{cage_skinning_forward.2} parent=153 // pred_check
        %p3162 = pneg %p672
      $region164: #{cage_skinning_forward.2} parent=153 // pred_check_branch
        %3164 = sbr.rel (%p3162) target = $region166
      $region165: #{cage_skinning_forward.2} parent=153 // pred_region
        %p3165 = scmp.lt.s32.totalorder %s41, 1
        %s3166 = scalar_select %p3165, %s41, 1
        %s3167 = smul.addr %s3166, 4
        %s3168 = smul.addr %s3167, 8
        %s3169 = scalar_lea.vmem %s28, %s3168
      $region166: #{cage_skinning_forward.2} parent=153 // pred_fallthru
        _
    $region154: #{cage_skinning_forward.2} parent=5 // pred_fallthru
      _
  $region6: #{cage_skinning_forward.2} parent=0 // loop_footer
    %s39 = sadd.s32 1, %s35
  $region7: #{cage_skinning_forward.2} parent=0 // loop_footer_branch
    %34 = sbr.rel target = $region3
  $region8: #{cage_skinning_forward.2} parent=0 // loop_exit
    _

// kernel: cage_skinning_forward.3
$region0: #{cage_skinning_forward.3}
  #allocation0 [shape = 'u32[]', space=smem, size = 0x4, offset = 0x4, fixed_abs, tag = 'smem constant byte address 0x4 - core index']
  #allocation1 [shape = 'u32[144,128]{1,0:T(1,128)}', space=vmem, size = 0x12000, scoped, tag = 'internal scratch']
  %s0 = inlined_call_operand.vmem [shape: f32[3,12], index: 0, kind: input, shape index: {}]
  %s1 = inlined_call_operand.vmem [shape: f32[2,64,3], index: 1, kind: input, shape index: {}]
  %s2 = inlined_call_operand.vmem [shape: f32[2,3,8], index: 2, kind: input, shape index: {}]
  %s3 = inlined_call_operand.vmem [shape: f32[2,3,8], index: 3, kind: input, shape index: {}]
  %s4 = inlined_call_operand.vmem [shape: f32[8,12], index: 4, kind: input, shape index: {}]
  %s5 = inlined_call_operand.vmem [shape: f32[2,8,12], index: 5, kind: input, shape index: {}]
  %s6 = inlined_call_operand.vmem [shape: f32[12,60], index: 6, kind: input, shape index: {}]
  %s7 = inlined_call_operand.vmem [shape: f32[60,12], index: 7, kind: input, shape index: {}]
  %s8 = inlined_call_operand.vmem [shape: f32[2,3,12], index: 8, kind: output, shape index: {0}]
  %s9 = inlined_call_operand.vmem [shape: f32[2,3,12], index: 9, kind: output, shape index: {1}]
  %s10 = inlined_call_operand.hbm [shape: f32[2,8,12], index: 10, kind: output, shape index: {2}]
  %s11 = inlined_call_operand.vmem [shape: f32[2,64,12], index: 11, kind: output, shape index: {3}]
  %s12 = inlined_call_operand.vmem [shape: f32[2,64,3], index: 12, kind: output, shape index: {4}]
  %13 = xla_tuple %s8, %s9, %s10, %s11, %s12
  %s14 = sld [smem:[#allocation0]]
  $region104: #{cage_skinning_forward.3} parent=0
    _
  %s16 = ssub.s32 1, %s14
  %s17 = scalar_select 0, %s16, %s14
  $region1: #{cage_skinning_forward.3} parent=0
    #allocation2 [shape = 'u8[8192]{0}', space=vmem, size = 0x2000, scoped, tag = 'output window, operand 2']
    #allocation3 [shape = 's32[2]{0}', space=sflag, size = 0x8, scoped, tag = 'scoped memory for cage_skinning_forward.3']
    %18 = vsyncpa [#allocation3], 0
    %s19 = scalar_lea.sflag [#allocation3], 1
    %20 = vsyncpa %s19, 0
    loop: start=0, step=1, limit=4
    $region2: #{cage_skinning_forward.3} parent=1 // loop_pre_header
      _
    $region3: #{cage_skinning_forward.3} parent=1 // loop_header
      %s22 = sphi 0, %s26
      %p23 = scmp.ge.s32.totalorder %s22, 4
      %s30 = sphi 0, %s30
      %s32 = sphi 0, %s30
      %s33 = sphi 0, %s32
      %s47 = sphi 0, %s33
      %s53 = sphi 0, %s55
      %s56 = sphi 0, %s53
      %s57 = sphi 0, %s56
      %s73 = sphi 0, %s57
      %s79 = sphi 0, %s81
      %s82 = sphi 0, %s79
      %s83 = sphi 0, %s82
      %s99 = sphi 0, %s83
      %s105 = sphi 0, %s107
      %s108 = sphi 0, %s105
      %s109 = sphi 0, %s108
      %s125 = sphi 0, %s109
      %s129 = sphi 0, %s129
      %s131 = sphi 0, %s129
      %s132 = sphi 0, %s131
      %s146 = sphi 0, %s132
      %s152 = sphi 0, %s154
      %s155 = sphi 0, %s152
      %s156 = sphi 0, %s155
      %s172 = sphi 0, %s156
      %s176 = sphi 0, %s176
      %s178 = sphi 0, %s176
      %s179 = sphi 0, %s178
      %s193 = sphi 0, %s179
      %s197 = sphi 0, %s197
      %s199 = sphi 0, %s197
      %s200 = sphi 0, %s199
      %s214 = sphi 0, %s200
      %s220 = sphi 0, %s222
      %s223 = sphi 0, %s220
      %s224 = sphi 0, %s223
      %s240 = sphi 0, %s224
      %s246 = sphi 0, %s248
      %s249 = sphi 0, %s246
      %s250 = sphi 0, %s249
      %s266 = sphi 0, %s250
      %s272 = sphi 0, %s274
      %s275 = sphi 0, %s272
      %s276 = sphi 0, %s275
      %s292 = sphi 0, %s276
      %s298 = sphi 0, %s300
      %s301 = sphi 0, %s298
      %s302 = sphi 0, %s301
      %s318 = sphi 0, %s302
      %s324 = sphi 0, %s326
      %s327 = sphi 0, %s324
      %s328 = sphi 0, %s327
      %s344 = sphi 0, %s328
    $region4: #{cage_skinning_forward.3} parent=1 // loop_header_branch
      %25 = sbr.rel (%p23) target = $region8
    $region5: #{cage_skinning_forward.3} parent=1 // loop_body
      %s27 = ssub.s32 %s22, 1
      %s28 = ssub.s32 %s22, 2
      %s29 = sadd.s32 %s22, 1
      %s31 = sadd.s32 %s30, 1
      %p34 = scmp.eq.s32.totalorder %s22, 1
      %p35 = scmp.ne.s32.totalorder %s30, %s32
      %p36 = scmp.eq.s32.totalorder %s22, 0
      %p37 = por %p35, %p36
      %p38 = scmp.ne.s32.totalorder %s30, %s32
      %p39 = scmp.eq.s32.totalorder %s27, 1
      %p40 = por %p38, %p39
      %p41 = scmp.ne.s32.totalorder %s32, %s33
      %p42 = scmp.eq.s32.totalorder %s27, 0
      %p43 = por %p41, %p42
      %p44 = scmp.ne.s32.totalorder %s32, %s33
      %p45 = scmp.eq.s32.totalorder %s28, 1
      %p46 = por %p44, %p45
      %p48 = scmp.ne.s32.totalorder %s33, %s47
      %p49 = scmp.eq.s32.totalorder %s28, 0
      %p50 = por %p48, %p49
      %s51 = ssub.s32 %s22, %s29
      %p52 = scmp.eq.s32.totalorder %s51, 0
      %s54 = sadd.s32 %s53, 1
      %s55 = scalar_select %p52, %s53, %s54
      %p58 = pneg %p52
      %p59 = scmp.eq.s32.totalorder %s22, 1
      %p60 = por %p58, %p59
      %p61 = scmp.ne.s32.totalorder %s53, %s56
      %p62 = scmp.eq.s32.totalorder %s22, 0
      %p63 = por %p61, %p62
      %p64 = scmp.ne.s32.totalorder %s53, %s56
      %p65 = scmp.eq.s32.totalorder %s27, 1
      %p66 = por %p64, %p65
      %p67 = scmp.ne.s32.totalorder %s56, %s57
      %p68 = scmp.eq.s32.totalorder %s27, 0
      %p69 = por %p67, %p68
      %p70 = scmp.ne.s32.totalorder %s56, %s57
      %p71 = scmp.eq.s32.totalorder %s28, 1
      %p72 = por %p70, %p71
      %p74 = scmp.ne.s32.totalorder %s57, %s73
      %p75 = scmp.eq.s32.totalorder %s28, 0
      %p76 = por %p74, %p75
      %s77 = ssub.s32 %s22, %s29
      %p78 = scmp.eq.s32.totalorder %s77, 0
      %s80 = sadd.s32 %s79, 1
      %s81 = scalar_select %p78, %s79, %s80
      %p84 = pneg %p78
      %p85 = scmp.eq.s32.totalorder %s22, 1
      %p86 = por %p84, %p85
      %p87 = scmp.ne.s32.totalorder %s79, %s82
      %p88 = scmp.eq.s32.totalorder %s22, 0
      %p89 = por %p87, %p88
      %p90 = scmp.ne.s32.totalorder %s79, %s82
      %p91 = scmp.eq.s32.totalorder %s27, 1
      %p92 = por %p90, %p91
      %p93 = scmp.ne.s32.totalorder %s82, %s83
      %p94 = scmp.eq.s32.totalorder %s27, 0
      %p95 = por %p93, %p94
      %p96 = scmp.ne.s32.totalorder %s82, %s83
      %p97 = scmp.eq.s32.totalorder %s28, 1
      %p98 = por %p96, %p97
      %p100 = scmp.ne.s32.totalorder %s83, %s99
      %p101 = scmp.eq.s32.totalorder %s28, 0
      %p102 = por %p100, %p101
      %s103 = ssub.s32 %s22, %s29
      %p104 = scmp.eq.s32.totalorder %s103, 0
      %s106 = sadd.s32 %s105, 1
      %s107 = scalar_select %p104, %s105, %s106
      %p110 = pneg %p104
      %p111 = scmp.eq.s32.totalorder %s22, 1
      %p112 = por %p110, %p111
      %p113 = scmp.ne.s32.totalorder %s105, %s108
      %p114 = scmp.eq.s32.totalorder %s22, 0
      %p115 = por %p113, %p114
      %p116 = scmp.ne.s32.totalorder %s105, %s108
      %p117 = scmp.eq.s32.totalorder %s27, 1
      %p118 = por %p116, %p117
      %p119 = scmp.ne.s32.totalorder %s108, %s109
      %p120 = scmp.eq.s32.totalorder %s27, 0
      %p121 = por %p119, %p120
      %p122 = scmp.ne.s32.totalorder %s108, %s109
      %p123 = scmp.eq.s32.totalorder %s28, 1
      %p124 = por %p122, %p123
      %p126 = scmp.ne.s32.totalorder %s109, %s125
      %p127 = scmp.eq.s32.totalorder %s28, 0
      %p128 = por %p126, %p127
      %s130 = sadd.s32 %s129, 1
      %p133 = scmp.eq.s32.totalorder %s22, 1
      %p134 = scmp.ne.s32.totalorder %s129, %s131
      %p135 = scmp.eq.s32.totalorder %s22, 0
      %p136 = por %p134, %p135
      %p137 = scmp.ne.s32.totalorder %s129, %s131
      %p138 = scmp.eq.s32.totalorder %s27, 1
      %p139 = por %p137, %p138
      %p140 = scmp.ne.s32.totalorder %s131, %s132
      %p141 = scmp.eq.s32.totalorder %s27, 0
      %p142 = por %p140, %p141
      %p143 = scmp.ne.s32.totalorder %s131, %s132
      %p144 = scmp.eq.s32.totalorder %s28, 1
      %p145 = por %p143, %p144
      %p147 = scmp.ne.s32.totalorder %s132, %s146
      %p148 = scmp.eq.s32.totalorder %s28, 0
      %p149 = por %p147, %p148
      %s150 = ssub.s32 %s22, %s29
      %p151 = scmp.eq.s32.totalorder %s150, 0
      %s153 = sadd.s32 %s152, 1
      %s154 = scalar_select %p151, %s152, %s153
      %p157 = pneg %p151
      %p158 = scmp.eq.s32.totalorder %s22, 1
      %p159 = por %p157, %p158
      %p160 = scmp.ne.s32.totalorder %s152, %s155
      %p161 = scmp.eq.s32.totalorder %s22, 0
      %p162 = por %p160, %p161
      %p163 = scmp.ne.s32.totalorder %s152, %s155
      %p164 = scmp.eq.s32.totalorder %s27, 1
      %p165 = por %p163, %p164
      %p166 = scmp.ne.s32.totalorder %s155, %s156
      %p167 = scmp.eq.s32.totalorder %s27, 0
      %p168 = por %p166, %p167
      %p169 = scmp.ne.s32.totalorder %s155, %s156
      %p170 = scmp.eq.s32.totalorder %s28, 1
      %p171 = por %p169, %p170
      %p173 = scmp.ne.s32.totalorder %s156, %s172
      %p174 = scmp.eq.s32.totalorder %s28, 0
      %p175 = por %p173, %p174
      %s177 = sadd.s32 %s176, 1
      %p180 = scmp.eq.s32.totalorder %s22, 1
      %p181 = scmp.ne.s32.totalorder %s176, %s178
      %p182 = scmp.eq.s32.totalorder %s22, 0
      %p183 = por %p181, %p182
      %p184 = scmp.ne.s32.totalorder %s176, %s178
      %p185 = scmp.eq.s32.totalorder %s27, 1
      %p186 = por %p184, %p185
      %p187 = scmp.ne.s32.totalorder %s178, %s179
      %p188 = scmp.eq.s32.totalorder %s27, 0
      %p189 = por %p187, %p188
      %p190 = scmp.ne.s32.totalorder %s178, %s179
      %p191 = scmp.eq.s32.totalorder %s28, 1
      %p192 = por %p190, %p191
      %p194 = scmp.ne.s32.totalorder %s179, %s193
      %p195 = scmp.eq.s32.totalorder %s28, 0
      %p196 = por %p194, %p195
      %s198 = sadd.s32 %s197, 1
      %p201 = scmp.eq.s32.totalorder %s22, 1
      %p202 = scmp.ne.s32.totalorder %s197, %s199
      %p203 = scmp.eq.s32.totalorder %s22, 0
      %p204 = por %p202, %p203
      %p205 = scmp.ne.s32.totalorder %s197, %s199
      %p206 = scmp.eq.s32.totalorder %s27, 1
      %p207 = por %p205, %p206
      %p208 = scmp.ne.s32.totalorder %s199, %s200
      %p209 = scmp.eq.s32.totalorder %s27, 0
      %p210 = por %p208, %p209
      %p211 = scmp.ne.s32.totalorder %s199, %s200
      %p212 = scmp.eq.s32.totalorder %s28, 1
      %p213 = por %p211, %p212
      %p215 = scmp.ne.s32.totalorder %s200, %s214
      %p216 = scmp.eq.s32.totalorder %s28, 0
      %p217 = por %p215, %p216
      %s218 = ssub.s32 %s22, %s29
      %p219 = scmp.eq.s32.totalorder %s218, 0
      %s221 = sadd.s32 %s220, 1
      %s222 = scalar_select %p219, %s220, %s221
      %p225 = pneg %p219
      %p226 = scmp.eq.s32.totalorder %s22, 1
      %p227 = por %p225, %p226
      %p228 = scmp.ne.s32.totalorder %s220, %s223
      %p229 = scmp.eq.s32.totalorder %s22, 0
      %p230 = por %p228, %p229
      %p231 = scmp.ne.s32.totalorder %s220, %s223
      %p232 = scmp.eq.s32.totalorder %s27, 1
      %p233 = por %p231, %p232
      %p234 = scmp.ne.s32.totalorder %s223, %s224
      %p235 = scmp.eq.s32.totalorder %s27, 0
      %p236 = por %p234, %p235
      %p237 = scmp.ne.s32.totalorder %s223, %s224
      %p238 = scmp.eq.s32.totalorder %s28, 1
      %p239 = por %p237, %p238
      %p241 = scmp.ne.s32.totalorder %s224, %s240
      %p242 = scmp.eq.s32.totalorder %s28, 0
      %p243 = por %p241, %p242
      %s244 = ssub.s32 %s22, %s29
      %p245 = scmp.eq.s32.totalorder %s244, 0
      %s247 = sadd.s32 %s246, 1
      %s248 = scalar_select %p245, %s246, %s247
      %p251 = pneg %p245
      %p252 = scmp.eq.s32.totalorder %s22, 1
      %p253 = por %p251, %p252
      %p254 = scmp.ne.s32.totalorder %s246, %s249
      %p255 = scmp.eq.s32.totalorder %s22, 0
      %p256 = por %p254, %p255
      %p257 = scmp.ne.s32.totalorder %s246, %s249
      %p258 = scmp.eq.s32.totalorder %s27, 1
      %p259 = por %p257, %p258
      %p260 = scmp.ne.s32.totalorder %s249, %s250
      %p261 = scmp.eq.s32.totalorder %s27, 0
      %p262 = por %p260, %p261
      %p263 = scmp.ne.s32.totalorder %s249, %s250
      %p264 = scmp.eq.s32.totalorder %s28, 1
      %p265 = por %p263, %p264
      %p267 = scmp.ne.s32.totalorder %s250, %s266
      %p268 = scmp.eq.s32.totalorder %s28, 0
      %p269 = por %p267, %p268
      %s270 = ssub.s32 %s22, %s29
      %p271 = scmp.eq.s32.totalorder %s270, 0
      %s273 = sadd.s32 %s272, 1
      %s274 = scalar_select %p271, %s272, %s273
      %p277 = pneg %p271
      %p278 = scmp.eq.s32.totalorder %s22, 1
      %p279 = por %p277, %p278
      %p280 = scmp.ne.s32.totalorder %s272, %s275
      %p281 = scmp.eq.s32.totalorder %s22, 0
      %p282 = por %p280, %p281
      %p283 = scmp.ne.s32.totalorder %s272, %s275
      %p284 = scmp.eq.s32.totalorder %s27, 1
      %p285 = por %p283, %p284
      %p286 = scmp.ne.s32.totalorder %s275, %s276
      %p287 = scmp.eq.s32.totalorder %s27, 0
      %p288 = por %p286, %p287
      %p289 = scmp.ne.s32.totalorder %s275, %s276
      %p290 = scmp.eq.s32.totalorder %s28, 1
      %p291 = por %p289, %p290
      %p293 = scmp.ne.s32.totalorder %s276, %s292
      %p294 = scmp.eq.s32.totalorder %s28, 0
      %p295 = por %p293, %p294
      %s296 = ssub.s32 %s22, %s29
      %p297 = scmp.eq.s32.totalorder %s296, 0
      %s299 = sadd.s32 %s298, 1
      %s300 = scalar_select %p297, %s298, %s299
      %p303 = pneg %p297
      %p304 = scmp.eq.s32.totalorder %s22, 1
      %p305 = por %p303, %p304
      %p306 = scmp.ne.s32.totalorder %s298, %s301
      %p307 = scmp.eq.s32.totalorder %s22, 0
      %p308 = por %p306, %p307
      %p309 = scmp.ne.s32.totalorder %s298, %s301
      %p310 = scmp.eq.s32.totalorder %s27, 1
      %p311 = por %p309, %p310
      %p312 = scmp.ne.s32.totalorder %s301, %s302
      %p313 = scmp.eq.s32.totalorder %s27, 0
      %p314 = por %p312, %p313
      %p315 = scmp.ne.s32.totalorder %s301, %s302
      %p316 = scmp.eq.s32.totalorder %s28, 1
      %p317 = por %p315, %p316
      %p319 = scmp.ne.s32.totalorder %s302, %s318
      %p320 = scmp.eq.s32.totalorder %s28, 0
      %p321 = por %p319, %p320
      %s322 = ssub.s32 %s22, %s29
      %p323 = scmp.eq.s32.totalorder %s322, 0
      %s325 = sadd.s32 %s324, 1
      %s326 = scalar_select %p323, %s324, %s325
      %p329 = pneg %p323
      %p330 = scmp.eq.s32.totalorder %s22, 1
      %p331 = por %p329, %p330
      %p332 = scmp.ne.s32.totalorder %s324, %s327
      %p333 = scmp.eq.s32.totalorder %s22, 0
      %p334 = por %p332, %p333
      %p335 = scmp.ne.s32.totalorder %s324, %s327
      %p336 = scmp.eq.s32.totalorder %s27, 1
      %p337 = por %p335, %p336
      %p338 = scmp.ne.s32.totalorder %s327, %s328
      %p339 = scmp.eq.s32.totalorder %s27, 0
      %p340 = por %p338, %p339
      %p341 = scmp.ne.s32.totalorder %s327, %s328
      %p342 = scmp.eq.s32.totalorder %s28, 1
      %p343 = por %p341, %p342
      %p345 = scmp.ne.s32.totalorder %s328, %s344
      %p346 = scmp.eq.s32.totalorder %s28, 0
      %p347 = por %p345, %p346
      %p348 = scmp.le.s32.totalorder 1, %s22
      %p349 = scmp.lt.s32.totalorder %s22, 3
      %p350 = pnand %p348, %p349
      %p351 = pneg %p350
      // Predicated region
      $region9: #{cage_skinning_forward.3} parent=5 // pred_check
        _
      $region10: #{cage_skinning_forward.3} parent=5 // pred_check_branch
        %353 = sbr.rel (%p350) target = $region12
      $region11: #{cage_skinning_forward.3} parent=5 // pred_region
        %s354 = ssub.s32 %s22, 1
        // Predicated region
        $region13: #{cage_skinning_forward.3} parent=11 // pred_check
          %p355 = pneg %p43
        $region14: #{cage_skinning_forward.3} parent=11 // pred_check_branch
          %357 = sbr.rel (%p355) target = $region16
        $region15: #{cage_skinning_forward.3} parent=11 // pred_region
          _
        $region16: #{cage_skinning_forward.3} parent=11 // pred_fallthru
          _
        // Predicated region
        $region17: #{cage_skinning_forward.3} parent=11 // pred_check
          %p358 = pneg %p142
        $region18: #{cage_skinning_forward.3} parent=11 // pred_check_branch
          %360 = sbr.rel (%p358) target = $region20
        $region19: #{cage_skinning_forward.3} parent=11 // pred_region
          _
        $region20: #{cage_skinning_forward.3} parent=11 // pred_fallthru
          _
        // Predicated region
        $region21: #{cage_skinning_forward.3} parent=11 // pred_check
          %p361 = pneg %p189
        $region22: #{cage_skinning_forward.3} parent=11 // pred_check_branch
          %363 = sbr.rel (%p361) target = $region24
        $region23: #{cage_skinning_forward.3} parent=11 // pred_region
          _
        $region24: #{cage_skinning_forward.3} parent=11 // pred_fallthru
          _
        // Predicated region
        $region25: #{cage_skinning_forward.3} parent=11 // pred_check
          %p364 = pneg %p210
        $region26: #{cage_skinning_forward.3} parent=11 // pred_check_branch
          %366 = sbr.rel (%p364) target = $region28
        $region27: #{cage_skinning_forward.3} parent=11 // pred_region
          _
        $region28: #{cage_skinning_forward.3} parent=11 // pred_fallthru
          _
      $region12: #{cage_skinning_forward.3} parent=5 // pred_fallthru
        _
      %p367 = scmp.lt.s32.totalorder %s22, 2
      // Predicated region
      $region29: #{cage_skinning_forward.3} parent=5 // pred_check
        %p368 = pneg %p367
      $region30: #{cage_skinning_forward.3} parent=5 // pred_check_branch
        %370 = sbr.rel (%p368) target = $region32
      $region31: #{cage_skinning_forward.3} parent=5 // pred_region
        // Predicated region
        $region33: #{cage_skinning_forward.3} parent=31 // pred_check
          %p371 = pneg %p63
        $region34: #{cage_skinning_forward.3} parent=31 // pred_check_branch
          %373 = sbr.rel (%p371) target = $region36
        $region35: #{cage_skinning_forward.3} parent=31 // pred_region
          %p374 = scmp.lt.s32.totalorder %s22, 1
          %s375 = scalar_select %p374, %s22, 1
          %s376 = smul.addr %s375, 8
          %s377 = smul.addr %s376, 8
          %s378 = scalar_lea.vmem %s1, %s377
        $region36: #{cage_skinning_forward.3} parent=31 // pred_fallthru
          _
        // Predicated region
        $region37: #{cage_skinning_forward.3} parent=31 // pred_check
          %p379 = pneg %p89
        $region38: #{cage_skinning_forward.3} parent=31 // pred_check_branch
          %381 = sbr.rel (%p379) target = $region40
        $region39: #{cage_skinning_forward.3} parent=31 // pred_region
          %p382 = scmp.lt.s32.totalorder %s22, 1
          %s383 = scalar_select %p382, %s22, 1
          %s384 = smul.addr %s383, 4
          %s385 = scalar_lea.vmem %s2, %s384
        $region40: #{cage_skinning_forward.3} parent=31 // pred_fallthru
          _
        // Predicated region
        $region41: #{cage_skinning_forward.3} parent=31 // pred_check
          %p386 = pneg %p115
        $region42: #{cage_skinning_forward.3} parent=31 // pred_check_branch
          %388 = sbr.rel (%p386) target = $region44
        $region43: #{cage_skinning_forward.3} parent=31 // pred_region
          %p389 = scmp.lt.s32.totalorder %s22, 1
          %s390 = scalar_select %p389, %s22, 1
          %s391 = smul.addr %s390, 4
          %s392 = scalar_lea.vmem %s3, %s391
        $region44: #{cage_skinning_forward.3} parent=31 // pred_fallthru
          _
        // Predicated region
        $region45: #{cage_skinning_forward.3} parent=31 // pred_check
          %p393 = pneg %p162
        $region46: #{cage_skinning_forward.3} parent=31 // pred_check_branch
          %395 = sbr.rel (%p393) target = $region48
        $region47: #{cage_skinning_forward.3} parent=31 // pred_region
          %p396 = scmp.lt.s32.totalorder %s22, 1
          %s397 = scalar_select %p396, %s22, 1
          %s398 = smul.addr %s397, 8
          %s399 = scalar_lea.vmem %s5, %s398
        $region48: #{cage_skinning_forward.3} parent=31 // pred_fallthru
          _
      $region32: #{cage_skinning_forward.3} parent=5 // pred_fallthru
        _
      %p400 = scmp.le.s32.totalorder 1, %s22
      %p401 = scmp.lt.s32.totalorder %s22, 3
      %p402 = pnand %p400, %p401
      %p403 = pneg %p402
      // Predicated region
      $region49: #{cage_skinning_forward.3} parent=5 // pred_check
        _
      $region50: #{cage_skinning_forward.3} parent=5 // pred_check_branch
        %405 = sbr.rel (%p402) target = $region52
      $region51: #{cage_skinning_forward.3} parent=5 // pred_region
        %s406 = ssub.s32 %s22, 1
        %p407 = pneg %p43
        %p408 = pneg %p40
        %p409 = scmp.lt.s32.totalorder %s27, 1
        %s410 = scalar_select %p409, %s27, 1
        %s411 = smul.addr %s410, 8
        %s412 = smul.addr %s411, 8
        %s413 = scalar_lea.vmem %s1, %s412
        %p414 = pneg %p69
        %p415 = pneg %p66
        %p416 = scmp.lt.s32.totalorder %s27, 1
        %s417 = scalar_select %p416, %s27, 1
        %s418 = smul.addr %s417, 4
        %s419 = scalar_lea.vmem %s2, %s418
        %p420 = pneg %p95
        %p421 = pneg %p92
        %p422 = scmp.lt.s32.totalorder %s27, 1
        %s423 = scalar_select %p422, %s27, 1
        %s424 = smul.addr %s423, 4
        %s425 = scalar_lea.vmem %s3, %s424
        %p426 = pneg %p121
        %p427 = pneg %p118
        %p428 = pneg %p142
        %p429 = pneg %p139
        %p430 = scmp.lt.s32.totalorder %s27, 1
        %s431 = scalar_select %p430, %s27, 1
        %s432 = smul.addr %s431, 8
        %s433 = scalar_lea.vmem %s5, %s432
        %p434 = pneg %p168
        %p435 = pneg %p165
        %p436 = pneg %p189
        %p437 = pneg %p186
        %p438 = pneg %p210
        %p439 = pneg %p207
        %p440 = pneg %p236
        %p441 = pneg %p233
        %p442 = scmp.lt.s32.totalorder %s27, 1
        %s443 = scalar_select %p442, %s27, 1
        %s444 = smul.addr %s443, 4
        %s445 = scalar_lea.vmem %s8, %s444
        %p446 = pneg %p262
        %p447 = pneg %p259
        %p448 = scmp.lt.s32.totalorder %s27, 1
        %s449 = scalar_select %p448, %s27, 1
        %s450 = smul.addr %s449, 4
        %s451 = scalar_lea.vmem %s9, %s450
        %p452 = pneg %p288
        %p453 = pneg %p285
        %s454 = sand.u32 %s275, 1
        %s455 = scalar_lea.sflag [#allocation3], %s454
        %s456 = sand.u32 %s275, 1
        %s457 = smul.addr %s456, 8
        %s458 = scalar_lea.vmem [#allocation2], %s457
        %p459 = pneg %p314
        %p460 = pneg %p311
        %p461 = scmp.lt.s32.totalorder %s27, 1
        %s462 = scalar_select %p461, %s27, 1
        %s463 = smul.addr %s462, 8
        %s464 = smul.addr %s463, 8
        %s465 = scalar_lea.vmem %s11, %s464
        %p466 = pneg %p340
        %p467 = pneg %p337
        %p468 = scmp.lt.s32.totalorder %s27, 1
        %s469 = scalar_select %p468, %s27, 1
        %s470 = smul.addr %s469, 8
        %s471 = smul.addr %s470, 8
        %s472 = scalar_lea.vmem %s12, %s471
        %p473 = scmp.lt.s32.totalorder %s27, 1
        %s474 = scalar_select %p473, %s27, 1
        %s475 = smul.addr %s474, 8
        %s476 = smul.addr %s475, 8
        %s477 = scalar_lea.vmem %s1, %s476
        %p478 = scmp.lt.s32.totalorder %s27, 1
        %s479 = scalar_select %p478, %s27, 1
        %s480 = smul.addr %s479, 4
        %s481 = scalar_lea.vmem %s2, %s480
        %p482 = scmp.lt.s32.totalorder %s27, 1
        %s483 = scalar_select %p482, %s27, 1
        %s484 = smul.addr %s483, 4
        %s485 = scalar_lea.vmem %s3, %s484
        %p486 = scmp.lt.s32.totalorder %s27, 1
        %s487 = scalar_select %p486, %s27, 1
        %s488 = smul.addr %s487, 8
        %s489 = scalar_lea.vmem %s5, %s488
        %p490 = scmp.lt.s32.totalorder %s27, 1
        %s491 = scalar_select %p490, %s27, 1
        %s492 = smul.addr %s491, 4
        %s493 = scalar_lea.vmem %s8, %s492
        %p494 = scmp.lt.s32.totalorder %s27, 1
        %s495 = scalar_select %p494, %s27, 1
        %s496 = smul.addr %s495, 4
        %s497 = scalar_lea.vmem %s9, %s496
        %p498 = scmp.lt.s32.totalorder %s27, 1
        %s499 = scalar_select %p498, %s27, 1
        %s500 = smul.addr %s499, 8
        %s501 = smul.addr %s500, 8
        %s502 = scalar_lea.vmem %s11, %s501
        %p503 = scmp.lt.s32.totalorder %s27, 1
        %s504 = scalar_select %p503, %s27, 1
        %s505 = smul.addr %s504, 8
        %s506 = smul.addr %s505, 8
        %s507 = scalar_lea.vmem %s12, %s506
        %v508 = vld [vmem:[%s477] sm:$0xff]
        %v509 = vld [vmem:[%s477 + $0x8] sm:$0xff]
        %v510 = vld [vmem:[%s477 + $0x10] sm:$0xff]
        %v511 = vld [vmem:[%s477 + $0x18] sm:$0xff]
        %v512 = vld [vmem:[%s477 + $0x20] sm:$0xff]
        %v513 = vld [vmem:[%s477 + $0x28] sm:$0xff]
        %v514 = vld [vmem:[%s477 + $0x30] sm:$0xff]
        %v515 = vld [vmem:[%s477 + $0x38] sm:$0xff]
        %v516 = vld [vmem:[%s0] sm:$0x7]
        %v517 = vmul.f32 %v508, %v508
        %v518 = vmul.f32 %v509, %v509
        %v519 = vmul.f32 %v510, %v510
        %v520 = vmul.f32 %v511, %v511
        %v521 = vmul.f32 %v512, %v512
        %v522 = vmul.f32 %v513, %v513
        %v523 = vmul.f32 %v514, %v514
        %v524 = vmul.f32 %v515, %v515
        %vm525 = vcmask 23552
        %v526 = vsel %vm525, %v517, 0.0
        %527 = vadd.xlane.f32.xlu0 %v526
        %v528 = vpop.xlane.xlu0 %527
        %v529 = vsel %vm525, %v518, 0.0
        %530 = vadd.xlane.f32.xlu0 %v529
        %v531 = vpop.xlane.xlu0 %530
        %v532 = vsel %vm525, %v519, 0.0
        %533 = vadd.xlane.f32.xlu0 %v532
        %v534 = vpop.xlane.xlu0 %533
        %v535 = vsel %vm525, %v520, 0.0
        %536 = vadd.xlane.f32.xlu0 %v535
        %v537 = vpop.xlane.xlu0 %536
        %v538 = vsel %vm525, %v521, 0.0
        %539 = vadd.xlane.f32.xlu0 %v538
        %v540 = vpop.xlane.xlu0 %539
        %v541 = vsel %vm525, %v522, 0.0
        %542 = vadd.xlane.f32.xlu0 %v541
        %v543 = vpop.xlane.xlu0 %542
        %v544 = vsel %vm525, %v523, 0.0
        %545 = vadd.xlane.f32.xlu0 %v544
        %v546 = vpop.xlane.xlu0 %545
        %v547 = vsel %vm525, %v524, 0.0
        %548 = vadd.xlane.f32.xlu0 %v547
        %v549 = vpop.xlane.xlu0 %548
        %551 = vset.pattern.permute.xlu0 0
        %552 = vperm.xlu0 %551, %v508
        %v553 = vpop.permute.xlu0 %552
        %556 = vset.pattern.permute.xlu0 0
        %557 = vperm.xlu0 %556, %v509
        %v558 = vpop.permute.xlu0 %557
        %561 = vset.pattern.permute.xlu0 0
        %562 = vperm.xlu0 %561, %v510
        %v563 = vpop.permute.xlu0 %562
        %566 = vset.pattern.permute.xlu0 0
        %567 = vperm.xlu0 %566, %v511
        %v568 = vpop.permute.xlu0 %567
        %571 = vset.pattern.permute.xlu0 0
        %572 = vperm.xlu0 %571, %v512
        %v573 = vpop.permute.xlu0 %572
        %576 = vset.pattern.permute.xlu0 0
        %577 = vperm.xlu0 %576, %v513
        %v578 = vpop.permute.xlu0 %577
        %581 = vset.pattern.permute.xlu0 0
        %582 = vperm.xlu0 %581, %v514
        %v583 = vpop.permute.xlu0 %582
        %586 = vset.pattern.permute.xlu0 0
        %587 = vperm.xlu0 %586, %v515
        %v588 = vpop.permute.xlu0 %587
        %v590 = vlaneseq
        %v591 = vshrl.u32 %v590, 7
        %v592 = vsub.s32 0, %v591
        %v593 = vrot.slane %v516, %v592
        %v594 = vmul.f32 %v553, %v593
        %v595 = vmul.f32 %v558, %v593
        %v596 = vmul.f32 %v563, %v593
        %v597 = vmul.f32 %v568, %v593
        %v598 = vmul.f32 %v573, %v593
        %v599 = vmul.f32 %v578, %v593
        %v600 = vmul.f32 %v583, %v593
        %v601 = vmul.f32 %v588, %v593
        %602 = vset.pattern.permute.xlu0 1
        %603 = vperm.xlu0 %602, %v508
        %v604 = vpop.permute.xlu0 %603
        %606 = vset.pattern.permute.xlu0 1
        %607 = vperm.xlu0 %606, %v509
        %v608 = vpop.permute.xlu0 %607
        %610 = vset.pattern.permute.xlu0 1
        %611 = vperm.xlu0 %610, %v510
        %v612 = vpop.permute.xlu0 %611
        %614 = vset.pattern.permute.xlu0 1
        %615 = vperm.xlu0 %614, %v511
        %v616 = vpop.permute.xlu0 %615
        %618 = vset.pattern.permute.xlu0 1
        %619 = vperm.xlu0 %618, %v512
        %v620 = vpop.permute.xlu0 %619
        %622 = vset.pattern.permute.xlu0 1
        %623 = vperm.xlu0 %622, %v513
        %v624 = vpop.permute.xlu0 %623
        %626 = vset.pattern.permute.xlu0 1
        %627 = vperm.xlu0 %626, %v514
        %v628 = vpop.permute.xlu0 %627
        %630 = vset.pattern.permute.xlu0 1
        %631 = vperm.xlu0 %630, %v515
        %v632 = vpop.permute.xlu0 %631
        %v634 = vlaneseq
        %v635 = vshrl.u32 %v634, 7
        %v636 = vsub.s32 1, %v635
        %v637 = vrot.slane %v516, %v636
        %v638 = vmul.f32 %v604, %v637
        %v639 = vmul.f32 %v608, %v637
        %v640 = vmul.f32 %v612, %v637
        %v641 = vmul.f32 %v616, %v637
        %v642 = vmul.f32 %v620, %v637
        %v643 = vmul.f32 %v624, %v637
        %v644 = vmul.f32 %v628, %v637
        %v645 = vmul.f32 %v632, %v637
        %v646 = vadd.f32 %v594, %v638
        %v647 = vadd.f32 %v595, %v639
        %v648 = vadd.f32 %v596, %v640
        %v649 = vadd.f32 %v597, %v641
        %v650 = vadd.f32 %v598, %v642
        %v651 = vadd.f32 %v599, %v643
        %v652 = vadd.f32 %v600, %v644
        %v653 = vadd.f32 %v601, %v645
        %654 = vset.pattern.permute.xlu0 2
        %655 = vperm.xlu0 %654, %v508
        %v656 = vpop.permute.xlu0 %655
        %658 = vset.pattern.permute.xlu0 2
        %659 = vperm.xlu0 %658, %v509
        %v660 = vpop.permute.xlu0 %659
        %662 = vset.pattern.permute.xlu0 2
        %663 = vperm.xlu0 %662, %v510
        %v664 = vpop.permute.xlu0 %663
        %666 = vset.pattern.permute.xlu0 2
        %667 = vperm.xlu0 %666, %v511
        %v668 = vpop.permute.xlu0 %667
        %670 = vset.pattern.permute.xlu0 2
        %671 = vperm.xlu0 %670, %v512
        %v672 = vpop.permute.xlu0 %671
        %674 = vset.pattern.permute.xlu0 2
        %675 = vperm.xlu0 %674, %v513
        %v676 = vpop.permute.xlu0 %675
        %678 = vset.pattern.permute.xlu0 2
        %679 = vperm.xlu0 %678, %v514
        %v680 = vpop.permute.xlu0 %679
        %682 = vset.pattern.permute.xlu0 2
        %683 = vperm.xlu0 %682, %v515
        %v684 = vpop.permute.xlu0 %683
        %v686 = vlaneseq
        %v687 = vshrl.u32 %v686, 7
        %v688 = vsub.s32 2, %v687
        %v689 = vrot.slane %v516, %v688
        %v690 = vmul.f32 %v656, %v689
        %v691 = vmul.f32 %v660, %v689
        %v692 = vmul.f32 %v664, %v689
        %v693 = vmul.f32 %v668, %v689
        %v694 = vmul.f32 %v672, %v689
        %v695 = vmul.f32 %v676, %v689
        %v696 = vmul.f32 %v680, %v689
        %v697 = vmul.f32 %v684, %v689
        %v698 = vadd.f32 %v646, %v690
        %v699 = vadd.f32 %v647, %v691
        %v700 = vadd.f32 %v648, %v692
        %v701 = vadd.f32 %v649, %v693
        %v702 = vadd.f32 %v650, %v694
        %v703 = vadd.f32 %v651, %v695
        %v704 = vadd.f32 %v652, %v696
        %v705 = vadd.f32 %v653, %v697
        %v706 = vmul.f32 %v698, 2.0
        %v707 = vmul.f32 %v699, 2.0
        %v708 = vmul.f32 %v700, 2.0
        %v709 = vmul.f32 %v701, 2.0
        %v710 = vmul.f32 %v702, 2.0
        %v711 = vmul.f32 %v703, 2.0
        %v712 = vmul.f32 %v704, 2.0
        %v713 = vmul.f32 %v705, 2.0
        %v714 = vmul.f32 %v516, %v516
        %vm715 = vcmask 92160
        %v716 = vsel %vm715, %v714, 0.0
        %v717 = vrot.slane %v716, 4
        %v718 = vadd.f32 %v716, %v717
        %v719 = vrot.slane %v718, 2
        %v720 = vadd.f32 %v718, %v719
        %v721 = vrot.slane %v720, 1
        %v722 = vadd.f32 %v720, %v721
        loop: start=0, step=1, limit=25
        $region53: #{cage_skinning_forward.3} parent=51 // loop_pre_header
          _
        $region54: #{cage_skinning_forward.3} parent=51 // loop_header
          %s724 = sphi 0, %s728
          %p725 = scmp.ge.s32.totalorder %s724, 25
          %v729 = vphi 1.0, %v914
        $region55: #{cage_skinning_forward.3} parent=51 // loop_header_branch
          %727 = sbr.rel (%p725) target = $region59
        $region56: #{cage_skinning_forward.3} parent=51 // loop_body
          %v730 = vmul.f32 %v729, %v706
          %v731 = vmul.f32 %v729, %v707
          %v732 = vmul.f32 %v729, %v708
          %v733 = vmul.f32 %v729, %v709
          %v734 = vmul.f32 %v729, %v710
          %v735 = vmul.f32 %v729, %v711
          %v736 = vmul.f32 %v729, %v712
          %v737 = vmul.f32 %v729, %v713
          %v738 = vsub.f32 %v528, %v730
          %v739 = vsub.f32 %v531, %v731
          %v740 = vsub.f32 %v534, %v732
          %v741 = vsub.f32 %v537, %v733
          %v742 = vsub.f32 %v540, %v734
          %v743 = vsub.f32 %v543, %v735
          %v744 = vsub.f32 %v546, %v736
          %v745 = vsub.f32 %v549, %v737
          %vm746 = vcmask 97280
          %v747 = vsel %vm746, %v738, inf
          %v748 = vsel %vm746, %v739, inf
          %v749 = vsel %vm746, %v740, inf
          %v750 = vsel %vm746, %v741, inf
          %v751 = vsel %vm746, %v742, inf
          %v752 = vmin.f32 %v747, %v751
          %v753 = vsel %vm746, %v743, inf
          %v754 = vmin.f32 %v748, %v753
          %v755 = vsel %vm746, %v744, inf
          %v756 = vmin.f32 %v749, %v755
          %v757 = vsel %vm746, %v745, inf
          %v758 = vmin.f32 %v750, %v757
          %v759 = vmin.f32 %v752, %v754
          %v760 = vmin.f32 %v756, %v758
          %v761 = vmin.f32 %v759, %v760
          %v762 = vrot.slane %v761, 4
          %v763 = vmin.f32 %v761, %v762
          %v764 = vrot.slane %v763, 2
          %v765 = vmin.f32 %v763, %v764
          %v766 = vrot.slane %v765, 1
          %v767 = vmin.f32 %v765, %v766
          %v768 = vmul.f32 %v729, %v729
          %v769 = vmul.f32 %v768, %v722
          %v770 = vadd.f32 %v767, %v769
          %vm771 = vcmp.gt.f32.partialorder %v770, 0.16
          %v772 = vsel %vm771, 1, 0
          %v773 = vcvt.s32.f32 %v772
          %v774 = vmul.f32 %v773, 0.01
          %v775 = vsub.f32 1.0, %v774
          %v776 = vmul.f32 %v729, %v775
          %v777 = vmul.f32 %v776, %v706
          %v778 = vmul.f32 %v776, %v707
          %v779 = vmul.f32 %v776, %v708
          %v780 = vmul.f32 %v776, %v709
          %v781 = vmul.f32 %v776, %v710
          %v782 = vmul.f32 %v776, %v711
          %v783 = vmul.f32 %v776, %v712
          %v784 = vmul.f32 %v776, %v713
          %v785 = vsub.f32 %v528, %v777
          %v786 = vsub.f32 %v531, %v778
          %v787 = vsub.f32 %v534, %v779
          %v788 = vsub.f32 %v537, %v780
          %v789 = vsub.f32 %v540, %v781
          %v790 = vsub.f32 %v543, %v782
          %v791 = vsub.f32 %v546, %v783
          %v792 = vsub.f32 %v549, %v784
          %v793 = vsel %vm746, %v785, inf
          %v794 = vsel %vm746, %v786, inf
          %v795 = vsel %vm746, %v787, inf
          %v796 = vsel %vm746, %v788, inf
          %v797 = vsel %vm746, %v789, inf
          %v798 = vmin.f32 %v793, %v797
          %v799 = vsel %vm746, %v790, inf
          %v800 = vmin.f32 %v794, %v799
          %v801 = vsel %vm746, %v791, inf
          %v802 = vmin.f32 %v795, %v801
          %v803 = vsel %vm746, %v792, inf
          %v804 = vmin.f32 %v796, %v803
          %v805 = vmin.f32 %v798, %v800
          %v806 = vmin.f32 %v802, %v804
          %v807 = vmin.f32 %v805, %v806
          %v808 = vrot.slane %v807, 4
          %v809 = vmin.f32 %v807, %v808
          %v810 = vrot.slane %v809, 2
          %v811 = vmin.f32 %v809, %v810
          %v812 = vrot.slane %v811, 1
          %v813 = vmin.f32 %v811, %v812
          %v814 = vmul.f32 %v776, %v776
          %v815 = vmul.f32 %v814, %v722
          %v816 = vadd.f32 %v813, %v815
          %vm817 = vcmp.gt.f32.partialorder %v816, 0.16
          %v818 = vsel %vm817, 1, 0
          %v819 = vcvt.s32.f32 %v818
          %v820 = vmul.f32 %v819, 0.01
          %v821 = vsub.f32 1.0, %v820
          %v822 = vmul.f32 %v776, %v821
          %v823 = vmul.f32 %v822, %v706
          %v824 = vmul.f32 %v822, %v707
          %v825 = vmul.f32 %v822, %v708
          %v826 = vmul.f32 %v822, %v709
          %v827 = vmul.f32 %v822, %v710
          %v828 = vmul.f32 %v822, %v711
          %v829 = vmul.f32 %v822, %v712
          %v830 = vmul.f32 %v822, %v713
          %v831 = vsub.f32 %v528, %v823
          %v832 = vsub.f32 %v531, %v824
          %v833 = vsub.f32 %v534, %v825
          %v834 = vsub.f32 %v537, %v826
          %v835 = vsub.f32 %v540, %v827
          %v836 = vsub.f32 %v543, %v828
          %v837 = vsub.f32 %v546, %v829
          %v838 = vsub.f32 %v549, %v830
          %v839 = vsel %vm746, %v831, inf
          %v840 = vsel %vm746, %v832, inf
          %v841 = vsel %vm746, %v833, inf
          %v842 = vsel %vm746, %v834, inf
          %v843 = vsel %vm746, %v835, inf
          %v844 = vmin.f32 %v839, %v843
          %v845 = vsel %vm746, %v836, inf
          %v846 = vmin.f32 %v840, %v845
          %v847 = vsel %vm746, %v837, inf
          %v848 = vmin.f32 %v841, %v847
          %v849 = vsel %vm746, %v838, inf
          %v850 = vmin.f32 %v842, %v849
          %v851 = vmin.f32 %v844, %v846
          %v852 = vmin.f32 %v848, %v850
          %v853 = vmin.f32 %v851, %v852
          %v854 = vrot.slane %v853, 4
          %v855 = vmin.f32 %v853, %v854
          %v856 = vrot.slane %v855, 2
          %v857 = vmin.f32 %v855, %v856
          %v858 = vrot.slane %v857, 1
          %v859 = vmin.f32 %v857, %v858
          %v860 = vmul.f32 %v822, %v822
          %v861 = vmul.f32 %v860, %v722
          %v862 = vadd.f32 %v859, %v861
          %vm863 = vcmp.gt.f32.partialorder %v862, 0.16
          %v864 = vsel %vm863, 1, 0
          %v865 = vcvt.s32.f32 %v864
          %v866 = vmul.f32 %v865, 0.01
          %v867 = vsub.f32 1.0, %v866
          %v868 = vmul.f32 %v822, %v867
          %v869 = vmul.f32 %v868, %v706
          %v870 = vmul.f32 %v868, %v707
          %v871 = vmul.f32 %v868, %v708
          %v872 = vmul.f32 %v868, %v709
          %v873 = vmul.f32 %v868, %v710
          %v874 = vmul.f32 %v868, %v711
          %v875 = vmul.f32 %v868, %v712
          %v876 = vmul.f32 %v868, %v713
          %v877 = vsub.f32 %v528, %v869
          %v878 = vsub.f32 %v531, %v870
          %v879 = vsub.f32 %v534, %v871
          %v880 = vsub.f32 %v537, %v872
          %v881 = vsub.f32 %v540, %v873
          %v882 = vsub.f32 %v543, %v874
          %v883 = vsub.f32 %v546, %v875
          %v884 = vsub.f32 %v549, %v876
          %v885 = vsel %vm746, %v877, inf
          %v886 = vsel %vm746, %v878, inf
          %v887 = vsel %vm746, %v879, inf
          %v888 = vsel %vm746, %v880, inf
          %v889 = vsel %vm746, %v881, inf
          %v890 = vmin.f32 %v885, %v889
          %v891 = vsel %vm746, %v882, inf
          %v892 = vmin.f32 %v886, %v891
          %v893 = vsel %vm746, %v883, inf
          %v894 = vmin.f32 %v887, %v893
          %v895 = vsel %vm746, %v884, inf
          %v896 = vmin.f32 %v888, %v895
          %v897 = vmin.f32 %v890, %v892
          %v898 = vmin.f32 %v894, %v896
          %v899 = vmin.f32 %v897, %v898
          %v900 = vrot.slane %v899, 4
          %v901 = vmin.f32 %v899, %v900
          %v902 = vrot.slane %v901, 2
          %v903 = vmin.f32 %v901, %v902
          %v904 = vrot.slane %v903, 1
          %v905 = vmin.f32 %v903, %v904
          %v906 = vmul.f32 %v868, %v868
          %v907 = vmul.f32 %v906, %v722
          %v908 = vadd.f32 %v905, %v907
          %vm909 = vcmp.gt.f32.partialorder %v908, 0.16
          %v910 = vsel %vm909, 1, 0
          %v911 = vcvt.s32.f32 %v910
          %v912 = vmul.f32 %v911, 0.01
          %v913 = vsub.f32 1.0, %v912
          %v914 = vmul.f32 %v868, %v913
        $region57: #{cage_skinning_forward.3} parent=51 // loop_footer
          %s728 = sadd.s32 1, %s724
        $region58: #{cage_skinning_forward.3} parent=51 // loop_footer_branch
          %723 = sbr.rel target = $region54
        $region59: #{cage_skinning_forward.3} parent=51 // loop_exit
          _
        %v915 = vmul.f32 %v516, %v729
        %v916 = vld [vmem:[%s481] sm:$0x7]
        %v917 = vlaneseq
        %v918 = vshrl.u32 %v917, 7
        %v919 = vsub.s32 0, %v918
        %v920 = vrot.slane %v916, %v919
        %922 = vbcast.lane.b32.xlu0 %v920, 256
        %v923 = vpop.permute.xlu0 %922
        %v924 = vlaneseq
        %v925 = vshrl.u32 %v924, 7
        %v926 = vsub.s32 1, %v925
        %v927 = vrot.slane %v916, %v926
        %929 = vbcast.lane.b32.xlu0 %v927, 256
        %v930 = vpop.permute.xlu0 %929
        %v931 = vlaneseq
        %v932 = vshrl.u32 %v931, 7
        %v933 = vsub.s32 2, %v932
        %v934 = vrot.slane %v916, %v933
        %936 = vbcast.lane.b32.xlu0 %v934, 256
        %v937 = vpop.permute.xlu0 %936
        %v940 = vunpack.c.l.s4 1966171168
        %v941 = vunpack.c.0.s8 %v940
        %v942 = vlaneseq
        %v943 = vshrl.u32 %v942, 7
        %v944 = vsub.s32 %v941, %v943
        %v945 = vrot.slane %v915, %v944
        %v946 = vcombine.high %v945, %v945
        %v948 = vunpack.c.l.s4 1966171168
        %v949 = vunpack.c.0.s8 %v948
        %v950 = vlaneseq
        %v951 = vshrl.u32 %v950, 7
        %v952 = vsub.s32 %v949, %v951
        %v953 = vrot.slane %v945, %v952
        %v955 = vunpack.c.l.s4 1966171168
        %v956 = vunpack.c.0.s8 %v955
        %v957 = vlaneseq
        %v958 = vshrl.u32 %v957, 7
        %v959 = vsub.s32 %v956, %v958
        %v960 = vrot.slane %v946, %v959
        %v961 = vcombine.high %v953, %v953
        %v962 = vlaneseq
        %v963 = vshrl.u32 %v962, 7
        %v964 = vsub.s32 0, %v963
        %v965 = vrot.slane %v953, %v964
        %v966 = vlaneseq
        %v967 = vshrl.u32 %v966, 7
        %v968 = vsub.s32 0, %v967
        %v969 = vrot.slane %v960, %v968
        %v970 = vlaneseq
        %v971 = vshrl.u32 %v970, 7
        %v972 = vsub.s32 0, %v971
        %v973 = vrot.slane %v961, %v972
        %v977 = vsub.f32 %v923, %v965
        %v978 = vsub.f32 %v930, %v969
        %v979 = vsub.f32 %v937, %v973
        %v980 = vmul.f32 %v977, %v977
        %v981 = vmul.f32 %v978, %v978
        %v982 = vmul.f32 %v979, %v979
        %vm983 = vcmask 97280
        %v984 = vsel %vm983, %v980, 0.0
        %v985 = vsel %vm983, %v981, 0.0
        %v986 = vadd.f32 %v984, %v985
        %v987 = vsel %vm983, %v982, 0.0
        %v988 = vadd.f32 %v986, %v987
        %v989 = vlaneseq
        %v990 = vand.u32 %v989, 127
        %v991 = vsel %vm983, %v988, inf
        %992 = vmin.xlane.f32.xlu0 %v991
        %v993 = vpop.xlane.xlu0 %992
        %vm994 = vcmp.eq.f32.partialorder %v988, %v993
        %v995 = vsel %vm994, %v990, 12
        %v996 = vsel %vm983, %v995, 2147483647
        %v997 = vand.u32 %v996, 65535
        %v998 = vshra.s32 %v996, 16
        %v999 = vcvt.s32.f32 %v997
        %v1000 = vcvt.s32.f32 %v998
        %1001 = vmin.xlane.f32.xlu0 %v1000
        %v1002 = vpop.xlane.xlu0 %1001
        %vm1003 = vcmp.eq.f32.partialorder %v1000, %v1002
        %v1004 = vsel %vm1003, %v999, inf
        %1005 = vmin.xlane.f32.xlu0 %v1004
        %v1006 = vpop.xlane.xlu0 %1005
        %v1007 = vcvt.f32.s32 %v1006
        %v1008 = vcvt.f32.s32 %v1002
        %v1009 = vshll.u32 %v1008, 16
        %v1010 = vadd.s32 %v1009, %v1007
        %vm1011 = vcmp.eq.s32.totalorder %v990, %v1010
        %v1012 = vsel %vm1011, inf, %v988
        %v1013 = vsel %vm983, %v1012, inf
        %1014 = vmin.xlane.f32.xlu0 %v1013
        %v1015 = vpop.xlane.xlu0 %1014
        %vm1016 = vcmp.eq.f32.partialorder %v1012, %v1015
        %v1017 = vsel %vm1016, %v990, 12
        %v1018 = vsel %vm983, %v1017, 2147483647
        %v1019 = vand.u32 %v1018, 65535
        %v1020 = vshra.s32 %v1018, 16
        %v1021 = vcvt.s32.f32 %v1019
        %v1022 = vcvt.s32.f32 %v1020
        %1023 = vmin.xlane.f32.xlu0 %v1022
        %v1024 = vpop.xlane.xlu0 %1023
        %vm1025 = vcmp.eq.f32.partialorder %v1022, %v1024
        %v1026 = vsel %vm1025, %v1021, inf
        %1027 = vmin.xlane.f32.xlu0 %v1026
        %v1028 = vpop.xlane.xlu0 %1027
        %v1029 = vcvt.f32.s32 %v1028
        %v1030 = vcvt.f32.s32 %v1024
        %v1031 = vshll.u32 %v1030, 16
        %v1032 = vadd.s32 %v1031, %v1029
        %vm1033 = vcmp.eq.s32.totalorder %v990, %v1032
        %v1034 = vsel %vm1033, inf, %v1012
        %v1035 = vsel %vm983, %v1034, inf
        %1036 = vmin.xlane.f32.xlu0 %v1035
        %v1037 = vpop.xlane.xlu0 %1036
        %vm1038 = vcmp.eq.f32.partialorder %v1034, %v1037
        %v1039 = vsel %vm1038, %v990, 12
        %v1040 = vsel %vm983, %v1039, 2147483647
        %v1041 = vand.u32 %v1040, 65535
        %v1042 = vshra.s32 %v1040, 16
        %v1043 = vcvt.s32.f32 %v1041
        %v1044 = vcvt.s32.f32 %v1042
        %1045 = vmin.xlane.f32.xlu0 %v1044
        %v1046 = vpop.xlane.xlu0 %1045
        %vm1047 = vcmp.eq.f32.partialorder %v1044, %v1046
        %v1048 = vsel %vm1047, %v1043, inf
        %1049 = vmin.xlane.f32.xlu0 %v1048
        %v1050 = vpop.xlane.xlu0 %1049
        %v1051 = vcvt.f32.s32 %v1050
        %v1052 = vcvt.f32.s32 %v1046
        %v1053 = vshll.u32 %v1052, 16
        %v1054 = vadd.s32 %v1053, %v1051
        %vm1055 = vcmp.eq.s32.totalorder %v990, %v1054
        %v1056 = vsel %vm1055, inf, %v1034
        %v1057 = vsel %vm983, %v1056, inf
        %1058 = vmin.xlane.f32.xlu0 %v1057
        %v1059 = vpop.xlane.xlu0 %1058
        %vm1060 = vcmp.eq.f32.partialorder %v1056, %v1059
        %v1061 = vsel %vm1060, %v990, 12
        %v1062 = vsel %vm983, %v1061, 2147483647
        %v1063 = vand.u32 %v1062, 65535
        %v1064 = vshra.s32 %v1062, 16
        %v1065 = vcvt.s32.f32 %v1063
        %v1066 = vcvt.s32.f32 %v1064
        %1067 = vmin.xlane.f32.xlu0 %v1066
        %v1068 = vpop.xlane.xlu0 %1067
        %vm1069 = vcmp.eq.f32.partialorder %v1066, %v1068
        %v1070 = vsel %vm1069, %v1065, inf
        %1071 = vmin.xlane.f32.xlu0 %v1070
        %v1072 = vpop.xlane.xlu0 %1071
        %v1073 = vcvt.f32.s32 %v1072
        %v1074 = vcvt.f32.s32 %v1068
        %v1075 = vshll.u32 %v1074, 16
        %v1076 = vadd.s32 %v1075, %v1073
        %vm1077 = vcmp.eq.s32.totalorder %v990, %v1076
        %v1078 = vsel %vm1077, inf, %v1056
        %v1079 = vsel %vm983, %v1078, inf
        %1080 = vmin.xlane.f32.xlu0 %v1079
        %v1081 = vpop.xlane.xlu0 %1080
        %vm1082 = vcmp.le.f32.partialorder %v988, %v1081
        %v1083 = vsel %vm1082, 1, 0
        %v1084 = vcvt.s32.f32 %v1083
        %v1085 = vld [vmem:[%s4] sm:$0xff]
        %v1086 = vld [vmem:[%s489] sm:$0xff]
        %v1087 = vadd.f32 %v1085, %v1086
        %v1088 = vmul.f32 %v1087, %v1084
        %v1089 = vld [vmem:[%s485] sm:$0x7]
        %v1090 = vsub.f32 %v1089, %v916
        %vm1091 = vcmask 64512
        %v1093 = vsel %vm1091, %v1090, 0
        %1095 = vmatprep.subr.mxu0 0.0
        %1096 = vmatpush1.msra.mxu0 0.0
        %1097 = vmatprep.subr.mxu0 0.0
        %1098 = vmatpush1.msra.mxu0 0.0
        %1099 = vmatprep.subr.mxu0 0.0
        %1100 = vmatpush1.msra.mxu0 0.0
        %1101 = vmatprep.subr.mxu0 0.0
        %1102 = vmatpush1.msra.mxu0 0.0
        %1103 = vmatprep.subr.mxu0 0.0
        %1104 = vmatpush1.msra.mxu0 0.0
        %1105 = vmatprep.subr.mxu0 0.0
        %1106 = vmatpush1.msra.mxu0 0.0
        %1107 = vmatprep.subr.mxu0 0.0
        %1108 = vmatpush1.msra.mxu0 0.0
        %1109 = vmatprep.subr.mxu0 0.0
        %1110 = vmatpush1.msra.mxu0 0.0
        %1111 = vmatprep.subr.mxu0 0.0
        %1112 = vmatpush1.msra.mxu0 0.0
        %1113 = vmatprep.subr.mxu0 0.0
        %1114 = vmatpush1.msra.mxu0 0.0
        %1115 = vmatprep.subr.mxu0 0.0
        %1116 = vmatpush1.msra.mxu0 0.0
        %1117 = vmatprep.subr.mxu0 0.0
        %1118 = vmatpush1.msra.mxu0 0.0
        %1119 = vmatprep.subr.mxu0 0.0
        %1120 = vmatpush1.msra.mxu0 0.0
        %1121 = vmatprep.subr.mxu0 0.0
        %1122 = vmatpush1.msra.mxu0 0.0
        %1123 = vmatprep.subr.mxu0 0.0
        %1124 = vmatpush1.msra.mxu0 0.0
        %1125 = vmatprep.subr.mxu0 0.0
        %1126 = vmatpush1.msra.mxu0 %v1088
        %1127 = vmatprep.subr.mxu0 0.0
        %1128 = vmatpush2.msra.mxu0 0.0
        %1129 = vmatprep.subr.mxu0 0.0
        %1130 = vmatpush2.msra.mxu0 0.0
        %1131 = vmatprep.subr.mxu0 0.0
        %1132 = vmatpush2.msra.mxu0 0.0
        %1133 = vmatprep.subr.mxu0 0.0
        %1134 = vmatpush2.msra.mxu0 0.0
        %1135 = vmatprep.subr.mxu0 0.0
        %1136 = vmatpush2.msra.mxu0 0.0
        %1137 = vmatprep.subr.mxu0 0.0
        %1138 = vmatpush2.msra.mxu0 0.0
        %1139 = vmatprep.subr.mxu0 0.0
        %1140 = vmatpush2.msra.mxu0 0.0
        %1141 = vmatprep.subr.mxu0 0.0
        %1142 = vmatpush2.msra.mxu0 0.0
        %1143 = vmatprep.subr.mxu0 0.0
        %1144 = vmatpush2.msra.mxu0 0.0
        %1145 = vmatprep.subr.mxu0 0.0
        %1146 = vmatpush2.msra.mxu0 0.0
        %1147 = vmatprep.subr.mxu0 0.0
        %1148 = vmatpush2.msra.mxu0 0.0
        %1149 = vmatprep.subr.mxu0 0.0
        %1150 = vmatpush2.msra.mxu0 0.0
        %1151 = vmatprep.subr.mxu0 0.0
        %1152 = vmatpush2.msra.mxu0 0.0
        %1153 = vmatprep.subr.mxu0 0.0
        %1154 = vmatpush2.msra.mxu0 0.0
        %1155 = vmatprep.subr.mxu0 0.0
        %1156 = vmatpush2.msra.mxu0 0.0
        %1157 = vmatprep.subr.mxu0 0.0
        %1158 = vmatpush2.msra.mxu0 0.0
        %1159 = vmatprep.mubr.f32.mxu0 0.0
        %1160 = vmatmul.mubr.f32.gmra.mxu0 %v1093
        %v1161 = vpop.f32.mrf.mxu0
        %v1162 = vadd.f32 0.0, %v1161
        %v1163 = vpop.f32.mrf.mxu0
        %1164 = vdwg.mxu0
        %v1165 = vadd.f32 %v915, %v1162
        %v1166 = vld [vmem:[%s6] sm:$0xff]
        %v1167 = vld [vmem:[%s6 + $0x8] sm:$0xf]
        %v1168 = vsel %vm983, %v915, 0
        %vm1170 = vcmask 1043456
        %v1172 = vsel %vm1170, %v1167, 0
        %1174 = vmatprep.subr.mxu0 0.0
        %1175 = vmatpush1.msra.mxu0 0.0
        %1176 = vmatprep.subr.mxu0 0.0
        %1177 = vmatpush1.msra.mxu0 0.0
        %1178 = vmatprep.subr.mxu0 0.0
        %1179 = vmatpush1.msra.mxu0 0.0
        %1180 = vmatprep.subr.mxu0 0.0
        %1181 = vmatpush1.msra.mxu0 0.0
        %1182 = vmatprep.subr.mxu0 0.0
        %1183 = vmatpush1.msra.mxu0 0.0
        %1184 = vmatprep.subr.mxu0 0.0
        %1185 = vmatpush1.msra.mxu0 0.0
        %1186 = vmatprep.subr.mxu0 0.0
        %1187 = vmatpush1.msra.mxu0 0.0
        %1188 = vmatprep.subr.mxu0 0.0
        %1189 = vmatpush1.msra.mxu0 0.0
        %1190 = vmatprep.subr.mxu0 0.0
        %1191 = vmatpush1.msra.mxu0 0.0
        %1192 = vmatprep.subr.mxu0 0.0
        %1193 = vmatpush1.msra.mxu0 0.0
        %1194 = vmatprep.subr.mxu0 0.0
        %1195 = vmatpush1.msra.mxu0 0.0
        %1196 = vmatprep.subr.mxu0 0.0
        %1197 = vmatpush1.msra.mxu0 0.0
        %1198 = vmatprep.subr.mxu0 0.0
        %1199 = vmatpush1.msra.mxu0 0.0
        %1200 = vmatprep.subr.mxu0 0.0
        %1201 = vmatpush1.msra.mxu0 0.0
        %1202 = vmatprep.subr.mxu0 0.0
        %1203 = vmatpush1.msra.mxu0 %v1172
        %1204 = vmatprep.subr.mxu0 0.0
        %1205 = vmatpush1.msra.mxu0 %v1166
        %1206 = vmatprep.subr.mxu0 0.0
        %1207 = vmatpush2.msra.mxu0 0.0
        %1208 = vmatprep.subr.mxu0 0.0
        %1209 = vmatpush2.msra.mxu0 0.0
        %1210 = vmatprep.subr.mxu0 0.0
        %1211 = vmatpush2.msra.mxu0 0.0
        %1212 = vmatprep.subr.mxu0 0.0
        %1213 = vmatpush2.msra.mxu0 0.0
        %1214 = vmatprep.subr.mxu0 0.0
        %1215 = vmatpush2.msra.mxu0 0.0
        %1216 = vmatprep.subr.mxu0 0.0
        %1217 = vmatpush2.msra.mxu0 0.0
        %1218 = vmatprep.subr.mxu0 0.0
        %1219 = vmatpush2.msra.mxu0 0.0
        %1220 = vmatprep.subr.mxu0 0.0
        %1221 = vmatpush2.msra.mxu0 0.0
        %1222 = vmatprep.subr.mxu0 0.0
        %1223 = vmatpush2.msra.mxu0 0.0
        %1224 = vmatprep.subr.mxu0 0.0
        %1225 = vmatpush2.msra.mxu0 0.0
        %1226 = vmatprep.subr.mxu0 0.0
        %1227 = vmatpush2.msra.mxu0 0.0
        %1228 = vmatprep.subr.mxu0 0.0
        %1229 = vmatpush2.msra.mxu0 0.0
        %1230 = vmatprep.subr.mxu0 0.0
        %1231 = vmatpush2.msra.mxu0 0.0
        %1232 = vmatprep.subr.mxu0 0.0
        %1233 = vmatpush2.msra.mxu0 0.0
        %1234 = vmatprep.subr.mxu0 0.0
        %1235 = vmatpush2.msra.mxu0 0.0
        %1236 = vmatprep.subr.mxu0 0.0
        %1237 = vmatpush2.msra.mxu0 0.0
        %1238 = vmatprep.mubr.f32.mxu0 0.0
        %1239 = vmatmul.mubr.f32.gmra.mxu0 %v1168
        %v1240 = vpop.f32.mrf.mxu0
        %v1241 = vadd.f32 0.0, %v1240
        %v1242 = vpop.f32.mrf.mxu0
        %1243 = vdwg.mxu0
        %v1244 = vlaneseq
        %v1245 = vshrl.u32 %v1244, 7
        %v1246 = vsub.s32 0, %v1245
        %v1247 = vrot.slane %v1241, %v1246
        %v1248 = vsub.f32 %v1247, %v553
        %v1249 = vsub.f32 %v1247, %v558
        %v1250 = vsub.f32 %v1247, %v563
        %v1251 = vsub.f32 %v1247, %v568
        %v1252 = vsub.f32 %v1247, %v573
        %v1253 = vsub.f32 %v1247, %v578
        %v1254 = vsub.f32 %v1247, %v583
        %v1255 = vsub.f32 %v1247, %v588
        %v1256 = vlaneseq
        %v1257 = vshrl.u32 %v1256, 7
        %v1258 = vsub.s32 1, %v1257
        %v1259 = vrot.slane %v1241, %v1258
        %v1260 = vsub.f32 %v1259, %v604
        %v1261 = vsub.f32 %v1259, %v608
        %v1262 = vsub.f32 %v1259, %v612
        %v1263 = vsub.f32 %v1259, %v616
        %v1264 = vsub.f32 %v1259, %v620
        %v1265 = vsub.f32 %v1259, %v624
        %v1266 = vsub.f32 %v1259, %v628
        %v1267 = vsub.f32 %v1259, %v632
        %v1268 = vlaneseq
        %v1269 = vshrl.u32 %v1268, 7
        %v1270 = vsub.s32 2, %v1269
        %v1271 = vrot.slane %v1241, %v1270
        %v1272 = vsub.f32 %v1271, %v656
        %v1273 = vsub.f32 %v1271, %v660
        %v1274 = vsub.f32 %v1271, %v664
        %v1275 = vsub.f32 %v1271, %v668
        %v1276 = vsub.f32 %v1271, %v672
        %v1277 = vsub.f32 %v1271, %v676
        %v1278 = vsub.f32 %v1271, %v680
        %v1279 = vsub.f32 %v1271, %v684
        %v1280 = vmul.f32 %v1248, %v1248
        %v1281 = vmul.f32 %v1249, %v1249
        %v1282 = vmul.f32 %v1250, %v1250
        %v1283 = vmul.f32 %v1251, %v1251
        %v1284 = vmul.f32 %v1252, %v1252
        %v1285 = vmul.f32 %v1253, %v1253
        %v1286 = vmul.f32 %v1254, %v1254
        %v1287 = vmul.f32 %v1255, %v1255
        %v1288 = vmul.f32 %v1260, %v1260
        %v1289 = vmul.f32 %v1261, %v1261
        %v1290 = vmul.f32 %v1262, %v1262
        %v1291 = vmul.f32 %v1263, %v1263
        %v1292 = vmul.f32 %v1264, %v1264
        %v1293 = vmul.f32 %v1265, %v1265
        %v1294 = vmul.f32 %v1266, %v1266
        %v1295 = vmul.f32 %v1267, %v1267
        %v1296 = vadd.f32 %v1280, %v1288
        %v1297 = vadd.f32 %v1281, %v1289
        %v1298 = vadd.f32 %v1282, %v1290
        %v1299 = vadd.f32 %v1283, %v1291
        %v1300 = vadd.f32 %v1284, %v1292
        %v1301 = vadd.f32 %v1285, %v1293
        %v1302 = vadd.f32 %v1286, %v1294
        %v1303 = vadd.f32 %v1287, %v1295
        %v1304 = vmul.f32 %v1272, %v1272
        %v1305 = vmul.f32 %v1273, %v1273
        %v1306 = vmul.f32 %v1274, %v1274
        %v1307 = vmul.f32 %v1275, %v1275
        %v1308 = vmul.f32 %v1276, %v1276
        %v1309 = vmul.f32 %v1277, %v1277
        %v1310 = vmul.f32 %v1278, %v1278
        %v1311 = vmul.f32 %v1279, %v1279
        %v1312 = vadd.f32 %v1296, %v1304
        %v1313 = vadd.f32 %v1297, %v1305
        %v1314 = vadd.f32 %v1298, %v1306
        %v1315 = vadd.f32 %v1299, %v1307
        %v1316 = vadd.f32 %v1300, %v1308
        %v1317 = vadd.f32 %v1301, %v1309
        %v1318 = vadd.f32 %v1302, %v1310
        %v1319 = vadd.f32 %v1303, %v1311
        %v1320 = vmax.f32 %v1312, 1e-16
        %v1321 = vmax.f32 %v1313, 1e-16
        %v1322 = vmax.f32 %v1314, 1e-16
        %v1323 = vmax.f32 %v1315, 1e-16
        %v1324 = vmax.f32 %v1316, 1e-16
        %v1325 = vmax.f32 %v1317, 1e-16
        %v1326 = vmax.f32 %v1318, 1e-16
        %v1327 = vmax.f32 %v1319, 1e-16
        %v1328 = vrsqrt.pop %v1320
        %v1329 = vrsqrt.pop %v1321
        %v1330 = vrsqrt.pop %v1322
        %v1331 = vrsqrt.pop %v1323
        %v1332 = vrsqrt.pop %v1324
        %v1333 = vrsqrt.pop %v1325
        %v1334 = vrsqrt.pop %v1326
        %v1335 = vrsqrt.pop %v1327
        %v1336 = vmul.f32 %v1248, %v1328
        %v1337 = vmul.f32 %v1249, %v1329
        %v1338 = vmul.f32 %v1250, %v1330
        %v1339 = vmul.f32 %v1251, %v1331
        %v1340 = vmul.f32 %v1252, %v1332
        %v1341 = vmul.f32 %v1253, %v1333
        %v1342 = vmul.f32 %v1254, %v1334
        %v1343 = vmul.f32 %v1255, %v1335
        %v1344 = vmul.f32 %v1260, %v1328
        %v1345 = vmul.f32 %v1261, %v1329
        %v1346 = vmul.f32 %v1262, %v1330
        %v1347 = vmul.f32 %v1263, %v1331
        %v1348 = vmul.f32 %v1264, %v1332
        %v1349 = vmul.f32 %v1265, %v1333
        %v1350 = vmul.f32 %v1266, %v1334
        %v1351 = vmul.f32 %v1267, %v1335
        %v1352 = vmul.f32 %v1272, %v1328
        %v1353 = vmul.f32 %v1273, %v1329
        %v1354 = vmul.f32 %v1274, %v1330
        %v1355 = vmul.f32 %v1275, %v1331
        %v1356 = vmul.f32 %v1276, %v1332
        %v1357 = vmul.f32 %v1277, %v1333
        %v1358 = vmul.f32 %v1278, %v1334
        %v1359 = vmul.f32 %v1279, %v1335
        %v1360 = vmul.f32 %v1320, %v1328
        %v1361 = vmul.f32 %v1321, %v1329
        %v1362 = vmul.f32 %v1322, %v1330
        %v1363 = vmul.f32 %v1323, %v1331
        %v1364 = vmul.f32 %v1324, %v1332
        %v1365 = vmul.f32 %v1325, %v1333
        %v1366 = vmul.f32 %v1326, %v1334
        %v1367 = vmul.f32 %v1327, %v1335
        %1376 = vrot.lane.b32.xlu0 %v1336, 108
        %v1377 = vpop.permute.xlu0 %1376
        %1378 = vrot.lane.b32.xlu0 %v1337, 108
        %v1379 = vpop.permute.xlu0 %1378
        %1380 = vrot.lane.b32.xlu0 %v1338, 108
        %v1381 = vpop.permute.xlu0 %1380
        %1382 = vrot.lane.b32.xlu0 %v1339, 108
        %v1383 = vpop.permute.xlu0 %1382
        %1384 = vrot.lane.b32.xlu0 %v1340, 108
        %v1385 = vpop.permute.xlu0 %1384
        %1386 = vrot.lane.b32.xlu0 %v1341, 108
        %v1387 = vpop.permute.xlu0 %1386
        %1388 = vrot.lane.b32.xlu0 %v1342, 108
        %v1389 = vpop.permute.xlu0 %1388
        %1390 = vrot.lane.b32.xlu0 %v1343, 108
        %v1391 = vpop.permute.xlu0 %1390
        %1400 = vrot.lane.b32.xlu0 %v1336, 40
        %v1401 = vpop.permute.xlu0 %1400
        %1402 = vrot.lane.b32.xlu0 %v1337, 40
        %v1403 = vpop.permute.xlu0 %1402
        %1404 = vrot.lane.b32.xlu0 %v1338, 40
        %v1405 = vpop.permute.xlu0 %1404
        %1406 = vrot.lane.b32.xlu0 %v1339, 40
        %v1407 = vpop.permute.xlu0 %1406
        %1408 = vrot.lane.b32.xlu0 %v1340, 40
        %v1409 = vpop.permute.xlu0 %1408
        %1410 = vrot.lane.b32.xlu0 %v1341, 40
        %v1411 = vpop.permute.xlu0 %1410
        %1412 = vrot.lane.b32.xlu0 %v1342, 40
        %v1413 = vpop.permute.xlu0 %1412
        %1414 = vrot.lane.b32.xlu0 %v1343, 40
        %v1415 = vpop.permute.xlu0 %1414
        %vm1424 = vcmask 326656
        %v1425 = vsel %vm1424, %v1377, %v1401
        %v1426 = vsel %vm1424, %v1379, %v1403
        %v1427 = vsel %vm1424, %v1381, %v1405
        %v1428 = vsel %vm1424, %v1383, %v1407
        %v1429 = vsel %vm1424, %v1385, %v1409
        %v1430 = vsel %vm1424, %v1387, %v1411
        %v1431 = vsel %vm1424, %v1389, %v1413
        %v1432 = vsel %vm1424, %v1391, %v1415
        %1433 = vrot.lane.b32.xlu0 %v1336, 88
        %v1434 = vpop.permute.xlu0 %1433
        %1435 = vrot.lane.b32.xlu0 %v1337, 88
        %v1436 = vpop.permute.xlu0 %1435
        %1437 = vrot.lane.b32.xlu0 %v1338, 88
        %v1438 = vpop.permute.xlu0 %1437
        %1439 = vrot.lane.b32.xlu0 %v1339, 88
        %v1440 = vpop.permute.xlu0 %1439
        %1441 = vrot.lane.b32.xlu0 %v1340, 88
        %v1442 = vpop.permute.xlu0 %1441
        %1443 = vrot.lane.b32.xlu0 %v1341, 88
        %v1444 = vpop.permute.xlu0 %1443
        %1445 = vrot.lane.b32.xlu0 %v1342, 88
        %v1446 = vpop.permute.xlu0 %1445
        %1447 = vrot.lane.b32.xlu0 %v1343, 88
        %v1448 = vpop.permute.xlu0 %1447
        %1457 = vrot.lane.b32.xlu0 %v1336, 20
        %v1458 = vpop.permute.xlu0 %1457
        %1459 = vrot.lane.b32.xlu0 %v1337, 20
        %v1460 = vpop.permute.xlu0 %1459
        %1461 = vrot.lane.b32.xlu0 %v1338, 20
        %v1462 = vpop.permute.xlu0 %1461
        %1463 = vrot.lane.b32.xlu0 %v1339, 20
        %v1464 = vpop.permute.xlu0 %1463
        %1465 = vrot.lane.b32.xlu0 %v1340, 20
        %v1466 = vpop.permute.xlu0 %1465
        %1467 = vrot.lane.b32.xlu0 %v1341, 20
        %v1468 = vpop.permute.xlu0 %1467
        %1469 = vrot.lane.b32.xlu0 %v1342, 20
        %v1470 = vpop.permute.xlu0 %1469
        %1471 = vrot.lane.b32.xlu0 %v1343, 20
        %v1472 = vpop.permute.xlu0 %1471
        %vm1481 = vcmask 162816
        %v1482 = vsel %vm1481, %v1434, %v1458
        %v1483 = vsel %vm1481, %v1436, %v1460
        %v1484 = vsel %vm1481, %v1438, %v1462
        %v1485 = vsel %vm1481, %v1440, %v1464
        %v1486 = vsel %vm1481, %v1442, %v1466
        %v1487 = vsel %vm1481, %v1444, %v1468
        %v1488 = vsel %vm1481, %v1446, %v1470
        %v1489 = vsel %vm1481, %v1448, %v1472
        %1498 = vrot.lane.b32.xlu0 %v1344, 108
        %v1499 = vpop.permute.xlu0 %1498
        %1500 = vrot.lane.b32.xlu0 %v1345, 108
        %v1501 = vpop.permute.xlu0 %1500
        %1502 = vrot.lane.b32.xlu0 %v1346, 108
        %v1503 = vpop.permute.xlu0 %1502
        %1504 = vrot.lane.b32.xlu0 %v1347, 108
        %v1505 = vpop.permute.xlu0 %1504
        %1506 = vrot.lane.b32.xlu0 %v1348, 108
        %v1507 = vpop.permute.xlu0 %1506
        %1508 = vrot.lane.b32.xlu0 %v1349, 108
        %v1509 = vpop.permute.xlu0 %1508
        %1510 = vrot.lane.b32.xlu0 %v1350, 108
        %v1511 = vpop.permute.xlu0 %1510
        %1512 = vrot.lane.b32.xlu0 %v1351, 108
        %v1513 = vpop.permute.xlu0 %1512
        %1522 = vrot.lane.b32.xlu0 %v1344, 40
        %v1523 = vpop.permute.xlu0 %1522
        %1524 = vrot.lane.b32.xlu0 %v1345, 40
        %v1525 = vpop.permute.xlu0 %1524
        %1526 = vrot.lane.b32.xlu0 %v1346, 40
        %v1527 = vpop.permute.xlu0 %1526
        %1528 = vrot.lane.b32.xlu0 %v1347, 40
        %v1529 = vpop.permute.xlu0 %1528
        %1530 = vrot.lane.b32.xlu0 %v1348, 40
        %v1531 = vpop.permute.xlu0 %1530
        %1532 = vrot.lane.b32.xlu0 %v1349, 40
        %v1533 = vpop.permute.xlu0 %1532
        %1534 = vrot.lane.b32.xlu0 %v1350, 40
        %v1535 = vpop.permute.xlu0 %1534
        %1536 = vrot.lane.b32.xlu0 %v1351, 40
        %v1537 = vpop.permute.xlu0 %1536
        %v1546 = vsel %vm1424, %v1499, %v1523
        %v1547 = vsel %vm1424, %v1501, %v1525
        %v1548 = vsel %vm1424, %v1503, %v1527
        %v1549 = vsel %vm1424, %v1505, %v1529
        %v1550 = vsel %vm1424, %v1507, %v1531
        %v1551 = vsel %vm1424, %v1509, %v1533
        %v1552 = vsel %vm1424, %v1511, %v1535
        %v1553 = vsel %vm1424, %v1513, %v1537
        %1554 = vrot.lane.b32.xlu0 %v1344, 88
        %v1555 = vpop.permute.xlu0 %1554
        %1556 = vrot.lane.b32.xlu0 %v1345, 88
        %v1557 = vpop.permute.xlu0 %1556
        %1558 = vrot.lane.b32.xlu0 %v1346, 88
        %v1559 = vpop.permute.xlu0 %1558
        %1560 = vrot.lane.b32.xlu0 %v1347, 88
        %v1561 = vpop.permute.xlu0 %1560
        %1562 = vrot.lane.b32.xlu0 %v1348, 88
        %v1563 = vpop.permute.xlu0 %1562
        %1564 = vrot.lane.b32.xlu0 %v1349, 88
        %v1565 = vpop.permute.xlu0 %1564
        %1566 = vrot.lane.b32.xlu0 %v1350, 88
        %v1567 = vpop.permute.xlu0 %1566
        %1568 = vrot.lane.b32.xlu0 %v1351, 88
        %v1569 = vpop.permute.xlu0 %1568
        %1578 = vrot.lane.b32.xlu0 %v1344, 20
        %v1579 = vpop.permute.xlu0 %1578
        %1580 = vrot.lane.b32.xlu0 %v1345, 20
        %v1581 = vpop.permute.xlu0 %1580
        %1582 = vrot.lane.b32.xlu0 %v1346, 20
        %v1583 = vpop.permute.xlu0 %1582
        %1584 = vrot.lane.b32.xlu0 %v1347, 20
        %v1585 = vpop.permute.xlu0 %1584
        %1586 = vrot.lane.b32.xlu0 %v1348, 20
        %v1587 = vpop.permute.xlu0 %1586
        %1588 = vrot.lane.b32.xlu0 %v1349, 20
        %v1589 = vpop.permute.xlu0 %1588
        %1590 = vrot.lane.b32.xlu0 %v1350, 20
        %v1591 = vpop.permute.xlu0 %1590
        %1592 = vrot.lane.b32.xlu0 %v1351, 20
        %v1593 = vpop.permute.xlu0 %1592
        %v1602 = vsel %vm1481, %v1555, %v1579
        %v1603 = vsel %vm1481, %v1557, %v1581
        %v1604 = vsel %vm1481, %v1559, %v1583
        %v1605 = vsel %vm1481, %v1561, %v1585
        %v1606 = vsel %vm1481, %v1563, %v1587
        %v1607 = vsel %vm1481, %v1565, %v1589
        %v1608 = vsel %vm1481, %v1567, %v1591
        %v1609 = vsel %vm1481, %v1569, %v1593
        %1618 = vrot.lane.b32.xlu0 %v1352, 108
        %v1619 = vpop.permute.xlu0 %1618
        %1620 = vrot.lane.b32.xlu0 %v1353, 108
        %v1621 = vpop.permute.xlu0 %1620
        %1622 = vrot.lane.b32.xlu0 %v1354, 108
        %v1623 = vpop.permute.xlu0 %1622
        %1624 = vrot.lane.b32.xlu0 %v1355, 108
        %v1625 = vpop.permute.xlu0 %1624
        %1626 = vrot.lane.b32.xlu0 %v1356, 108
        %v1627 = vpop.permute.xlu0 %1626
        %1628 = vrot.lane.b32.xlu0 %v1357, 108
        %v1629 = vpop.permute.xlu0 %1628
        %1630 = vrot.lane.b32.xlu0 %v1358, 108
        %v1631 = vpop.permute.xlu0 %1630
        %1632 = vrot.lane.b32.xlu0 %v1359, 108
        %v1633 = vpop.permute.xlu0 %1632
        %1642 = vrot.lane.b32.xlu0 %v1352, 40
        %v1643 = vpop.permute.xlu0 %1642
        %1644 = vrot.lane.b32.xlu0 %v1353, 40
        %v1645 = vpop.permute.xlu0 %1644
        %1646 = vrot.lane.b32.xlu0 %v1354, 40
        %v1647 = vpop.permute.xlu0 %1646
        %1648 = vrot.lane.b32.xlu0 %v1355, 40
        %v1649 = vpop.permute.xlu0 %1648
        %1650 = vrot.lane.b32.xlu0 %v1356, 40
        %v1651 = vpop.permute.xlu0 %1650
        %1652 = vrot.lane.b32.xlu0 %v1357, 40
        %v1653 = vpop.permute.xlu0 %1652
        %1654 = vrot.lane.b32.xlu0 %v1358, 40
        %v1655 = vpop.permute.xlu0 %1654
        %1656 = vrot.lane.b32.xlu0 %v1359, 40
        %v1657 = vpop.permute.xlu0 %1656
        %v1666 = vsel %vm1424, %v1619, %v1643
        %v1667 = vsel %vm1424, %v1621, %v1645
        %v1668 = vsel %vm1424, %v1623, %v1647
        %v1669 = vsel %vm1424, %v1625, %v1649
        %v1670 = vsel %vm1424, %v1627, %v1651
        %v1671 = vsel %vm1424, %v1629, %v1653
        %v1672 = vsel %vm1424, %v1631, %v1655
        %v1673 = vsel %vm1424, %v1633, %v1657
        %1674 = vrot.lane.b32.xlu0 %v1352, 88
        %v1675 = vpop.permute.xlu0 %1674
        %1676 = vrot.lane.b32.xlu0 %v1353, 88
        %v1677 = vpop.permute.xlu0 %1676
        %1678 = vrot.lane.b32.xlu0 %v1354, 88
        %v1679 = vpop.permute.xlu0 %1678
        %1680 = vrot.lane.b32.xlu0 %v1355, 88
        %v1681 = vpop.permute.xlu0 %1680
        %1682 = vrot.lane.b32.xlu0 %v1356, 88
        %v1683 = vpop.permute.xlu0 %1682
        %1684 = vrot.lane.b32.xlu0 %v1357, 88
        %v1685 = vpop.permute.xlu0 %1684
        %1686 = vrot.lane.b32.xlu0 %v1358, 88
        %v1687 = vpop.permute.xlu0 %1686
        %1688 = vrot.lane.b32.xlu0 %v1359, 88
        %v1689 = vpop.permute.xlu0 %1688
        %1698 = vrot.lane.b32.xlu0 %v1352, 20
        %v1699 = vpop.permute.xlu0 %1698
        %1700 = vrot.lane.b32.xlu0 %v1353, 20
        %v1701 = vpop.permute.xlu0 %1700
        %1702 = vrot.lane.b32.xlu0 %v1354, 20
        %v1703 = vpop.permute.xlu0 %1702
        %1704 = vrot.lane.b32.xlu0 %v1355, 20
        %v1705 = vpop.permute.xlu0 %1704
        %1706 = vrot.lane.b32.xlu0 %v1356, 20
        %v1707 = vpop.permute.xlu0 %1706
        %1708 = vrot.lane.b32.xlu0 %v1357, 20
        %v1709 = vpop.permute.xlu0 %1708
        %1710 = vrot.lane.b32.xlu0 %v1358, 20
        %v1711 = vpop.permute.xlu0 %1710
        %1712 = vrot.lane.b32.xlu0 %v1359, 20
        %v1713 = vpop.permute.xlu0 %1712
        %v1722 = vsel %vm1481, %v1675, %v1699
        %v1723 = vsel %vm1481, %v1677, %v1701
        %v1724 = vsel %vm1481, %v1679, %v1703
        %v1725 = vsel %vm1481, %v1681, %v1705
        %v1726 = vsel %vm1481, %v1683, %v1707
        %v1727 = vsel %vm1481, %v1685, %v1709
        %v1728 = vsel %vm1481, %v1687, %v1711
        %v1729 = vsel %vm1481, %v1689, %v1713
        %v1730 = vsub.f32 %v1425, %v1482
        %v1731 = vsub.f32 %v1426, %v1483
        %v1732 = vsub.f32 %v1427, %v1484
        %v1733 = vsub.f32 %v1428, %v1485
        %v1734 = vsub.f32 %v1429, %v1486
        %v1735 = vsub.f32 %v1430, %v1487
        %v1736 = vsub.f32 %v1431, %v1488
        %v1737 = vsub.f32 %v1432, %v1489
        %v1738 = vsub.f32 %v1546, %v1602
        %v1739 = vsub.f32 %v1547, %v1603
        %v1740 = vsub.f32 %v1548, %v1604
        %v1741 = vsub.f32 %v1549, %v1605
        %v1742 = vsub.f32 %v1550, %v1606
        %v1743 = vsub.f32 %v1551, %v1607
        %v1744 = vsub.f32 %v1552, %v1608
        %v1745 = vsub.f32 %v1553, %v1609
        %v1746 = vsub.f32 %v1666, %v1722
        %v1747 = vsub.f32 %v1667, %v1723
        %v1748 = vsub.f32 %v1668, %v1724
        %v1749 = vsub.f32 %v1669, %v1725
        %v1750 = vsub.f32 %v1670, %v1726
        %v1751 = vsub.f32 %v1671, %v1727
        %v1752 = vsub.f32 %v1672, %v1728
        %v1753 = vsub.f32 %v1673, %v1729
        %v1754 = vmul.f32 %v1730, %v1730
        %v1755 = vmul.f32 %v1731, %v1731
        %v1756 = vmul.f32 %v1732, %v1732
        %v1757 = vmul.f32 %v1733, %v1733
        %v1758 = vmul.f32 %v1734, %v1734
        %v1759 = vmul.f32 %v1735, %v1735
        %v1760 = vmul.f32 %v1736, %v1736
        %v1761 = vmul.f32 %v1737, %v1737
        %v1762 = vmul.f32 %v1738, %v1738
        %v1763 = vmul.f32 %v1739, %v1739
        %v1764 = vmul.f32 %v1740, %v1740
        %v1765 = vmul.f32 %v1741, %v1741
        %v1766 = vmul.f32 %v1742, %v1742
        %v1767 = vmul.f32 %v1743, %v1743
        %v1768 = vmul.f32 %v1744, %v1744
        %v1769 = vmul.f32 %v1745, %v1745
        %v1770 = vadd.f32 %v1754, %v1762
        %v1771 = vadd.f32 %v1755, %v1763
        %v1772 = vadd.f32 %v1756, %v1764
        %v1773 = vadd.f32 %v1757, %v1765
        %v1774 = vadd.f32 %v1758, %v1766
        %v1775 = vadd.f32 %v1759, %v1767
        %v1776 = vadd.f32 %v1760, %v1768
        %v1777 = vadd.f32 %v1761, %v1769
        %v1778 = vmul.f32 %v1746, %v1746
        %v1779 = vmul.f32 %v1747, %v1747
        %v1780 = vmul.f32 %v1748, %v1748
        %v1781 = vmul.f32 %v1749, %v1749
        %v1782 = vmul.f32 %v1750, %v1750
        %v1783 = vmul.f32 %v1751, %v1751
        %v1784 = vmul.f32 %v1752, %v1752
        %v1785 = vmul.f32 %v1753, %v1753
        %v1786 = vadd.f32 %v1770, %v1778
        %v1787 = vadd.f32 %v1771, %v1779
        %v1788 = vadd.f32 %v1772, %v1780
        %v1789 = vadd.f32 %v1773, %v1781
        %v1790 = vadd.f32 %v1774, %v1782
        %v1791 = vadd.f32 %v1775, %v1783
        %v1792 = vadd.f32 %v1776, %v1784
        %v1793 = vadd.f32 %v1777, %v1785
        %v1794 = vrsqrt.pop %v1786
        %v1795 = vmul.f32 %v1786, %v1794
        %vm1796 = vcmp.eq.f32.partialorder %v1786, inf
        %v1797 = vsel %vm1796, %v1786, %v1795
        %vm1798 = vcmp.eq.f32.partialorder %v1786, 0.0
        %v1799 = vand.u32 %v1786, 2147483648
        %v1800 = vsel %vm1798, %v1799, %v1797
        %v1801 = vrsqrt.pop %v1787
        %v1802 = vmul.f32 %v1787, %v1801
        %vm1803 = vcmp.eq.f32.partialorder %v1787, inf
        %v1804 = vsel %vm1803, %v1787, %v1802
        %vm1805 = vcmp.eq.f32.partialorder %v1787, 0.0
        %v1806 = vand.u32 %v1787, 2147483648
        %v1807 = vsel %vm1805, %v1806, %v1804
        %v1808 = vrsqrt.pop %v1788
        %v1809 = vmul.f32 %v1788, %v1808
        %vm1810 = vcmp.eq.f32.partialorder %v1788, inf
        %v1811 = vsel %vm1810, %v1788, %v1809
        %vm1812 = vcmp.eq.f32.partialorder %v1788, 0.0
        %v1813 = vand.u32 %v1788, 2147483648
        %v1814 = vsel %vm1812, %v1813, %v1811
        %v1815 = vrsqrt.pop %v1789
        %v1816 = vmul.f32 %v1789, %v1815
        %vm1817 = vcmp.eq.f32.partialorder %v1789, inf
        %v1818 = vsel %vm1817, %v1789, %v1816
        %vm1819 = vcmp.eq.f32.partialorder %v1789, 0.0
        %v1820 = vand.u32 %v1789, 2147483648
        %v1821 = vsel %vm1819, %v1820, %v1818
        %v1822 = vrsqrt.pop %v1790
        %v1823 = vmul.f32 %v1790, %v1822
        %vm1824 = vcmp.eq.f32.partialorder %v1790, inf
        %v1825 = vsel %vm1824, %v1790, %v1823
        %vm1826 = vcmp.eq.f32.partialorder %v1790, 0.0
        %v1827 = vand.u32 %v1790, 2147483648
        %v1828 = vsel %vm1826, %v1827, %v1825
        %v1829 = vrsqrt.pop %v1791
        %v1830 = vmul.f32 %v1791, %v1829
        %vm1831 = vcmp.eq.f32.partialorder %v1791, inf
        %v1832 = vsel %vm1831, %v1791, %v1830
        %vm1833 = vcmp.eq.f32.partialorder %v1791, 0.0
        %v1834 = vand.u32 %v1791, 2147483648
        %v1835 = vsel %vm1833, %v1834, %v1832
        %v1836 = vrsqrt.pop %v1792
        %v1837 = vmul.f32 %v1792, %v1836
        %vm1838 = vcmp.eq.f32.partialorder %v1792, inf
        %v1839 = vsel %vm1838, %v1792, %v1837
        %vm1840 = vcmp.eq.f32.partialorder %v1792, 0.0
        %v1841 = vand.u32 %v1792, 2147483648
        %v1842 = vsel %vm1840, %v1841, %v1839
        %v1843 = vrsqrt.pop %v1793
        %v1844 = vmul.f32 %v1793, %v1843
        %vm1845 = vcmp.eq.f32.partialorder %v1793, inf
        %v1846 = vsel %vm1845, %v1793, %v1844
        %vm1847 = vcmp.eq.f32.partialorder %v1793, 0.0
        %v1848 = vand.u32 %v1793, 2147483648
        %v1849 = vsel %vm1847, %v1848, %v1846
        %v1850 = vmul.f32 %v1800, 0.5
        %v1851 = vmul.f32 %v1807, 0.5
        %v1852 = vmul.f32 %v1814, 0.5
        %v1853 = vmul.f32 %v1821, 0.5
        %v1854 = vmul.f32 %v1828, 0.5
        %v1855 = vmul.f32 %v1835, 0.5
        %v1856 = vmul.f32 %v1842, 0.5
        %v1857 = vmul.f32 %v1849, 0.5
        %v1858 = vmax.f32 %v1850, 0.0
        %v1859 = vmax.f32 %v1851, 0.0
        %v1860 = vmax.f32 %v1852, 0.0
        %v1861 = vmax.f32 %v1853, 0.0
        %v1862 = vmax.f32 %v1854, 0.0
        %v1863 = vmax.f32 %v1855, 0.0
        %v1864 = vmax.f32 %v1856, 0.0
        %v1865 = vmax.f32 %v1857, 0.0
        %v1866 = vmin.f32 %v1858, 1.0
        %v1867 = vmin.f32 %v1859, 1.0
        %v1868 = vmin.f32 %v1860, 1.0
        %v1869 = vmin.f32 %v1861, 1.0
        %v1870 = vmin.f32 %v1862, 1.0
        %v1871 = vmin.f32 %v1863, 1.0
        %v1872 = vmin.f32 %v1864, 1.0
        %v1873 = vmin.f32 %v1865, 1.0
        %vm1874 = vcmp.gt.f32.partialorder %v1866, 0.5
        %vm1875 = vcmp.gt.f32.partialorder %v1867, 0.5
        %vm1876 = vcmp.gt.f32.partialorder %v1868, 0.5
        %vm1877 = vcmp.gt.f32.partialorder %v1869, 0.5
        %vm1878 = vcmp.gt.f32.partialorder %v1870, 0.5
        %vm1879 = vcmp.gt.f32.partialorder %v1871, 0.5
        %vm1880 = vcmp.gt.f32.partialorder %v1872, 0.5
        %vm1881 = vcmp.gt.f32.partialorder %v1873, 0.5
        %v1882 = vsub.f32 1.0, %v1866
        %v1883 = vsub.f32 1.0, %v1867
        %v1884 = vsub.f32 1.0, %v1868
        %v1885 = vsub.f32 1.0, %v1869
        %v1886 = vsub.f32 1.0, %v1870
        %v1887 = vsub.f32 1.0, %v1871
        %v1888 = vsub.f32 1.0, %v1872
        %v1889 = vsub.f32 1.0, %v1873
        %v1890 = vmul.f32 %v1882, 0.5
        %v1891 = vmul.f32 %v1883, 0.5
        %v1892 = vmul.f32 %v1884, 0.5
        %v1893 = vmul.f32 %v1885, 0.5
        %v1894 = vmul.f32 %v1886, 0.5
        %v1895 = vmul.f32 %v1887, 0.5
        %v1896 = vmul.f32 %v1888, 0.5
        %v1897 = vmul.f32 %v1889, 0.5
        %v1898 = vmul.f32 %v1866, %v1866
        %v1899 = vmul.f32 %v1867, %v1867
        %v1900 = vmul.f32 %v1868, %v1868
        %v1901 = vmul.f32 %v1869, %v1869
        %v1902 = vmul.f32 %v1870, %v1870
        %v1903 = vmul.f32 %v1871, %v1871
        %v1904 = vmul.f32 %v1872, %v1872
        %v1905 = vmul.f32 %v1873, %v1873
        %v1906 = vsel %vm1874, %v1890, %v1898
        %v1907 = vsel %vm1875, %v1891, %v1899
        %v1908 = vsel %vm1876, %v1892, %v1900
        %v1909 = vsel %vm1877, %v1893, %v1901
        %v1910 = vsel %vm1878, %v1894, %v1902
        %v1911 = vsel %vm1879, %v1895, %v1903
        %v1912 = vsel %vm1880, %v1896, %v1904
        %v1913 = vsel %vm1881, %v1897, %v1905
        %v1914 = vmax.f32 %v1890, 0.0
        %v1915 = vmax.f32 %v1891, 0.0
        %v1916 = vmax.f32 %v1892, 0.0
        %v1917 = vmax.f32 %v1893, 0.0
        %v1918 = vmax.f32 %v1894, 0.0
        %v1919 = vmax.f32 %v1895, 0.0
        %v1920 = vmax.f32 %v1896, 0.0
        %v1921 = vmax.f32 %v1897, 0.0
        %v1922 = vrsqrt.pop %v1914
        %v1923 = vmul.f32 %v1914, %v1922
        %vm1924 = vcmp.eq.f32.partialorder %v1914, inf
        %v1925 = vsel %vm1924, %v1914, %v1923
        %vm1926 = vcmp.eq.f32.partialorder %v1914, 0.0
        %v1927 = vand.u32 %v1914, 2147483648
        %v1928 = vsel %vm1926, %v1927, %v1925
        %v1929 = vrsqrt.pop %v1915
        %v1930 = vmul.f32 %v1915, %v1929
        %vm1931 = vcmp.eq.f32.partialorder %v1915, inf
        %v1932 = vsel %vm1931, %v1915, %v1930
        %vm1933 = vcmp.eq.f32.partialorder %v1915, 0.0
        %v1934 = vand.u32 %v1915, 2147483648
        %v1935 = vsel %vm1933, %v1934, %v1932
        %v1936 = vrsqrt.pop %v1916
        %v1937 = vmul.f32 %v1916, %v1936
        %vm1938 = vcmp.eq.f32.partialorder %v1916, inf
        %v1939 = vsel %vm1938, %v1916, %v1937
        %vm1940 = vcmp.eq.f32.partialorder %v1916, 0.0
        %v1941 = vand.u32 %v1916, 2147483648
        %v1942 = vsel %vm1940, %v1941, %v1939
        %v1943 = vrsqrt.pop %v1917
        %v1944 = vmul.f32 %v1917, %v1943
        %vm1945 = vcmp.eq.f32.partialorder %v1917, inf
        %v1946 = vsel %vm1945, %v1917, %v1944
        %vm1947 = vcmp.eq.f32.partialorder %v1917, 0.0
        %v1948 = vand.u32 %v1917, 2147483648
        %v1949 = vsel %vm1947, %v1948, %v1946
        %v1950 = vrsqrt.pop %v1918
        %v1951 = vmul.f32 %v1918, %v1950
        %vm1952 = vcmp.eq.f32.partialorder %v1918, inf
        %v1953 = vsel %vm1952, %v1918, %v1951
        %vm1954 = vcmp.eq.f32.partialorder %v1918, 0.0
        %v1955 = vand.u32 %v1918, 2147483648
        %v1956 = vsel %vm1954, %v1955, %v1953
        %v1957 = vrsqrt.pop %v1919
        %v1958 = vmul.f32 %v1919, %v1957
        %vm1959 = vcmp.eq.f32.partialorder %v1919, inf
        %v1960 = vsel %vm1959, %v1919, %v1958
        %vm1961 = vcmp.eq.f32.partialorder %v1919, 0.0
        %v1962 = vand.u32 %v1919, 2147483648
        %v1963 = vsel %vm1961, %v1962, %v1960
        %v1964 = vrsqrt.pop %v1920
        %v1965 = vmul.f32 %v1920, %v1964
        %vm1966 = vcmp.eq.f32.partialorder %v1920, inf
        %v1967 = vsel %vm1966, %v1920, %v1965
        %vm1968 = vcmp.eq.f32.partialorder %v1920, 0.0
        %v1969 = vand.u32 %v1920, 2147483648
        %v1970 = vsel %vm1968, %v1969, %v1967
        %v1971 = vrsqrt.pop %v1921
        %v1972 = vmul.f32 %v1921, %v1971
        %vm1973 = vcmp.eq.f32.partialorder %v1921, inf
        %v1974 = vsel %vm1973, %v1921, %v1972
        %vm1975 = vcmp.eq.f32.partialorder %v1921, 0.0
        %v1976 = vand.u32 %v1921, 2147483648
        %v1977 = vsel %vm1975, %v1976, %v1974
        %v1978 = vsel %vm1874, %v1928, %v1866
        %v1979 = vsel %vm1875, %v1935, %v1867
        %v1980 = vsel %vm1876, %v1942, %v1868
        %v1981 = vsel %vm1877, %v1949, %v1869
        %v1982 = vsel %vm1878, %v1956, %v1870
        %v1983 = vsel %vm1879, %v1963, %v1871
        %v1984 = vsel %vm1880, %v1970, %v1872
        %v1985 = vsel %vm1881, %v1977, %v1873
        %v1986 = vmul.f32 %v1906, 0.0421632
        %v1987 = vmul.f32 %v1907, 0.0421632
        %v1988 = vmul.f32 %v1908, 0.0421632
        %v1989 = vmul.f32 %v1909, 0.0421632
        %v1990 = vmul.f32 %v1910, 0.0421632
        %v1991 = vmul.f32 %v1911, 0.0421632
        %v1992 = vmul.f32 %v1912, 0.0421632
        %v1993 = vmul.f32 %v1913, 0.0421632
        %v1994 = vadd.f32 %v1986, 0.024181312
        %v1995 = vadd.f32 %v1987, 0.024181312
        %v1996 = vadd.f32 %v1988, 0.024181312
        %v1997 = vadd.f32 %v1989, 0.024181312
        %v1998 = vadd.f32 %v1990, 0.024181312
        %v1999 = vadd.f32 %v1991, 0.024181312
        %v2000 = vadd.f32 %v1992, 0.024181312
        %v2001 = vadd.f32 %v1993, 0.024181312
        %v2002 = vmul.f32 %v1994, %v1906
        %v2003 = vmul.f32 %v1995, %v1907
        %v2004 = vmul.f32 %v1996, %v1908
        %v2005 = vmul.f32 %v1997, %v1909
        %v2006 = vmul.f32 %v1998, %v1910
        %v2007 = vmul.f32 %v1999, %v1911
        %v2008 = vmul.f32 %v2000, %v1912
        %v2009 = vmul.f32 %v2001, %v1913
        %v2010 = vadd.f32 %v2002, 0.045470025
        %v2011 = vadd.f32 %v2003, 0.045470025
        %v2012 = vadd.f32 %v2004, 0.045470025
        %v2013 = vadd.f32 %v2005, 0.045470025
        %v2014 = vadd.f32 %v2006, 0.045470025
        %v2015 = vadd.f32 %v2007, 0.045470025
        %v2016 = vadd.f32 %v2008, 0.045470025
        %v2017 = vadd.f32 %v2009, 0.045470025
        %v2018 = vmul.f32 %v2010, %v1906
        %v2019 = vmul.f32 %v2011, %v1907
        %v2020 = vmul.f32 %v2012, %v1908
        %v2021 = vmul.f32 %v2013, %v1909
        %v2022 = vmul.f32 %v2014, %v1910
        %v2023 = vmul.f32 %v2015, %v1911
        %v2024 = vmul.f32 %v2016, %v1912
        %v2025 = vmul.f32 %v2017, %v1913
        %v2026 = vadd.f32 %v2018, 0.074953005
        %v2027 = vadd.f32 %v2019, 0.074953005
        %v2028 = vadd.f32 %v2020, 0.074953005
        %v2029 = vadd.f32 %v2021, 0.074953005
        %v2030 = vadd.f32 %v2022, 0.074953005
        %v2031 = vadd.f32 %v2023, 0.074953005
        %v2032 = vadd.f32 %v2024, 0.074953005
        %v2033 = vadd.f32 %v2025, 0.074953005
        %v2034 = vmul.f32 %v2026, %v1906
        %v2035 = vmul.f32 %v2027, %v1907
        %v2036 = vmul.f32 %v2028, %v1908
        %v2037 = vmul.f32 %v2029, %v1909
        %v2038 = vmul.f32 %v2030, %v1910
        %v2039 = vmul.f32 %v2031, %v1911
        %v2040 = vmul.f32 %v2032, %v1912
        %v2041 = vmul.f32 %v2033, %v1913
        %v2042 = vadd.f32 %v2034, 0.16666752
        %v2043 = vadd.f32 %v2035, 0.16666752
        %v2044 = vadd.f32 %v2036, 0.16666752
        %v2045 = vadd.f32 %v2037, 0.16666752
        %v2046 = vadd.f32 %v2038, 0.16666752
        %v2047 = vadd.f32 %v2039, 0.16666752
        %v2048 = vadd.f32 %v2040, 0.16666752
        %v2049 = vadd.f32 %v2041, 0.16666752
        %v2050 = vmul.f32 %v2042, %v1906
        %v2051 = vmul.f32 %v2043, %v1907
        %v2052 = vmul.f32 %v2044, %v1908
        %v2053 = vmul.f32 %v2045, %v1909
        %v2054 = vmul.f32 %v2046, %v1910
        %v2055 = vmul.f32 %v2047, %v1911
        %v2056 = vmul.f32 %v2048, %v1912
        %v2057 = vmul.f32 %v2049, %v1913
        %v2058 = vmul.f32 %v2050, %v1978
        %v2059 = vmul.f32 %v2051, %v1979
        %v2060 = vmul.f32 %v2052, %v1980
        %v2061 = vmul.f32 %v2053, %v1981
        %v2062 = vmul.f32 %v2054, %v1982
        %v2063 = vmul.f32 %v2055, %v1983
        %v2064 = vmul.f32 %v2056, %v1984
        %v2065 = vmul.f32 %v2057, %v1985
        %v2066 = vadd.f32 %v2058, %v1978
        %v2067 = vadd.f32 %v2059, %v1979
        %v2068 = vadd.f32 %v2060, %v1980
        %v2069 = vadd.f32 %v2061, %v1981
        %v2070 = vadd.f32 %v2062, %v1982
        %v2071 = vadd.f32 %v2063, %v1983
        %v2072 = vadd.f32 %v2064, %v1984
        %v2073 = vadd.f32 %v2065, %v1985
        %v2074 = vmul.f32 %v2066, 2.0
        %v2075 = vmul.f32 %v2067, 2.0
        %v2076 = vmul.f32 %v2068, 2.0
        %v2077 = vmul.f32 %v2069, 2.0
        %v2078 = vmul.f32 %v2070, 2.0
        %v2079 = vmul.f32 %v2071, 2.0
        %v2080 = vmul.f32 %v2072, 2.0
        %v2081 = vmul.f32 %v2073, 2.0
        %v2082 = vsub.f32 1.5707964, %v2074
        %v2083 = vsub.f32 1.5707964, %v2075
        %v2084 = vsub.f32 1.5707964, %v2076
        %v2085 = vsub.f32 1.5707964, %v2077
        %v2086 = vsub.f32 1.5707964, %v2078
        %v2087 = vsub.f32 1.5707964, %v2079
        %v2088 = vsub.f32 1.5707964, %v2080
        %v2089 = vsub.f32 1.5707964, %v2081
        %v2090 = vsel %vm1874, %v2082, %v2066
        %v2091 = vsel %vm1875, %v2083, %v2067
        %v2092 = vsel %vm1876, %v2084, %v2068
        %v2093 = vsel %vm1877, %v2085, %v2069
        %v2094 = vsel %vm1878, %v2086, %v2070
        %v2095 = vsel %vm1879, %v2087, %v2071
        %v2096 = vsel %vm1880, %v2088, %v2072
        %v2097 = vsel %vm1881, %v2089, %v2073
        %v2098 = vmul.f32 %v2090, 2.0
        %v2099 = vmul.f32 %v2091, 2.0
        %v2100 = vmul.f32 %v2092, 2.0
        %v2101 = vmul.f32 %v2093, 2.0
        %v2102 = vmul.f32 %v2094, 2.0
        %v2103 = vmul.f32 %v2095, 2.0
        %v2104 = vmul.f32 %v2096, 2.0
        %v2105 = vmul.f32 %v2097, 2.0
        %v2106 = vmul.f32 %v1786, 0.5
        %v2107 = vmul.f32 %v1787, 0.5
        %v2108 = vmul.f32 %v1788, 0.5
        %v2109 = vmul.f32 %v1789, 0.5
        %v2110 = vmul.f32 %v1790, 0.5
        %v2111 = vmul.f32 %v1791, 0.5
        %v2112 = vmul.f32 %v1792, 0.5
        %v2113 = vmul.f32 %v1793, 0.5
        %v2114 = vsub.f32 1.0, %v2106
        %v2115 = vsub.f32 1.0, %v2107
        %v2116 = vsub.f32 1.0, %v2108
        %v2117 = vsub.f32 1.0, %v2109
        %v2118 = vsub.f32 1.0, %v2110
        %v2119 = vsub.f32 1.0, %v2111
        %v2120 = vsub.f32 1.0, %v2112
        %v2121 = vsub.f32 1.0, %v2113
        %v2122 = vmul.f32 %v1786, 0.25
        %v2123 = vmul.f32 %v1787, 0.25
        %v2124 = vmul.f32 %v1788, 0.25
        %v2125 = vmul.f32 %v1789, 0.25
        %v2126 = vmul.f32 %v1790, 0.25
        %v2127 = vmul.f32 %v1791, 0.25
        %v2128 = vmul.f32 %v1792, 0.25
        %v2129 = vmul.f32 %v1793, 0.25
        %v2130 = vsub.f32 1.0, %v2122
        %v2131 = vsub.f32 1.0, %v2123
        %v2132 = vsub.f32 1.0, %v2124
        %v2133 = vsub.f32 1.0, %v2125
        %v2134 = vsub.f32 1.0, %v2126
        %v2135 = vsub.f32 1.0, %v2127
        %v2136 = vsub.f32 1.0, %v2128
        %v2137 = vsub.f32 1.0, %v2129
        %v2138 = vmax.f32 %v2130, 0.0
        %v2139 = vmax.f32 %v2131, 0.0
        %v2140 = vmax.f32 %v2132, 0.0
        %v2141 = vmax.f32 %v2133, 0.0
        %v2142 = vmax.f32 %v2134, 0.0
        %v2143 = vmax.f32 %v2135, 0.0
        %v2144 = vmax.f32 %v2136, 0.0
        %v2145 = vmax.f32 %v2137, 0.0
        %v2146 = vmin.f32 %v2138, 1.0
        %v2147 = vmin.f32 %v2139, 1.0
        %v2148 = vmin.f32 %v2140, 1.0
        %v2149 = vmin.f32 %v2141, 1.0
        %v2150 = vmin.f32 %v2142, 1.0
        %v2151 = vmin.f32 %v2143, 1.0
        %v2152 = vmin.f32 %v2144, 1.0
        %v2153 = vmin.f32 %v2145, 1.0
        %v2154 = vrsqrt.pop %v2146
        %v2155 = vmul.f32 %v2146, %v2154
        %vm2156 = vcmp.eq.f32.partialorder %v2146, inf
        %v2157 = vsel %vm2156, %v2146, %v2155
        %vm2158 = vcmp.eq.f32.partialorder %v2146, 0.0
        %v2159 = vand.u32 %v2146, 2147483648
        %v2160 = vsel %vm2158, %v2159, %v2157
        %v2161 = vrsqrt.pop %v2147
        %v2162 = vmul.f32 %v2147, %v2161
        %vm2163 = vcmp.eq.f32.partialorder %v2147, inf
        %v2164 = vsel %vm2163, %v2147, %v2162
        %vm2165 = vcmp.eq.f32.partialorder %v2147, 0.0
        %v2166 = vand.u32 %v2147, 2147483648
        %v2167 = vsel %vm2165, %v2166, %v2164
        %v2168 = vrsqrt.pop %v2148
        %v2169 = vmul.f32 %v2148, %v2168
        %vm2170 = vcmp.eq.f32.partialorder %v2148, inf
        %v2171 = vsel %vm2170, %v2148, %v2169
        %vm2172 = vcmp.eq.f32.partialorder %v2148, 0.0
        %v2173 = vand.u32 %v2148, 2147483648
        %v2174 = vsel %vm2172, %v2173, %v2171
        %v2175 = vrsqrt.pop %v2149
        %v2176 = vmul.f32 %v2149, %v2175
        %vm2177 = vcmp.eq.f32.partialorder %v2149, inf
        %v2178 = vsel %vm2177, %v2149, %v2176
        %vm2179 = vcmp.eq.f32.partialorder %v2149, 0.0
        %v2180 = vand.u32 %v2149, 2147483648
        %v2181 = vsel %vm2179, %v2180, %v2178
        %v2182 = vrsqrt.pop %v2150
        %v2183 = vmul.f32 %v2150, %v2182
        %vm2184 = vcmp.eq.f32.partialorder %v2150, inf
        %v2185 = vsel %vm2184, %v2150, %v2183
        %vm2186 = vcmp.eq.f32.partialorder %v2150, 0.0
        %v2187 = vand.u32 %v2150, 2147483648
        %v2188 = vsel %vm2186, %v2187, %v2185
        %v2189 = vrsqrt.pop %v2151
        %v2190 = vmul.f32 %v2151, %v2189
        %vm2191 = vcmp.eq.f32.partialorder %v2151, inf
        %v2192 = vsel %vm2191, %v2151, %v2190
        %vm2193 = vcmp.eq.f32.partialorder %v2151, 0.0
        %v2194 = vand.u32 %v2151, 2147483648
        %v2195 = vsel %vm2193, %v2194, %v2192
        %v2196 = vrsqrt.pop %v2152
        %v2197 = vmul.f32 %v2152, %v2196
        %vm2198 = vcmp.eq.f32.partialorder %v2152, inf
        %v2199 = vsel %vm2198, %v2152, %v2197
        %vm2200 = vcmp.eq.f32.partialorder %v2152, 0.0
        %v2201 = vand.u32 %v2152, 2147483648
        %v2202 = vsel %vm2200, %v2201, %v2199
        %v2203 = vrsqrt.pop %v2153
        %v2204 = vmul.f32 %v2153, %v2203
        %vm2205 = vcmp.eq.f32.partialorder %v2153, inf
        %v2206 = vsel %vm2205, %v2153, %v2204
        %vm2207 = vcmp.eq.f32.partialorder %v2153, 0.0
        %v2208 = vand.u32 %v2153, 2147483648
        %v2209 = vsel %vm2207, %v2208, %v2206
        %v2210 = vmul.f32 %v1800, %v2160
        %v2211 = vmul.f32 %v1807, %v2167
        %v2212 = vmul.f32 %v1814, %v2174
        %v2213 = vmul.f32 %v1821, %v2181
        %v2214 = vmul.f32 %v1828, %v2188
        %v2215 = vmul.f32 %v1835, %v2195
        %v2216 = vmul.f32 %v1842, %v2202
        %v2217 = vmul.f32 %v1849, %v2209
        %v2218 = vmul.f32 %v1546, %v1722
        %v2219 = vmul.f32 %v1547, %v1723
        %v2220 = vmul.f32 %v1548, %v1724
        %v2221 = vmul.f32 %v1549, %v1725
        %v2222 = vmul.f32 %v1550, %v1726
        %v2223 = vmul.f32 %v1551, %v1727
        %v2224 = vmul.f32 %v1552, %v1728
        %v2225 = vmul.f32 %v1553, %v1729
        %v2226 = vmul.f32 %v1666, %v1602
        %v2227 = vmul.f32 %v1667, %v1603
        %v2228 = vmul.f32 %v1668, %v1604
        %v2229 = vmul.f32 %v1669, %v1605
        %v2230 = vmul.f32 %v1670, %v1606
        %v2231 = vmul.f32 %v1671, %v1607
        %v2232 = vmul.f32 %v1672, %v1608
        %v2233 = vmul.f32 %v1673, %v1609
        %v2234 = vsub.f32 %v2218, %v2226
        %v2235 = vsub.f32 %v2219, %v2227
        %v2236 = vsub.f32 %v2220, %v2228
        %v2237 = vsub.f32 %v2221, %v2229
        %v2238 = vsub.f32 %v2222, %v2230
        %v2239 = vsub.f32 %v2223, %v2231
        %v2240 = vsub.f32 %v2224, %v2232
        %v2241 = vsub.f32 %v2225, %v2233
        %v2242 = vmul.f32 %v1336, %v2234
        %v2243 = vmul.f32 %v1337, %v2235
        %v2244 = vmul.f32 %v1338, %v2236
        %v2245 = vmul.f32 %v1339, %v2237
        %v2246 = vmul.f32 %v1340, %v2238
        %v2247 = vmul.f32 %v1341, %v2239
        %v2248 = vmul.f32 %v1342, %v2240
        %v2249 = vmul.f32 %v1343, %v2241
        %v2250 = vmul.f32 %v1666, %v1482
        %v2251 = vmul.f32 %v1667, %v1483
        %v2252 = vmul.f32 %v1668, %v1484
        %v2253 = vmul.f32 %v1669, %v1485
        %v2254 = vmul.f32 %v1670, %v1486
        %v2255 = vmul.f32 %v1671, %v1487
        %v2256 = vmul.f32 %v1672, %v1488
        %v2257 = vmul.f32 %v1673, %v1489
        %v2258 = vmul.f32 %v1425, %v1722
        %v2259 = vmul.f32 %v1426, %v1723
        %v2260 = vmul.f32 %v1427, %v1724
        %v2261 = vmul.f32 %v1428, %v1725
        %v2262 = vmul.f32 %v1429, %v1726
        %v2263 = vmul.f32 %v1430, %v1727
        %v2264 = vmul.f32 %v1431, %v1728
        %v2265 = vmul.f32 %v1432, %v1729
        %v2266 = vsub.f32 %v2250, %v2258
        %v2267 = vsub.f32 %v2251, %v2259
        %v2268 = vsub.f32 %v2252, %v2260
        %v2269 = vsub.f32 %v2253, %v2261
        %v2270 = vsub.f32 %v2254, %v2262
        %v2271 = vsub.f32 %v2255, %v2263
        %v2272 = vsub.f32 %v2256, %v2264
        %v2273 = vsub.f32 %v2257, %v2265
        %v2274 = vmul.f32 %v1344, %v2266
        %v2275 = vmul.f32 %v1345, %v2267
        %v2276 = vmul.f32 %v1346, %v2268
        %v2277 = vmul.f32 %v1347, %v2269
        %v2278 = vmul.f32 %v1348, %v2270
        %v2279 = vmul.f32 %v1349, %v2271
        %v2280 = vmul.f32 %v1350, %v2272
        %v2281 = vmul.f32 %v1351, %v2273
        %v2282 = vadd.f32 %v2242, %v2274
        %v2283 = vadd.f32 %v2243, %v2275
        %v2284 = vadd.f32 %v2244, %v2276
        %v2285 = vadd.f32 %v2245, %v2277
        %v2286 = vadd.f32 %v2246, %v2278
        %v2287 = vadd.f32 %v2247, %v2279
        %v2288 = vadd.f32 %v2248, %v2280
        %v2289 = vadd.f32 %v2249, %v2281
        %v2290 = vmul.f32 %v1425, %v1602
        %v2291 = vmul.f32 %v1426, %v1603
        %v2292 = vmul.f32 %v1427, %v1604
        %v2293 = vmul.f32 %v1428, %v1605
        %v2294 = vmul.f32 %v1429, %v1606
        %v2295 = vmul.f32 %v1430, %v1607
        %v2296 = vmul.f32 %v1431, %v1608
        %v2297 = vmul.f32 %v1432, %v1609
        %v2298 = vmul.f32 %v1546, %v1482
        %v2299 = vmul.f32 %v1547, %v1483
        %v2300 = vmul.f32 %v1548, %v1484
        %v2301 = vmul.f32 %v1549, %v1485
        %v2302 = vmul.f32 %v1550, %v1486
        %v2303 = vmul.f32 %v1551, %v1487
        %v2304 = vmul.f32 %v1552, %v1488
        %v2305 = vmul.f32 %v1553, %v1489
        %v2306 = vsub.f32 %v2290, %v2298
        %v2307 = vsub.f32 %v2291, %v2299
        %v2308 = vsub.f32 %v2292, %v2300
        %v2309 = vsub.f32 %v2293, %v2301
        %v2310 = vsub.f32 %v2294, %v2302
        %v2311 = vsub.f32 %v2295, %v2303
        %v2312 = vsub.f32 %v2296, %v2304
        %v2313 = vsub.f32 %v2297, %v2305
        %v2314 = vmul.f32 %v1352, %v2306
        %v2315 = vmul.f32 %v1353, %v2307
        %v2316 = vmul.f32 %v1354, %v2308
        %v2317 = vmul.f32 %v1355, %v2309
        %v2318 = vmul.f32 %v1356, %v2310
        %v2319 = vmul.f32 %v1357, %v2311
        %v2320 = vmul.f32 %v1358, %v2312
        %v2321 = vmul.f32 %v1359, %v2313
        %v2322 = vadd.f32 %v2282, %v2314
        %v2323 = vadd.f32 %v2283, %v2315
        %v2324 = vadd.f32 %v2284, %v2316
        %v2325 = vadd.f32 %v2285, %v2317
        %v2326 = vadd.f32 %v2286, %v2318
        %v2327 = vadd.f32 %v2287, %v2319
        %v2328 = vadd.f32 %v2288, %v2320
        %v2329 = vadd.f32 %v2289, %v2321
        %vm2330 = vcmp.gt.f32.partialorder %v2322, 0.0
        %vm2331 = vcmp.gt.f32.partialorder %v2323, 0.0
        %vm2332 = vcmp.gt.f32.partialorder %v2324, 0.0
        %vm2333 = vcmp.gt.f32.partialorder %v2325, 0.0
        %vm2334 = vcmp.gt.f32.partialorder %v2326, 0.0
        %vm2335 = vcmp.gt.f32.partialorder %v2327, 0.0
        %vm2336 = vcmp.gt.f32.partialorder %v2328, 0.0
        %vm2337 = vcmp.gt.f32.partialorder %v2329, 0.0
        %vm2338 = vcmp.lt.f32.partialorder %v2322, 0.0
        %vm2339 = vcmp.lt.f32.partialorder %v2323, 0.0
        %vm2340 = vcmp.lt.f32.partialorder %v2324, 0.0
        %vm2341 = vcmp.lt.f32.partialorder %v2325, 0.0
        %vm2342 = vcmp.lt.f32.partialorder %v2326, 0.0
        %vm2343 = vcmp.lt.f32.partialorder %v2327, 0.0
        %vm2344 = vcmp.lt.f32.partialorder %v2328, 0.0
        %vm2345 = vcmp.lt.f32.partialorder %v2329, 0.0
        %v2346 = vsel %vm2338, -1.0, 0.0
        %v2347 = vsel %vm2339, -1.0, 0.0
        %v2348 = vsel %vm2340, -1.0, 0.0
        %v2349 = vsel %vm2341, -1.0, 0.0
        %v2350 = vsel %vm2342, -1.0, 0.0
        %v2351 = vsel %vm2343, -1.0, 0.0
        %v2352 = vsel %vm2344, -1.0, 0.0
        %v2353 = vsel %vm2345, -1.0, 0.0
        %v2354 = vsel %vm2330, 1.0, %v2346
        %v2355 = vsel %vm2331, 1.0, %v2347
        %v2356 = vsel %vm2332, 1.0, %v2348
        %v2357 = vsel %vm2333, 1.0, %v2349
        %v2358 = vsel %vm2334, 1.0, %v2350
        %v2359 = vsel %vm2335, 1.0, %v2351
        %v2360 = vsel %vm2336, 1.0, %v2352
        %v2361 = vsel %vm2337, 1.0, %v2353
        %2370 = vrot.lane.b32.xlu0 %v2114, 108
        %v2371 = vpop.permute.xlu0 %2370
        %2372 = vrot.lane.b32.xlu0 %v2115, 108
        %v2373 = vpop.permute.xlu0 %2372
        %2374 = vrot.lane.b32.xlu0 %v2116, 108
        %v2375 = vpop.permute.xlu0 %2374
        %2376 = vrot.lane.b32.xlu0 %v2117, 108
        %v2377 = vpop.permute.xlu0 %2376
        %2378 = vrot.lane.b32.xlu0 %v2118, 108
        %v2379 = vpop.permute.xlu0 %2378
        %2380 = vrot.lane.b32.xlu0 %v2119, 108
        %v2381 = vpop.permute.xlu0 %2380
        %2382 = vrot.lane.b32.xlu0 %v2120, 108
        %v2383 = vpop.permute.xlu0 %2382
        %2384 = vrot.lane.b32.xlu0 %v2121, 108
        %v2385 = vpop.permute.xlu0 %2384
        %2394 = vrot.lane.b32.xlu0 %v2114, 40
        %v2395 = vpop.permute.xlu0 %2394
        %2396 = vrot.lane.b32.xlu0 %v2115, 40
        %v2397 = vpop.permute.xlu0 %2396
        %2398 = vrot.lane.b32.xlu0 %v2116, 40
        %v2399 = vpop.permute.xlu0 %2398
        %2400 = vrot.lane.b32.xlu0 %v2117, 40
        %v2401 = vpop.permute.xlu0 %2400
        %2402 = vrot.lane.b32.xlu0 %v2118, 40
        %v2403 = vpop.permute.xlu0 %2402
        %2404 = vrot.lane.b32.xlu0 %v2119, 40
        %v2405 = vpop.permute.xlu0 %2404
        %2406 = vrot.lane.b32.xlu0 %v2120, 40
        %v2407 = vpop.permute.xlu0 %2406
        %2408 = vrot.lane.b32.xlu0 %v2121, 40
        %v2409 = vpop.permute.xlu0 %2408
        %v2418 = vsel %vm1424, %v2371, %v2395
        %v2419 = vsel %vm1424, %v2373, %v2397
        %v2420 = vsel %vm1424, %v2375, %v2399
        %v2421 = vsel %vm1424, %v2377, %v2401
        %v2422 = vsel %vm1424, %v2379, %v2403
        %v2423 = vsel %vm1424, %v2381, %v2405
        %v2424 = vsel %vm1424, %v2383, %v2407
        %v2425 = vsel %vm1424, %v2385, %v2409
        %2426 = vrot.lane.b32.xlu0 %v2114, 88
        %v2427 = vpop.permute.xlu0 %2426
        %2428 = vrot.lane.b32.xlu0 %v2115, 88
        %v2429 = vpop.permute.xlu0 %2428
        %2430 = vrot.lane.b32.xlu0 %v2116, 88
        %v2431 = vpop.permute.xlu0 %2430
        %2432 = vrot.lane.b32.xlu0 %v2117, 88
        %v2433 = vpop.permute.xlu0 %2432
        %2434 = vrot.lane.b32.xlu0 %v2118, 88
        %v2435 = vpop.permute.xlu0 %2434
        %2436 = vrot.lane.b32.xlu0 %v2119, 88
        %v2437 = vpop.permute.xlu0 %2436
        %2438 = vrot.lane.b32.xlu0 %v2120, 88
        %v2439 = vpop.permute.xlu0 %2438
        %2440 = vrot.lane.b32.xlu0 %v2121, 88
        %v2441 = vpop.permute.xlu0 %2440
        %2450 = vrot.lane.b32.xlu0 %v2114, 20
        %v2451 = vpop.permute.xlu0 %2450
        %2452 = vrot.lane.b32.xlu0 %v2115, 20
        %v2453 = vpop.permute.xlu0 %2452
        %2454 = vrot.lane.b32.xlu0 %v2116, 20
        %v2455 = vpop.permute.xlu0 %2454
        %2456 = vrot.lane.b32.xlu0 %v2117, 20
        %v2457 = vpop.permute.xlu0 %2456
        %2458 = vrot.lane.b32.xlu0 %v2118, 20
        %v2459 = vpop.permute.xlu0 %2458
        %2460 = vrot.lane.b32.xlu0 %v2119, 20
        %v2461 = vpop.permute.xlu0 %2460
        %2462 = vrot.lane.b32.xlu0 %v2120, 20
        %v2463 = vpop.permute.xlu0 %2462
        %2464 = vrot.lane.b32.xlu0 %v2121, 20
        %v2465 = vpop.permute.xlu0 %2464
        %v2474 = vsel %vm1481, %v2427, %v2451
        %v2475 = vsel %vm1481, %v2429, %v2453
        %v2476 = vsel %vm1481, %v2431, %v2455
        %v2477 = vsel %vm1481, %v2433, %v2457
        %v2478 = vsel %vm1481, %v2435, %v2459
        %v2479 = vsel %vm1481, %v2437, %v2461
        %v2480 = vsel %vm1481, %v2439, %v2463
        %v2481 = vsel %vm1481, %v2441, %v2465
        %2490 = vrot.lane.b32.xlu0 %v2210, 108
        %v2491 = vpop.permute.xlu0 %2490
        %2492 = vrot.lane.b32.xlu0 %v2211, 108
        %v2493 = vpop.permute.xlu0 %2492
        %2494 = vrot.lane.b32.xlu0 %v2212, 108
        %v2495 = vpop.permute.xlu0 %2494
        %2496 = vrot.lane.b32.xlu0 %v2213, 108
        %v2497 = vpop.permute.xlu0 %2496
        %2498 = vrot.lane.b32.xlu0 %v2214, 108
        %v2499 = vpop.permute.xlu0 %2498
        %2500 = vrot.lane.b32.xlu0 %v2215, 108
        %v2501 = vpop.permute.xlu0 %2500
        %2502 = vrot.lane.b32.xlu0 %v2216, 108
        %v2503 = vpop.permute.xlu0 %2502
        %2504 = vrot.lane.b32.xlu0 %v2217, 108
        %v2505 = vpop.permute.xlu0 %2504
        %2514 = vrot.lane.b32.xlu0 %v2210, 40
        %v2515 = vpop.permute.xlu0 %2514
        %2516 = vrot.lane.b32.xlu0 %v2211, 40
        %v2517 = vpop.permute.xlu0 %2516
        %2518 = vrot.lane.b32.xlu0 %v2212, 40
        %v2519 = vpop.permute.xlu0 %2518
        %2520 = vrot.lane.b32.xlu0 %v2213, 40
        %v2521 = vpop.permute.xlu0 %2520
        %2522 = vrot.lane.b32.xlu0 %v2214, 40
        %v2523 = vpop.permute.xlu0 %2522
        %2524 = vrot.lane.b32.xlu0 %v2215, 40
        %v2525 = vpop.permute.xlu0 %2524
        %2526 = vrot.lane.b32.xlu0 %v2216, 40
        %v2527 = vpop.permute.xlu0 %2526
        %2528 = vrot.lane.b32.xlu0 %v2217, 40
        %v2529 = vpop.permute.xlu0 %2528
        %v2538 = vsel %vm1424, %v2491, %v2515
        %v2539 = vsel %vm1424, %v2493, %v2517
        %v2540 = vsel %vm1424, %v2495, %v2519
        %v2541 = vsel %vm1424, %v2497, %v2521
        %v2542 = vsel %vm1424, %v2499, %v2523
        %v2543 = vsel %vm1424, %v2501, %v2525
        %v2544 = vsel %vm1424, %v2503, %v2527
        %v2545 = vsel %vm1424, %v2505, %v2529
        %2546 = vrot.lane.b32.xlu0 %v2210, 88
        %v2547 = vpop.permute.xlu0 %2546
        %2548 = vrot.lane.b32.xlu0 %v2211, 88
        %v2549 = vpop.permute.xlu0 %2548
        %2550 = vrot.lane.b32.xlu0 %v2212, 88
        %v2551 = vpop.permute.xlu0 %2550
        %2552 = vrot.lane.b32.xlu0 %v2213, 88
        %v2553 = vpop.permute.xlu0 %2552
        %2554 = vrot.lane.b32.xlu0 %v2214, 88
        %v2555 = vpop.permute.xlu0 %2554
        %2556 = vrot.lane.b32.xlu0 %v2215, 88
        %v2557 = vpop.permute.xlu0 %2556
        %2558 = vrot.lane.b32.xlu0 %v2216, 88
        %v2559 = vpop.permute.xlu0 %2558
        %2560 = vrot.lane.b32.xlu0 %v2217, 88
        %v2561 = vpop.permute.xlu0 %2560
        %2570 = vrot.lane.b32.xlu0 %v2210, 20
        %v2571 = vpop.permute.xlu0 %2570
        %2572 = vrot.lane.b32.xlu0 %v2211, 20
        %v2573 = vpop.permute.xlu0 %2572
        %2574 = vrot.lane.b32.xlu0 %v2212, 20
        %v2575 = vpop.permute.xlu0 %2574
        %2576 = vrot.lane.b32.xlu0 %v2213, 20
        %v2577 = vpop.permute.xlu0 %2576
        %2578 = vrot.lane.b32.xlu0 %v2214, 20
        %v2579 = vpop.permute.xlu0 %2578
        %2580 = vrot.lane.b32.xlu0 %v2215, 20
        %v2581 = vpop.permute.xlu0 %2580
        %2582 = vrot.lane.b32.xlu0 %v2216, 20
        %v2583 = vpop.permute.xlu0 %2582
        %2584 = vrot.lane.b32.xlu0 %v2217, 20
        %v2585 = vpop.permute.xlu0 %2584
        %v2594 = vsel %vm1481, %v2547, %v2571
        %v2595 = vsel %vm1481, %v2549, %v2573
        %v2596 = vsel %vm1481, %v2551, %v2575
        %v2597 = vsel %vm1481, %v2553, %v2577
        %v2598 = vsel %vm1481, %v2555, %v2579
        %v2599 = vsel %vm1481, %v2557, %v2581
        %v2600 = vsel %vm1481, %v2559, %v2583
        %v2601 = vsel %vm1481, %v2561, %v2585
        %v2602 = vmul.f32 %v2418, %v2474
        %v2603 = vmul.f32 %v2419, %v2475
        %v2604 = vmul.f32 %v2420, %v2476
        %v2605 = vmul.f32 %v2421, %v2477
        %v2606 = vmul.f32 %v2422, %v2478
        %v2607 = vmul.f32 %v2423, %v2479
        %v2608 = vmul.f32 %v2424, %v2480
        %v2609 = vmul.f32 %v2425, %v2481
        %v2610 = vsub.f32 %v2114, %v2602
        %v2611 = vsub.f32 %v2115, %v2603
        %v2612 = vsub.f32 %v2116, %v2604
        %v2613 = vsub.f32 %v2117, %v2605
        %v2614 = vsub.f32 %v2118, %v2606
        %v2615 = vsub.f32 %v2119, %v2607
        %v2616 = vsub.f32 %v2120, %v2608
        %v2617 = vsub.f32 %v2121, %v2609
        %v2618 = vmul.f32 %v2538, %v2594
        %v2619 = vmul.f32 %v2539, %v2595
        %v2620 = vmul.f32 %v2540, %v2596
        %v2621 = vmul.f32 %v2541, %v2597
        %v2622 = vmul.f32 %v2542, %v2598
        %v2623 = vmul.f32 %v2543, %v2599
        %v2624 = vmul.f32 %v2544, %v2600
        %v2625 = vmul.f32 %v2545, %v2601
        %v2626 = vmax.f32 %v2618, 1e-08
        %v2627 = vmax.f32 %v2619, 1e-08
        %v2628 = vmax.f32 %v2620, 1e-08
        %v2629 = vmax.f32 %v2621, 1e-08
        %v2630 = vmax.f32 %v2622, 1e-08
        %v2631 = vmax.f32 %v2623, 1e-08
        %v2632 = vmax.f32 %v2624, 1e-08
        %v2633 = vmax.f32 %v2625, 1e-08
        %v2634 = vrcp.pop %v2626
        %v2635 = vmul.f32 %v2610, %v2634
        %v2636 = vrcp.pop %v2627
        %v2637 = vmul.f32 %v2611, %v2636
        %v2638 = vrcp.pop %v2628
        %v2639 = vmul.f32 %v2612, %v2638
        %v2640 = vrcp.pop %v2629
        %v2641 = vmul.f32 %v2613, %v2640
        %v2642 = vrcp.pop %v2630
        %v2643 = vmul.f32 %v2614, %v2642
        %v2644 = vrcp.pop %v2631
        %v2645 = vmul.f32 %v2615, %v2644
        %v2646 = vrcp.pop %v2632
        %v2647 = vmul.f32 %v2616, %v2646
        %v2648 = vrcp.pop %v2633
        %v2649 = vmul.f32 %v2617, %v2648
        %v2650 = vmax.f32 %v2635, -1.0
        %v2651 = vmax.f32 %v2637, -1.0
        %v2652 = vmax.f32 %v2639, -1.0
        %v2653 = vmax.f32 %v2641, -1.0
        %v2654 = vmax.f32 %v2643, -1.0
        %v2655 = vmax.f32 %v2645, -1.0
        %v2656 = vmax.f32 %v2647, -1.0
        %v2657 = vmax.f32 %v2649, -1.0
        %v2658 = vmin.f32 %v2650, 1.0
        %v2659 = vmin.f32 %v2651, 1.0
        %v2660 = vmin.f32 %v2652, 1.0
        %v2661 = vmin.f32 %v2653, 1.0
        %v2662 = vmin.f32 %v2654, 1.0
        %v2663 = vmin.f32 %v2655, 1.0
        %v2664 = vmin.f32 %v2656, 1.0
        %v2665 = vmin.f32 %v2657, 1.0
        %v2666 = vmul.f32 %v2658, %v2658
        %v2667 = vmul.f32 %v2659, %v2659
        %v2668 = vmul.f32 %v2660, %v2660
        %v2669 = vmul.f32 %v2661, %v2661
        %v2670 = vmul.f32 %v2662, %v2662
        %v2671 = vmul.f32 %v2663, %v2663
        %v2672 = vmul.f32 %v2664, %v2664
        %v2673 = vmul.f32 %v2665, %v2665
        %v2674 = vsub.f32 1.0, %v2666
        %v2675 = vsub.f32 1.0, %v2667
        %v2676 = vsub.f32 1.0, %v2668
        %v2677 = vsub.f32 1.0, %v2669
        %v2678 = vsub.f32 1.0, %v2670
        %v2679 = vsub.f32 1.0, %v2671
        %v2680 = vsub.f32 1.0, %v2672
        %v2681 = vsub.f32 1.0, %v2673
        %v2682 = vmax.f32 %v2674, 0.0
        %v2683 = vmax.f32 %v2675, 0.0
        %v2684 = vmax.f32 %v2676, 0.0
        %v2685 = vmax.f32 %v2677, 0.0
        %v2686 = vmax.f32 %v2678, 0.0
        %v2687 = vmax.f32 %v2679, 0.0
        %v2688 = vmax.f32 %v2680, 0.0
        %v2689 = vmax.f32 %v2681, 0.0
        %v2690 = vmin.f32 %v2682, 1.0
        %v2691 = vmin.f32 %v2683, 1.0
        %v2692 = vmin.f32 %v2684, 1.0
        %v2693 = vmin.f32 %v2685, 1.0
        %v2694 = vmin.f32 %v2686, 1.0
        %v2695 = vmin.f32 %v2687, 1.0
        %v2696 = vmin.f32 %v2688, 1.0
        %v2697 = vmin.f32 %v2689, 1.0
        %v2698 = vrsqrt.pop %v2690
        %v2699 = vmul.f32 %v2690, %v2698
        %vm2700 = vcmp.eq.f32.partialorder %v2690, inf
        %v2701 = vsel %vm2700, %v2690, %v2699
        %vm2702 = vcmp.eq.f32.partialorder %v2690, 0.0
        %v2703 = vand.u32 %v2690, 2147483648
        %v2704 = vsel %vm2702, %v2703, %v2701
        %v2705 = vrsqrt.pop %v2691
        %v2706 = vmul.f32 %v2691, %v2705
        %vm2707 = vcmp.eq.f32.partialorder %v2691, inf
        %v2708 = vsel %vm2707, %v2691, %v2706
        %vm2709 = vcmp.eq.f32.partialorder %v2691, 0.0
        %v2710 = vand.u32 %v2691, 2147483648
        %v2711 = vsel %vm2709, %v2710, %v2708
        %v2712 = vrsqrt.pop %v2692
        %v2713 = vmul.f32 %v2692, %v2712
        %vm2714 = vcmp.eq.f32.partialorder %v2692, inf
        %v2715 = vsel %vm2714, %v2692, %v2713
        %vm2716 = vcmp.eq.f32.partialorder %v2692, 0.0
        %v2717 = vand.u32 %v2692, 2147483648
        %v2718 = vsel %vm2716, %v2717, %v2715
        %v2719 = vrsqrt.pop %v2693
        %v2720 = vmul.f32 %v2693, %v2719
        %vm2721 = vcmp.eq.f32.partialorder %v2693, inf
        %v2722 = vsel %vm2721, %v2693, %v2720
        %vm2723 = vcmp.eq.f32.partialorder %v2693, 0.0
        %v2724 = vand.u32 %v2693, 2147483648
        %v2725 = vsel %vm2723, %v2724, %v2722
        %v2726 = vrsqrt.pop %v2694
        %v2727 = vmul.f32 %v2694, %v2726
        %vm2728 = vcmp.eq.f32.partialorder %v2694, inf
        %v2729 = vsel %vm2728, %v2694, %v2727
        %vm2730 = vcmp.eq.f32.partialorder %v2694, 0.0
        %v2731 = vand.u32 %v2694, 2147483648
        %v2732 = vsel %vm2730, %v2731, %v2729
        %v2733 = vrsqrt.pop %v2695
        %v2734 = vmul.f32 %v2695, %v2733
        %vm2735 = vcmp.eq.f32.partialorder %v2695, inf
        %v2736 = vsel %vm2735, %v2695, %v2734
        %vm2737 = vcmp.eq.f32.partialorder %v2695, 0.0
        %v2738 = vand.u32 %v2695, 2147483648
        %v2739 = vsel %vm2737, %v2738, %v2736
        %v2740 = vrsqrt.pop %v2696
        %v2741 = vmul.f32 %v2696, %v2740
        %vm2742 = vcmp.eq.f32.partialorder %v2696, inf
        %v2743 = vsel %vm2742, %v2696, %v2741
        %vm2744 = vcmp.eq.f32.partialorder %v2696, 0.0
        %v2745 = vand.u32 %v2696, 2147483648
        %v2746 = vsel %vm2744, %v2745, %v2743
        %v2747 = vrsqrt.pop %v2697
        %v2748 = vmul.f32 %v2697, %v2747
        %vm2749 = vcmp.eq.f32.partialorder %v2697, inf
        %v2750 = vsel %vm2749, %v2697, %v2748
        %vm2751 = vcmp.eq.f32.partialorder %v2697, 0.0
        %v2752 = vand.u32 %v2697, 2147483648
        %v2753 = vsel %vm2751, %v2752, %v2750
        %v2754 = vmul.f32 %v2354, %v2704
        %v2755 = vmul.f32 %v2355, %v2711
        %v2756 = vmul.f32 %v2356, %v2718
        %v2757 = vmul.f32 %v2357, %v2725
        %v2758 = vmul.f32 %v2358, %v2732
        %v2759 = vmul.f32 %v2359, %v2739
        %v2760 = vmul.f32 %v2360, %v2746
        %v2761 = vmul.f32 %v2361, %v2753
        %v2762 = vand.u32 2147483647, %v2754
        %v2763 = vand.u32 2147483647, %v2755
        %v2764 = vand.u32 2147483647, %v2756
        %v2765 = vand.u32 2147483647, %v2757
        %v2766 = vand.u32 2147483647, %v2758
        %v2767 = vand.u32 2147483647, %v2759
        %v2768 = vand.u32 2147483647, %v2760
        %v2769 = vand.u32 2147483647, %v2761
        %vm2770 = vcmp.gt.f32.partialorder %v2762, 1e-08
        %vm2771 = vcmp.gt.f32.partialorder %v2763, 1e-08
        %vm2772 = vcmp.gt.f32.partialorder %v2764, 1e-08
        %vm2773 = vcmp.gt.f32.partialorder %v2765, 1e-08
        %vm2774 = vcmp.gt.f32.partialorder %v2766, 1e-08
        %vm2775 = vcmp.gt.f32.partialorder %v2767, 1e-08
        %vm2776 = vcmp.gt.f32.partialorder %v2768, 1e-08
        %vm2777 = vcmp.gt.f32.partialorder %v2769, 1e-08
        %v2778 = vsel %vm2770, 1, 0
        %v2779 = vsel %vm2771, 1, 0
        %v2780 = vsel %vm2772, 1, 0
        %v2781 = vsel %vm2773, 1, 0
        %v2782 = vsel %vm2774, 1, 0
        %v2783 = vsel %vm2775, 1, 0
        %v2784 = vsel %vm2776, 1, 0
        %v2785 = vsel %vm2777, 1, 0
        %v2786 = vcvt.s32.f32 %v2778
        %v2787 = vcvt.s32.f32 %v2779
        %v2788 = vcvt.s32.f32 %v2780
        %v2789 = vcvt.s32.f32 %v2781
        %v2790 = vcvt.s32.f32 %v2782
        %v2791 = vcvt.s32.f32 %v2783
        %v2792 = vcvt.s32.f32 %v2784
        %v2793 = vcvt.s32.f32 %v2785
        %2802 = vrot.lane.b32.xlu0 %v2786, 108
        %v2803 = vpop.permute.xlu0 %2802
        %2804 = vrot.lane.b32.xlu0 %v2787, 108
        %v2805 = vpop.permute.xlu0 %2804
        %2806 = vrot.lane.b32.xlu0 %v2788, 108
        %v2807 = vpop.permute.xlu0 %2806
        %2808 = vrot.lane.b32.xlu0 %v2789, 108
        %v2809 = vpop.permute.xlu0 %2808
        %2810 = vrot.lane.b32.xlu0 %v2790, 108
        %v2811 = vpop.permute.xlu0 %2810
        %2812 = vrot.lane.b32.xlu0 %v2791, 108
        %v2813 = vpop.permute.xlu0 %2812
        %2814 = vrot.lane.b32.xlu0 %v2792, 108
        %v2815 = vpop.permute.xlu0 %2814
        %2816 = vrot.lane.b32.xlu0 %v2793, 108
        %v2817 = vpop.permute.xlu0 %2816
        %2826 = vrot.lane.b32.xlu0 %v2786, 40
        %v2827 = vpop.permute.xlu0 %2826
        %2828 = vrot.lane.b32.xlu0 %v2787, 40
        %v2829 = vpop.permute.xlu0 %2828
        %2830 = vrot.lane.b32.xlu0 %v2788, 40
        %v2831 = vpop.permute.xlu0 %2830
        %2832 = vrot.lane.b32.xlu0 %v2789, 40
        %v2833 = vpop.permute.xlu0 %2832
        %2834 = vrot.lane.b32.xlu0 %v2790, 40
        %v2835 = vpop.permute.xlu0 %2834
        %2836 = vrot.lane.b32.xlu0 %v2791, 40
        %v2837 = vpop.permute.xlu0 %2836
        %2838 = vrot.lane.b32.xlu0 %v2792, 40
        %v2839 = vpop.permute.xlu0 %2838
        %2840 = vrot.lane.b32.xlu0 %v2793, 40
        %v2841 = vpop.permute.xlu0 %2840
        %v2850 = vsel %vm1424, %v2803, %v2827
        %v2851 = vsel %vm1424, %v2805, %v2829
        %v2852 = vsel %vm1424, %v2807, %v2831
        %v2853 = vsel %vm1424, %v2809, %v2833
        %v2854 = vsel %vm1424, %v2811, %v2835
        %v2855 = vsel %vm1424, %v2813, %v2837
        %v2856 = vsel %vm1424, %v2815, %v2839
        %v2857 = vsel %vm1424, %v2817, %v2841
        %v2858 = vmul.f32 %v2786, %v2850
        %v2859 = vmul.f32 %v2787, %v2851
        %v2860 = vmul.f32 %v2788, %v2852
        %v2861 = vmul.f32 %v2789, %v2853
        %v2862 = vmul.f32 %v2790, %v2854
        %v2863 = vmul.f32 %v2791, %v2855
        %v2864 = vmul.f32 %v2792, %v2856
        %v2865 = vmul.f32 %v2793, %v2857
        %2866 = vrot.lane.b32.xlu0 %v2786, 88
        %v2867 = vpop.permute.xlu0 %2866
        %2868 = vrot.lane.b32.xlu0 %v2787, 88
        %v2869 = vpop.permute.xlu0 %2868
        %2870 = vrot.lane.b32.xlu0 %v2788, 88
        %v2871 = vpop.permute.xlu0 %2870
        %2872 = vrot.lane.b32.xlu0 %v2789, 88
        %v2873 = vpop.permute.xlu0 %2872
        %2874 = vrot.lane.b32.xlu0 %v2790, 88
        %v2875 = vpop.permute.xlu0 %2874
        %2876 = vrot.lane.b32.xlu0 %v2791, 88
        %v2877 = vpop.permute.xlu0 %2876
        %2878 = vrot.lane.b32.xlu0 %v2792, 88
        %v2879 = vpop.permute.xlu0 %2878
        %2880 = vrot.lane.b32.xlu0 %v2793, 88
        %v2881 = vpop.permute.xlu0 %2880
        %2890 = vrot.lane.b32.xlu0 %v2786, 20
        %v2891 = vpop.permute.xlu0 %2890
        %2892 = vrot.lane.b32.xlu0 %v2787, 20
        %v2893 = vpop.permute.xlu0 %2892
        %2894 = vrot.lane.b32.xlu0 %v2788, 20
        %v2895 = vpop.permute.xlu0 %2894
        %2896 = vrot.lane.b32.xlu0 %v2789, 20
        %v2897 = vpop.permute.xlu0 %2896
        %2898 = vrot.lane.b32.xlu0 %v2790, 20
        %v2899 = vpop.permute.xlu0 %2898
        %2900 = vrot.lane.b32.xlu0 %v2791, 20
        %v2901 = vpop.permute.xlu0 %2900
        %2902 = vrot.lane.b32.xlu0 %v2792, 20
        %v2903 = vpop.permute.xlu0 %2902
        %2904 = vrot.lane.b32.xlu0 %v2793, 20
        %v2905 = vpop.permute.xlu0 %2904
        %v2914 = vsel %vm1481, %v2867, %v2891
        %v2915 = vsel %vm1481, %v2869, %v2893
        %v2916 = vsel %vm1481, %v2871, %v2895
        %v2917 = vsel %vm1481, %v2873, %v2897
        %v2918 = vsel %vm1481, %v2875, %v2899
        %v2919 = vsel %vm1481, %v2877, %v2901
        %v2920 = vsel %vm1481, %v2879, %v2903
        %v2921 = vsel %vm1481, %v2881, %v2905
        %v2922 = vmul.f32 %v2858, %v2914
        %v2923 = vmul.f32 %v2859, %v2915
        %v2924 = vmul.f32 %v2860, %v2916
        %v2925 = vmul.f32 %v2861, %v2917
        %v2926 = vmul.f32 %v2862, %v2918
        %v2927 = vmul.f32 %v2863, %v2919
        %v2928 = vmul.f32 %v2864, %v2920
        %v2929 = vmul.f32 %v2865, %v2921
        %vm2930 = vcmp.gt.f32.partialorder %v2922, 0.5
        %vm2931 = vcmp.gt.f32.partialorder %v2923, 0.5
        %vm2932 = vcmp.gt.f32.partialorder %v2924, 0.5
        %vm2933 = vcmp.gt.f32.partialorder %v2925, 0.5
        %vm2934 = vcmp.gt.f32.partialorder %v2926, 0.5
        %vm2935 = vcmp.gt.f32.partialorder %v2927, 0.5
        %vm2936 = vcmp.gt.f32.partialorder %v2928, 0.5
        %vm2937 = vcmp.gt.f32.partialorder %v2929, 0.5
        %2946 = vrot.lane.b32.xlu0 %v2658, 108
        %v2947 = vpop.permute.xlu0 %2946
        %2948 = vrot.lane.b32.xlu0 %v2659, 108
        %v2949 = vpop.permute.xlu0 %2948
        %2950 = vrot.lane.b32.xlu0 %v2660, 108
        %v2951 = vpop.permute.xlu0 %2950
        %2952 = vrot.lane.b32.xlu0 %v2661, 108
        %v2953 = vpop.permute.xlu0 %2952
        %2954 = vrot.lane.b32.xlu0 %v2662, 108
        %v2955 = vpop.permute.xlu0 %2954
        %2956 = vrot.lane.b32.xlu0 %v2663, 108
        %v2957 = vpop.permute.xlu0 %2956
        %2958 = vrot.lane.b32.xlu0 %v2664, 108
        %v2959 = vpop.permute.xlu0 %2958
        %2960 = vrot.lane.b32.xlu0 %v2665, 108
        %v2961 = vpop.permute.xlu0 %2960
        %2970 = vrot.lane.b32.xlu0 %v2658, 40
        %v2971 = vpop.permute.xlu0 %2970
        %2972 = vrot.lane.b32.xlu0 %v2659, 40
        %v2973 = vpop.permute.xlu0 %2972
        %2974 = vrot.lane.b32.xlu0 %v2660, 40
        %v2975 = vpop.permute.xlu0 %2974
        %2976 = vrot.lane.b32.xlu0 %v2661, 40
        %v2977 = vpop.permute.xlu0 %2976
        %2978 = vrot.lane.b32.xlu0 %v2662, 40
        %v2979 = vpop.permute.xlu0 %2978
        %2980 = vrot.lane.b32.xlu0 %v2663, 40
        %v2981 = vpop.permute.xlu0 %2980
        %2982 = vrot.lane.b32.xlu0 %v2664, 40
        %v2983 = vpop.permute.xlu0 %2982
        %2984 = vrot.lane.b32.xlu0 %v2665, 40
        %v2985 = vpop.permute.xlu0 %2984
        %v2994 = vsel %vm1424, %v2947, %v2971
        %v2995 = vsel %vm1424, %v2949, %v2973
        %v2996 = vsel %vm1424, %v2951, %v2975
        %v2997 = vsel %vm1424, %v2953, %v2977
        %v2998 = vsel %vm1424, %v2955, %v2979
        %v2999 = vsel %vm1424, %v2957, %v2981
        %v3000 = vsel %vm1424, %v2959, %v2983
        %v3001 = vsel %vm1424, %v2961, %v2985
        %3010 = vrot.lane.b32.xlu0 %v2098, 88
        %v3011 = vpop.permute.xlu0 %3010
        %3012 = vrot.lane.b32.xlu0 %v2099, 88
        %v3013 = vpop.permute.xlu0 %3012
        %3014 = vrot.lane.b32.xlu0 %v2100, 88
        %v3015 = vpop.permute.xlu0 %3014
        %3016 = vrot.lane.b32.xlu0 %v2101, 88
        %v3017 = vpop.permute.xlu0 %3016
        %3018 = vrot.lane.b32.xlu0 %v2102, 88
        %v3019 = vpop.permute.xlu0 %3018
        %3020 = vrot.lane.b32.xlu0 %v2103, 88
        %v3021 = vpop.permute.xlu0 %3020
        %3022 = vrot.lane.b32.xlu0 %v2104, 88
        %v3023 = vpop.permute.xlu0 %3022
        %3024 = vrot.lane.b32.xlu0 %v2105, 88
        %v3025 = vpop.permute.xlu0 %3024
        %3034 = vrot.lane.b32.xlu0 %v2098, 20
        %v3035 = vpop.permute.xlu0 %3034
        %3036 = vrot.lane.b32.xlu0 %v2099, 20
        %v3037 = vpop.permute.xlu0 %3036
        %3038 = vrot.lane.b32.xlu0 %v2100, 20
        %v3039 = vpop.permute.xlu0 %3038
        %3040 = vrot.lane.b32.xlu0 %v2101, 20
        %v3041 = vpop.permute.xlu0 %3040
        %3042 = vrot.lane.b32.xlu0 %v2102, 20
        %v3043 = vpop.permute.xlu0 %3042
        %3044 = vrot.lane.b32.xlu0 %v2103, 20
        %v3045 = vpop.permute.xlu0 %3044
        %3046 = vrot.lane.b32.xlu0 %v2104, 20
        %v3047 = vpop.permute.xlu0 %3046
        %3048 = vrot.lane.b32.xlu0 %v2105, 20
        %v3049 = vpop.permute.xlu0 %3048
        %v3058 = vsel %vm1481, %v3011, %v3035
        %v3059 = vsel %vm1481, %v3013, %v3037
        %v3060 = vsel %vm1481, %v3015, %v3039
        %v3061 = vsel %vm1481, %v3017, %v3041
        %v3062 = vsel %vm1481, %v3019, %v3043
        %v3063 = vsel %vm1481, %v3021, %v3045
        %v3064 = vsel %vm1481, %v3023, %v3047
        %v3065 = vsel %vm1481, %v3025, %v3049
        %v3066 = vmul.f32 %v2994, %v3058
        %v3067 = vmul.f32 %v2995, %v3059
        %v3068 = vmul.f32 %v2996, %v3060
        %v3069 = vmul.f32 %v2997, %v3061
        %v3070 = vmul.f32 %v2998, %v3062
        %v3071 = vmul.f32 %v2999, %v3063
        %v3072 = vmul.f32 %v3000, %v3064
        %v3073 = vmul.f32 %v3001, %v3065
        %v3074 = vsub.f32 %v2098, %v3066
        %v3075 = vsub.f32 %v2099, %v3067
        %v3076 = vsub.f32 %v2100, %v3068
        %v3077 = vsub.f32 %v2101, %v3069
        %v3078 = vsub.f32 %v2102, %v3070
        %v3079 = vsub.f32 %v2103, %v3071
        %v3080 = vsub.f32 %v2104, %v3072
        %v3081 = vsub.f32 %v2105, %v3073
        %3082 = vrot.lane.b32.xlu0 %v2658, 88
        %v3083 = vpop.permute.xlu0 %3082
        %3084 = vrot.lane.b32.xlu0 %v2659, 88
        %v3085 = vpop.permute.xlu0 %3084
        %3086 = vrot.lane.b32.xlu0 %v2660, 88
        %v3087 = vpop.permute.xlu0 %3086
        %3088 = vrot.lane.b32.xlu0 %v2661, 88
        %v3089 = vpop.permute.xlu0 %3088
        %3090 = vrot.lane.b32.xlu0 %v2662, 88
        %v3091 = vpop.permute.xlu0 %3090
        %3092 = vrot.lane.b32.xlu0 %v2663, 88
        %v3093 = vpop.permute.xlu0 %3092
        %3094 = vrot.lane.b32.xlu0 %v2664, 88
        %v3095 = vpop.permute.xlu0 %3094
        %3096 = vrot.lane.b32.xlu0 %v2665, 88
        %v3097 = vpop.permute.xlu0 %3096
        %3106 = vrot.lane.b32.xlu0 %v2658, 20
        %v3107 = vpop.permute.xlu0 %3106
        %3108 = vrot.lane.b32.xlu0 %v2659, 20
        %v3109 = vpop.permute.xlu0 %3108
        %3110 = vrot.lane.b32.xlu0 %v2660, 20
        %v3111 = vpop.permute.xlu0 %3110
        %3112 = vrot.lane.b32.xlu0 %v2661, 20
        %v3113 = vpop.permute.xlu0 %3112
        %3114 = vrot.lane.b32.xlu0 %v2662, 20
        %v3115 = vpop.permute.xlu0 %3114
        %3116 = vrot.lane.b32.xlu0 %v2663, 20
        %v3117 = vpop.permute.xlu0 %3116
        %3118 = vrot.lane.b32.xlu0 %v2664, 20
        %v3119 = vpop.permute.xlu0 %3118
        %3120 = vrot.lane.b32.xlu0 %v2665, 20
        %v3121 = vpop.permute.xlu0 %3120
        %v3130 = vsel %vm1481, %v3083, %v3107
        %v3131 = vsel %vm1481, %v3085, %v3109
        %v3132 = vsel %vm1481, %v3087, %v3111
        %v3133 = vsel %vm1481, %v3089, %v3113
        %v3134 = vsel %vm1481, %v3091, %v3115
        %v3135 = vsel %vm1481, %v3093, %v3117
        %v3136 = vsel %vm1481, %v3095, %v3119
        %v3137 = vsel %vm1481, %v3097, %v3121
        %3138 = vrot.lane.b32.xlu0 %v2098, 108
        %v3139 = vpop.permute.xlu0 %3138
        %3140 = vrot.lane.b32.xlu0 %v2099, 108
        %v3141 = vpop.permute.xlu0 %3140
        %3142 = vrot.lane.b32.xlu0 %v2100, 108
        %v3143 = vpop.permute.xlu0 %3142
        %3144 = vrot.lane.b32.xlu0 %v2101, 108
        %v3145 = vpop.permute.xlu0 %3144
        %3146 = vrot.lane.b32.xlu0 %v2102, 108
        %v3147 = vpop.permute.xlu0 %3146
        %3148 = vrot.lane.b32.xlu0 %v2103, 108
        %v3149 = vpop.permute.xlu0 %3148
        %3150 = vrot.lane.b32.xlu0 %v2104, 108
        %v3151 = vpop.permute.xlu0 %3150
        %3152 = vrot.lane.b32.xlu0 %v2105, 108
        %v3153 = vpop.permute.xlu0 %3152
        %3162 = vrot.lane.b32.xlu0 %v2098, 40
        %v3163 = vpop.permute.xlu0 %3162
        %3164 = vrot.lane.b32.xlu0 %v2099, 40
        %v3165 = vpop.permute.xlu0 %3164
        %3166 = vrot.lane.b32.xlu0 %v2100, 40
        %v3167 = vpop.permute.xlu0 %3166
        %3168 = vrot.lane.b32.xlu0 %v2101, 40
        %v3169 = vpop.permute.xlu0 %3168
        %3170 = vrot.lane.b32.xlu0 %v2102, 40
        %v3171 = vpop.permute.xlu0 %3170
        %3172 = vrot.lane.b32.xlu0 %v2103, 40
        %v3173 = vpop.permute.xlu0 %3172
        %3174 = vrot.lane.b32.xlu0 %v2104, 40
        %v3175 = vpop.permute.xlu0 %3174
        %3176 = vrot.lane.b32.xlu0 %v2105, 40
        %v3177 = vpop.permute.xlu0 %3176
        %v3186 = vsel %vm1424, %v3139, %v3163
        %v3187 = vsel %vm1424, %v3141, %v3165
        %v3188 = vsel %vm1424, %v3143, %v3167
        %v3189 = vsel %vm1424, %v3145, %v3169
        %v3190 = vsel %vm1424, %v3147, %v3171
        %v3191 = vsel %vm1424, %v3149, %v3173
        %v3192 = vsel %vm1424, %v3151, %v3175
        %v3193 = vsel %vm1424, %v3153, %v3177
        %v3194 = vmul.f32 %v3130, %v3186
        %v3195 = vmul.f32 %v3131, %v3187
        %v3196 = vmul.f32 %v3132, %v3188
        %v3197 = vmul.f32 %v3133, %v3189
        %v3198 = vmul.f32 %v3134, %v3190
        %v3199 = vmul.f32 %v3135, %v3191
        %v3200 = vmul.f32 %v3136, %v3192
        %v3201 = vmul.f32 %v3137, %v3193
        %v3202 = vsub.f32 %v3074, %v3194
        %v3203 = vsub.f32 %v3075, %v3195
        %v3204 = vsub.f32 %v3076, %v3196
        %v3205 = vsub.f32 %v3077, %v3197
        %v3206 = vsub.f32 %v3078, %v3198
        %v3207 = vsub.f32 %v3079, %v3199
        %v3208 = vsub.f32 %v3080, %v3200
        %v3209 = vsub.f32 %v3081, %v3201
        %v3210 = vmul.f32 %v1360, %v2538
        %v3211 = vmul.f32 %v1361, %v2539
        %v3212 = vmul.f32 %v1362, %v2540
        %v3213 = vmul.f32 %v1363, %v2541
        %v3214 = vmul.f32 %v1364, %v2542
        %v3215 = vmul.f32 %v1365, %v2543
        %v3216 = vmul.f32 %v1366, %v2544
        %v3217 = vmul.f32 %v1367, %v2545
        %3226 = vrot.lane.b32.xlu0 %v2754, 88
        %v3227 = vpop.permute.xlu0 %3226
        %3228 = vrot.lane.b32.xlu0 %v2755, 88
        %v3229 = vpop.permute.xlu0 %3228
        %3230 = vrot.lane.b32.xlu0 %v2756, 88
        %v3231 = vpop.permute.xlu0 %3230
        %3232 = vrot.lane.b32.xlu0 %v2757, 88
        %v3233 = vpop.permute.xlu0 %3232
        %3234 = vrot.lane.b32.xlu0 %v2758, 88
        %v3235 = vpop.permute.xlu0 %3234
        %3236 = vrot.lane.b32.xlu0 %v2759, 88
        %v3237 = vpop.permute.xlu0 %3236
        %3238 = vrot.lane.b32.xlu0 %v2760, 88
        %v3239 = vpop.permute.xlu0 %3238
        %3240 = vrot.lane.b32.xlu0 %v2761, 88
        %v3241 = vpop.permute.xlu0 %3240
        %3250 = vrot.lane.b32.xlu0 %v2754, 20
        %v3251 = vpop.permute.xlu0 %3250
        %3252 = vrot.lane.b32.xlu0 %v2755, 20
        %v3253 = vpop.permute.xlu0 %3252
        %3254 = vrot.lane.b32.xlu0 %v2756, 20
        %v3255 = vpop.permute.xlu0 %3254
        %3256 = vrot.lane.b32.xlu0 %v2757, 20
        %v3257 = vpop.permute.xlu0 %3256
        %3258 = vrot.lane.b32.xlu0 %v2758, 20
        %v3259 = vpop.permute.xlu0 %3258
        %3260 = vrot.lane.b32.xlu0 %v2759, 20
        %v3261 = vpop.permute.xlu0 %3260
        %3262 = vrot.lane.b32.xlu0 %v2760, 20
        %v3263 = vpop.permute.xlu0 %3262
        %3264 = vrot.lane.b32.xlu0 %v2761, 20
        %v3265 = vpop.permute.xlu0 %3264
        %v3274 = vsel %vm1481, %v3227, %v3251
        %v3275 = vsel %vm1481, %v3229, %v3253
        %v3276 = vsel %vm1481, %v3231, %v3255
        %v3277 = vsel %vm1481, %v3233, %v3257
        %v3278 = vsel %vm1481, %v3235, %v3259
        %v3279 = vsel %vm1481, %v3237, %v3261
        %v3280 = vsel %vm1481, %v3239, %v3263
        %v3281 = vsel %vm1481, %v3241, %v3265
        %v3282 = vmul.f32 %v3210, %v3274
        %v3283 = vmul.f32 %v3211, %v3275
        %v3284 = vmul.f32 %v3212, %v3276
        %v3285 = vmul.f32 %v3213, %v3277
        %v3286 = vmul.f32 %v3214, %v3278
        %v3287 = vmul.f32 %v3215, %v3279
        %v3288 = vmul.f32 %v3216, %v3280
        %v3289 = vmul.f32 %v3217, %v3281
        %v3290 = vand.u32 2147483647, %v3282
        %v3291 = vand.u32 2147483647, %v3283
        %v3292 = vand.u32 2147483647, %v3284
        %v3293 = vand.u32 2147483647, %v3285
        %v3294 = vand.u32 2147483647, %v3286
        %v3295 = vand.u32 2147483647, %v3287
        %v3296 = vand.u32 2147483647, %v3288
        %v3297 = vand.u32 2147483647, %v3289
        %vm3298 = vcmp.lt.f32.partialorder %v3290, 1e-08
        %vm3299 = vcmp.lt.f32.partialorder %v3291, 1e-08
        %vm3300 = vcmp.lt.f32.partialorder %v3292, 1e-08
        %vm3301 = vcmp.lt.f32.partialorder %v3293, 1e-08
        %vm3302 = vcmp.lt.f32.partialorder %v3294, 1e-08
        %vm3303 = vcmp.lt.f32.partialorder %v3295, 1e-08
        %vm3304 = vcmp.lt.f32.partialorder %v3296, 1e-08
        %vm3305 = vcmp.lt.f32.partialorder %v3297, 1e-08
        %v3306 = vsel %vm3298, 1e-08, %v3282
        %v3307 = vsel %vm3299, 1e-08, %v3283
        %v3308 = vsel %vm3300, 1e-08, %v3284
        %v3309 = vsel %vm3301, 1e-08, %v3285
        %v3310 = vsel %vm3302, 1e-08, %v3286
        %v3311 = vsel %vm3303, 1e-08, %v3287
        %v3312 = vsel %vm3304, 1e-08, %v3288
        %v3313 = vsel %vm3305, 1e-08, %v3289
        %v3314 = vrcp.pop %v3306
        %v3315 = vmul.f32 %v3202, %v3314
        %v3316 = vrcp.pop %v3307
        %v3317 = vmul.f32 %v3203, %v3316
        %v3318 = vrcp.pop %v3308
        %v3319 = vmul.f32 %v3204, %v3318
        %v3320 = vrcp.pop %v3309
        %v3321 = vmul.f32 %v3205, %v3320
        %v3322 = vrcp.pop %v3310
        %v3323 = vmul.f32 %v3206, %v3322
        %v3324 = vrcp.pop %v3311
        %v3325 = vmul.f32 %v3207, %v3324
        %v3326 = vrcp.pop %v3312
        %v3327 = vmul.f32 %v3208, %v3326
        %v3328 = vrcp.pop %v3313
        %v3329 = vmul.f32 %v3209, %v3328
        %v3330 = vsel %vm2930, %v3315, 0.0
        %v3331 = vsel %vm2931, %v3317, 0.0
        %v3332 = vsel %vm2932, %v3319, 0.0
        %v3333 = vsel %vm2933, %v3321, 0.0
        %v3334 = vsel %vm2934, %v3323, 0.0
        %v3335 = vsel %vm2935, %v3325, 0.0
        %v3336 = vsel %vm2936, %v3327, 0.0
        %v3337 = vsel %vm2937, %v3329, 0.0
        %v3338 = vld [vmem:[%s7] sm:$0xff]
        %v3339 = vld [vmem:[%s7 + $0x8] sm:$0xff]
        %v3340 = vld [vmem:[%s7 + $0x10] sm:$0xff]
        %v3341 = vld [vmem:[%s7 + $0x18] sm:$0xff]
        %v3342 = vld [vmem:[%s7 + $0x20] sm:$0xff]
        %v3343 = vld [vmem:[%s7 + $0x28] sm:$0xff]
        %v3344 = vld [vmem:[%s7 + $0x30] sm:$0xff]
        %v3345 = vld [vmem:[%s7 + $0x38] sm:$0xf]
        %vm3346 = vcmask 490496
        %v3348 = vsel %vm3346, %v3330, 0
        %v3351 = vsel %vm3346, %v3331, 0
        %v3354 = vsel %vm3346, %v3332, 0
        %v3357 = vsel %vm3346, %v3333, 0
        %v3360 = vsel %vm3346, %v3334, 0
        %v3363 = vsel %vm3346, %v3335, 0
        %v3366 = vsel %vm3346, %v3336, 0
        %v3369 = vsel %vm3346, %v3337, 0
        %v3372 = vsel %vm1170, %v3345, 0
        %3374 = vmatprep.subr.mxu0 0.0
        %3375 = vmatpush1.msra.mxu0 0.0
        %3376 = vmatprep.subr.mxu0 0.0
        %3377 = vmatpush1.msra.mxu0 0.0
        %3378 = vmatprep.subr.mxu0 0.0
        %3379 = vmatpush1.msra.mxu0 0.0
        %3380 = vmatprep.subr.mxu0 0.0
        %3381 = vmatpush1.msra.mxu0 0.0
        %3382 = vmatprep.subr.mxu0 0.0
        %3383 = vmatpush1.msra.mxu0 0.0
        %3384 = vmatprep.subr.mxu0 0.0
        %3385 = vmatpush1.msra.mxu0 0.0
        %3386 = vmatprep.subr.mxu0 0.0
        %3387 = vmatpush1.msra.mxu0 0.0
        %3388 = vmatprep.subr.mxu0 0.0
        %3389 = vmatpush1.msra.mxu0 0.0
        %3390 = vmatprep.subr.mxu0 0.0
        %3391 = vmatpush1.msra.mxu0 %v3372
        %3392 = vmatprep.subr.mxu0 0.0
        %3393 = vmatpush1.msra.mxu0 %v3344
        %3394 = vmatprep.subr.mxu0 0.0
        %3395 = vmatpush1.msra.mxu0 %v3343
        %3396 = vmatprep.subr.mxu0 0.0
        %3397 = vmatpush1.msra.mxu0 %v3342
        %3398 = vmatprep.subr.mxu0 0.0
        %3399 = vmatpush1.msra.mxu0 %v3341
        %3400 = vmatprep.subr.mxu0 0.0
        %3401 = vmatpush1.msra.mxu0 %v3340
        %3402 = vmatprep.subr.mxu0 0.0
        %3403 = vmatpush1.msra.mxu0 %v3339
        %3404 = vmatprep.subr.mxu0 0.0
        %3405 = vmatpush1.msra.mxu0 %v3338
        %3406 = vmatprep.subr.mxu0 0.0
        %3407 = vmatpush2.msra.mxu0 0.0
        %3408 = vmatprep.subr.mxu0 0.0
        %3409 = vmatpush2.msra.mxu0 0.0
        %3410 = vmatprep.subr.mxu0 0.0
        %3411 = vmatpush2.msra.mxu0 0.0
        %3412 = vmatprep.subr.mxu0 0.0
        %3413 = vmatpush2.msra.mxu0 0.0
        %3414 = vmatprep.subr.mxu0 0.0
        %3415 = vmatpush2.msra.mxu0 0.0
        %3416 = vmatprep.subr.mxu0 0.0
        %3417 = vmatpush2.msra.mxu0 0.0
        %3418 = vmatprep.subr.mxu0 0.0
        %3419 = vmatpush2.msra.mxu0 0.0
        %3420 = vmatprep.subr.mxu0 0.0
        %3421 = vmatpush2.msra.mxu0 0.0
        %3422 = vmatprep.subr.mxu0 0.0
        %3423 = vmatpush2.msra.mxu0 0.0
        %3424 = vmatprep.subr.mxu0 0.0
        %3425 = vmatpush2.msra.mxu0 0.0
        %3426 = vmatprep.subr.mxu0 0.0
        %3427 = vmatpush2.msra.mxu0 0.0
        %3428 = vmatprep.subr.mxu0 0.0
        %3429 = vmatpush2.msra.mxu0 0.0
        %3430 = vmatprep.subr.mxu0 0.0
        %3431 = vmatpush2.msra.mxu0 0.0
        %3432 = vmatprep.subr.mxu0 0.0
        %3433 = vmatpush2.msra.mxu0 0.0
        %3434 = vmatprep.subr.mxu0 0.0
        %3435 = vmatpush2.msra.mxu0 0.0
        %3436 = vmatprep.subr.mxu0 0.0
        %3437 = vmatpush2.msra.mxu0 0.0
        %3438 = vmatprep.mubr.f32.mxu0 0.0
        %3439 = vmatmul.mubr.f32.gmra.mxu0 %v3348
        %v3440 = vpop.f32.mrf.mxu0
        %v3441 = vadd.f32 0.0, %v3440
        %v3442 = vpop.f32.mrf.mxu0
        %3443 = vmatprep.mubr.f32.mxu0 0.0
        %3444 = vmatmul.mubr.f32.gmra.mxu0 %v3351
        %v3445 = vpop.f32.mrf.mxu0
        %v3446 = vadd.f32 0.0, %v3445
        %v3447 = vpop.f32.mrf.mxu0
        %3448 = vmatprep.mubr.f32.mxu0 0.0
        %3449 = vmatmul.mubr.f32.gmra.mxu0 %v3354
        %v3450 = vpop.f32.mrf.mxu0
        %v3451 = vadd.f32 0.0, %v3450
        %v3452 = vpop.f32.mrf.mxu0
        %3453 = vmatprep.mubr.f32.mxu0 0.0
        %3454 = vmatmul.mubr.f32.gmra.mxu0 %v3357
        %v3455 = vpop.f32.mrf.mxu0
        %v3456 = vadd.f32 0.0, %v3455
        %v3457 = vpop.f32.mrf.mxu0
        %3458 = vmatprep.mubr.f32.mxu0 0.0
        %3459 = vmatmul.mubr.f32.gmra.mxu0 %v3360
        %v3460 = vpop.f32.mrf.mxu0
        %v3461 = vadd.f32 0.0, %v3460
        %v3462 = vpop.f32.mrf.mxu0
        %3463 = vmatprep.mubr.f32.mxu0 0.0
        %3464 = vmatmul.mubr.f32.gmra.mxu0 %v3363
        %v3465 = vpop.f32.mrf.mxu0
        %v3466 = vadd.f32 0.0, %v3465
        %v3467 = vpop.f32.mrf.mxu0
        %3468 = vmatprep.mubr.f32.mxu0 0.0
        %3469 = vmatmul.mubr.f32.gmra.mxu0 %v3366
        %v3470 = vpop.f32.mrf.mxu0
        %v3471 = vadd.f32 0.0, %v3470
        %v3472 = vpop.f32.mrf.mxu0
        %3473 = vmatprep.mubr.f32.mxu0 0.0
        %3474 = vmatmul.mubr.f32.gmra.mxu0 %v3369
        %v3475 = vpop.f32.mrf.mxu0
        %v3476 = vadd.f32 0.0, %v3475
        %v3477 = vpop.f32.mrf.mxu0
        %3478 = vdwg.mxu0
        %v3479 = vsel %vm983, %v3441, 0.0
        %3480 = vadd.xlane.f32.xlu0 %v3479
        %v3481 = vpop.xlane.xlu0 %3480
        %v3482 = vsel %vm983, %v3446, 0.0
        %3483 = vadd.xlane.f32.xlu0 %v3482
        %v3484 = vpop.xlane.xlu0 %3483
        %v3485 = vsel %vm983, %v3451, 0.0
        %3486 = vadd.xlane.f32.xlu0 %v3485
        %v3487 = vpop.xlane.xlu0 %3486
        %v3488 = vsel %vm983, %v3456, 0.0
        %3489 = vadd.xlane.f32.xlu0 %v3488
        %v3490 = vpop.xlane.xlu0 %3489
        %v3491 = vsel %vm983, %v3461, 0.0
        %3492 = vadd.xlane.f32.xlu0 %v3491
        %v3493 = vpop.xlane.xlu0 %3492
        %v3494 = vsel %vm983, %v3466, 0.0
        %3495 = vadd.xlane.f32.xlu0 %v3494
        %v3496 = vpop.xlane.xlu0 %3495
        %v3497 = vsel %vm983, %v3471, 0.0
        %3498 = vadd.xlane.f32.xlu0 %v3497
        %v3499 = vpop.xlane.xlu0 %3498
        %v3500 = vsel %vm983, %v3476, 0.0
        %3501 = vadd.xlane.f32.xlu0 %v3500
        %v3502 = vpop.xlane.xlu0 %3501
        %v3503 = vand.u32 2147483647, %v3481
        %v3504 = vand.u32 2147483647, %v3484
        %v3505 = vand.u32 2147483647, %v3487
        %v3506 = vand.u32 2147483647, %v3490
        %v3507 = vand.u32 2147483647, %v3493
        %v3508 = vand.u32 2147483647, %v3496
        %v3509 = vand.u32 2147483647, %v3499
        %v3510 = vand.u32 2147483647, %v3502
        %vm3511 = vcmp.lt.f32.partialorder %v3503, 1e-08
        %vm3512 = vcmp.lt.f32.partialorder %v3504, 1e-08
        %vm3513 = vcmp.lt.f32.partialorder %v3505, 1e-08
        %vm3514 = vcmp.lt.f32.partialorder %v3506, 1e-08
        %vm3515 = vcmp.lt.f32.partialorder %v3507, 1e-08
        %vm3516 = vcmp.lt.f32.partialorder %v3508, 1e-08
        %vm3517 = vcmp.lt.f32.partialorder %v3509, 1e-08
        %vm3518 = vcmp.lt.f32.partialorder %v3510, 1e-08
        %v3519 = vsel %vm3511, 1e-08, %v3481
        %v3520 = vsel %vm3512, 1e-08, %v3484
        %v3521 = vsel %vm3513, 1e-08, %v3487
        %v3522 = vsel %vm3514, 1e-08, %v3490
        %v3523 = vsel %vm3515, 1e-08, %v3493
        %v3524 = vsel %vm3516, 1e-08, %v3496
        %v3525 = vsel %vm3517, 1e-08, %v3499
        %v3526 = vsel %vm3518, 1e-08, %v3502
        %v3527 = vrcp.pop %v3519
        %v3528 = vrcp.pop %v3520
        %v3529 = vrcp.pop %v3521
        %v3530 = vrcp.pop %v3522
        %v3531 = vrcp.pop %v3523
        %v3532 = vrcp.pop %v3524
        %v3533 = vrcp.pop %v3525
        %v3534 = vrcp.pop %v3526
        %v3535 = vmul.f32 %v3441, %v3527
        %v3536 = vmul.f32 %v3446, %v3528
        %v3537 = vmul.f32 %v3451, %v3529
        %v3538 = vmul.f32 %v3456, %v3530
        %v3539 = vmul.f32 %v3461, %v3531
        %v3540 = vmul.f32 %v3466, %v3532
        %v3541 = vmul.f32 %v3471, %v3533
        %v3542 = vmul.f32 %v3476, %v3534
        %v3543 = vlaneseq
        %v3544 = vshrl.u32 %v3543, 7
        %v3545 = vsub.s32 0, %v3544
        %v3546 = vrot.slane %v1165, %v3545
        %v3547 = vmul.f32 %v3535, %v3546
        %v3548 = vmul.f32 %v3536, %v3546
        %v3549 = vmul.f32 %v3537, %v3546
        %v3550 = vmul.f32 %v3538, %v3546
        %v3551 = vmul.f32 %v3539, %v3546
        %v3552 = vmul.f32 %v3540, %v3546
        %v3553 = vmul.f32 %v3541, %v3546
        %v3554 = vmul.f32 %v3542, %v3546
        %v3555 = vsel %vm983, %v3547, 0.0
        %3556 = vadd.xlane.f32.xlu0 %v3555
        %v3557 = vpop.xlane.xlu0 %3556
        %v3558 = vsel %vm983, %v3548, 0.0
        %3559 = vadd.xlane.f32.xlu0 %v3558
        %v3560 = vpop.xlane.xlu0 %3559
        %v3561 = vsel %vm983, %v3549, 0.0
        %3562 = vadd.xlane.f32.xlu0 %v3561
        %v3563 = vpop.xlane.xlu0 %3562
        %v3564 = vsel %vm983, %v3550, 0.0
        %3565 = vadd.xlane.f32.xlu0 %v3564
        %v3566 = vpop.xlane.xlu0 %3565
        %v3567 = vsel %vm983, %v3551, 0.0
        %3568 = vadd.xlane.f32.xlu0 %v3567
        %v3569 = vpop.xlane.xlu0 %3568
        %v3570 = vsel %vm983, %v3552, 0.0
        %3571 = vadd.xlane.f32.xlu0 %v3570
        %v3572 = vpop.xlane.xlu0 %3571
        %v3573 = vsel %vm983, %v3553, 0.0
        %3574 = vadd.xlane.f32.xlu0 %v3573
        %v3575 = vpop.xlane.xlu0 %3574
        %v3576 = vsel %vm983, %v3554, 0.0
        %3577 = vadd.xlane.f32.xlu0 %v3576
        %v3578 = vpop.xlane.xlu0 %3577
        %v3579 = vlaneseq
        %v3580 = vshrl.u32 %v3579, 7
        %v3581 = vsub.s32 1, %v3580
        %v3582 = vrot.slane %v1165, %v3581
        %v3583 = vmul.f32 %v3535, %v3582
        %v3584 = vmul.f32 %v3536, %v3582
        %v3585 = vmul.f32 %v3537, %v3582
        %v3586 = vmul.f32 %v3538, %v3582
        %v3587 = vmul.f32 %v3539, %v3582
        %v3588 = vmul.f32 %v3540, %v3582
        %v3589 = vmul.f32 %v3541, %v3582
        %v3590 = vmul.f32 %v3542, %v3582
        %v3591 = vsel %vm983, %v3583, 0.0
        %3592 = vadd.xlane.f32.xlu0 %v3591
        %v3593 = vpop.xlane.xlu0 %3592
        %v3594 = vsel %vm983, %v3584, 0.0
        %3595 = vadd.xlane.f32.xlu0 %v3594
        %v3596 = vpop.xlane.xlu0 %3595
        %v3597 = vsel %vm983, %v3585, 0.0
        %3598 = vadd.xlane.f32.xlu0 %v3597
        %v3599 = vpop.xlane.xlu0 %3598
        %v3600 = vsel %vm983, %v3586, 0.0
        %3601 = vadd.xlane.f32.xlu0 %v3600
        %v3602 = vpop.xlane.xlu0 %3601
        %v3603 = vsel %vm983, %v3587, 0.0
        %3604 = vadd.xlane.f32.xlu0 %v3603
        %v3605 = vpop.xlane.xlu0 %3604
        %v3606 = vsel %vm983, %v3588, 0.0
        %3607 = vadd.xlane.f32.xlu0 %v3606
        %v3608 = vpop.xlane.xlu0 %3607
        %v3609 = vsel %vm983, %v3589, 0.0
        %3610 = vadd.xlane.f32.xlu0 %v3609
        %v3611 = vpop.xlane.xlu0 %3610
        %v3612 = vsel %vm983, %v3590, 0.0
        %3613 = vadd.xlane.f32.xlu0 %v3612
        %v3614 = vpop.xlane.xlu0 %3613
        %v3615 = vlaneseq
        %v3616 = vshrl.u32 %v3615, 7
        %v3617 = vsub.s32 2, %v3616
        %v3618 = vrot.slane %v1165, %v3617
        %v3619 = vmul.f32 %v3535, %v3618
        %v3620 = vmul.f32 %v3536, %v3618
        %v3621 = vmul.f32 %v3537, %v3618
        %v3622 = vmul.f32 %v3538, %v3618
        %v3623 = vmul.f32 %v3539, %v3618
        %v3624 = vmul.f32 %v3540, %v3618
        %v3625 = vmul.f32 %v3541, %v3618
        %v3626 = vmul.f32 %v3542, %v3618
        %v3627 = vsel %vm983, %v3619, 0.0
        %3628 = vadd.xlane.f32.xlu0 %v3627
        %v3629 = vpop.xlane.xlu0 %3628
        %v3630 = vsel %vm983, %v3620, 0.0
        %3631 = vadd.xlane.f32.xlu0 %v3630
        %v3632 = vpop.xlane.xlu0 %3631
        %v3633 = vsel %vm983, %v3621, 0.0
        %3634 = vadd.xlane.f32.xlu0 %v3633
        %v3635 = vpop.xlane.xlu0 %3634
        %v3636 = vsel %vm983, %v3622, 0.0
        %3637 = vadd.xlane.f32.xlu0 %v3636
        %v3638 = vpop.xlane.xlu0 %3637
        %v3639 = vsel %vm983, %v3623, 0.0
        %3640 = vadd.xlane.f32.xlu0 %v3639
        %v3641 = vpop.xlane.xlu0 %3640
        %v3642 = vsel %vm983, %v3624, 0.0
        %3643 = vadd.xlane.f32.xlu0 %v3642
        %v3644 = vpop.xlane.xlu0 %3643
        %v3645 = vsel %vm983, %v3625, 0.0
        %3646 = vadd.xlane.f32.xlu0 %v3645
        %v3647 = vpop.xlane.xlu0 %3646
        %v3648 = vsel %vm983, %v3626, 0.0
        %3649 = vadd.xlane.f32.xlu0 %v3648
        %v3650 = vpop.xlane.xlu0 %3649
        %vm3651 = vcmask 7168
        %v3652 = vsel %vm3651, %v3557, %v3593
        %v3653 = vsel %vm3651, %v3560, %v3596
        %v3654 = vsel %vm3651, %v3563, %v3599
        %v3655 = vsel %vm3651, %v3566, %v3602
        %v3656 = vsel %vm3651, %v3569, %v3605
        %v3657 = vsel %vm3651, %v3572, %v3608
        %v3658 = vsel %vm3651, %v3575, %v3611
        %v3659 = vsel %vm3651, %v3578, %v3614
        %vm3660 = vcmask 15360
        %v3661 = vsel %vm3660, %v3652, %v3629
        %v3662 = vsel %vm3660, %v3653, %v3632
        %v3663 = vsel %vm3660, %v3654, %v3635
        %v3664 = vsel %vm3660, %v3655, %v3638
        %v3665 = vsel %vm3660, %v3656, %v3641
        %v3666 = vsel %vm3660, %v3657, %v3644
        %v3667 = vsel %vm3660, %v3658, %v3647
        %v3668 = vsel %vm3660, %v3659, %v3650
        %3669 = vst.msk [vmem:[%s493] sm:$0x7] %vm715, %v915
        %3670 = vst.msk [vmem:[%s497] sm:$0x7] %vm715, %v1165
        %3671 = vst.msk [vmem:[%s458] sm:$0xff] %vm983, %v1088
        %3672 = vst.msk [vmem:[%s502] sm:$0xff] %vm983, %v3535
        %3673 = vst.msk [vmem:[%s502 + $0x8] sm:$0xff] %vm983, %v3536
        %3674 = vst.msk [vmem:[%s502 + $0x10] sm:$0xff] %vm983, %v3537
        %3675 = vst.msk [vmem:[%s502 + $0x18] sm:$0xff] %vm983, %v3538
        %3676 = vst.msk [vmem:[%s502 + $0x20] sm:$0xff] %vm983, %v3539
        %3677 = vst.msk [vmem:[%s502 + $0x28] sm:$0xff] %vm983, %v3540
        %3678 = vst.msk [vmem:[%s502 + $0x30] sm:$0xff] %vm983, %v3541
        %3679 = vst.msk [vmem:[%s502 + $0x38] sm:$0xff] %vm983, %v3542
        %3680 = vst.msk [vmem:[%s507] sm:$0xff] %vm525, %v3661
        %3681 = vst.msk [vmem:[%s507 + $0x8] sm:$0xff] %vm525, %v3662
        %3682 = vst.msk [vmem:[%s507 + $0x10] sm:$0xff] %vm525, %v3663
        %3683 = vst.msk [vmem:[%s507 + $0x18] sm:$0xff] %vm525, %v3664
        %3684 = vst.msk [vmem:[%s507 + $0x20] sm:$0xff] %vm525, %v3665
        %3685 = vst.msk [vmem:[%s507 + $0x28] sm:$0xff] %vm525, %v3666
        %3686 = vst.msk [vmem:[%s507 + $0x30] sm:$0xff] %vm525, %v3667
        %3687 = vst.msk [vmem:[%s507 + $0x38] sm:$0xff] %vm525, %v3668
        %p3688 = scmp.lt.s32.totalorder %s27, 1
        %s3689 = scalar_select %p3688, %s27, 1
        %s3690 = smul.addr %s3689, 4
        %s3691 = scalar_lea.vmem %s8, %s3690
        %p3692 = scmp.lt.s32.totalorder %s27, 1
        %s3693 = scalar_select %p3692, %s27, 1
        %s3694 = smul.addr %s3693, 4
        %s3695 = scalar_lea.vmem %s9, %s3694
        %s3696 = sand.u32 %s275, 1
        %s3697 = scalar_lea.sflag [#allocation3], %s3696
        %s3698 = sand.u32 %s275, 1
        %s3699 = smul.addr %s3698, 8
        %s3700 = scalar_lea.vmem [#allocation2], %s3699
        %p3701 = scmp.lt.s32.totalorder %s27, 1
        %s3702 = scalar_select %p3701, %s27, 1
        %s3703 = smul.addr %s3702, 8
        %s3704 = smul.addr %s3703, 8
        %s3705 = scalar_lea.vmem %s11, %s3704
        %p3706 = scmp.lt.s32.totalorder %s27, 1
        %s3707 = scalar_select %p3706, %s27, 1
        %s3708 = smul.addr %s3707, 8
        %s3709 = smul.addr %s3708, 8
        %s3710 = scalar_lea.vmem %s12, %s3709
        // Predicated region
        $region60: #{cage_skinning_forward.3} parent=51 // pred_check
          %p3711 = pneg %p233
        $region61: #{cage_skinning_forward.3} parent=51 // pred_check_branch
          %3713 = sbr.rel (%p3711) target = $region63
        $region62: #{cage_skinning_forward.3} parent=51 // pred_region
          _
        $region63: #{cage_skinning_forward.3} parent=51 // pred_fallthru
          _
        // Predicated region
        $region64: #{cage_skinning_forward.3} parent=51 // pred_check
          %p3714 = pneg %p259
        $region65: #{cage_skinning_forward.3} parent=51 // pred_check_branch
          %3716 = sbr.rel (%p3714) target = $region67
        $region66: #{cage_skinning_forward.3} parent=51 // pred_region
          _
        $region67: #{cage_skinning_forward.3} parent=51 // pred_fallthru
          _
        // Predicated region
        $region68: #{cage_skinning_forward.3} parent=51 // pred_check
          %p3717 = pneg %p285
        $region69: #{cage_skinning_forward.3} parent=51 // pred_check_branch
          %3719 = sbr.rel (%p3717) target = $region71
        $region70: #{cage_skinning_forward.3} parent=51 // pred_region
          %s3721 = ssub.s32 128, 128
          %3722 = vsyncadd %s3697, %s3721
          %s3723 = smul.addr %s27, 128
          %s3724 = scalar_lea.hbm %s10, %s3723
          %s3726 = sshll.u32 %s3700, 4
          %s3727 = int_to_ptr.vmem [resolvable:$true] %s3726
          %3729 = dma.vmem_to_hbm [thread:$0]  %s3727, 128, %s3724, %s3697
        $region71: #{cage_skinning_forward.3} parent=51 // pred_fallthru
          _
        // Predicated region
        $region72: #{cage_skinning_forward.3} parent=51 // pred_check
          %p3730 = pneg %p311
        $region73: #{cage_skinning_forward.3} parent=51 // pred_check_branch
          %3732 = sbr.rel (%p3730) target = $region75
        $region74: #{cage_skinning_forward.3} parent=51 // pred_region
          _
        $region75: #{cage_skinning_forward.3} parent=51 // pred_fallthru
          _
        // Predicated region
        $region76: #{cage_skinning_forward.3} parent=51 // pred_check
          %p3733 = pneg %p337
        $region77: #{cage_skinning_forward.3} parent=51 // pred_check_branch
          %3735 = sbr.rel (%p3733) target = $region79
        $region78: #{cage_skinning_forward.3} parent=51 // pred_region
          _
        $region79: #{cage_skinning_forward.3} parent=51 // pred_fallthru
          _
      $region52: #{cage_skinning_forward.3} parent=5 // pred_fallthru
        _
      %p3736 = scmp.le.s32.totalorder 2, %s22
      // Predicated region
      $region80: #{cage_skinning_forward.3} parent=5 // pred_check
        %p3737 = pneg %p3736
      $region81: #{cage_skinning_forward.3} parent=5 // pred_check_branch
        %3739 = sbr.rel (%p3737) target = $region83
      $region82: #{cage_skinning_forward.3} parent=5 // pred_region
        %s3740 = ssub.s32 %s22, 2
        // Predicated region
        $region84: #{cage_skinning_forward.3} parent=82 // pred_check
          %p3741 = pneg %p239
        $region85: #{cage_skinning_forward.3} parent=82 // pred_check_branch
          %3743 = sbr.rel (%p3741) target = $region87
        $region86: #{cage_skinning_forward.3} parent=82 // pred_region
          %p3744 = scmp.lt.s32.totalorder %s28, 1
          %s3745 = scalar_select %p3744, %s28, 1
          %s3746 = smul.addr %s3745, 4
          %s3747 = scalar_lea.vmem %s8, %s3746
        $region87: #{cage_skinning_forward.3} parent=82 // pred_fallthru
          _
        // Predicated region
        $region88: #{cage_skinning_forward.3} parent=82 // pred_check
          %p3748 = pneg %p265
        $region89: #{cage_skinning_forward.3} parent=82 // pred_check_branch
          %3750 = sbr.rel (%p3748) target = $region91
        $region90: #{cage_skinning_forward.3} parent=82 // pred_region
          %p3751 = scmp.lt.s32.totalorder %s28, 1
          %s3752 = scalar_select %p3751, %s28, 1
          %s3753 = smul.addr %s3752, 4
          %s3754 = scalar_lea.vmem %s9, %s3753
        $region91: #{cage_skinning_forward.3} parent=82 // pred_fallthru
          _
        // Predicated region
        $region92: #{cage_skinning_forward.3} parent=82 // pred_check
          %p3755 = pneg %p291
        $region93: #{cage_skinning_forward.3} parent=82 // pred_check_branch
          %3757 = sbr.rel (%p3755) target = $region95
        $region94: #{cage_skinning_forward.3} parent=82 // pred_region
          %s3758 = sand.u32 %s276, 1
          %s3759 = scalar_lea.sflag [#allocation3], %s3758
          %s3760 = sand.u32 %s276, 1
          %s3761 = smul.addr %s3760, 8
          %s3762 = scalar_lea.vmem [#allocation2], %s3761
          %3763 = dma.done %s3759, 128
        $region95: #{cage_skinning_forward.3} parent=82 // pred_fallthru
          _
        // Predicated region
        $region96: #{cage_skinning_forward.3} parent=82 // pred_check
          %p3764 = pneg %p317
        $region97: #{cage_skinning_forward.3} parent=82 // pred_check_branch
          %3766 = sbr.rel (%p3764) target = $region99
        $region98: #{cage_skinning_forward.3} parent=82 // pred_region
          %p3767 = scmp.lt.s32.totalorder %s28, 1
          %s3768 = scalar_select %p3767, %s28, 1
          %s3769 = smul.addr %s3768, 8
          %s3770 = smul.addr %s3769, 8
          %s3771 = scalar_lea.vmem %s11, %s3770
        $region99: #{cage_skinning_forward.3} parent=82 // pred_fallthru
          _
        // Predicated region
        $region100: #{cage_skinning_forward.3} parent=82 // pred_check
          %p3772 = pneg %p343
        $region101: #{cage_skinning_forward.3} parent=82 // pred_check_branch
          %3774 = sbr.rel (%p3772) target = $region103
        $region102: #{cage_skinning_forward.3} parent=82 // pred_region
          %p3775 = scmp.lt.s32.totalorder %s28, 1
          %s3776 = scalar_select %p3775, %s28, 1
          %s3777 = smul.addr %s3776, 8
          %s3778 = smul.addr %s3777, 8
          %s3779 = scalar_lea.vmem %s12, %s3778
        $region103: #{cage_skinning_forward.3} parent=82 // pred_fallthru
          _
      $region83: #{cage_skinning_forward.3} parent=5 // pred_fallthru
        _
    $region6: #{cage_skinning_forward.3} parent=1 // loop_footer
      %s26 = sadd.s32 1, %s22
    $region7: #{cage_skinning_forward.3} parent=1 // loop_footer_branch
      %21 = sbr.rel target = $region3
    $region8: #{cage_skinning_forward.3} parent=1 // loop_exit
      _
    %3780 = vsyncpa [#allocation3], 1
    %s3781 = scalar_lea.sflag [#allocation3], 1
    %3782 = vsyncpa %s3781, 1

</llo_original>
